<compile_context>
chip_gen: v5e
topology: v5e:2x2
jax: 0.10.0
libtpu: 0.0.40
codegen_flags: <defaults>
</compile_context>

<pallas_src>
import math

import jax
import jax.numpy as jnp
from jax.experimental import pallas as pl
from jax.experimental.pallas import tpu as pltpu

_LN_EPS = 1e-5
_NEG_INF = -1e30   # finite "-inf": masked softmax rows can never produce NaN


# --------------------------------------------------------------------------
# In-kernel building blocks (pure value math on VMEM-resident data)
# --------------------------------------------------------------------------

def _layernorm(z, g, b):
    """LayerNorm over the last axis (eps=1e-5, like nn.LayerNorm), f32 stats."""
    mean = jnp.mean(z, axis=-1, keepdims=True)
    c = z - mean
    var = jnp.mean(c * c, axis=-1, keepdims=True)
    return c * jax.lax.rsqrt(var + _LN_EPS) * g + b


def _softmax_rows(s):
    s = s - jnp.max(s, axis=-1, keepdims=True)
    p = jnp.exp(s)
    return p * pl.reciprocal(jnp.sum(p, axis=-1, keepdims=True), approx=True)


def _attend_and_project(q, k, v, mask, wo, bo, nhead):
    """Per-head scores/softmax/AV; head-concat + output projection folded into a
    per-head accumulation: out += (p_h @ v_h) @ Wo[h*hd:(h+1)*hd, :]."""
    L, E = q.shape
    hd = E // nhead
    out = jnp.zeros((L, E), jnp.float32)
    for h in range(nhead):
        lo, hi = h * hd, (h + 1) * hd
        # q_h @ k_h^T without an explicit transpose (contract last dims).
        s = jax.lax.dot_general(q[:, lo:hi], k[:, lo:hi],
                                (((1,), (1,)), ((), ())),
                                preferred_element_type=jnp.float32)
        if mask is not None:
            s = s + mask
        p = _softmax_rows(s)
        o_h = jnp.dot(p, v[:, lo:hi], preferred_element_type=jnp.float32)
        out = out + jnp.dot(o_h, wo[lo:hi, :], preferred_element_type=jnp.float32)
    return out + bo


def _mha_self(x, mask, wqkv, bqkv, wo, bo, nhead):
    """Self-attention: one fused (L,E)@(E,3E) projection (lane width 3E)."""
    E = x.shape[-1]
    qkv = jnp.dot(x, wqkv, preferred_element_type=jnp.float32) + bqkv   # (L, 3E)
    # 1/sqrt(hd) query scale is folded into Wq / bq at init time.
    return _attend_and_project(qkv[:, :E], qkv[:, E:2 * E], qkv[:, 2 * E:],
                               mask, wo, bo, nhead)


def _mha_cross(x, mem, wq, wkv, bqkv, wo, bo, nhead):
    """Cross-attention: q from x, fused (S,E)@(E,2E) K/V projection from memory."""
    E = x.shape[-1]
    q = jnp.dot(x, wq, preferred_element_type=jnp.float32) + bqkv[:, :E]
    kv = jnp.dot(mem, wkv, preferred_element_type=jnp.float32) + bqkv[:, E:]
    return _attend_and_project(q, kv[:, :E], kv[:, E:], None, wo, bo, nhead)


def _ffn(x, w1, b1, w2, b2):
    """FFN with bf16 weights, f32 accumulation; ReLU / bias adds in f32."""
    hid = jnp.dot(x.astype(w1.dtype), w1, preferred_element_type=jnp.float32) + b1
    hid = jnp.maximum(hid, 0.0)
    return jnp.dot(hid.astype(w2.dtype), w2, preferred_element_type=jnp.float32) + b2


# --------------------------------------------------------------------------
# Fully fused transformer kernel (one grid point = one batch element)
# --------------------------------------------------------------------------

def _make_transformer_kernel(nhead, n_enc, n_dec):
    def kernel(x_ref, mask_ref,
               e_wqkv, e_wo, e_w1, e_w2, e_bqkv, e_b1, e_vec,
               ds_wqkv, ds_wo, dc_wq, dc_wkv, dc_wo, d_w1, d_w2,
               ds_bqkv, dc_bqkv, d_b1, d_vec,
               fin_vec, out_w, out_b,
               o_ref):
        x = x_ref[0]                       # (S, E)  current batch element
        mask = mask_ref[...]               # (S, S)  finite additive causal mask

        # ---------------- encoder stack (post-norm, ReLU) ----------------
        h = x
        for l in range(n_enc):
            vec = e_vec[l]                 # rows: bo, ln1g, ln1b, b2, ln2g, ln2b
            a = _mha_self(h, mask, e_wqkv[l], e_bqkv[l], e_wo[l], vec[0:1], nhead)
            h = _layernorm(h + a, vec[1:2], vec[2:3])
            f = _ffn(h, e_w1[l], e_b1[l], e_w2[l], vec[3:4])
            h = _layernorm(h + f, vec[4:5], vec[5:6])
        fv = fin_vec[...]                  # rows: enc_g, enc_b, dec_g, dec_b
        mem = _layernorm(h, fv[0:1], fv[1:2])          # final encoder LayerNorm

        # ---------------- decoder stack ----------------
        d = x                              # tgt == src in this model's forward
        for l in range(n_dec):
            vec = d_vec[l]     # rows: s_bo, ln1g, ln1b, c_bo, ln2g, ln2b, b2, ln3g, ln3b
            a = _mha_self(d, mask, ds_wqkv[l], ds_bqkv[l], ds_wo[l], vec[0:1], nhead)
            d = _layernorm(d + a, vec[1:2], vec[2:3])
            c = _mha_cross(d, mem, dc_wq[l], dc_wkv[l], dc_bqkv[l], dc_wo[l],
                           vec[3:4], nhead)
            d = _layernorm(d + c, vec[4:5], vec[5:6])
            f = _ffn(d, d_w1[l], d_b1[l], d_w2[l], vec[6:7])
            d = _layernorm(d + f, vec[7:8], vec[8:9])

        z = _layernorm(d, fv[2:3], fv[3:4])            # final decoder LayerNorm
        # vocab projection, lane-dense (ntoken padded to a multiple of 128)
        o_ref[0] = (jnp.dot(z, out_w[...], preferred_element_type=jnp.float32)
                    + out_b[...])
    return kernel


# --------------------------------------------------------------------------
# Forward wrapper (embedding gather / positional encoding in plain JAX)
# --------------------------------------------------------------------------

def make_forward(ninp, nhead, ntoken, n_enc, n_dec):
    def forward(params, src, src_mask):
        S, N = src.shape
        E = ninp
        # embedding lookup (gather) + sqrt(E) scale + positional encoding.
        # TODO(synk): gather stays in plain JAX; no useful Pallas form at this size.
        x = params['embedding'][src] * math.sqrt(E)        # (S, N, E)
        x = x + params['pe'][:S]                           # pe: (L, 1, E)
        xb = x.transpose(1, 0, 2)                          # (N, S, E), batch-major

        # finite additive mask (avoid inf-inf -> NaN); used for both src and tgt.
        mask = jnp.where(jnp.isfinite(src_mask), src_mask, _NEG_INF)
        mask = mask.astype(jnp.float32)

        weights = (
            params['e_wqkv'], params['e_wo'], params['e_w1'], params['e_w2'],
            params['e_bqkv'], params['e_b1'], params['e_vec'],
            params['ds_wqkv'], params['ds_wo'], params['dc_wq'],
            params['dc_wkv'], params['dc_wo'], params['d_w1'], params['d_w2'],
            params['ds_bqkv'], params['dc_bqkv'], params['d_b1'], params['d_vec'],
            params['fin_vec'], params['out_w'], params['out_b'],
        )
        vpad = params['out_w'].shape[-1]

        def _full(a):                      # whole array resident in VMEM, all steps
            z = (0,) * a.ndim
            return pl.BlockSpec(a.shape, lambda n, _z=z: _z)

        out = pl.pallas_call(
            _make_transformer_kernel(nhead, n_enc, n_dec),
            out_shape=jax.ShapeDtypeStruct((N, S, vpad), jnp.float32),
            grid=(N,),
            in_specs=[pl.BlockSpec((1, S, E), lambda n: (n, 0, 0)),
                      _full(mask)] + [_full(w) for w in weights],
            out_specs=pl.BlockSpec((1, S, vpad), lambda n: (n, 0, 0)),
            compiler_params=pltpu.CompilerParams(
                dimension_semantics=("parallel",)),        # v7x: one TC per batch
        )(xb, mask, *weights)

        logits = out[:, :, :ntoken]                        # drop vocab padding
        return logits.transpose(1, 0, 2)                   # (S, N, ntoken)
    return forward


# --------------------------------------------------------------------------
# Deterministic parameter construction (fused QKV / packed small params)
# --------------------------------------------------------------------------

def _uniform(key, shape, scale):
    return jax.random.uniform(key, shape, jnp.float32, -scale, scale)


def make_positional_encoding(max_len, d_model):
    position = jnp.arange(max_len, dtype=jnp.float32)[:, None]
    div_term = jnp.exp(jnp.arange(0, d_model, 2, dtype=jnp.float32)
                       * (-math.log(10000.0) / d_model))
    pe = jnp.zeros((max_len, d_model), jnp.float32)
    pe = pe.at[:, 0::2].set(jnp.sin(position * div_term))
    pe = pe.at[:, 1::2].set(jnp.cos(position * div_term))
    return pe[:, None, :]                                  # (L, 1, E)


def generate_square_subsequent_mask(sz):
    upper = jnp.triu(jnp.ones((sz, sz), jnp.float32), k=1)
    return jnp.where(upper == 1.0, -jnp.inf, 0.0).astype(jnp.float32)


def init_params(key, ntoken, ninp, nhead, n_enc, n_dec, dff):
    E = ninp
    hd = E // nhead
    qs = 1.0 / math.sqrt(hd)          # query scale folded into Wq (saves a VPU mul)
    s_e = 1.0 / math.sqrt(E)
    s_f = 1.0 / math.sqrt(dff)

    kit = iter(jax.random.split(key, 6 * n_enc + 10 * n_dec + 4))
    ones_e = jnp.ones((E,), jnp.float32)
    zeros_e = jnp.zeros((E,), jnp.float32)

    e_wqkv, e_wo, e_w1, e_w2, e_vec = [], [], [], [], []
    for _ in range(n_enc):
        wq = _uniform(next(kit), (E, E), s_e) * qs
        wk = _uniform(next(kit), (E, E), s_e)
        wv = _uniform(next(kit), (E, E), s_e)
        e_wqkv.append(jnp.concatenate([wq, wk, wv], axis=1))          # (E, 3E)
        e_wo.append(_uniform(next(kit), (E, E), s_e))
        e_w1.append(_uniform(next(kit), (E, dff), s_e).astype(jnp.bfloat16))
        e_w2.append(_uniform(next(kit), (dff, E), s_f).astype(jnp.bfloat16))
        # rows: bo, ln1_g, ln1_b, b2, ln2_g, ln2_b
        e_vec.append(jnp.stack([zeros_e, ones_e, zeros_e,
                                zeros_e, ones_e, zeros_e]))

    ds_wqkv, ds_wo, dc_wq, dc_wkv, dc_wo = [], [], [], [], []
    d_w1, d_w2, d_vec = [], [], []
    for _ in range(n_dec):
        wq = _uniform(next(kit), (E, E), s_e) * qs
        wk = _uniform(next(kit), (E, E), s_e)
        wv = _uniform(next(kit), (E, E), s_e)
        ds_wqkv.append(jnp.concatenate([wq, wk, wv], axis=1))          # (E, 3E)
        ds_wo.append(_uniform(next(kit), (E, E), s_e))
        dc_wq.append(_uniform(next(kit), (E, E), s_e) * qs)
        wk = _uniform(next(kit), (E, E), s_e)
        wv = _uniform(next(kit), (E, E), s_e)
        dc_wkv.append(jnp.concatenate([wk, wv], axis=1))               # (E, 2E)
        dc_wo.append(_uniform(next(kit), (E, E), s_e))
        d_w1.append(_uniform(next(kit), (E, dff), s_e).astype(jnp.bfloat16))
        d_w2.append(_uniform(next(kit), (dff, E), s_f).astype(jnp.bfloat16))
        # rows: s_bo, ln1_g, ln1_b, c_bo, ln2_g, ln2_b, b2, ln3_g, ln3_b
        d_vec.append(jnp.stack([zeros_e, ones_e, zeros_e,
                                zeros_e, ones_e, zeros_e,
                                zeros_e, ones_e, zeros_e]))

    # lane-dense output projection: pad vocab dim to a multiple of 128
    vpad = ((ntoken + 127) // 128) * 128
    out_w = _uniform(next(kit), (E, ntoken), 0.1)      # initrange=0.1 (init_weights)
    out_w = jnp.pad(out_w, ((0, 0), (0, vpad - ntoken)))

    return dict(
        embedding=_uniform(next(kit), (ntoken, E), 0.1),
        pe=make_positional_encoding(5000, E),
        e_wqkv=jnp.stack(e_wqkv), e_wo=jnp.stack(e_wo),
        e_w1=jnp.stack(e_w1), e_w2=jnp.stack(e_w2),
        e_bqkv=jnp.zeros((n_enc, 1, 3 * E), jnp.float32),
        e_b1=jnp.zeros((n_enc, 1, dff), jnp.float32),
        e_vec=jnp.stack(e_vec),
        ds_wqkv=jnp.stack(ds_wqkv), ds_wo=jnp.stack(ds_wo),
        dc_wq=jnp.stack(dc_wq), dc_wkv=jnp.stack(dc_wkv), dc_wo=jnp.stack(dc_wo),
        d_w1=jnp.stack(d_w1), d_w2=jnp.stack(d_w2),
        ds_bqkv=jnp.zeros((n_dec, 1, 3 * E), jnp.float32),
        dc_bqkv=jnp.zeros((n_dec, 1, 3 * E), jnp.float32),
        d_b1=jnp.zeros((n_dec, 1, dff), jnp.float32),
        d_vec=jnp.stack(d_vec),
        fin_vec=jnp.stack([ones_e, zeros_e, ones_e, zeros_e]),  # enc_g, enc_b, dec_g, dec_b
        out_w=out_w,                                            # (E, vpad)
        out_b=jnp.zeros((1, vpad), jnp.float32),
    )


# --------------------------------------------------------------------------
# Main
# --------------------------------------------------------------------------

if __name__ == "__main__":
    # TransformerModel hyperparameters (small, consistent with the module).
    # NB: nn.Transformer(ninp, nhead, nlayers, nhid, dropout) maps positionally
    # to num_encoder_layers=nlayers, num_decoder_layers=nhid and uses the
    # PyTorch default dim_feedforward=2048. Dropout is identity (eval mode).
    ntoken, ninp, nhead, nhid, nlayers = 50, 32, 4, 2, 2
    dim_feedforward = 2048
    S, N = 8, 2                        # (seq_len, batch)

    key = jax.random.PRNGKey(0)
    k_param, k_src = jax.random.split(key)

    params = init_params(k_param, ntoken, ninp, nhead,
                         n_enc=nlayers, n_dec=nhid, dff=dim_feedforward)

    src = jax.random.randint(k_src, (S, N), 0, ntoken, dtype=jnp.int32)
    src_mask = generate_square_subsequent_mask(S)

    forward = jax.jit(make_forward(ninp, nhead, ntoken, n_enc=nlayers, n_dec=nhid))
    out = forward(params, src, src_mask)
    out = jax.block_until_ready(out)

    assert out.shape == (S, N, ntoken), out.shape
    assert bool(jnp.all(jnp.isfinite(out)))
    print("KERNEL_OK")
</pallas_src>

<mosaic_0001>
module attributes {stable_mosaic.version = 11 : i64} {
  func.func @kernel(%arg0: i32, %arg1: memref<1x8x32xf32, #tpu.memory_space<vmem>>, %arg2: memref<8x8xf32, #tpu.memory_space<vmem>>, %arg3: memref<2x32x96xf32, #tpu.memory_space<vmem>>, %arg4: memref<2x32x32xf32, #tpu.memory_space<vmem>>, %arg5: memref<2x32x2048xbf16, #tpu.memory_space<vmem>>, %arg6: memref<2x2048x32xbf16, #tpu.memory_space<vmem>>, %arg7: memref<2x1x96xf32, #tpu.memory_space<vmem>>, %arg8: memref<2x1x2048xf32, #tpu.memory_space<vmem>>, %arg9: memref<2x6x32xf32, #tpu.memory_space<vmem>>, %arg10: memref<2x32x96xf32, #tpu.memory_space<vmem>>, %arg11: memref<2x32x32xf32, #tpu.memory_space<vmem>>, %arg12: memref<2x32x32xf32, #tpu.memory_space<vmem>>, %arg13: memref<2x32x64xf32, #tpu.memory_space<vmem>>, %arg14: memref<2x32x32xf32, #tpu.memory_space<vmem>>, %arg15: memref<2x32x2048xbf16, #tpu.memory_space<vmem>>, %arg16: memref<2x2048x32xbf16, #tpu.memory_space<vmem>>, %arg17: memref<2x1x96xf32, #tpu.memory_space<vmem>>, %arg18: memref<2x1x96xf32, #tpu.memory_space<vmem>>, %arg19: memref<2x1x2048xf32, #tpu.memory_space<vmem>>, %arg20: memref<2x9x32xf32, #tpu.memory_space<vmem>>, %arg21: memref<4x32xf32, #tpu.memory_space<vmem>>, %arg22: memref<32x128xf32, #tpu.memory_space<vmem>>, %arg23: memref<1x128xf32, #tpu.memory_space<vmem>>, %arg24: memref<1x8x128xf32, #tpu.memory_space<vmem>>) attributes {dimension_semantics = [#tpu.dimension_semantics<parallel>], iteration_bounds = array<i64: 2>, scalar_prefetch = 0 : i64, scratch_operands = 0 : i64, tpu.core_type = #tpu.core_type<tc>, window_params = [{transform_indices = @transform_0, window_bounds = array<i64: 1, 8, 32>}, {pipeline_mode = #tpu.pipeline_mode<synchronous>, transform_indices = @transform_1, window_bounds = array<i64: 8, 8>}, {pipeline_mode = #tpu.pipeline_mode<synchronous>, transform_indices = @transform_2, window_bounds = array<i64: 2, 32, 96>}, {pipeline_mode = #tpu.pipeline_mode<synchronous>, transform_indices = @transform_3, window_bounds = array<i64: 2, 32, 32>}, {pipeline_mode = #tpu.pipeline_mode<synchronous>, transform_indices = @transform_4, window_bounds = array<i64: 2, 32, 2048>}, {pipeline_mode = #tpu.pipeline_mode<synchronous>, transform_indices = @transform_5, window_bounds = array<i64: 2, 2048, 32>}, {pipeline_mode = #tpu.pipeline_mode<synchronous>, transform_indices = @transform_6, window_bounds = array<i64: 2, 1, 96>}, {pipeline_mode = #tpu.pipeline_mode<synchronous>, transform_indices = @transform_7, window_bounds = array<i64: 2, 1, 2048>}, {pipeline_mode = #tpu.pipeline_mode<synchronous>, transform_indices = @transform_8, window_bounds = array<i64: 2, 6, 32>}, {pipeline_mode = #tpu.pipeline_mode<synchronous>, transform_indices = @transform_9, window_bounds = array<i64: 2, 32, 96>}, {pipeline_mode = #tpu.pipeline_mode<synchronous>, transform_indices = @transform_10, window_bounds = array<i64: 2, 32, 32>}, {pipeline_mode = #tpu.pipeline_mode<synchronous>, transform_indices = @transform_11, window_bounds = array<i64: 2, 32, 32>}, {pipeline_mode = #tpu.pipeline_mode<synchronous>, transform_indices = @transform_12, window_bounds = array<i64: 2, 32, 64>}, {pipeline_mode = #tpu.pipeline_mode<synchronous>, transform_indices = @transform_13, window_bounds = array<i64: 2, 32, 32>}, {pipeline_mode = #tpu.pipeline_mode<synchronous>, transform_indices = @transform_14, window_bounds = array<i64: 2, 32, 2048>}, {pipeline_mode = #tpu.pipeline_mode<synchronous>, transform_indices = @transform_15, window_bounds = array<i64: 2, 2048, 32>}, {pipeline_mode = #tpu.pipeline_mode<synchronous>, transform_indices = @transform_16, window_bounds = array<i64: 2, 1, 96>}, {pipeline_mode = #tpu.pipeline_mode<synchronous>, transform_indices = @transform_17, window_bounds = array<i64: 2, 1, 96>}, {pipeline_mode = #tpu.pipeline_mode<synchronous>, transform_indices = @transform_18, window_bounds = array<i64: 2, 1, 2048>}, {pipeline_mode = #tpu.pipeline_mode<synchronous>, transform_indices = @transform_19, window_bounds = array<i64: 2, 9, 32>}, {pipeline_mode = #tpu.pipeline_mode<synchronous>, transform_indices = @transform_20, window_bounds = array<i64: 4, 32>}, {pipeline_mode = #tpu.pipeline_mode<synchronous>, transform_indices = @transform_21, window_bounds = array<i64: 32, 128>}, {pipeline_mode = #tpu.pipeline_mode<synchronous>, transform_indices = @transform_22, window_bounds = array<i64: 1, 128>}, {transform_indices = @transform_23, window_bounds = array<i64: 1, 8, 128>}]} {
    %c0 = arith.constant 0 : index
    %c0_0 = arith.constant 0 : index
    %c0_1 = arith.constant 0 : index
    %0 = vector.load %arg1[%c0, %c0_0, %c0_1] : memref<1x8x32xf32, #tpu.memory_space<vmem>>, vector<1x8x32xf32>
    %1 = vector.shape_cast %0 : vector<1x8x32xf32> to vector<8x32xf32>
    %c0_2 = arith.constant 0 : index
    %c0_3 = arith.constant 0 : index
    %2 = vector.load %arg2[%c0_2, %c0_3] : memref<8x8xf32, #tpu.memory_space<vmem>>, vector<8x8xf32>
    %c0_4 = arith.constant 0 : index
    %c0_5 = arith.constant 0 : index
    %c0_6 = arith.constant 0 : index
    %3 = vector.load %arg9[%c0_4, %c0_5, %c0_6] : memref<2x6x32xf32, #tpu.memory_space<vmem>>, vector<1x6x32xf32>
    %4 = vector.shape_cast %3 : vector<1x6x32xf32> to vector<6x32xf32>
    %c0_7 = arith.constant 0 : index
    %c0_8 = arith.constant 0 : index
    %c0_9 = arith.constant 0 : index
    %5 = vector.load %arg3[%c0_7, %c0_8, %c0_9] : memref<2x32x96xf32, #tpu.memory_space<vmem>>, vector<1x32x96xf32>
    %6 = vector.shape_cast %5 : vector<1x32x96xf32> to vector<32x96xf32>
    %c0_10 = arith.constant 0 : index
    %c0_11 = arith.constant 0 : index
    %c0_12 = arith.constant 0 : index
    %7 = vector.load %arg7[%c0_10, %c0_11, %c0_12] : memref<2x1x96xf32, #tpu.memory_space<vmem>>, vector<1x1x96xf32>
    %8 = vector.shape_cast %7 : vector<1x1x96xf32> to vector<1x96xf32>
    %c0_13 = arith.constant 0 : index
    %c0_14 = arith.constant 0 : index
    %c0_15 = arith.constant 0 : index
    %9 = vector.load %arg4[%c0_13, %c0_14, %c0_15] : memref<2x32x32xf32, #tpu.memory_space<vmem>>, vector<1x32x32xf32>
    %10 = vector.shape_cast %9 : vector<1x32x32xf32> to vector<32x32xf32>
    %11 = vector.extract_strided_slice %4 {offsets = [0, 0], sizes = [1, 32], strides = [1, 1]} : vector<6x32xf32> to vector<1x32xf32>
    %cst = arith.constant dense<0.000000e+00> : vector<8x96xf32>
    %12 = tpu.matmul %1, %6, %cst {dimension_numbers = #tpu.dot_dimension_numbers<[1], [0], [0], [1], [0, 0, 1, 1], [], []>} : vector<8x32xf32>, vector<32x96xf32>, vector<8x96xf32> -> vector<8x96xf32>
    %13 = vector.broadcast %8 : vector<1x96xf32> to vector<8x96xf32>
    %14 = arith.addf %12, %13 : vector<8x96xf32>
    %15 = vector.extract_strided_slice %14 {offsets = [0, 0], sizes = [8, 32], strides = [1, 1]} : vector<8x96xf32> to vector<8x32xf32>
    %16 = vector.extract_strided_slice %14 {offsets = [0, 32], sizes = [8, 32], strides = [1, 1]} : vector<8x96xf32> to vector<8x32xf32>
    %17 = vector.extract_strided_slice %14 {offsets = [0, 64], sizes = [8, 32], strides = [1, 1]} : vector<8x96xf32> to vector<8x32xf32>
    %cst_16 = arith.constant 0.000000e+00 : f32
    %18 = vector.broadcast %cst_16 : f32 to vector<8x32xf32>
    %19 = vector.extract_strided_slice %15 {offsets = [0, 0], sizes = [8, 8], strides = [1, 1]} : vector<8x32xf32> to vector<8x8xf32>
    %20 = vector.extract_strided_slice %16 {offsets = [0, 0], sizes = [8, 8], strides = [1, 1]} : vector<8x32xf32> to vector<8x8xf32>
    %cst_17 = arith.constant dense<0.000000e+00> : vector<8x8xf32>
    %21 = tpu.matmul %19, %20, %cst_17 {dimension_numbers = #tpu.dot_dimension_numbers<[1], [1], [0], [0], [0, 0, 1, 0], [], []>} : vector<8x8xf32>, vector<8x8xf32>, vector<8x8xf32> -> vector<8x8xf32>
    %22 = arith.addf %21, %2 : vector<8x8xf32>
    %cst_18 = arith.constant dense<0xFF800000> : vector<8xf32>
    %23 = vector.multi_reduction <maximumf>, %22, %cst_18 [1] : vector<8x8xf32> to vector<8xf32>
    %24 = vector.shape_cast %23 : vector<8xf32> to vector<8x1xf32>
    %25 = vector.broadcast %24 : vector<8x1xf32> to vector<8x8xf32>
    %26 = arith.subf %22, %25 : vector<8x8xf32>
    %27 = math.exp %26 : vector<8x8xf32>
    %cst_19 = arith.constant dense<0.000000e+00> : vector<8xf32>
    %28 = vector.multi_reduction <add>, %27, %cst_19 [1] : vector<8x8xf32> to vector<8xf32>
    %29 = vector.shape_cast %28 : vector<8xf32> to vector<8x1xf32>
    %30 = tpu.reciprocal %29 {approx = true} : vector<8x1xf32> -> vector<8x1xf32>
    %31 = vector.broadcast %30 : vector<8x1xf32> to vector<8x8xf32>
    %32 = arith.mulf %27, %31 : vector<8x8xf32>
    %33 = vector.extract_strided_slice %17 {offsets = [0, 0], sizes = [8, 8], strides = [1, 1]} : vector<8x32xf32> to vector<8x8xf32>
    %cst_20 = arith.constant dense<0.000000e+00> : vector<8x8xf32>
    %34 = tpu.matmul %32, %33, %cst_20 {dimension_numbers = #tpu.dot_dimension_numbers<[1], [0], [0], [1], [0, 0, 1, 1], [], []>} : vector<8x8xf32>, vector<8x8xf32>, vector<8x8xf32> -> vector<8x8xf32>
    %35 = vector.extract_strided_slice %10 {offsets = [0, 0], sizes = [8, 32], strides = [1, 1]} : vector<32x32xf32> to vector<8x32xf32>
    %cst_21 = arith.constant dense<0.000000e+00> : vector<8x32xf32>
    %36 = tpu.matmul %34, %35, %cst_21 {dimension_numbers = #tpu.dot_dimension_numbers<[1], [0], [0], [1], [0, 0, 1, 1], [], []>} : vector<8x8xf32>, vector<8x32xf32>, vector<8x32xf32> -> vector<8x32xf32>
    %37 = arith.addf %18, %36 : vector<8x32xf32>
    %38 = vector.extract_strided_slice %15 {offsets = [0, 8], sizes = [8, 8], strides = [1, 1]} : vector<8x32xf32> to vector<8x8xf32>
    %39 = vector.extract_strided_slice %16 {offsets = [0, 8], sizes = [8, 8], strides = [1, 1]} : vector<8x32xf32> to vector<8x8xf32>
    %cst_22 = arith.constant dense<0.000000e+00> : vector<8x8xf32>
    %40 = tpu.matmul %38, %39, %cst_22 {dimension_numbers = #tpu.dot_dimension_numbers<[1], [1], [0], [0], [0, 0, 1, 0], [], []>} : vector<8x8xf32>, vector<8x8xf32>, vector<8x8xf32> -> vector<8x8xf32>
    %41 = arith.addf %40, %2 : vector<8x8xf32>
    %cst_23 = arith.constant dense<0xFF800000> : vector<8xf32>
    %42 = vector.multi_reduction <maximumf>, %41, %cst_23 [1] : vector<8x8xf32> to vector<8xf32>
    %43 = vector.shape_cast %42 : vector<8xf32> to vector<8x1xf32>
    %44 = vector.broadcast %43 : vector<8x1xf32> to vector<8x8xf32>
    %45 = arith.subf %41, %44 : vector<8x8xf32>
    %46 = math.exp %45 : vector<8x8xf32>
    %cst_24 = arith.constant dense<0.000000e+00> : vector<8xf32>
    %47 = vector.multi_reduction <add>, %46, %cst_24 [1] : vector<8x8xf32> to vector<8xf32>
    %48 = vector.shape_cast %47 : vector<8xf32> to vector<8x1xf32>
    %49 = tpu.reciprocal %48 {approx = true} : vector<8x1xf32> -> vector<8x1xf32>
    %50 = vector.broadcast %49 : vector<8x1xf32> to vector<8x8xf32>
    %51 = arith.mulf %46, %50 : vector<8x8xf32>
    %52 = vector.extract_strided_slice %17 {offsets = [0, 8], sizes = [8, 8], strides = [1, 1]} : vector<8x32xf32> to vector<8x8xf32>
    %cst_25 = arith.constant dense<0.000000e+00> : vector<8x8xf32>
    %53 = tpu.matmul %51, %52, %cst_25 {dimension_numbers = #tpu.dot_dimension_numbers<[1], [0], [0], [1], [0, 0, 1, 1], [], []>} : vector<8x8xf32>, vector<8x8xf32>, vector<8x8xf32> -> vector<8x8xf32>
    %54 = vector.extract_strided_slice %10 {offsets = [8, 0], sizes = [8, 32], strides = [1, 1]} : vector<32x32xf32> to vector<8x32xf32>
    %cst_26 = arith.constant dense<0.000000e+00> : vector<8x32xf32>
    %55 = tpu.matmul %53, %54, %cst_26 {dimension_numbers = #tpu.dot_dimension_numbers<[1], [0], [0], [1], [0, 0, 1, 1], [], []>} : vector<8x8xf32>, vector<8x32xf32>, vector<8x32xf32> -> vector<8x32xf32>
    %56 = arith.addf %37, %55 : vector<8x32xf32>
    %57 = vector.extract_strided_slice %15 {offsets = [0, 16], sizes = [8, 8], strides = [1, 1]} : vector<8x32xf32> to vector<8x8xf32>
    %58 = vector.extract_strided_slice %16 {offsets = [0, 16], sizes = [8, 8], strides = [1, 1]} : vector<8x32xf32> to vector<8x8xf32>
    %cst_27 = arith.constant dense<0.000000e+00> : vector<8x8xf32>
    %59 = tpu.matmul %57, %58, %cst_27 {dimension_numbers = #tpu.dot_dimension_numbers<[1], [1], [0], [0], [0, 0, 1, 0], [], []>} : vector<8x8xf32>, vector<8x8xf32>, vector<8x8xf32> -> vector<8x8xf32>
    %60 = arith.addf %59, %2 : vector<8x8xf32>
    %cst_28 = arith.constant dense<0xFF800000> : vector<8xf32>
    %61 = vector.multi_reduction <maximumf>, %60, %cst_28 [1] : vector<8x8xf32> to vector<8xf32>
    %62 = vector.shape_cast %61 : vector<8xf32> to vector<8x1xf32>
    %63 = vector.broadcast %62 : vector<8x1xf32> to vector<8x8xf32>
    %64 = arith.subf %60, %63 : vector<8x8xf32>
    %65 = math.exp %64 : vector<8x8xf32>
    %cst_29 = arith.constant dense<0.000000e+00> : vector<8xf32>
    %66 = vector.multi_reduction <add>, %65, %cst_29 [1] : vector<8x8xf32> to vector<8xf32>
    %67 = vector.shape_cast %66 : vector<8xf32> to vector<8x1xf32>
    %68 = tpu.reciprocal %67 {approx = true} : vector<8x1xf32> -> vector<8x1xf32>
    %69 = vector.broadcast %68 : vector<8x1xf32> to vector<8x8xf32>
    %70 = arith.mulf %65, %69 : vector<8x8xf32>
    %71 = vector.extract_strided_slice %17 {offsets = [0, 16], sizes = [8, 8], strides = [1, 1]} : vector<8x32xf32> to vector<8x8xf32>
    %cst_30 = arith.constant dense<0.000000e+00> : vector<8x8xf32>
    %72 = tpu.matmul %70, %71, %cst_30 {dimension_numbers = #tpu.dot_dimension_numbers<[1], [0], [0], [1], [0, 0, 1, 1], [], []>} : vector<8x8xf32>, vector<8x8xf32>, vector<8x8xf32> -> vector<8x8xf32>
    %73 = vector.extract_strided_slice %10 {offsets = [16, 0], sizes = [8, 32], strides = [1, 1]} : vector<32x32xf32> to vector<8x32xf32>
    %cst_31 = arith.constant dense<0.000000e+00> : vector<8x32xf32>
    %74 = tpu.matmul %72, %73, %cst_31 {dimension_numbers = #tpu.dot_dimension_numbers<[1], [0], [0], [1], [0, 0, 1, 1], [], []>} : vector<8x8xf32>, vector<8x32xf32>, vector<8x32xf32> -> vector<8x32xf32>
    %75 = arith.addf %56, %74 : vector<8x32xf32>
    %76 = vector.extract_strided_slice %15 {offsets = [0, 24], sizes = [8, 8], strides = [1, 1]} : vector<8x32xf32> to vector<8x8xf32>
    %77 = vector.extract_strided_slice %16 {offsets = [0, 24], sizes = [8, 8], strides = [1, 1]} : vector<8x32xf32> to vector<8x8xf32>
    %cst_32 = arith.constant dense<0.000000e+00> : vector<8x8xf32>
    %78 = tpu.matmul %76, %77, %cst_32 {dimension_numbers = #tpu.dot_dimension_numbers<[1], [1], [0], [0], [0, 0, 1, 0], [], []>} : vector<8x8xf32>, vector<8x8xf32>, vector<8x8xf32> -> vector<8x8xf32>
    %79 = arith.addf %78, %2 : vector<8x8xf32>
    %cst_33 = arith.constant dense<0xFF800000> : vector<8xf32>
    %80 = vector.multi_reduction <maximumf>, %79, %cst_33 [1] : vector<8x8xf32> to vector<8xf32>
    %81 = vector.shape_cast %80 : vector<8xf32> to vector<8x1xf32>
    %82 = vector.broadcast %81 : vector<8x1xf32> to vector<8x8xf32>
    %83 = arith.subf %79, %82 : vector<8x8xf32>
    %84 = math.exp %83 : vector<8x8xf32>
    %cst_34 = arith.constant dense<0.000000e+00> : vector<8xf32>
    %85 = vector.multi_reduction <add>, %84, %cst_34 [1] : vector<8x8xf32> to vector<8xf32>
    %86 = vector.shape_cast %85 : vector<8xf32> to vector<8x1xf32>
    %87 = tpu.reciprocal %86 {approx = true} : vector<8x1xf32> -> vector<8x1xf32>
    %88 = vector.broadcast %87 : vector<8x1xf32> to vector<8x8xf32>
    %89 = arith.mulf %84, %88 : vector<8x8xf32>
    %90 = vector.extract_strided_slice %17 {offsets = [0, 24], sizes = [8, 8], strides = [1, 1]} : vector<8x32xf32> to vector<8x8xf32>
    %cst_35 = arith.constant dense<0.000000e+00> : vector<8x8xf32>
    %91 = tpu.matmul %89, %90, %cst_35 {dimension_numbers = #tpu.dot_dimension_numbers<[1], [0], [0], [1], [0, 0, 1, 1], [], []>} : vector<8x8xf32>, vector<8x8xf32>, vector<8x8xf32> -> vector<8x8xf32>
    %92 = vector.extract_strided_slice %10 {offsets = [24, 0], sizes = [8, 32], strides = [1, 1]} : vector<32x32xf32> to vector<8x32xf32>
    %cst_36 = arith.constant dense<0.000000e+00> : vector<8x32xf32>
    %93 = tpu.matmul %91, %92, %cst_36 {dimension_numbers = #tpu.dot_dimension_numbers<[1], [0], [0], [1], [0, 0, 1, 1], [], []>} : vector<8x8xf32>, vector<8x32xf32>, vector<8x32xf32> -> vector<8x32xf32>
    %94 = arith.addf %75, %93 : vector<8x32xf32>
    %95 = vector.broadcast %11 : vector<1x32xf32> to vector<8x32xf32>
    %96 = arith.addf %94, %95 : vector<8x32xf32>
    %97 = arith.addf %1, %96 : vector<8x32xf32>
    %98 = vector.extract_strided_slice %4 {offsets = [1, 0], sizes = [1, 32], strides = [1, 1]} : vector<6x32xf32> to vector<1x32xf32>
    %99 = vector.extract_strided_slice %4 {offsets = [2, 0], sizes = [1, 32], strides = [1, 1]} : vector<6x32xf32> to vector<1x32xf32>
    %cst_37 = arith.constant dense<0.000000e+00> : vector<8xf32>
    %100 = vector.multi_reduction <add>, %97, %cst_37 [1] : vector<8x32xf32> to vector<8xf32>
    %101 = vector.shape_cast %100 : vector<8xf32> to vector<8x1xf32>
    %cst_38 = arith.constant 3.200000e+01 : f32
    %102 = vector.broadcast %cst_38 : f32 to vector<8x1xf32>
    %103 = arith.divf %101, %102 : vector<8x1xf32>
    %104 = vector.broadcast %103 : vector<8x1xf32> to vector<8x32xf32>
    %105 = arith.subf %97, %104 : vector<8x32xf32>
    %106 = arith.mulf %105, %105 : vector<8x32xf32>
    %cst_39 = arith.constant dense<0.000000e+00> : vector<8xf32>
    %107 = vector.multi_reduction <add>, %106, %cst_39 [1] : vector<8x32xf32> to vector<8xf32>
    %108 = vector.shape_cast %107 : vector<8xf32> to vector<8x1xf32>
    %cst_40 = arith.constant 3.200000e+01 : f32
    %109 = vector.broadcast %cst_40 : f32 to vector<8x1xf32>
    %110 = arith.divf %108, %109 : vector<8x1xf32>
    %cst_41 = arith.constant 9.99999974E-6 : f32
    %111 = vector.broadcast %cst_41 : f32 to vector<8x1xf32>
    %112 = arith.addf %110, %111 : vector<8x1xf32>
    %113 = math.rsqrt %112 : vector<8x1xf32>
    %114 = vector.broadcast %113 : vector<8x1xf32> to vector<8x32xf32>
    %115 = arith.mulf %105, %114 : vector<8x32xf32>
    %116 = vector.broadcast %98 : vector<1x32xf32> to vector<8x32xf32>
    %117 = arith.mulf %115, %116 : vector<8x32xf32>
    %118 = vector.broadcast %99 : vector<1x32xf32> to vector<8x32xf32>
    %119 = arith.addf %117, %118 : vector<8x32xf32>
    %c0_42 = arith.constant 0 : index
    %c0_43 = arith.constant 0 : index
    %c0_44 = arith.constant 0 : index
    %120 = vector.load %arg5[%c0_42, %c0_43, %c0_44] : memref<2x32x2048xbf16, #tpu.memory_space<vmem>>, vector<1x32x2048xbf16>
    %121 = vector.shape_cast %120 : vector<1x32x2048xbf16> to vector<32x2048xbf16>
    %c0_45 = arith.constant 0 : index
    %c0_46 = arith.constant 0 : index
    %c0_47 = arith.constant 0 : index
    %122 = vector.load %arg8[%c0_45, %c0_46, %c0_47] : memref<2x1x2048xf32, #tpu.memory_space<vmem>>, vector<1x1x2048xf32>
    %123 = vector.shape_cast %122 : vector<1x1x2048xf32> to vector<1x2048xf32>
    %c0_48 = arith.constant 0 : index
    %c0_49 = arith.constant 0 : index
    %c0_50 = arith.constant 0 : index
    %124 = vector.load %arg6[%c0_48, %c0_49, %c0_50] : memref<2x2048x32xbf16, #tpu.memory_space<vmem>>, vector<1x2048x32xbf16>
    %125 = vector.shape_cast %124 : vector<1x2048x32xbf16> to vector<2048x32xbf16>
    %126 = vector.extract_strided_slice %4 {offsets = [3, 0], sizes = [1, 32], strides = [1, 1]} : vector<6x32xf32> to vector<1x32xf32>
    %127 = arith.truncf %119 : vector<8x32xf32> to vector<8x32xbf16>
    %cst_51 = arith.constant dense<0.000000e+00> : vector<8x2048xf32>
    %128 = tpu.matmul %127, %121, %cst_51 {dimension_numbers = #tpu.dot_dimension_numbers<[1], [0], [0], [1], [0, 0, 1, 1], [], []>} : vector<8x32xbf16>, vector<32x2048xbf16>, vector<8x2048xf32> -> vector<8x2048xf32>
    %129 = vector.broadcast %123 : vector<1x2048xf32> to vector<8x2048xf32>
    %130 = arith.addf %128, %129 : vector<8x2048xf32>
    %cst_52 = arith.constant 0.000000e+00 : f32
    %131 = vector.broadcast %cst_52 : f32 to vector<8x2048xf32>
    %132 = arith.maximumf %130, %131 : vector<8x2048xf32>
    %133 = arith.truncf %132 : vector<8x2048xf32> to vector<8x2048xbf16>
    %cst_53 = arith.constant dense<0.000000e+00> : vector<8x32xf32>
    %134 = tpu.matmul %133, %125, %cst_53 {dimension_numbers = #tpu.dot_dimension_numbers<[1], [0], [0], [1], [0, 0, 1, 1], [], []>} : vector<8x2048xbf16>, vector<2048x32xbf16>, vector<8x32xf32> -> vector<8x32xf32>
    %135 = vector.broadcast %126 : vector<1x32xf32> to vector<8x32xf32>
    %136 = arith.addf %134, %135 : vector<8x32xf32>
    %137 = arith.addf %119, %136 : vector<8x32xf32>
    %138 = vector.extract_strided_slice %4 {offsets = [4, 0], sizes = [1, 32], strides = [1, 1]} : vector<6x32xf32> to vector<1x32xf32>
    %139 = vector.extract_strided_slice %4 {offsets = [5, 0], sizes = [1, 32], strides = [1, 1]} : vector<6x32xf32> to vector<1x32xf32>
    %cst_54 = arith.constant dense<0.000000e+00> : vector<8xf32>
    %140 = vector.multi_reduction <add>, %137, %cst_54 [1] : vector<8x32xf32> to vector<8xf32>
    %141 = vector.shape_cast %140 : vector<8xf32> to vector<8x1xf32>
    %cst_55 = arith.constant 3.200000e+01 : f32
    %142 = vector.broadcast %cst_55 : f32 to vector<8x1xf32>
    %143 = arith.divf %141, %142 : vector<8x1xf32>
    %144 = vector.broadcast %143 : vector<8x1xf32> to vector<8x32xf32>
    %145 = arith.subf %137, %144 : vector<8x32xf32>
    %146 = arith.mulf %145, %145 : vector<8x32xf32>
    %cst_56 = arith.constant dense<0.000000e+00> : vector<8xf32>
    %147 = vector.multi_reduction <add>, %146, %cst_56 [1] : vector<8x32xf32> to vector<8xf32>
    %148 = vector.shape_cast %147 : vector<8xf32> to vector<8x1xf32>
    %cst_57 = arith.constant 3.200000e+01 : f32
    %149 = vector.broadcast %cst_57 : f32 to vector<8x1xf32>
    %150 = arith.divf %148, %149 : vector<8x1xf32>
    %cst_58 = arith.constant 9.99999974E-6 : f32
    %151 = vector.broadcast %cst_58 : f32 to vector<8x1xf32>
    %152 = arith.addf %150, %151 : vector<8x1xf32>
    %153 = math.rsqrt %152 : vector<8x1xf32>
    %154 = vector.broadcast %153 : vector<8x1xf32> to vector<8x32xf32>
    %155 = arith.mulf %145, %154 : vector<8x32xf32>
    %156 = vector.broadcast %138 : vector<1x32xf32> to vector<8x32xf32>
    %157 = arith.mulf %155, %156 : vector<8x32xf32>
    %158 = vector.broadcast %139 : vector<1x32xf32> to vector<8x32xf32>
    %159 = arith.addf %157, %158 : vector<8x32xf32>
    %c1 = arith.constant 1 : index
    %c0_59 = arith.constant 0 : index
    %c0_60 = arith.constant 0 : index
    %160 = vector.load %arg9[%c1, %c0_59, %c0_60] : memref<2x6x32xf32, #tpu.memory_space<vmem>>, vector<1x6x32xf32>
    %161 = vector.shape_cast %160 : vector<1x6x32xf32> to vector<6x32xf32>
    %c1_61 = arith.constant 1 : index
    %c0_62 = arith.constant 0 : index
    %c0_63 = arith.constant 0 : index
    %162 = vector.load %arg3[%c1_61, %c0_62, %c0_63] : memref<2x32x96xf32, #tpu.memory_space<vmem>>, vector<1x32x96xf32>
    %163 = vector.shape_cast %162 : vector<1x32x96xf32> to vector<32x96xf32>
    %c1_64 = arith.constant 1 : index
    %c0_65 = arith.constant 0 : index
    %c0_66 = arith.constant 0 : index
    %164 = vector.load %arg7[%c1_64, %c0_65, %c0_66] : memref<2x1x96xf32, #tpu.memory_space<vmem>>, vector<1x1x96xf32>
    %165 = vector.shape_cast %164 : vector<1x1x96xf32> to vector<1x96xf32>
    %c1_67 = arith.constant 1 : index
    %c0_68 = arith.constant 0 : index
    %c0_69 = arith.constant 0 : index
    %166 = vector.load %arg4[%c1_67, %c0_68, %c0_69] : memref<2x32x32xf32, #tpu.memory_space<vmem>>, vector<1x32x32xf32>
    %167 = vector.shape_cast %166 : vector<1x32x32xf32> to vector<32x32xf32>
    %168 = vector.extract_strided_slice %161 {offsets = [0, 0], sizes = [1, 32], strides = [1, 1]} : vector<6x32xf32> to vector<1x32xf32>
    %cst_70 = arith.constant dense<0.000000e+00> : vector<8x96xf32>
    %169 = tpu.matmul %159, %163, %cst_70 {dimension_numbers = #tpu.dot_dimension_numbers<[1], [0], [0], [1], [0, 0, 1, 1], [], []>} : vector<8x32xf32>, vector<32x96xf32>, vector<8x96xf32> -> vector<8x96xf32>
    %170 = vector.broadcast %165 : vector<1x96xf32> to vector<8x96xf32>
    %171 = arith.addf %169, %170 : vector<8x96xf32>
    %172 = vector.extract_strided_slice %171 {offsets = [0, 0], sizes = [8, 32], strides = [1, 1]} : vector<8x96xf32> to vector<8x32xf32>
    %173 = vector.extract_strided_slice %171 {offsets = [0, 32], sizes = [8, 32], strides = [1, 1]} : vector<8x96xf32> to vector<8x32xf32>
    %174 = vector.extract_strided_slice %171 {offsets = [0, 64], sizes = [8, 32], strides = [1, 1]} : vector<8x96xf32> to vector<8x32xf32>
    %cst_71 = arith.constant 0.000000e+00 : f32
    %175 = vector.broadcast %cst_71 : f32 to vector<8x32xf32>
    %176 = vector.extract_strided_slice %172 {offsets = [0, 0], sizes = [8, 8], strides = [1, 1]} : vector<8x32xf32> to vector<8x8xf32>
    %177 = vector.extract_strided_slice %173 {offsets = [0, 0], sizes = [8, 8], strides = [1, 1]} : vector<8x32xf32> to vector<8x8xf32>
    %cst_72 = arith.constant dense<0.000000e+00> : vector<8x8xf32>
    %178 = tpu.matmul %176, %177, %cst_72 {dimension_numbers = #tpu.dot_dimension_numbers<[1], [1], [0], [0], [0, 0, 1, 0], [], []>} : vector<8x8xf32>, vector<8x8xf32>, vector<8x8xf32> -> vector<8x8xf32>
    %179 = arith.addf %178, %2 : vector<8x8xf32>
    %cst_73 = arith.constant dense<0xFF800000> : vector<8xf32>
    %180 = vector.multi_reduction <maximumf>, %179, %cst_73 [1] : vector<8x8xf32> to vector<8xf32>
    %181 = vector.shape_cast %180 : vector<8xf32> to vector<8x1xf32>
    %182 = vector.broadcast %181 : vector<8x1xf32> to vector<8x8xf32>
    %183 = arith.subf %179, %182 : vector<8x8xf32>
    %184 = math.exp %183 : vector<8x8xf32>
    %cst_74 = arith.constant dense<0.000000e+00> : vector<8xf32>
    %185 = vector.multi_reduction <add>, %184, %cst_74 [1] : vector<8x8xf32> to vector<8xf32>
    %186 = vector.shape_cast %185 : vector<8xf32> to vector<8x1xf32>
    %187 = tpu.reciprocal %186 {approx = true} : vector<8x1xf32> -> vector<8x1xf32>
    %188 = vector.broadcast %187 : vector<8x1xf32> to vector<8x8xf32>
    %189 = arith.mulf %184, %188 : vector<8x8xf32>
    %190 = vector.extract_strided_slice %174 {offsets = [0, 0], sizes = [8, 8], strides = [1, 1]} : vector<8x32xf32> to vector<8x8xf32>
    %cst_75 = arith.constant dense<0.000000e+00> : vector<8x8xf32>
    %191 = tpu.matmul %189, %190, %cst_75 {dimension_numbers = #tpu.dot_dimension_numbers<[1], [0], [0], [1], [0, 0, 1, 1], [], []>} : vector<8x8xf32>, vector<8x8xf32>, vector<8x8xf32> -> vector<8x8xf32>
    %192 = vector.extract_strided_slice %167 {offsets = [0, 0], sizes = [8, 32], strides = [1, 1]} : vector<32x32xf32> to vector<8x32xf32>
    %cst_76 = arith.constant dense<0.000000e+00> : vector<8x32xf32>
    %193 = tpu.matmul %191, %192, %cst_76 {dimension_numbers = #tpu.dot_dimension_numbers<[1], [0], [0], [1], [0, 0, 1, 1], [], []>} : vector<8x8xf32>, vector<8x32xf32>, vector<8x32xf32> -> vector<8x32xf32>
    %194 = arith.addf %175, %193 : vector<8x32xf32>
    %195 = vector.extract_strided_slice %172 {offsets = [0, 8], sizes = [8, 8], strides = [1, 1]} : vector<8x32xf32> to vector<8x8xf32>
    %196 = vector.extract_strided_slice %173 {offsets = [0, 8], sizes = [8, 8], strides = [1, 1]} : vector<8x32xf32> to vector<8x8xf32>
    %cst_77 = arith.constant dense<0.000000e+00> : vector<8x8xf32>
    %197 = tpu.matmul %195, %196, %cst_77 {dimension_numbers = #tpu.dot_dimension_numbers<[1], [1], [0], [0], [0, 0, 1, 0], [], []>} : vector<8x8xf32>, vector<8x8xf32>, vector<8x8xf32> -> vector<8x8xf32>
    %198 = arith.addf %197, %2 : vector<8x8xf32>
    %cst_78 = arith.constant dense<0xFF800000> : vector<8xf32>
    %199 = vector.multi_reduction <maximumf>, %198, %cst_78 [1] : vector<8x8xf32> to vector<8xf32>
    %200 = vector.shape_cast %199 : vector<8xf32> to vector<8x1xf32>
    %201 = vector.broadcast %200 : vector<8x1xf32> to vector<8x8xf32>
    %202 = arith.subf %198, %201 : vector<8x8xf32>
    %203 = math.exp %202 : vector<8x8xf32>
    %cst_79 = arith.constant dense<0.000000e+00> : vector<8xf32>
    %204 = vector.multi_reduction <add>, %203, %cst_79 [1] : vector<8x8xf32> to vector<8xf32>
    %205 = vector.shape_cast %204 : vector<8xf32> to vector<8x1xf32>
    %206 = tpu.reciprocal %205 {approx = true} : vector<8x1xf32> -> vector<8x1xf32>
    %207 = vector.broadcast %206 : vector<8x1xf32> to vector<8x8xf32>
    %208 = arith.mulf %203, %207 : vector<8x8xf32>
    %209 = vector.extract_strided_slice %174 {offsets = [0, 8], sizes = [8, 8], strides = [1, 1]} : vector<8x32xf32> to vector<8x8xf32>
    %cst_80 = arith.constant dense<0.000000e+00> : vector<8x8xf32>
    %210 = tpu.matmul %208, %209, %cst_80 {dimension_numbers = #tpu.dot_dimension_numbers<[1], [0], [0], [1], [0, 0, 1, 1], [], []>} : vector<8x8xf32>, vector<8x8xf32>, vector<8x8xf32> -> vector<8x8xf32>
    %211 = vector.extract_strided_slice %167 {offsets = [8, 0], sizes = [8, 32], strides = [1, 1]} : vector<32x32xf32> to vector<8x32xf32>
    %cst_81 = arith.constant dense<0.000000e+00> : vector<8x32xf32>
    %212 = tpu.matmul %210, %211, %cst_81 {dimension_numbers = #tpu.dot_dimension_numbers<[1], [0], [0], [1], [0, 0, 1, 1], [], []>} : vector<8x8xf32>, vector<8x32xf32>, vector<8x32xf32> -> vector<8x32xf32>
    %213 = arith.addf %194, %212 : vector<8x32xf32>
    %214 = vector.extract_strided_slice %172 {offsets = [0, 16], sizes = [8, 8], strides = [1, 1]} : vector<8x32xf32> to vector<8x8xf32>
    %215 = vector.extract_strided_slice %173 {offsets = [0, 16], sizes = [8, 8], strides = [1, 1]} : vector<8x32xf32> to vector<8x8xf32>
    %cst_82 = arith.constant dense<0.000000e+00> : vector<8x8xf32>
    %216 = tpu.matmul %214, %215, %cst_82 {dimension_numbers = #tpu.dot_dimension_numbers<[1], [1], [0], [0], [0, 0, 1, 0], [], []>} : vector<8x8xf32>, vector<8x8xf32>, vector<8x8xf32> -> vector<8x8xf32>
    %217 = arith.addf %216, %2 : vector<8x8xf32>
    %cst_83 = arith.constant dense<0xFF800000> : vector<8xf32>
    %218 = vector.multi_reduction <maximumf>, %217, %cst_83 [1] : vector<8x8xf32> to vector<8xf32>
    %219 = vector.shape_cast %218 : vector<8xf32> to vector<8x1xf32>
    %220 = vector.broadcast %219 : vector<8x1xf32> to vector<8x8xf32>
    %221 = arith.subf %217, %220 : vector<8x8xf32>
    %222 = math.exp %221 : vector<8x8xf32>
    %cst_84 = arith.constant dense<0.000000e+00> : vector<8xf32>
    %223 = vector.multi_reduction <add>, %222, %cst_84 [1] : vector<8x8xf32> to vector<8xf32>
    %224 = vector.shape_cast %223 : vector<8xf32> to vector<8x1xf32>
    %225 = tpu.reciprocal %224 {approx = true} : vector<8x1xf32> -> vector<8x1xf32>
    %226 = vector.broadcast %225 : vector<8x1xf32> to vector<8x8xf32>
    %227 = arith.mulf %222, %226 : vector<8x8xf32>
    %228 = vector.extract_strided_slice %174 {offsets = [0, 16], sizes = [8, 8], strides = [1, 1]} : vector<8x32xf32> to vector<8x8xf32>
    %cst_85 = arith.constant dense<0.000000e+00> : vector<8x8xf32>
    %229 = tpu.matmul %227, %228, %cst_85 {dimension_numbers = #tpu.dot_dimension_numbers<[1], [0], [0], [1], [0, 0, 1, 1], [], []>} : vector<8x8xf32>, vector<8x8xf32>, vector<8x8xf32> -> vector<8x8xf32>
    %230 = vector.extract_strided_slice %167 {offsets = [16, 0], sizes = [8, 32], strides = [1, 1]} : vector<32x32xf32> to vector<8x32xf32>
    %cst_86 = arith.constant dense<0.000000e+00> : vector<8x32xf32>
    %231 = tpu.matmul %229, %230, %cst_86 {dimension_numbers = #tpu.dot_dimension_numbers<[1], [0], [0], [1], [0, 0, 1, 1], [], []>} : vector<8x8xf32>, vector<8x32xf32>, vector<8x32xf32> -> vector<8x32xf32>
    %232 = arith.addf %213, %231 : vector<8x32xf32>
    %233 = vector.extract_strided_slice %172 {offsets = [0, 24], sizes = [8, 8], strides = [1, 1]} : vector<8x32xf32> to vector<8x8xf32>
    %234 = vector.extract_strided_slice %173 {offsets = [0, 24], sizes = [8, 8], strides = [1, 1]} : vector<8x32xf32> to vector<8x8xf32>
    %cst_87 = arith.constant dense<0.000000e+00> : vector<8x8xf32>
    %235 = tpu.matmul %233, %234, %cst_87 {dimension_numbers = #tpu.dot_dimension_numbers<[1], [1], [0], [0], [0, 0, 1, 0], [], []>} : vector<8x8xf32>, vector<8x8xf32>, vector<8x8xf32> -> vector<8x8xf32>
    %236 = arith.addf %235, %2 : vector<8x8xf32>
    %cst_88 = arith.constant dense<0xFF800000> : vector<8xf32>
    %237 = vector.multi_reduction <maximumf>, %236, %cst_88 [1] : vector<8x8xf32> to vector<8xf32>
    %238 = vector.shape_cast %237 : vector<8xf32> to vector<8x1xf32>
    %239 = vector.broadcast %238 : vector<8x1xf32> to vector<8x8xf32>
    %240 = arith.subf %236, %239 : vector<8x8xf32>
    %241 = math.exp %240 : vector<8x8xf32>
    %cst_89 = arith.constant dense<0.000000e+00> : vector<8xf32>
    %242 = vector.multi_reduction <add>, %241, %cst_89 [1] : vector<8x8xf32> to vector<8xf32>
    %243 = vector.shape_cast %242 : vector<8xf32> to vector<8x1xf32>
    %244 = tpu.reciprocal %243 {approx = true} : vector<8x1xf32> -> vector<8x1xf32>
    %245 = vector.broadcast %244 : vector<8x1xf32> to vector<8x8xf32>
    %246 = arith.mulf %241, %245 : vector<8x8xf32>
    %247 = vector.extract_strided_slice %174 {offsets = [0, 24], sizes = [8, 8], strides = [1, 1]} : vector<8x32xf32> to vector<8x8xf32>
    %cst_90 = arith.constant dense<0.000000e+00> : vector<8x8xf32>
    %248 = tpu.matmul %246, %247, %cst_90 {dimension_numbers = #tpu.dot_dimension_numbers<[1], [0], [0], [1], [0, 0, 1, 1], [], []>} : vector<8x8xf32>, vector<8x8xf32>, vector<8x8xf32> -> vector<8x8xf32>
    %249 = vector.extract_strided_slice %167 {offsets = [24, 0], sizes = [8, 32], strides = [1, 1]} : vector<32x32xf32> to vector<8x32xf32>
    %cst_91 = arith.constant dense<0.000000e+00> : vector<8x32xf32>
    %250 = tpu.matmul %248, %249, %cst_91 {dimension_numbers = #tpu.dot_dimension_numbers<[1], [0], [0], [1], [0, 0, 1, 1], [], []>} : vector<8x8xf32>, vector<8x32xf32>, vector<8x32xf32> -> vector<8x32xf32>
    %251 = arith.addf %232, %250 : vector<8x32xf32>
    %252 = vector.broadcast %168 : vector<1x32xf32> to vector<8x32xf32>
    %253 = arith.addf %251, %252 : vector<8x32xf32>
    %254 = arith.addf %159, %253 : vector<8x32xf32>
    %255 = vector.extract_strided_slice %161 {offsets = [1, 0], sizes = [1, 32], strides = [1, 1]} : vector<6x32xf32> to vector<1x32xf32>
    %256 = vector.extract_strided_slice %161 {offsets = [2, 0], sizes = [1, 32], strides = [1, 1]} : vector<6x32xf32> to vector<1x32xf32>
    %cst_92 = arith.constant dense<0.000000e+00> : vector<8xf32>
    %257 = vector.multi_reduction <add>, %254, %cst_92 [1] : vector<8x32xf32> to vector<8xf32>
    %258 = vector.shape_cast %257 : vector<8xf32> to vector<8x1xf32>
    %cst_93 = arith.constant 3.200000e+01 : f32
    %259 = vector.broadcast %cst_93 : f32 to vector<8x1xf32>
    %260 = arith.divf %258, %259 : vector<8x1xf32>
    %261 = vector.broadcast %260 : vector<8x1xf32> to vector<8x32xf32>
    %262 = arith.subf %254, %261 : vector<8x32xf32>
    %263 = arith.mulf %262, %262 : vector<8x32xf32>
    %cst_94 = arith.constant dense<0.000000e+00> : vector<8xf32>
    %264 = vector.multi_reduction <add>, %263, %cst_94 [1] : vector<8x32xf32> to vector<8xf32>
    %265 = vector.shape_cast %264 : vector<8xf32> to vector<8x1xf32>
    %cst_95 = arith.constant 3.200000e+01 : f32
    %266 = vector.broadcast %cst_95 : f32 to vector<8x1xf32>
    %267 = arith.divf %265, %266 : vector<8x1xf32>
    %cst_96 = arith.constant 9.99999974E-6 : f32
    %268 = vector.broadcast %cst_96 : f32 to vector<8x1xf32>
    %269 = arith.addf %267, %268 : vector<8x1xf32>
    %270 = math.rsqrt %269 : vector<8x1xf32>
    %271 = vector.broadcast %270 : vector<8x1xf32> to vector<8x32xf32>
    %272 = arith.mulf %262, %271 : vector<8x32xf32>
    %273 = vector.broadcast %255 : vector<1x32xf32> to vector<8x32xf32>
    %274 = arith.mulf %272, %273 : vector<8x32xf32>
    %275 = vector.broadcast %256 : vector<1x32xf32> to vector<8x32xf32>
    %276 = arith.addf %274, %275 : vector<8x32xf32>
    %c1_97 = arith.constant 1 : index
    %c0_98 = arith.constant 0 : index
    %c0_99 = arith.constant 0 : index
    %277 = vector.load %arg5[%c1_97, %c0_98, %c0_99] : memref<2x32x2048xbf16, #tpu.memory_space<vmem>>, vector<1x32x2048xbf16>
    %278 = vector.shape_cast %277 : vector<1x32x2048xbf16> to vector<32x2048xbf16>
    %c1_100 = arith.constant 1 : index
    %c0_101 = arith.constant 0 : index
    %c0_102 = arith.constant 0 : index
    %279 = vector.load %arg8[%c1_100, %c0_101, %c0_102] : memref<2x1x2048xf32, #tpu.memory_space<vmem>>, vector<1x1x2048xf32>
    %280 = vector.shape_cast %279 : vector<1x1x2048xf32> to vector<1x2048xf32>
    %c1_103 = arith.constant 1 : index
    %c0_104 = arith.constant 0 : index
    %c0_105 = arith.constant 0 : index
    %281 = vector.load %arg6[%c1_103, %c0_104, %c0_105] : memref<2x2048x32xbf16, #tpu.memory_space<vmem>>, vector<1x2048x32xbf16>
    %282 = vector.shape_cast %281 : vector<1x2048x32xbf16> to vector<2048x32xbf16>
    %283 = vector.extract_strided_slice %161 {offsets = [3, 0], sizes = [1, 32], strides = [1, 1]} : vector<6x32xf32> to vector<1x32xf32>
    %284 = arith.truncf %276 : vector<8x32xf32> to vector<8x32xbf16>
    %cst_106 = arith.constant dense<0.000000e+00> : vector<8x2048xf32>
    %285 = tpu.matmul %284, %278, %cst_106 {dimension_numbers = #tpu.dot_dimension_numbers<[1], [0], [0], [1], [0, 0, 1, 1], [], []>} : vector<8x32xbf16>, vector<32x2048xbf16>, vector<8x2048xf32> -> vector<8x2048xf32>
    %286 = vector.broadcast %280 : vector<1x2048xf32> to vector<8x2048xf32>
    %287 = arith.addf %285, %286 : vector<8x2048xf32>
    %cst_107 = arith.constant 0.000000e+00 : f32
    %288 = vector.broadcast %cst_107 : f32 to vector<8x2048xf32>
    %289 = arith.maximumf %287, %288 : vector<8x2048xf32>
    %290 = arith.truncf %289 : vector<8x2048xf32> to vector<8x2048xbf16>
    %cst_108 = arith.constant dense<0.000000e+00> : vector<8x32xf32>
    %291 = tpu.matmul %290, %282, %cst_108 {dimension_numbers = #tpu.dot_dimension_numbers<[1], [0], [0], [1], [0, 0, 1, 1], [], []>} : vector<8x2048xbf16>, vector<2048x32xbf16>, vector<8x32xf32> -> vector<8x32xf32>
    %292 = vector.broadcast %283 : vector<1x32xf32> to vector<8x32xf32>
    %293 = arith.addf %291, %292 : vector<8x32xf32>
    %294 = arith.addf %276, %293 : vector<8x32xf32>
    %295 = vector.extract_strided_slice %161 {offsets = [4, 0], sizes = [1, 32], strides = [1, 1]} : vector<6x32xf32> to vector<1x32xf32>
    %296 = vector.extract_strided_slice %161 {offsets = [5, 0], sizes = [1, 32], strides = [1, 1]} : vector<6x32xf32> to vector<1x32xf32>
    %cst_109 = arith.constant dense<0.000000e+00> : vector<8xf32>
    %297 = vector.multi_reduction <add>, %294, %cst_109 [1] : vector<8x32xf32> to vector<8xf32>
    %298 = vector.shape_cast %297 : vector<8xf32> to vector<8x1xf32>
    %cst_110 = arith.constant 3.200000e+01 : f32
    %299 = vector.broadcast %cst_110 : f32 to vector<8x1xf32>
    %300 = arith.divf %298, %299 : vector<8x1xf32>
    %301 = vector.broadcast %300 : vector<8x1xf32> to vector<8x32xf32>
    %302 = arith.subf %294, %301 : vector<8x32xf32>
    %303 = arith.mulf %302, %302 : vector<8x32xf32>
    %cst_111 = arith.constant dense<0.000000e+00> : vector<8xf32>
    %304 = vector.multi_reduction <add>, %303, %cst_111 [1] : vector<8x32xf32> to vector<8xf32>
    %305 = vector.shape_cast %304 : vector<8xf32> to vector<8x1xf32>
    %cst_112 = arith.constant 3.200000e+01 : f32
    %306 = vector.broadcast %cst_112 : f32 to vector<8x1xf32>
    %307 = arith.divf %305, %306 : vector<8x1xf32>
    %cst_113 = arith.constant 9.99999974E-6 : f32
    %308 = vector.broadcast %cst_113 : f32 to vector<8x1xf32>
    %309 = arith.addf %307, %308 : vector<8x1xf32>
    %310 = math.rsqrt %309 : vector<8x1xf32>
    %311 = vector.broadcast %310 : vector<8x1xf32> to vector<8x32xf32>
    %312 = arith.mulf %302, %311 : vector<8x32xf32>
    %313 = vector.broadcast %295 : vector<1x32xf32> to vector<8x32xf32>
    %314 = arith.mulf %312, %313 : vector<8x32xf32>
    %315 = vector.broadcast %296 : vector<1x32xf32> to vector<8x32xf32>
    %316 = arith.addf %314, %315 : vector<8x32xf32>
    %c0_114 = arith.constant 0 : index
    %c0_115 = arith.constant 0 : index
    %317 = vector.load %arg21[%c0_114, %c0_115] : memref<4x32xf32, #tpu.memory_space<vmem>>, vector<4x32xf32>
    %318 = vector.extract_strided_slice %317 {offsets = [0, 0], sizes = [1, 32], strides = [1, 1]} : vector<4x32xf32> to vector<1x32xf32>
    %319 = vector.extract_strided_slice %317 {offsets = [1, 0], sizes = [1, 32], strides = [1, 1]} : vector<4x32xf32> to vector<1x32xf32>
    %cst_116 = arith.constant dense<0.000000e+00> : vector<8xf32>
    %320 = vector.multi_reduction <add>, %316, %cst_116 [1] : vector<8x32xf32> to vector<8xf32>
    %321 = vector.shape_cast %320 : vector<8xf32> to vector<8x1xf32>
    %cst_117 = arith.constant 3.200000e+01 : f32
    %322 = vector.broadcast %cst_117 : f32 to vector<8x1xf32>
    %323 = arith.divf %321, %322 : vector<8x1xf32>
    %324 = vector.broadcast %323 : vector<8x1xf32> to vector<8x32xf32>
    %325 = arith.subf %316, %324 : vector<8x32xf32>
    %326 = arith.mulf %325, %325 : vector<8x32xf32>
    %cst_118 = arith.constant dense<0.000000e+00> : vector<8xf32>
    %327 = vector.multi_reduction <add>, %326, %cst_118 [1] : vector<8x32xf32> to vector<8xf32>
    %328 = vector.shape_cast %327 : vector<8xf32> to vector<8x1xf32>
    %cst_119 = arith.constant 3.200000e+01 : f32
    %329 = vector.broadcast %cst_119 : f32 to vector<8x1xf32>
    %330 = arith.divf %328, %329 : vector<8x1xf32>
    %cst_120 = arith.constant 9.99999974E-6 : f32
    %331 = vector.broadcast %cst_120 : f32 to vector<8x1xf32>
    %332 = arith.addf %330, %331 : vector<8x1xf32>
    %333 = math.rsqrt %332 : vector<8x1xf32>
    %334 = vector.broadcast %333 : vector<8x1xf32> to vector<8x32xf32>
    %335 = arith.mulf %325, %334 : vector<8x32xf32>
    %336 = vector.broadcast %318 : vector<1x32xf32> to vector<8x32xf32>
    %337 = arith.mulf %335, %336 : vector<8x32xf32>
    %338 = vector.broadcast %319 : vector<1x32xf32> to vector<8x32xf32>
    %339 = arith.addf %337, %338 : vector<8x32xf32>
    %c0_121 = arith.constant 0 : index
    %c0_122 = arith.constant 0 : index
    %c0_123 = arith.constant 0 : index
    %340 = vector.load %arg20[%c0_121, %c0_122, %c0_123] : memref<2x9x32xf32, #tpu.memory_space<vmem>>, vector<1x9x32xf32>
    %341 = vector.shape_cast %340 : vector<1x9x32xf32> to vector<9x32xf32>
    %c0_124 = arith.constant 0 : index
    %c0_125 = arith.constant 0 : index
    %c0_126 = arith.constant 0 : index
    %342 = vector.load %arg10[%c0_124, %c0_125, %c0_126] : memref<2x32x96xf32, #tpu.memory_space<vmem>>, vector<1x32x96xf32>
    %343 = vector.shape_cast %342 : vector<1x32x96xf32> to vector<32x96xf32>
    %c0_127 = arith.constant 0 : index
    %c0_128 = arith.constant 0 : index
    %c0_129 = arith.constant 0 : index
    %344 = vector.load %arg17[%c0_127, %c0_128, %c0_129] : memref<2x1x96xf32, #tpu.memory_space<vmem>>, vector<1x1x96xf32>
    %345 = vector.shape_cast %344 : vector<1x1x96xf32> to vector<1x96xf32>
    %c0_130 = arith.constant 0 : index
    %c0_131 = arith.constant 0 : index
    %c0_132 = arith.constant 0 : index
    %346 = vector.load %arg11[%c0_130, %c0_131, %c0_132] : memref<2x32x32xf32, #tpu.memory_space<vmem>>, vector<1x32x32xf32>
    %347 = vector.shape_cast %346 : vector<1x32x32xf32> to vector<32x32xf32>
    %348 = vector.extract_strided_slice %341 {offsets = [0, 0], sizes = [1, 32], strides = [1, 1]} : vector<9x32xf32> to vector<1x32xf32>
    %cst_133 = arith.constant dense<0.000000e+00> : vector<8x96xf32>
    %349 = tpu.matmul %1, %343, %cst_133 {dimension_numbers = #tpu.dot_dimension_numbers<[1], [0], [0], [1], [0, 0, 1, 1], [], []>} : vector<8x32xf32>, vector<32x96xf32>, vector<8x96xf32> -> vector<8x96xf32>
    %350 = vector.broadcast %345 : vector<1x96xf32> to vector<8x96xf32>
    %351 = arith.addf %349, %350 : vector<8x96xf32>
    %352 = vector.extract_strided_slice %351 {offsets = [0, 0], sizes = [8, 32], strides = [1, 1]} : vector<8x96xf32> to vector<8x32xf32>
    %353 = vector.extract_strided_slice %351 {offsets = [0, 32], sizes = [8, 32], strides = [1, 1]} : vector<8x96xf32> to vector<8x32xf32>
    %354 = vector.extract_strided_slice %351 {offsets = [0, 64], sizes = [8, 32], strides = [1, 1]} : vector<8x96xf32> to vector<8x32xf32>
    %cst_134 = arith.constant 0.000000e+00 : f32
    %355 = vector.broadcast %cst_134 : f32 to vector<8x32xf32>
    %356 = vector.extract_strided_slice %352 {offsets = [0, 0], sizes = [8, 8], strides = [1, 1]} : vector<8x32xf32> to vector<8x8xf32>
    %357 = vector.extract_strided_slice %353 {offsets = [0, 0], sizes = [8, 8], strides = [1, 1]} : vector<8x32xf32> to vector<8x8xf32>
    %cst_135 = arith.constant dense<0.000000e+00> : vector<8x8xf32>
    %358 = tpu.matmul %356, %357, %cst_135 {dimension_numbers = #tpu.dot_dimension_numbers<[1], [1], [0], [0], [0, 0, 1, 0], [], []>} : vector<8x8xf32>, vector<8x8xf32>, vector<8x8xf32> -> vector<8x8xf32>
    %359 = arith.addf %358, %2 : vector<8x8xf32>
    %cst_136 = arith.constant dense<0xFF800000> : vector<8xf32>
    %360 = vector.multi_reduction <maximumf>, %359, %cst_136 [1] : vector<8x8xf32> to vector<8xf32>
    %361 = vector.shape_cast %360 : vector<8xf32> to vector<8x1xf32>
    %362 = vector.broadcast %361 : vector<8x1xf32> to vector<8x8xf32>
    %363 = arith.subf %359, %362 : vector<8x8xf32>
    %364 = math.exp %363 : vector<8x8xf32>
    %cst_137 = arith.constant dense<0.000000e+00> : vector<8xf32>
    %365 = vector.multi_reduction <add>, %364, %cst_137 [1] : vector<8x8xf32> to vector<8xf32>
    %366 = vector.shape_cast %365 : vector<8xf32> to vector<8x1xf32>
    %367 = tpu.reciprocal %366 {approx = true} : vector<8x1xf32> -> vector<8x1xf32>
    %368 = vector.broadcast %367 : vector<8x1xf32> to vector<8x8xf32>
    %369 = arith.mulf %364, %368 : vector<8x8xf32>
    %370 = vector.extract_strided_slice %354 {offsets = [0, 0], sizes = [8, 8], strides = [1, 1]} : vector<8x32xf32> to vector<8x8xf32>
    %cst_138 = arith.constant dense<0.000000e+00> : vector<8x8xf32>
    %371 = tpu.matmul %369, %370, %cst_138 {dimension_numbers = #tpu.dot_dimension_numbers<[1], [0], [0], [1], [0, 0, 1, 1], [], []>} : vector<8x8xf32>, vector<8x8xf32>, vector<8x8xf32> -> vector<8x8xf32>
    %372 = vector.extract_strided_slice %347 {offsets = [0, 0], sizes = [8, 32], strides = [1, 1]} : vector<32x32xf32> to vector<8x32xf32>
    %cst_139 = arith.constant dense<0.000000e+00> : vector<8x32xf32>
    %373 = tpu.matmul %371, %372, %cst_139 {dimension_numbers = #tpu.dot_dimension_numbers<[1], [0], [0], [1], [0, 0, 1, 1], [], []>} : vector<8x8xf32>, vector<8x32xf32>, vector<8x32xf32> -> vector<8x32xf32>
    %374 = arith.addf %355, %373 : vector<8x32xf32>
    %375 = vector.extract_strided_slice %352 {offsets = [0, 8], sizes = [8, 8], strides = [1, 1]} : vector<8x32xf32> to vector<8x8xf32>
    %376 = vector.extract_strided_slice %353 {offsets = [0, 8], sizes = [8, 8], strides = [1, 1]} : vector<8x32xf32> to vector<8x8xf32>
    %cst_140 = arith.constant dense<0.000000e+00> : vector<8x8xf32>
    %377 = tpu.matmul %375, %376, %cst_140 {dimension_numbers = #tpu.dot_dimension_numbers<[1], [1], [0], [0], [0, 0, 1, 0], [], []>} : vector<8x8xf32>, vector<8x8xf32>, vector<8x8xf32> -> vector<8x8xf32>
    %378 = arith.addf %377, %2 : vector<8x8xf32>
    %cst_141 = arith.constant dense<0xFF800000> : vector<8xf32>
    %379 = vector.multi_reduction <maximumf>, %378, %cst_141 [1] : vector<8x8xf32> to vector<8xf32>
    %380 = vector.shape_cast %379 : vector<8xf32> to vector<8x1xf32>
    %381 = vector.broadcast %380 : vector<8x1xf32> to vector<8x8xf32>
    %382 = arith.subf %378, %381 : vector<8x8xf32>
    %383 = math.exp %382 : vector<8x8xf32>
    %cst_142 = arith.constant dense<0.000000e+00> : vector<8xf32>
    %384 = vector.multi_reduction <add>, %383, %cst_142 [1] : vector<8x8xf32> to vector<8xf32>
    %385 = vector.shape_cast %384 : vector<8xf32> to vector<8x1xf32>
    %386 = tpu.reciprocal %385 {approx = true} : vector<8x1xf32> -> vector<8x1xf32>
    %387 = vector.broadcast %386 : vector<8x1xf32> to vector<8x8xf32>
    %388 = arith.mulf %383, %387 : vector<8x8xf32>
    %389 = vector.extract_strided_slice %354 {offsets = [0, 8], sizes = [8, 8], strides = [1, 1]} : vector<8x32xf32> to vector<8x8xf32>
    %cst_143 = arith.constant dense<0.000000e+00> : vector<8x8xf32>
    %390 = tpu.matmul %388, %389, %cst_143 {dimension_numbers = #tpu.dot_dimension_numbers<[1], [0], [0], [1], [0, 0, 1, 1], [], []>} : vector<8x8xf32>, vector<8x8xf32>, vector<8x8xf32> -> vector<8x8xf32>
    %391 = vector.extract_strided_slice %347 {offsets = [8, 0], sizes = [8, 32], strides = [1, 1]} : vector<32x32xf32> to vector<8x32xf32>
    %cst_144 = arith.constant dense<0.000000e+00> : vector<8x32xf32>
    %392 = tpu.matmul %390, %391, %cst_144 {dimension_numbers = #tpu.dot_dimension_numbers<[1], [0], [0], [1], [0, 0, 1, 1], [], []>} : vector<8x8xf32>, vector<8x32xf32>, vector<8x32xf32> -> vector<8x32xf32>
    %393 = arith.addf %374, %392 : vector<8x32xf32>
    %394 = vector.extract_strided_slice %352 {offsets = [0, 16], sizes = [8, 8], strides = [1, 1]} : vector<8x32xf32> to vector<8x8xf32>
    %395 = vector.extract_strided_slice %353 {offsets = [0, 16], sizes = [8, 8], strides = [1, 1]} : vector<8x32xf32> to vector<8x8xf32>
    %cst_145 = arith.constant dense<0.000000e+00> : vector<8x8xf32>
    %396 = tpu.matmul %394, %395, %cst_145 {dimension_numbers = #tpu.dot_dimension_numbers<[1], [1], [0], [0], [0, 0, 1, 0], [], []>} : vector<8x8xf32>, vector<8x8xf32>, vector<8x8xf32> -> vector<8x8xf32>
    %397 = arith.addf %396, %2 : vector<8x8xf32>
    %cst_146 = arith.constant dense<0xFF800000> : vector<8xf32>
    %398 = vector.multi_reduction <maximumf>, %397, %cst_146 [1] : vector<8x8xf32> to vector<8xf32>
    %399 = vector.shape_cast %398 : vector<8xf32> to vector<8x1xf32>
    %400 = vector.broadcast %399 : vector<8x1xf32> to vector<8x8xf32>
    %401 = arith.subf %397, %400 : vector<8x8xf32>
    %402 = math.exp %401 : vector<8x8xf32>
    %cst_147 = arith.constant dense<0.000000e+00> : vector<8xf32>
    %403 = vector.multi_reduction <add>, %402, %cst_147 [1] : vector<8x8xf32> to vector<8xf32>
    %404 = vector.shape_cast %403 : vector<8xf32> to vector<8x1xf32>
    %405 = tpu.reciprocal %404 {approx = true} : vector<8x1xf32> -> vector<8x1xf32>
    %406 = vector.broadcast %405 : vector<8x1xf32> to vector<8x8xf32>
    %407 = arith.mulf %402, %406 : vector<8x8xf32>
    %408 = vector.extract_strided_slice %354 {offsets = [0, 16], sizes = [8, 8], strides = [1, 1]} : vector<8x32xf32> to vector<8x8xf32>
    %cst_148 = arith.constant dense<0.000000e+00> : vector<8x8xf32>
    %409 = tpu.matmul %407, %408, %cst_148 {dimension_numbers = #tpu.dot_dimension_numbers<[1], [0], [0], [1], [0, 0, 1, 1], [], []>} : vector<8x8xf32>, vector<8x8xf32>, vector<8x8xf32> -> vector<8x8xf32>
    %410 = vector.extract_strided_slice %347 {offsets = [16, 0], sizes = [8, 32], strides = [1, 1]} : vector<32x32xf32> to vector<8x32xf32>
    %cst_149 = arith.constant dense<0.000000e+00> : vector<8x32xf32>
    %411 = tpu.matmul %409, %410, %cst_149 {dimension_numbers = #tpu.dot_dimension_numbers<[1], [0], [0], [1], [0, 0, 1, 1], [], []>} : vector<8x8xf32>, vector<8x32xf32>, vector<8x32xf32> -> vector<8x32xf32>
    %412 = arith.addf %393, %411 : vector<8x32xf32>
    %413 = vector.extract_strided_slice %352 {offsets = [0, 24], sizes = [8, 8], strides = [1, 1]} : vector<8x32xf32> to vector<8x8xf32>
    %414 = vector.extract_strided_slice %353 {offsets = [0, 24], sizes = [8, 8], strides = [1, 1]} : vector<8x32xf32> to vector<8x8xf32>
    %cst_150 = arith.constant dense<0.000000e+00> : vector<8x8xf32>
    %415 = tpu.matmul %413, %414, %cst_150 {dimension_numbers = #tpu.dot_dimension_numbers<[1], [1], [0], [0], [0, 0, 1, 0], [], []>} : vector<8x8xf32>, vector<8x8xf32>, vector<8x8xf32> -> vector<8x8xf32>
    %416 = arith.addf %415, %2 : vector<8x8xf32>
    %cst_151 = arith.constant dense<0xFF800000> : vector<8xf32>
    %417 = vector.multi_reduction <maximumf>, %416, %cst_151 [1] : vector<8x8xf32> to vector<8xf32>
    %418 = vector.shape_cast %417 : vector<8xf32> to vector<8x1xf32>
    %419 = vector.broadcast %418 : vector<8x1xf32> to vector<8x8xf32>
    %420 = arith.subf %416, %419 : vector<8x8xf32>
    %421 = math.exp %420 : vector<8x8xf32>
    %cst_152 = arith.constant dense<0.000000e+00> : vector<8xf32>
    %422 = vector.multi_reduction <add>, %421, %cst_152 [1] : vector<8x8xf32> to vector<8xf32>
    %423 = vector.shape_cast %422 : vector<8xf32> to vector<8x1xf32>
    %424 = tpu.reciprocal %423 {approx = true} : vector<8x1xf32> -> vector<8x1xf32>
    %425 = vector.broadcast %424 : vector<8x1xf32> to vector<8x8xf32>
    %426 = arith.mulf %421, %425 : vector<8x8xf32>
    %427 = vector.extract_strided_slice %354 {offsets = [0, 24], sizes = [8, 8], strides = [1, 1]} : vector<8x32xf32> to vector<8x8xf32>
    %cst_153 = arith.constant dense<0.000000e+00> : vector<8x8xf32>
    %428 = tpu.matmul %426, %427, %cst_153 {dimension_numbers = #tpu.dot_dimension_numbers<[1], [0], [0], [1], [0, 0, 1, 1], [], []>} : vector<8x8xf32>, vector<8x8xf32>, vector<8x8xf32> -> vector<8x8xf32>
    %429 = vector.extract_strided_slice %347 {offsets = [24, 0], sizes = [8, 32], strides = [1, 1]} : vector<32x32xf32> to vector<8x32xf32>
    %cst_154 = arith.constant dense<0.000000e+00> : vector<8x32xf32>
    %430 = tpu.matmul %428, %429, %cst_154 {dimension_numbers = #tpu.dot_dimension_numbers<[1], [0], [0], [1], [0, 0, 1, 1], [], []>} : vector<8x8xf32>, vector<8x32xf32>, vector<8x32xf32> -> vector<8x32xf32>
    %431 = arith.addf %412, %430 : vector<8x32xf32>
    %432 = vector.broadcast %348 : vector<1x32xf32> to vector<8x32xf32>
    %433 = arith.addf %431, %432 : vector<8x32xf32>
    %434 = arith.addf %1, %433 : vector<8x32xf32>
    %435 = vector.extract_strided_slice %341 {offsets = [1, 0], sizes = [1, 32], strides = [1, 1]} : vector<9x32xf32> to vector<1x32xf32>
    %436 = vector.extract_strided_slice %341 {offsets = [2, 0], sizes = [1, 32], strides = [1, 1]} : vector<9x32xf32> to vector<1x32xf32>
    %cst_155 = arith.constant dense<0.000000e+00> : vector<8xf32>
    %437 = vector.multi_reduction <add>, %434, %cst_155 [1] : vector<8x32xf32> to vector<8xf32>
    %438 = vector.shape_cast %437 : vector<8xf32> to vector<8x1xf32>
    %cst_156 = arith.constant 3.200000e+01 : f32
    %439 = vector.broadcast %cst_156 : f32 to vector<8x1xf32>
    %440 = arith.divf %438, %439 : vector<8x1xf32>
    %441 = vector.broadcast %440 : vector<8x1xf32> to vector<8x32xf32>
    %442 = arith.subf %434, %441 : vector<8x32xf32>
    %443 = arith.mulf %442, %442 : vector<8x32xf32>
    %cst_157 = arith.constant dense<0.000000e+00> : vector<8xf32>
    %444 = vector.multi_reduction <add>, %443, %cst_157 [1] : vector<8x32xf32> to vector<8xf32>
    %445 = vector.shape_cast %444 : vector<8xf32> to vector<8x1xf32>
    %cst_158 = arith.constant 3.200000e+01 : f32
    %446 = vector.broadcast %cst_158 : f32 to vector<8x1xf32>
    %447 = arith.divf %445, %446 : vector<8x1xf32>
    %cst_159 = arith.constant 9.99999974E-6 : f32
    %448 = vector.broadcast %cst_159 : f32 to vector<8x1xf32>
    %449 = arith.addf %447, %448 : vector<8x1xf32>
    %450 = math.rsqrt %449 : vector<8x1xf32>
    %451 = vector.broadcast %450 : vector<8x1xf32> to vector<8x32xf32>
    %452 = arith.mulf %442, %451 : vector<8x32xf32>
    %453 = vector.broadcast %435 : vector<1x32xf32> to vector<8x32xf32>
    %454 = arith.mulf %452, %453 : vector<8x32xf32>
    %455 = vector.broadcast %436 : vector<1x32xf32> to vector<8x32xf32>
    %456 = arith.addf %454, %455 : vector<8x32xf32>
    %c0_160 = arith.constant 0 : index
    %c0_161 = arith.constant 0 : index
    %c0_162 = arith.constant 0 : index
    %457 = vector.load %arg12[%c0_160, %c0_161, %c0_162] : memref<2x32x32xf32, #tpu.memory_space<vmem>>, vector<1x32x32xf32>
    %458 = vector.shape_cast %457 : vector<1x32x32xf32> to vector<32x32xf32>
    %c0_163 = arith.constant 0 : index
    %c0_164 = arith.constant 0 : index
    %c0_165 = arith.constant 0 : index
    %459 = vector.load %arg13[%c0_163, %c0_164, %c0_165] : memref<2x32x64xf32, #tpu.memory_space<vmem>>, vector<1x32x64xf32>
    %460 = vector.shape_cast %459 : vector<1x32x64xf32> to vector<32x64xf32>
    %c0_166 = arith.constant 0 : index
    %c0_167 = arith.constant 0 : index
    %c0_168 = arith.constant 0 : index
    %461 = vector.load %arg18[%c0_166, %c0_167, %c0_168] : memref<2x1x96xf32, #tpu.memory_space<vmem>>, vector<1x1x96xf32>
    %462 = vector.shape_cast %461 : vector<1x1x96xf32> to vector<1x96xf32>
    %c0_169 = arith.constant 0 : index
    %c0_170 = arith.constant 0 : index
    %c0_171 = arith.constant 0 : index
    %463 = vector.load %arg14[%c0_169, %c0_170, %c0_171] : memref<2x32x32xf32, #tpu.memory_space<vmem>>, vector<1x32x32xf32>
    %464 = vector.shape_cast %463 : vector<1x32x32xf32> to vector<32x32xf32>
    %465 = vector.extract_strided_slice %341 {offsets = [3, 0], sizes = [1, 32], strides = [1, 1]} : vector<9x32xf32> to vector<1x32xf32>
    %cst_172 = arith.constant dense<0.000000e+00> : vector<8x32xf32>
    %466 = tpu.matmul %456, %458, %cst_172 {dimension_numbers = #tpu.dot_dimension_numbers<[1], [0], [0], [1], [0, 0, 1, 1], [], []>} : vector<8x32xf32>, vector<32x32xf32>, vector<8x32xf32> -> vector<8x32xf32>
    %467 = vector.extract_strided_slice %462 {offsets = [0, 0], sizes = [1, 32], strides = [1, 1]} : vector<1x96xf32> to vector<1x32xf32>
    %468 = vector.broadcast %467 : vector<1x32xf32> to vector<8x32xf32>
    %469 = arith.addf %466, %468 : vector<8x32xf32>
    %cst_173 = arith.constant dense<0.000000e+00> : vector<8x64xf32>
    %470 = tpu.matmul %339, %460, %cst_173 {dimension_numbers = #tpu.dot_dimension_numbers<[1], [0], [0], [1], [0, 0, 1, 1], [], []>} : vector<8x32xf32>, vector<32x64xf32>, vector<8x64xf32> -> vector<8x64xf32>
    %471 = vector.extract_strided_slice %462 {offsets = [0, 32], sizes = [1, 64], strides = [1, 1]} : vector<1x96xf32> to vector<1x64xf32>
    %472 = vector.broadcast %471 : vector<1x64xf32> to vector<8x64xf32>
    %473 = arith.addf %470, %472 : vector<8x64xf32>
    %474 = vector.extract_strided_slice %473 {offsets = [0, 0], sizes = [8, 32], strides = [1, 1]} : vector<8x64xf32> to vector<8x32xf32>
    %475 = vector.extract_strided_slice %473 {offsets = [0, 32], sizes = [8, 32], strides = [1, 1]} : vector<8x64xf32> to vector<8x32xf32>
    %cst_174 = arith.constant 0.000000e+00 : f32
    %476 = vector.broadcast %cst_174 : f32 to vector<8x32xf32>
    %477 = vector.extract_strided_slice %469 {offsets = [0, 0], sizes = [8, 8], strides = [1, 1]} : vector<8x32xf32> to vector<8x8xf32>
    %478 = vector.extract_strided_slice %474 {offsets = [0, 0], sizes = [8, 8], strides = [1, 1]} : vector<8x32xf32> to vector<8x8xf32>
    %cst_175 = arith.constant dense<0.000000e+00> : vector<8x8xf32>
    %479 = tpu.matmul %477, %478, %cst_175 {dimension_numbers = #tpu.dot_dimension_numbers<[1], [1], [0], [0], [0, 0, 1, 0], [], []>} : vector<8x8xf32>, vector<8x8xf32>, vector<8x8xf32> -> vector<8x8xf32>
    %cst_176 = arith.constant dense<0xFF800000> : vector<8xf32>
    %480 = vector.multi_reduction <maximumf>, %479, %cst_176 [1] : vector<8x8xf32> to vector<8xf32>
    %481 = vector.shape_cast %480 : vector<8xf32> to vector<8x1xf32>
    %482 = vector.broadcast %481 : vector<8x1xf32> to vector<8x8xf32>
    %483 = arith.subf %479, %482 : vector<8x8xf32>
    %484 = math.exp %483 : vector<8x8xf32>
    %cst_177 = arith.constant dense<0.000000e+00> : vector<8xf32>
    %485 = vector.multi_reduction <add>, %484, %cst_177 [1] : vector<8x8xf32> to vector<8xf32>
    %486 = vector.shape_cast %485 : vector<8xf32> to vector<8x1xf32>
    %487 = tpu.reciprocal %486 {approx = true} : vector<8x1xf32> -> vector<8x1xf32>
    %488 = vector.broadcast %487 : vector<8x1xf32> to vector<8x8xf32>
    %489 = arith.mulf %484, %488 : vector<8x8xf32>
    %490 = vector.extract_strided_slice %475 {offsets = [0, 0], sizes = [8, 8], strides = [1, 1]} : vector<8x32xf32> to vector<8x8xf32>
    %cst_178 = arith.constant dense<0.000000e+00> : vector<8x8xf32>
    %491 = tpu.matmul %489, %490, %cst_178 {dimension_numbers = #tpu.dot_dimension_numbers<[1], [0], [0], [1], [0, 0, 1, 1], [], []>} : vector<8x8xf32>, vector<8x8xf32>, vector<8x8xf32> -> vector<8x8xf32>
    %492 = vector.extract_strided_slice %464 {offsets = [0, 0], sizes = [8, 32], strides = [1, 1]} : vector<32x32xf32> to vector<8x32xf32>
    %cst_179 = arith.constant dense<0.000000e+00> : vector<8x32xf32>
    %493 = tpu.matmul %491, %492, %cst_179 {dimension_numbers = #tpu.dot_dimension_numbers<[1], [0], [0], [1], [0, 0, 1, 1], [], []>} : vector<8x8xf32>, vector<8x32xf32>, vector<8x32xf32> -> vector<8x32xf32>
    %494 = arith.addf %476, %493 : vector<8x32xf32>
    %495 = vector.extract_strided_slice %469 {offsets = [0, 8], sizes = [8, 8], strides = [1, 1]} : vector<8x32xf32> to vector<8x8xf32>
    %496 = vector.extract_strided_slice %474 {offsets = [0, 8], sizes = [8, 8], strides = [1, 1]} : vector<8x32xf32> to vector<8x8xf32>
    %cst_180 = arith.constant dense<0.000000e+00> : vector<8x8xf32>
    %497 = tpu.matmul %495, %496, %cst_180 {dimension_numbers = #tpu.dot_dimension_numbers<[1], [1], [0], [0], [0, 0, 1, 0], [], []>} : vector<8x8xf32>, vector<8x8xf32>, vector<8x8xf32> -> vector<8x8xf32>
    %cst_181 = arith.constant dense<0xFF800000> : vector<8xf32>
    %498 = vector.multi_reduction <maximumf>, %497, %cst_181 [1] : vector<8x8xf32> to vector<8xf32>
    %499 = vector.shape_cast %498 : vector<8xf32> to vector<8x1xf32>
    %500 = vector.broadcast %499 : vector<8x1xf32> to vector<8x8xf32>
    %501 = arith.subf %497, %500 : vector<8x8xf32>
    %502 = math.exp %501 : vector<8x8xf32>
    %cst_182 = arith.constant dense<0.000000e+00> : vector<8xf32>
    %503 = vector.multi_reduction <add>, %502, %cst_182 [1] : vector<8x8xf32> to vector<8xf32>
    %504 = vector.shape_cast %503 : vector<8xf32> to vector<8x1xf32>
    %505 = tpu.reciprocal %504 {approx = true} : vector<8x1xf32> -> vector<8x1xf32>
    %506 = vector.broadcast %505 : vector<8x1xf32> to vector<8x8xf32>
    %507 = arith.mulf %502, %506 : vector<8x8xf32>
    %508 = vector.extract_strided_slice %475 {offsets = [0, 8], sizes = [8, 8], strides = [1, 1]} : vector<8x32xf32> to vector<8x8xf32>
    %cst_183 = arith.constant dense<0.000000e+00> : vector<8x8xf32>
    %509 = tpu.matmul %507, %508, %cst_183 {dimension_numbers = #tpu.dot_dimension_numbers<[1], [0], [0], [1], [0, 0, 1, 1], [], []>} : vector<8x8xf32>, vector<8x8xf32>, vector<8x8xf32> -> vector<8x8xf32>
    %510 = vector.extract_strided_slice %464 {offsets = [8, 0], sizes = [8, 32], strides = [1, 1]} : vector<32x32xf32> to vector<8x32xf32>
    %cst_184 = arith.constant dense<0.000000e+00> : vector<8x32xf32>
    %511 = tpu.matmul %509, %510, %cst_184 {dimension_numbers = #tpu.dot_dimension_numbers<[1], [0], [0], [1], [0, 0, 1, 1], [], []>} : vector<8x8xf32>, vector<8x32xf32>, vector<8x32xf32> -> vector<8x32xf32>
    %512 = arith.addf %494, %511 : vector<8x32xf32>
    %513 = vector.extract_strided_slice %469 {offsets = [0, 16], sizes = [8, 8], strides = [1, 1]} : vector<8x32xf32> to vector<8x8xf32>
    %514 = vector.extract_strided_slice %474 {offsets = [0, 16], sizes = [8, 8], strides = [1, 1]} : vector<8x32xf32> to vector<8x8xf32>
    %cst_185 = arith.constant dense<0.000000e+00> : vector<8x8xf32>
    %515 = tpu.matmul %513, %514, %cst_185 {dimension_numbers = #tpu.dot_dimension_numbers<[1], [1], [0], [0], [0, 0, 1, 0], [], []>} : vector<8x8xf32>, vector<8x8xf32>, vector<8x8xf32> -> vector<8x8xf32>
    %cst_186 = arith.constant dense<0xFF800000> : vector<8xf32>
    %516 = vector.multi_reduction <maximumf>, %515, %cst_186 [1] : vector<8x8xf32> to vector<8xf32>
    %517 = vector.shape_cast %516 : vector<8xf32> to vector<8x1xf32>
    %518 = vector.broadcast %517 : vector<8x1xf32> to vector<8x8xf32>
    %519 = arith.subf %515, %518 : vector<8x8xf32>
    %520 = math.exp %519 : vector<8x8xf32>
    %cst_187 = arith.constant dense<0.000000e+00> : vector<8xf32>
    %521 = vector.multi_reduction <add>, %520, %cst_187 [1] : vector<8x8xf32> to vector<8xf32>
    %522 = vector.shape_cast %521 : vector<8xf32> to vector<8x1xf32>
    %523 = tpu.reciprocal %522 {approx = true} : vector<8x1xf32> -> vector<8x1xf32>
    %524 = vector.broadcast %523 : vector<8x1xf32> to vector<8x8xf32>
    %525 = arith.mulf %520, %524 : vector<8x8xf32>
    %526 = vector.extract_strided_slice %475 {offsets = [0, 16], sizes = [8, 8], strides = [1, 1]} : vector<8x32xf32> to vector<8x8xf32>
    %cst_188 = arith.constant dense<0.000000e+00> : vector<8x8xf32>
    %527 = tpu.matmul %525, %526, %cst_188 {dimension_numbers = #tpu.dot_dimension_numbers<[1], [0], [0], [1], [0, 0, 1, 1], [], []>} : vector<8x8xf32>, vector<8x8xf32>, vector<8x8xf32> -> vector<8x8xf32>
    %528 = vector.extract_strided_slice %464 {offsets = [16, 0], sizes = [8, 32], strides = [1, 1]} : vector<32x32xf32> to vector<8x32xf32>
    %cst_189 = arith.constant dense<0.000000e+00> : vector<8x32xf32>
    %529 = tpu.matmul %527, %528, %cst_189 {dimension_numbers = #tpu.dot_dimension_numbers<[1], [0], [0], [1], [0, 0, 1, 1], [], []>} : vector<8x8xf32>, vector<8x32xf32>, vector<8x32xf32> -> vector<8x32xf32>
    %530 = arith.addf %512, %529 : vector<8x32xf32>
    %531 = vector.extract_strided_slice %469 {offsets = [0, 24], sizes = [8, 8], strides = [1, 1]} : vector<8x32xf32> to vector<8x8xf32>
    %532 = vector.extract_strided_slice %474 {offsets = [0, 24], sizes = [8, 8], strides = [1, 1]} : vector<8x32xf32> to vector<8x8xf32>
    %cst_190 = arith.constant dense<0.000000e+00> : vector<8x8xf32>
    %533 = tpu.matmul %531, %532, %cst_190 {dimension_numbers = #tpu.dot_dimension_numbers<[1], [1], [0], [0], [0, 0, 1, 0], [], []>} : vector<8x8xf32>, vector<8x8xf32>, vector<8x8xf32> -> vector<8x8xf32>
    %cst_191 = arith.constant dense<0xFF800000> : vector<8xf32>
    %534 = vector.multi_reduction <maximumf>, %533, %cst_191 [1] : vector<8x8xf32> to vector<8xf32>
    %535 = vector.shape_cast %534 : vector<8xf32> to vector<8x1xf32>
    %536 = vector.broadcast %535 : vector<8x1xf32> to vector<8x8xf32>
    %537 = arith.subf %533, %536 : vector<8x8xf32>
    %538 = math.exp %537 : vector<8x8xf32>
    %cst_192 = arith.constant dense<0.000000e+00> : vector<8xf32>
    %539 = vector.multi_reduction <add>, %538, %cst_192 [1] : vector<8x8xf32> to vector<8xf32>
    %540 = vector.shape_cast %539 : vector<8xf32> to vector<8x1xf32>
    %541 = tpu.reciprocal %540 {approx = true} : vector<8x1xf32> -> vector<8x1xf32>
    %542 = vector.broadcast %541 : vector<8x1xf32> to vector<8x8xf32>
    %543 = arith.mulf %538, %542 : vector<8x8xf32>
    %544 = vector.extract_strided_slice %475 {offsets = [0, 24], sizes = [8, 8], strides = [1, 1]} : vector<8x32xf32> to vector<8x8xf32>
    %cst_193 = arith.constant dense<0.000000e+00> : vector<8x8xf32>
    %545 = tpu.matmul %543, %544, %cst_193 {dimension_numbers = #tpu.dot_dimension_numbers<[1], [0], [0], [1], [0, 0, 1, 1], [], []>} : vector<8x8xf32>, vector<8x8xf32>, vector<8x8xf32> -> vector<8x8xf32>
    %546 = vector.extract_strided_slice %464 {offsets = [24, 0], sizes = [8, 32], strides = [1, 1]} : vector<32x32xf32> to vector<8x32xf32>
    %cst_194 = arith.constant dense<0.000000e+00> : vector<8x32xf32>
    %547 = tpu.matmul %545, %546, %cst_194 {dimension_numbers = #tpu.dot_dimension_numbers<[1], [0], [0], [1], [0, 0, 1, 1], [], []>} : vector<8x8xf32>, vector<8x32xf32>, vector<8x32xf32> -> vector<8x32xf32>
    %548 = arith.addf %530, %547 : vector<8x32xf32>
    %549 = vector.broadcast %465 : vector<1x32xf32> to vector<8x32xf32>
    %550 = arith.addf %548, %549 : vector<8x32xf32>
    %551 = arith.addf %456, %550 : vector<8x32xf32>
    %552 = vector.extract_strided_slice %341 {offsets = [4, 0], sizes = [1, 32], strides = [1, 1]} : vector<9x32xf32> to vector<1x32xf32>
    %553 = vector.extract_strided_slice %341 {offsets = [5, 0], sizes = [1, 32], strides = [1, 1]} : vector<9x32xf32> to vector<1x32xf32>
    %cst_195 = arith.constant dense<0.000000e+00> : vector<8xf32>
    %554 = vector.multi_reduction <add>, %551, %cst_195 [1] : vector<8x32xf32> to vector<8xf32>
    %555 = vector.shape_cast %554 : vector<8xf32> to vector<8x1xf32>
    %cst_196 = arith.constant 3.200000e+01 : f32
    %556 = vector.broadcast %cst_196 : f32 to vector<8x1xf32>
    %557 = arith.divf %555, %556 : vector<8x1xf32>
    %558 = vector.broadcast %557 : vector<8x1xf32> to vector<8x32xf32>
    %559 = arith.subf %551, %558 : vector<8x32xf32>
    %560 = arith.mulf %559, %559 : vector<8x32xf32>
    %cst_197 = arith.constant dense<0.000000e+00> : vector<8xf32>
    %561 = vector.multi_reduction <add>, %560, %cst_197 [1] : vector<8x32xf32> to vector<8xf32>
    %562 = vector.shape_cast %561 : vector<8xf32> to vector<8x1xf32>
    %cst_198 = arith.constant 3.200000e+01 : f32
    %563 = vector.broadcast %cst_198 : f32 to vector<8x1xf32>
    %564 = arith.divf %562, %563 : vector<8x1xf32>
    %cst_199 = arith.constant 9.99999974E-6 : f32
    %565 = vector.broadcast %cst_199 : f32 to vector<8x1xf32>
    %566 = arith.addf %564, %565 : vector<8x1xf32>
    %567 = math.rsqrt %566 : vector<8x1xf32>
    %568 = vector.broadcast %567 : vector<8x1xf32> to vector<8x32xf32>
    %569 = arith.mulf %559, %568 : vector<8x32xf32>
    %570 = vector.broadcast %552 : vector<1x32xf32> to vector<8x32xf32>
    %571 = arith.mulf %569, %570 : vector<8x32xf32>
    %572 = vector.broadcast %553 : vector<1x32xf32> to vector<8x32xf32>
    %573 = arith.addf %571, %572 : vector<8x32xf32>
    %c0_200 = arith.constant 0 : index
    %c0_201 = arith.constant 0 : index
    %c0_202 = arith.constant 0 : index
    %574 = vector.load %arg15[%c0_200, %c0_201, %c0_202] : memref<2x32x2048xbf16, #tpu.memory_space<vmem>>, vector<1x32x2048xbf16>
    %575 = vector.shape_cast %574 : vector<1x32x2048xbf16> to vector<32x2048xbf16>
    %c0_203 = arith.constant 0 : index
    %c0_204 = arith.constant 0 : index
    %c0_205 = arith.constant 0 : index
    %576 = vector.load %arg19[%c0_203, %c0_204, %c0_205] : memref<2x1x2048xf32, #tpu.memory_space<vmem>>, vector<1x1x2048xf32>
    %577 = vector.shape_cast %576 : vector<1x1x2048xf32> to vector<1x2048xf32>
    %c0_206 = arith.constant 0 : index
    %c0_207 = arith.constant 0 : index
    %c0_208 = arith.constant 0 : index
    %578 = vector.load %arg16[%c0_206, %c0_207, %c0_208] : memref<2x2048x32xbf16, #tpu.memory_space<vmem>>, vector<1x2048x32xbf16>
    %579 = vector.shape_cast %578 : vector<1x2048x32xbf16> to vector<2048x32xbf16>
    %580 = vector.extract_strided_slice %341 {offsets = [6, 0], sizes = [1, 32], strides = [1, 1]} : vector<9x32xf32> to vector<1x32xf32>
    %581 = arith.truncf %573 : vector<8x32xf32> to vector<8x32xbf16>
    %cst_209 = arith.constant dense<0.000000e+00> : vector<8x2048xf32>
    %582 = tpu.matmul %581, %575, %cst_209 {dimension_numbers = #tpu.dot_dimension_numbers<[1], [0], [0], [1], [0, 0, 1, 1], [], []>} : vector<8x32xbf16>, vector<32x2048xbf16>, vector<8x2048xf32> -> vector<8x2048xf32>
    %583 = vector.broadcast %577 : vector<1x2048xf32> to vector<8x2048xf32>
    %584 = arith.addf %582, %583 : vector<8x2048xf32>
    %cst_210 = arith.constant 0.000000e+00 : f32
    %585 = vector.broadcast %cst_210 : f32 to vector<8x2048xf32>
    %586 = arith.maximumf %584, %585 : vector<8x2048xf32>
    %587 = arith.truncf %586 : vector<8x2048xf32> to vector<8x2048xbf16>
    %cst_211 = arith.constant dense<0.000000e+00> : vector<8x32xf32>
    %588 = tpu.matmul %587, %579, %cst_211 {dimension_numbers = #tpu.dot_dimension_numbers<[1], [0], [0], [1], [0, 0, 1, 1], [], []>} : vector<8x2048xbf16>, vector<2048x32xbf16>, vector<8x32xf32> -> vector<8x32xf32>
    %589 = vector.broadcast %580 : vector<1x32xf32> to vector<8x32xf32>
    %590 = arith.addf %588, %589 : vector<8x32xf32>
    %591 = arith.addf %573, %590 : vector<8x32xf32>
    %592 = vector.extract_strided_slice %341 {offsets = [7, 0], sizes = [1, 32], strides = [1, 1]} : vector<9x32xf32> to vector<1x32xf32>
    %593 = vector.extract_strided_slice %341 {offsets = [8, 0], sizes = [1, 32], strides = [1, 1]} : vector<9x32xf32> to vector<1x32xf32>
    %cst_212 = arith.constant dense<0.000000e+00> : vector<8xf32>
    %594 = vector.multi_reduction <add>, %591, %cst_212 [1] : vector<8x32xf32> to vector<8xf32>
    %595 = vector.shape_cast %594 : vector<8xf32> to vector<8x1xf32>
    %cst_213 = arith.constant 3.200000e+01 : f32
    %596 = vector.broadcast %cst_213 : f32 to vector<8x1xf32>
    %597 = arith.divf %595, %596 : vector<8x1xf32>
    %598 = vector.broadcast %597 : vector<8x1xf32> to vector<8x32xf32>
    %599 = arith.subf %591, %598 : vector<8x32xf32>
    %600 = arith.mulf %599, %599 : vector<8x32xf32>
    %cst_214 = arith.constant dense<0.000000e+00> : vector<8xf32>
    %601 = vector.multi_reduction <add>, %600, %cst_214 [1] : vector<8x32xf32> to vector<8xf32>
    %602 = vector.shape_cast %601 : vector<8xf32> to vector<8x1xf32>
    %cst_215 = arith.constant 3.200000e+01 : f32
    %603 = vector.broadcast %cst_215 : f32 to vector<8x1xf32>
    %604 = arith.divf %602, %603 : vector<8x1xf32>
    %cst_216 = arith.constant 9.99999974E-6 : f32
    %605 = vector.broadcast %cst_216 : f32 to vector<8x1xf32>
    %606 = arith.addf %604, %605 : vector<8x1xf32>
    %607 = math.rsqrt %606 : vector<8x1xf32>
    %608 = vector.broadcast %607 : vector<8x1xf32> to vector<8x32xf32>
    %609 = arith.mulf %599, %608 : vector<8x32xf32>
    %610 = vector.broadcast %592 : vector<1x32xf32> to vector<8x32xf32>
    %611 = arith.mulf %609, %610 : vector<8x32xf32>
    %612 = vector.broadcast %593 : vector<1x32xf32> to vector<8x32xf32>
    %613 = arith.addf %611, %612 : vector<8x32xf32>
    %c1_217 = arith.constant 1 : index
    %c0_218 = arith.constant 0 : index
    %c0_219 = arith.constant 0 : index
    %614 = vector.load %arg20[%c1_217, %c0_218, %c0_219] : memref<2x9x32xf32, #tpu.memory_space<vmem>>, vector<1x9x32xf32>
    %615 = vector.shape_cast %614 : vector<1x9x32xf32> to vector<9x32xf32>
    %c1_220 = arith.constant 1 : index
    %c0_221 = arith.constant 0 : index
    %c0_222 = arith.constant 0 : index
    %616 = vector.load %arg10[%c1_220, %c0_221, %c0_222] : memref<2x32x96xf32, #tpu.memory_space<vmem>>, vector<1x32x96xf32>
    %617 = vector.shape_cast %616 : vector<1x32x96xf32> to vector<32x96xf32>
    %c1_223 = arith.constant 1 : index
    %c0_224 = arith.constant 0 : index
    %c0_225 = arith.constant 0 : index
    %618 = vector.load %arg17[%c1_223, %c0_224, %c0_225] : memref<2x1x96xf32, #tpu.memory_space<vmem>>, vector<1x1x96xf32>
    %619 = vector.shape_cast %618 : vector<1x1x96xf32> to vector<1x96xf32>
    %c1_226 = arith.constant 1 : index
    %c0_227 = arith.constant 0 : index
    %c0_228 = arith.constant 0 : index
    %620 = vector.load %arg11[%c1_226, %c0_227, %c0_228] : memref<2x32x32xf32, #tpu.memory_space<vmem>>, vector<1x32x32xf32>
    %621 = vector.shape_cast %620 : vector<1x32x32xf32> to vector<32x32xf32>
    %622 = vector.extract_strided_slice %615 {offsets = [0, 0], sizes = [1, 32], strides = [1, 1]} : vector<9x32xf32> to vector<1x32xf32>
    %cst_229 = arith.constant dense<0.000000e+00> : vector<8x96xf32>
    %623 = tpu.matmul %613, %617, %cst_229 {dimension_numbers = #tpu.dot_dimension_numbers<[1], [0], [0], [1], [0, 0, 1, 1], [], []>} : vector<8x32xf32>, vector<32x96xf32>, vector<8x96xf32> -> vector<8x96xf32>
    %624 = vector.broadcast %619 : vector<1x96xf32> to vector<8x96xf32>
    %625 = arith.addf %623, %624 : vector<8x96xf32>
    %626 = vector.extract_strided_slice %625 {offsets = [0, 0], sizes = [8, 32], strides = [1, 1]} : vector<8x96xf32> to vector<8x32xf32>
    %627 = vector.extract_strided_slice %625 {offsets = [0, 32], sizes = [8, 32], strides = [1, 1]} : vector<8x96xf32> to vector<8x32xf32>
    %628 = vector.extract_strided_slice %625 {offsets = [0, 64], sizes = [8, 32], strides = [1, 1]} : vector<8x96xf32> to vector<8x32xf32>
    %cst_230 = arith.constant 0.000000e+00 : f32
    %629 = vector.broadcast %cst_230 : f32 to vector<8x32xf32>
    %630 = vector.extract_strided_slice %626 {offsets = [0, 0], sizes = [8, 8], strides = [1, 1]} : vector<8x32xf32> to vector<8x8xf32>
    %631 = vector.extract_strided_slice %627 {offsets = [0, 0], sizes = [8, 8], strides = [1, 1]} : vector<8x32xf32> to vector<8x8xf32>
    %cst_231 = arith.constant dense<0.000000e+00> : vector<8x8xf32>
    %632 = tpu.matmul %630, %631, %cst_231 {dimension_numbers = #tpu.dot_dimension_numbers<[1], [1], [0], [0], [0, 0, 1, 0], [], []>} : vector<8x8xf32>, vector<8x8xf32>, vector<8x8xf32> -> vector<8x8xf32>
    %633 = arith.addf %632, %2 : vector<8x8xf32>
    %cst_232 = arith.constant dense<0xFF800000> : vector<8xf32>
    %634 = vector.multi_reduction <maximumf>, %633, %cst_232 [1] : vector<8x8xf32> to vector<8xf32>
    %635 = vector.shape_cast %634 : vector<8xf32> to vector<8x1xf32>
    %636 = vector.broadcast %635 : vector<8x1xf32> to vector<8x8xf32>
    %637 = arith.subf %633, %636 : vector<8x8xf32>
    %638 = math.exp %637 : vector<8x8xf32>
    %cst_233 = arith.constant dense<0.000000e+00> : vector<8xf32>
    %639 = vector.multi_reduction <add>, %638, %cst_233 [1] : vector<8x8xf32> to vector<8xf32>
    %640 = vector.shape_cast %639 : vector<8xf32> to vector<8x1xf32>
    %641 = tpu.reciprocal %640 {approx = true} : vector<8x1xf32> -> vector<8x1xf32>
    %642 = vector.broadcast %641 : vector<8x1xf32> to vector<8x8xf32>
    %643 = arith.mulf %638, %642 : vector<8x8xf32>
    %644 = vector.extract_strided_slice %628 {offsets = [0, 0], sizes = [8, 8], strides = [1, 1]} : vector<8x32xf32> to vector<8x8xf32>
    %cst_234 = arith.constant dense<0.000000e+00> : vector<8x8xf32>
    %645 = tpu.matmul %643, %644, %cst_234 {dimension_numbers = #tpu.dot_dimension_numbers<[1], [0], [0], [1], [0, 0, 1, 1], [], []>} : vector<8x8xf32>, vector<8x8xf32>, vector<8x8xf32> -> vector<8x8xf32>
    %646 = vector.extract_strided_slice %621 {offsets = [0, 0], sizes = [8, 32], strides = [1, 1]} : vector<32x32xf32> to vector<8x32xf32>
    %cst_235 = arith.constant dense<0.000000e+00> : vector<8x32xf32>
    %647 = tpu.matmul %645, %646, %cst_235 {dimension_numbers = #tpu.dot_dimension_numbers<[1], [0], [0], [1], [0, 0, 1, 1], [], []>} : vector<8x8xf32>, vector<8x32xf32>, vector<8x32xf32> -> vector<8x32xf32>
    %648 = arith.addf %629, %647 : vector<8x32xf32>
    %649 = vector.extract_strided_slice %626 {offsets = [0, 8], sizes = [8, 8], strides = [1, 1]} : vector<8x32xf32> to vector<8x8xf32>
    %650 = vector.extract_strided_slice %627 {offsets = [0, 8], sizes = [8, 8], strides = [1, 1]} : vector<8x32xf32> to vector<8x8xf32>
    %cst_236 = arith.constant dense<0.000000e+00> : vector<8x8xf32>
    %651 = tpu.matmul %649, %650, %cst_236 {dimension_numbers = #tpu.dot_dimension_numbers<[1], [1], [0], [0], [0, 0, 1, 0], [], []>} : vector<8x8xf32>, vector<8x8xf32>, vector<8x8xf32> -> vector<8x8xf32>
    %652 = arith.addf %651, %2 : vector<8x8xf32>
    %cst_237 = arith.constant dense<0xFF800000> : vector<8xf32>
    %653 = vector.multi_reduction <maximumf>, %652, %cst_237 [1] : vector<8x8xf32> to vector<8xf32>
    %654 = vector.shape_cast %653 : vector<8xf32> to vector<8x1xf32>
    %655 = vector.broadcast %654 : vector<8x1xf32> to vector<8x8xf32>
    %656 = arith.subf %652, %655 : vector<8x8xf32>
    %657 = math.exp %656 : vector<8x8xf32>
    %cst_238 = arith.constant dense<0.000000e+00> : vector<8xf32>
    %658 = vector.multi_reduction <add>, %657, %cst_238 [1] : vector<8x8xf32> to vector<8xf32>
    %659 = vector.shape_cast %658 : vector<8xf32> to vector<8x1xf32>
    %660 = tpu.reciprocal %659 {approx = true} : vector<8x1xf32> -> vector<8x1xf32>
    %661 = vector.broadcast %660 : vector<8x1xf32> to vector<8x8xf32>
    %662 = arith.mulf %657, %661 : vector<8x8xf32>
    %663 = vector.extract_strided_slice %628 {offsets = [0, 8], sizes = [8, 8], strides = [1, 1]} : vector<8x32xf32> to vector<8x8xf32>
    %cst_239 = arith.constant dense<0.000000e+00> : vector<8x8xf32>
    %664 = tpu.matmul %662, %663, %cst_239 {dimension_numbers = #tpu.dot_dimension_numbers<[1], [0], [0], [1], [0, 0, 1, 1], [], []>} : vector<8x8xf32>, vector<8x8xf32>, vector<8x8xf32> -> vector<8x8xf32>
    %665 = vector.extract_strided_slice %621 {offsets = [8, 0], sizes = [8, 32], strides = [1, 1]} : vector<32x32xf32> to vector<8x32xf32>
    %cst_240 = arith.constant dense<0.000000e+00> : vector<8x32xf32>
    %666 = tpu.matmul %664, %665, %cst_240 {dimension_numbers = #tpu.dot_dimension_numbers<[1], [0], [0], [1], [0, 0, 1, 1], [], []>} : vector<8x8xf32>, vector<8x32xf32>, vector<8x32xf32> -> vector<8x32xf32>
    %667 = arith.addf %648, %666 : vector<8x32xf32>
    %668 = vector.extract_strided_slice %626 {offsets = [0, 16], sizes = [8, 8], strides = [1, 1]} : vector<8x32xf32> to vector<8x8xf32>
    %669 = vector.extract_strided_slice %627 {offsets = [0, 16], sizes = [8, 8], strides = [1, 1]} : vector<8x32xf32> to vector<8x8xf32>
    %cst_241 = arith.constant dense<0.000000e+00> : vector<8x8xf32>
    %670 = tpu.matmul %668, %669, %cst_241 {dimension_numbers = #tpu.dot_dimension_numbers<[1], [1], [0], [0], [0, 0, 1, 0], [], []>} : vector<8x8xf32>, vector<8x8xf32>, vector<8x8xf32> -> vector<8x8xf32>
    %671 = arith.addf %670, %2 : vector<8x8xf32>
    %cst_242 = arith.constant dense<0xFF800000> : vector<8xf32>
    %672 = vector.multi_reduction <maximumf>, %671, %cst_242 [1] : vector<8x8xf32> to vector<8xf32>
    %673 = vector.shape_cast %672 : vector<8xf32> to vector<8x1xf32>
    %674 = vector.broadcast %673 : vector<8x1xf32> to vector<8x8xf32>
    %675 = arith.subf %671, %674 : vector<8x8xf32>
    %676 = math.exp %675 : vector<8x8xf32>
    %cst_243 = arith.constant dense<0.000000e+00> : vector<8xf32>
    %677 = vector.multi_reduction <add>, %676, %cst_243 [1] : vector<8x8xf32> to vector<8xf32>
    %678 = vector.shape_cast %677 : vector<8xf32> to vector<8x1xf32>
    %679 = tpu.reciprocal %678 {approx = true} : vector<8x1xf32> -> vector<8x1xf32>
    %680 = vector.broadcast %679 : vector<8x1xf32> to vector<8x8xf32>
    %681 = arith.mulf %676, %680 : vector<8x8xf32>
    %682 = vector.extract_strided_slice %628 {offsets = [0, 16], sizes = [8, 8], strides = [1, 1]} : vector<8x32xf32> to vector<8x8xf32>
    %cst_244 = arith.constant dense<0.000000e+00> : vector<8x8xf32>
    %683 = tpu.matmul %681, %682, %cst_244 {dimension_numbers = #tpu.dot_dimension_numbers<[1], [0], [0], [1], [0, 0, 1, 1], [], []>} : vector<8x8xf32>, vector<8x8xf32>, vector<8x8xf32> -> vector<8x8xf32>
    %684 = vector.extract_strided_slice %621 {offsets = [16, 0], sizes = [8, 32], strides = [1, 1]} : vector<32x32xf32> to vector<8x32xf32>
    %cst_245 = arith.constant dense<0.000000e+00> : vector<8x32xf32>
    %685 = tpu.matmul %683, %684, %cst_245 {dimension_numbers = #tpu.dot_dimension_numbers<[1], [0], [0], [1], [0, 0, 1, 1], [], []>} : vector<8x8xf32>, vector<8x32xf32>, vector<8x32xf32> -> vector<8x32xf32>
    %686 = arith.addf %667, %685 : vector<8x32xf32>
    %687 = vector.extract_strided_slice %626 {offsets = [0, 24], sizes = [8, 8], strides = [1, 1]} : vector<8x32xf32> to vector<8x8xf32>
    %688 = vector.extract_strided_slice %627 {offsets = [0, 24], sizes = [8, 8], strides = [1, 1]} : vector<8x32xf32> to vector<8x8xf32>
    %cst_246 = arith.constant dense<0.000000e+00> : vector<8x8xf32>
    %689 = tpu.matmul %687, %688, %cst_246 {dimension_numbers = #tpu.dot_dimension_numbers<[1], [1], [0], [0], [0, 0, 1, 0], [], []>} : vector<8x8xf32>, vector<8x8xf32>, vector<8x8xf32> -> vector<8x8xf32>
    %690 = arith.addf %689, %2 : vector<8x8xf32>
    %cst_247 = arith.constant dense<0xFF800000> : vector<8xf32>
    %691 = vector.multi_reduction <maximumf>, %690, %cst_247 [1] : vector<8x8xf32> to vector<8xf32>
    %692 = vector.shape_cast %691 : vector<8xf32> to vector<8x1xf32>
    %693 = vector.broadcast %692 : vector<8x1xf32> to vector<8x8xf32>
    %694 = arith.subf %690, %693 : vector<8x8xf32>
    %695 = math.exp %694 : vector<8x8xf32>
    %cst_248 = arith.constant dense<0.000000e+00> : vector<8xf32>
    %696 = vector.multi_reduction <add>, %695, %cst_248 [1] : vector<8x8xf32> to vector<8xf32>
    %697 = vector.shape_cast %696 : vector<8xf32> to vector<8x1xf32>
    %698 = tpu.reciprocal %697 {approx = true} : vector<8x1xf32> -> vector<8x1xf32>
    %699 = vector.broadcast %698 : vector<8x1xf32> to vector<8x8xf32>
    %700 = arith.mulf %695, %699 : vector<8x8xf32>
    %701 = vector.extract_strided_slice %628 {offsets = [0, 24], sizes = [8, 8], strides = [1, 1]} : vector<8x32xf32> to vector<8x8xf32>
    %cst_249 = arith.constant dense<0.000000e+00> : vector<8x8xf32>
    %702 = tpu.matmul %700, %701, %cst_249 {dimension_numbers = #tpu.dot_dimension_numbers<[1], [0], [0], [1], [0, 0, 1, 1], [], []>} : vector<8x8xf32>, vector<8x8xf32>, vector<8x8xf32> -> vector<8x8xf32>
    %703 = vector.extract_strided_slice %621 {offsets = [24, 0], sizes = [8, 32], strides = [1, 1]} : vector<32x32xf32> to vector<8x32xf32>
    %cst_250 = arith.constant dense<0.000000e+00> : vector<8x32xf32>
    %704 = tpu.matmul %702, %703, %cst_250 {dimension_numbers = #tpu.dot_dimension_numbers<[1], [0], [0], [1], [0, 0, 1, 1], [], []>} : vector<8x8xf32>, vector<8x32xf32>, vector<8x32xf32> -> vector<8x32xf32>
    %705 = arith.addf %686, %704 : vector<8x32xf32>
    %706 = vector.broadcast %622 : vector<1x32xf32> to vector<8x32xf32>
    %707 = arith.addf %705, %706 : vector<8x32xf32>
    %708 = arith.addf %613, %707 : vector<8x32xf32>
    %709 = vector.extract_strided_slice %615 {offsets = [1, 0], sizes = [1, 32], strides = [1, 1]} : vector<9x32xf32> to vector<1x32xf32>
    %710 = vector.extract_strided_slice %615 {offsets = [2, 0], sizes = [1, 32], strides = [1, 1]} : vector<9x32xf32> to vector<1x32xf32>
    %cst_251 = arith.constant dense<0.000000e+00> : vector<8xf32>
    %711 = vector.multi_reduction <add>, %708, %cst_251 [1] : vector<8x32xf32> to vector<8xf32>
    %712 = vector.shape_cast %711 : vector<8xf32> to vector<8x1xf32>
    %cst_252 = arith.constant 3.200000e+01 : f32
    %713 = vector.broadcast %cst_252 : f32 to vector<8x1xf32>
    %714 = arith.divf %712, %713 : vector<8x1xf32>
    %715 = vector.broadcast %714 : vector<8x1xf32> to vector<8x32xf32>
    %716 = arith.subf %708, %715 : vector<8x32xf32>
    %717 = arith.mulf %716, %716 : vector<8x32xf32>
    %cst_253 = arith.constant dense<0.000000e+00> : vector<8xf32>
    %718 = vector.multi_reduction <add>, %717, %cst_253 [1] : vector<8x32xf32> to vector<8xf32>
    %719 = vector.shape_cast %718 : vector<8xf32> to vector<8x1xf32>
    %cst_254 = arith.constant 3.200000e+01 : f32
    %720 = vector.broadcast %cst_254 : f32 to vector<8x1xf32>
    %721 = arith.divf %719, %720 : vector<8x1xf32>
    %cst_255 = arith.constant 9.99999974E-6 : f32
    %722 = vector.broadcast %cst_255 : f32 to vector<8x1xf32>
    %723 = arith.addf %721, %722 : vector<8x1xf32>
    %724 = math.rsqrt %723 : vector<8x1xf32>
    %725 = vector.broadcast %724 : vector<8x1xf32> to vector<8x32xf32>
    %726 = arith.mulf %716, %725 : vector<8x32xf32>
    %727 = vector.broadcast %709 : vector<1x32xf32> to vector<8x32xf32>
    %728 = arith.mulf %726, %727 : vector<8x32xf32>
    %729 = vector.broadcast %710 : vector<1x32xf32> to vector<8x32xf32>
    %730 = arith.addf %728, %729 : vector<8x32xf32>
    %c1_256 = arith.constant 1 : index
    %c0_257 = arith.constant 0 : index
    %c0_258 = arith.constant 0 : index
    %731 = vector.load %arg12[%c1_256, %c0_257, %c0_258] : memref<2x32x32xf32, #tpu.memory_space<vmem>>, vector<1x32x32xf32>
    %732 = vector.shape_cast %731 : vector<1x32x32xf32> to vector<32x32xf32>
    %c1_259 = arith.constant 1 : index
    %c0_260 = arith.constant 0 : index
    %c0_261 = arith.constant 0 : index
    %733 = vector.load %arg13[%c1_259, %c0_260, %c0_261] : memref<2x32x64xf32, #tpu.memory_space<vmem>>, vector<1x32x64xf32>
    %734 = vector.shape_cast %733 : vector<1x32x64xf32> to vector<32x64xf32>
    %c1_262 = arith.constant 1 : index
    %c0_263 = arith.constant 0 : index
    %c0_264 = arith.constant 0 : index
    %735 = vector.load %arg18[%c1_262, %c0_263, %c0_264] : memref<2x1x96xf32, #tpu.memory_space<vmem>>, vector<1x1x96xf32>
    %736 = vector.shape_cast %735 : vector<1x1x96xf32> to vector<1x96xf32>
    %c1_265 = arith.constant 1 : index
    %c0_266 = arith.constant 0 : index
    %c0_267 = arith.constant 0 : index
    %737 = vector.load %arg14[%c1_265, %c0_266, %c0_267] : memref<2x32x32xf32, #tpu.memory_space<vmem>>, vector<1x32x32xf32>
    %738 = vector.shape_cast %737 : vector<1x32x32xf32> to vector<32x32xf32>
    %739 = vector.extract_strided_slice %615 {offsets = [3, 0], sizes = [1, 32], strides = [1, 1]} : vector<9x32xf32> to vector<1x32xf32>
    %cst_268 = arith.constant dense<0.000000e+00> : vector<8x32xf32>
    %740 = tpu.matmul %730, %732, %cst_268 {dimension_numbers = #tpu.dot_dimension_numbers<[1], [0], [0], [1], [0, 0, 1, 1], [], []>} : vector<8x32xf32>, vector<32x32xf32>, vector<8x32xf32> -> vector<8x32xf32>
    %741 = vector.extract_strided_slice %736 {offsets = [0, 0], sizes = [1, 32], strides = [1, 1]} : vector<1x96xf32> to vector<1x32xf32>
    %742 = vector.broadcast %741 : vector<1x32xf32> to vector<8x32xf32>
    %743 = arith.addf %740, %742 : vector<8x32xf32>
    %cst_269 = arith.constant dense<0.000000e+00> : vector<8x64xf32>
    %744 = tpu.matmul %339, %734, %cst_269 {dimension_numbers = #tpu.dot_dimension_numbers<[1], [0], [0], [1], [0, 0, 1, 1], [], []>} : vector<8x32xf32>, vector<32x64xf32>, vector<8x64xf32> -> vector<8x64xf32>
    %745 = vector.extract_strided_slice %736 {offsets = [0, 32], sizes = [1, 64], strides = [1, 1]} : vector<1x96xf32> to vector<1x64xf32>
    %746 = vector.broadcast %745 : vector<1x64xf32> to vector<8x64xf32>
    %747 = arith.addf %744, %746 : vector<8x64xf32>
    %748 = vector.extract_strided_slice %747 {offsets = [0, 0], sizes = [8, 32], strides = [1, 1]} : vector<8x64xf32> to vector<8x32xf32>
    %749 = vector.extract_strided_slice %747 {offsets = [0, 32], sizes = [8, 32], strides = [1, 1]} : vector<8x64xf32> to vector<8x32xf32>
    %cst_270 = arith.constant 0.000000e+00 : f32
    %750 = vector.broadcast %cst_270 : f32 to vector<8x32xf32>
    %751 = vector.extract_strided_slice %743 {offsets = [0, 0], sizes = [8, 8], strides = [1, 1]} : vector<8x32xf32> to vector<8x8xf32>
    %752 = vector.extract_strided_slice %748 {offsets = [0, 0], sizes = [8, 8], strides = [1, 1]} : vector<8x32xf32> to vector<8x8xf32>
    %cst_271 = arith.constant dense<0.000000e+00> : vector<8x8xf32>
    %753 = tpu.matmul %751, %752, %cst_271 {dimension_numbers = #tpu.dot_dimension_numbers<[1], [1], [0], [0], [0, 0, 1, 0], [], []>} : vector<8x8xf32>, vector<8x8xf32>, vector<8x8xf32> -> vector<8x8xf32>
    %cst_272 = arith.constant dense<0xFF800000> : vector<8xf32>
    %754 = vector.multi_reduction <maximumf>, %753, %cst_272 [1] : vector<8x8xf32> to vector<8xf32>
    %755 = vector.shape_cast %754 : vector<8xf32> to vector<8x1xf32>
    %756 = vector.broadcast %755 : vector<8x1xf32> to vector<8x8xf32>
    %757 = arith.subf %753, %756 : vector<8x8xf32>
    %758 = math.exp %757 : vector<8x8xf32>
    %cst_273 = arith.constant dense<0.000000e+00> : vector<8xf32>
    %759 = vector.multi_reduction <add>, %758, %cst_273 [1] : vector<8x8xf32> to vector<8xf32>
    %760 = vector.shape_cast %759 : vector<8xf32> to vector<8x1xf32>
    %761 = tpu.reciprocal %760 {approx = true} : vector<8x1xf32> -> vector<8x1xf32>
    %762 = vector.broadcast %761 : vector<8x1xf32> to vector<8x8xf32>
    %763 = arith.mulf %758, %762 : vector<8x8xf32>
    %764 = vector.extract_strided_slice %749 {offsets = [0, 0], sizes = [8, 8], strides = [1, 1]} : vector<8x32xf32> to vector<8x8xf32>
    %cst_274 = arith.constant dense<0.000000e+00> : vector<8x8xf32>
    %765 = tpu.matmul %763, %764, %cst_274 {dimension_numbers = #tpu.dot_dimension_numbers<[1], [0], [0], [1], [0, 0, 1, 1], [], []>} : vector<8x8xf32>, vector<8x8xf32>, vector<8x8xf32> -> vector<8x8xf32>
    %766 = vector.extract_strided_slice %738 {offsets = [0, 0], sizes = [8, 32], strides = [1, 1]} : vector<32x32xf32> to vector<8x32xf32>
    %cst_275 = arith.constant dense<0.000000e+00> : vector<8x32xf32>
    %767 = tpu.matmul %765, %766, %cst_275 {dimension_numbers = #tpu.dot_dimension_numbers<[1], [0], [0], [1], [0, 0, 1, 1], [], []>} : vector<8x8xf32>, vector<8x32xf32>, vector<8x32xf32> -> vector<8x32xf32>
    %768 = arith.addf %750, %767 : vector<8x32xf32>
    %769 = vector.extract_strided_slice %743 {offsets = [0, 8], sizes = [8, 8], strides = [1, 1]} : vector<8x32xf32> to vector<8x8xf32>
    %770 = vector.extract_strided_slice %748 {offsets = [0, 8], sizes = [8, 8], strides = [1, 1]} : vector<8x32xf32> to vector<8x8xf32>
    %cst_276 = arith.constant dense<0.000000e+00> : vector<8x8xf32>
    %771 = tpu.matmul %769, %770, %cst_276 {dimension_numbers = #tpu.dot_dimension_numbers<[1], [1], [0], [0], [0, 0, 1, 0], [], []>} : vector<8x8xf32>, vector<8x8xf32>, vector<8x8xf32> -> vector<8x8xf32>
    %cst_277 = arith.constant dense<0xFF800000> : vector<8xf32>
    %772 = vector.multi_reduction <maximumf>, %771, %cst_277 [1] : vector<8x8xf32> to vector<8xf32>
    %773 = vector.shape_cast %772 : vector<8xf32> to vector<8x1xf32>
    %774 = vector.broadcast %773 : vector<8x1xf32> to vector<8x8xf32>
    %775 = arith.subf %771, %774 : vector<8x8xf32>
    %776 = math.exp %775 : vector<8x8xf32>
    %cst_278 = arith.constant dense<0.000000e+00> : vector<8xf32>
    %777 = vector.multi_reduction <add>, %776, %cst_278 [1] : vector<8x8xf32> to vector<8xf32>
    %778 = vector.shape_cast %777 : vector<8xf32> to vector<8x1xf32>
    %779 = tpu.reciprocal %778 {approx = true} : vector<8x1xf32> -> vector<8x1xf32>
    %780 = vector.broadcast %779 : vector<8x1xf32> to vector<8x8xf32>
    %781 = arith.mulf %776, %780 : vector<8x8xf32>
    %782 = vector.extract_strided_slice %749 {offsets = [0, 8], sizes = [8, 8], strides = [1, 1]} : vector<8x32xf32> to vector<8x8xf32>
    %cst_279 = arith.constant dense<0.000000e+00> : vector<8x8xf32>
    %783 = tpu.matmul %781, %782, %cst_279 {dimension_numbers = #tpu.dot_dimension_numbers<[1], [0], [0], [1], [0, 0, 1, 1], [], []>} : vector<8x8xf32>, vector<8x8xf32>, vector<8x8xf32> -> vector<8x8xf32>
    %784 = vector.extract_strided_slice %738 {offsets = [8, 0], sizes = [8, 32], strides = [1, 1]} : vector<32x32xf32> to vector<8x32xf32>
    %cst_280 = arith.constant dense<0.000000e+00> : vector<8x32xf32>
    %785 = tpu.matmul %783, %784, %cst_280 {dimension_numbers = #tpu.dot_dimension_numbers<[1], [0], [0], [1], [0, 0, 1, 1], [], []>} : vector<8x8xf32>, vector<8x32xf32>, vector<8x32xf32> -> vector<8x32xf32>
    %786 = arith.addf %768, %785 : vector<8x32xf32>
    %787 = vector.extract_strided_slice %743 {offsets = [0, 16], sizes = [8, 8], strides = [1, 1]} : vector<8x32xf32> to vector<8x8xf32>
    %788 = vector.extract_strided_slice %748 {offsets = [0, 16], sizes = [8, 8], strides = [1, 1]} : vector<8x32xf32> to vector<8x8xf32>
    %cst_281 = arith.constant dense<0.000000e+00> : vector<8x8xf32>
    %789 = tpu.matmul %787, %788, %cst_281 {dimension_numbers = #tpu.dot_dimension_numbers<[1], [1], [0], [0], [0, 0, 1, 0], [], []>} : vector<8x8xf32>, vector<8x8xf32>, vector<8x8xf32> -> vector<8x8xf32>
    %cst_282 = arith.constant dense<0xFF800000> : vector<8xf32>
    %790 = vector.multi_reduction <maximumf>, %789, %cst_282 [1] : vector<8x8xf32> to vector<8xf32>
    %791 = vector.shape_cast %790 : vector<8xf32> to vector<8x1xf32>
    %792 = vector.broadcast %791 : vector<8x1xf32> to vector<8x8xf32>
    %793 = arith.subf %789, %792 : vector<8x8xf32>
    %794 = math.exp %793 : vector<8x8xf32>
    %cst_283 = arith.constant dense<0.000000e+00> : vector<8xf32>
    %795 = vector.multi_reduction <add>, %794, %cst_283 [1] : vector<8x8xf32> to vector<8xf32>
    %796 = vector.shape_cast %795 : vector<8xf32> to vector<8x1xf32>
    %797 = tpu.reciprocal %796 {approx = true} : vector<8x1xf32> -> vector<8x1xf32>
    %798 = vector.broadcast %797 : vector<8x1xf32> to vector<8x8xf32>
    %799 = arith.mulf %794, %798 : vector<8x8xf32>
    %800 = vector.extract_strided_slice %749 {offsets = [0, 16], sizes = [8, 8], strides = [1, 1]} : vector<8x32xf32> to vector<8x8xf32>
    %cst_284 = arith.constant dense<0.000000e+00> : vector<8x8xf32>
    %801 = tpu.matmul %799, %800, %cst_284 {dimension_numbers = #tpu.dot_dimension_numbers<[1], [0], [0], [1], [0, 0, 1, 1], [], []>} : vector<8x8xf32>, vector<8x8xf32>, vector<8x8xf32> -> vector<8x8xf32>
    %802 = vector.extract_strided_slice %738 {offsets = [16, 0], sizes = [8, 32], strides = [1, 1]} : vector<32x32xf32> to vector<8x32xf32>
    %cst_285 = arith.constant dense<0.000000e+00> : vector<8x32xf32>
    %803 = tpu.matmul %801, %802, %cst_285 {dimension_numbers = #tpu.dot_dimension_numbers<[1], [0], [0], [1], [0, 0, 1, 1], [], []>} : vector<8x8xf32>, vector<8x32xf32>, vector<8x32xf32> -> vector<8x32xf32>
    %804 = arith.addf %786, %803 : vector<8x32xf32>
    %805 = vector.extract_strided_slice %743 {offsets = [0, 24], sizes = [8, 8], strides = [1, 1]} : vector<8x32xf32> to vector<8x8xf32>
    %806 = vector.extract_strided_slice %748 {offsets = [0, 24], sizes = [8, 8], strides = [1, 1]} : vector<8x32xf32> to vector<8x8xf32>
    %cst_286 = arith.constant dense<0.000000e+00> : vector<8x8xf32>
    %807 = tpu.matmul %805, %806, %cst_286 {dimension_numbers = #tpu.dot_dimension_numbers<[1], [1], [0], [0], [0, 0, 1, 0], [], []>} : vector<8x8xf32>, vector<8x8xf32>, vector<8x8xf32> -> vector<8x8xf32>
    %cst_287 = arith.constant dense<0xFF800000> : vector<8xf32>
    %808 = vector.multi_reduction <maximumf>, %807, %cst_287 [1] : vector<8x8xf32> to vector<8xf32>
    %809 = vector.shape_cast %808 : vector<8xf32> to vector<8x1xf32>
    %810 = vector.broadcast %809 : vector<8x1xf32> to vector<8x8xf32>
    %811 = arith.subf %807, %810 : vector<8x8xf32>
    %812 = math.exp %811 : vector<8x8xf32>
    %cst_288 = arith.constant dense<0.000000e+00> : vector<8xf32>
    %813 = vector.multi_reduction <add>, %812, %cst_288 [1] : vector<8x8xf32> to vector<8xf32>
    %814 = vector.shape_cast %813 : vector<8xf32> to vector<8x1xf32>
    %815 = tpu.reciprocal %814 {approx = true} : vector<8x1xf32> -> vector<8x1xf32>
    %816 = vector.broadcast %815 : vector<8x1xf32> to vector<8x8xf32>
    %817 = arith.mulf %812, %816 : vector<8x8xf32>
    %818 = vector.extract_strided_slice %749 {offsets = [0, 24], sizes = [8, 8], strides = [1, 1]} : vector<8x32xf32> to vector<8x8xf32>
    %cst_289 = arith.constant dense<0.000000e+00> : vector<8x8xf32>
    %819 = tpu.matmul %817, %818, %cst_289 {dimension_numbers = #tpu.dot_dimension_numbers<[1], [0], [0], [1], [0, 0, 1, 1], [], []>} : vector<8x8xf32>, vector<8x8xf32>, vector<8x8xf32> -> vector<8x8xf32>
    %820 = vector.extract_strided_slice %738 {offsets = [24, 0], sizes = [8, 32], strides = [1, 1]} : vector<32x32xf32> to vector<8x32xf32>
    %cst_290 = arith.constant dense<0.000000e+00> : vector<8x32xf32>
    %821 = tpu.matmul %819, %820, %cst_290 {dimension_numbers = #tpu.dot_dimension_numbers<[1], [0], [0], [1], [0, 0, 1, 1], [], []>} : vector<8x8xf32>, vector<8x32xf32>, vector<8x32xf32> -> vector<8x32xf32>
    %822 = arith.addf %804, %821 : vector<8x32xf32>
    %823 = vector.broadcast %739 : vector<1x32xf32> to vector<8x32xf32>
    %824 = arith.addf %822, %823 : vector<8x32xf32>
    %825 = arith.addf %730, %824 : vector<8x32xf32>
    %826 = vector.extract_strided_slice %615 {offsets = [4, 0], sizes = [1, 32], strides = [1, 1]} : vector<9x32xf32> to vector<1x32xf32>
    %827 = vector.extract_strided_slice %615 {offsets = [5, 0], sizes = [1, 32], strides = [1, 1]} : vector<9x32xf32> to vector<1x32xf32>
    %cst_291 = arith.constant dense<0.000000e+00> : vector<8xf32>
    %828 = vector.multi_reduction <add>, %825, %cst_291 [1] : vector<8x32xf32> to vector<8xf32>
    %829 = vector.shape_cast %828 : vector<8xf32> to vector<8x1xf32>
    %cst_292 = arith.constant 3.200000e+01 : f32
    %830 = vector.broadcast %cst_292 : f32 to vector<8x1xf32>
    %831 = arith.divf %829, %830 : vector<8x1xf32>
    %832 = vector.broadcast %831 : vector<8x1xf32> to vector<8x32xf32>
    %833 = arith.subf %825, %832 : vector<8x32xf32>
    %834 = arith.mulf %833, %833 : vector<8x32xf32>
    %cst_293 = arith.constant dense<0.000000e+00> : vector<8xf32>
    %835 = vector.multi_reduction <add>, %834, %cst_293 [1] : vector<8x32xf32> to vector<8xf32>
    %836 = vector.shape_cast %835 : vector<8xf32> to vector<8x1xf32>
    %cst_294 = arith.constant 3.200000e+01 : f32
    %837 = vector.broadcast %cst_294 : f32 to vector<8x1xf32>
    %838 = arith.divf %836, %837 : vector<8x1xf32>
    %cst_295 = arith.constant 9.99999974E-6 : f32
    %839 = vector.broadcast %cst_295 : f32 to vector<8x1xf32>
    %840 = arith.addf %838, %839 : vector<8x1xf32>
    %841 = math.rsqrt %840 : vector<8x1xf32>
    %842 = vector.broadcast %841 : vector<8x1xf32> to vector<8x32xf32>
    %843 = arith.mulf %833, %842 : vector<8x32xf32>
    %844 = vector.broadcast %826 : vector<1x32xf32> to vector<8x32xf32>
    %845 = arith.mulf %843, %844 : vector<8x32xf32>
    %846 = vector.broadcast %827 : vector<1x32xf32> to vector<8x32xf32>
    %847 = arith.addf %845, %846 : vector<8x32xf32>
    %c1_296 = arith.constant 1 : index
    %c0_297 = arith.constant 0 : index
    %c0_298 = arith.constant 0 : index
    %848 = vector.load %arg15[%c1_296, %c0_297, %c0_298] : memref<2x32x2048xbf16, #tpu.memory_space<vmem>>, vector<1x32x2048xbf16>
    %849 = vector.shape_cast %848 : vector<1x32x2048xbf16> to vector<32x2048xbf16>
    %c1_299 = arith.constant 1 : index
    %c0_300 = arith.constant 0 : index
    %c0_301 = arith.constant 0 : index
    %850 = vector.load %arg19[%c1_299, %c0_300, %c0_301] : memref<2x1x2048xf32, #tpu.memory_space<vmem>>, vector<1x1x2048xf32>
    %851 = vector.shape_cast %850 : vector<1x1x2048xf32> to vector<1x2048xf32>
    %c1_302 = arith.constant 1 : index
    %c0_303 = arith.constant 0 : index
    %c0_304 = arith.constant 0 : index
    %852 = vector.load %arg16[%c1_302, %c0_303, %c0_304] : memref<2x2048x32xbf16, #tpu.memory_space<vmem>>, vector<1x2048x32xbf16>
    %853 = vector.shape_cast %852 : vector<1x2048x32xbf16> to vector<2048x32xbf16>
    %854 = vector.extract_strided_slice %615 {offsets = [6, 0], sizes = [1, 32], strides = [1, 1]} : vector<9x32xf32> to vector<1x32xf32>
    %855 = arith.truncf %847 : vector<8x32xf32> to vector<8x32xbf16>
    %cst_305 = arith.constant dense<0.000000e+00> : vector<8x2048xf32>
    %856 = tpu.matmul %855, %849, %cst_305 {dimension_numbers = #tpu.dot_dimension_numbers<[1], [0], [0], [1], [0, 0, 1, 1], [], []>} : vector<8x32xbf16>, vector<32x2048xbf16>, vector<8x2048xf32> -> vector<8x2048xf32>
    %857 = vector.broadcast %851 : vector<1x2048xf32> to vector<8x2048xf32>
    %858 = arith.addf %856, %857 : vector<8x2048xf32>
    %cst_306 = arith.constant 0.000000e+00 : f32
    %859 = vector.broadcast %cst_306 : f32 to vector<8x2048xf32>
    %860 = arith.maximumf %858, %859 : vector<8x2048xf32>
    %861 = arith.truncf %860 : vector<8x2048xf32> to vector<8x2048xbf16>
    %cst_307 = arith.constant dense<0.000000e+00> : vector<8x32xf32>
    %862 = tpu.matmul %861, %853, %cst_307 {dimension_numbers = #tpu.dot_dimension_numbers<[1], [0], [0], [1], [0, 0, 1, 1], [], []>} : vector<8x2048xbf16>, vector<2048x32xbf16>, vector<8x32xf32> -> vector<8x32xf32>
    %863 = vector.broadcast %854 : vector<1x32xf32> to vector<8x32xf32>
    %864 = arith.addf %862, %863 : vector<8x32xf32>
    %865 = arith.addf %847, %864 : vector<8x32xf32>
    %866 = vector.extract_strided_slice %615 {offsets = [7, 0], sizes = [1, 32], strides = [1, 1]} : vector<9x32xf32> to vector<1x32xf32>
    %867 = vector.extract_strided_slice %615 {offsets = [8, 0], sizes = [1, 32], strides = [1, 1]} : vector<9x32xf32> to vector<1x32xf32>
    %cst_308 = arith.constant dense<0.000000e+00> : vector<8xf32>
    %868 = vector.multi_reduction <add>, %865, %cst_308 [1] : vector<8x32xf32> to vector<8xf32>
    %869 = vector.shape_cast %868 : vector<8xf32> to vector<8x1xf32>
    %cst_309 = arith.constant 3.200000e+01 : f32
    %870 = vector.broadcast %cst_309 : f32 to vector<8x1xf32>
    %871 = arith.divf %869, %870 : vector<8x1xf32>
    %872 = vector.broadcast %871 : vector<8x1xf32> to vector<8x32xf32>
    %873 = arith.subf %865, %872 : vector<8x32xf32>
    %874 = arith.mulf %873, %873 : vector<8x32xf32>
    %cst_310 = arith.constant dense<0.000000e+00> : vector<8xf32>
    %875 = vector.multi_reduction <add>, %874, %cst_310 [1] : vector<8x32xf32> to vector<8xf32>
    %876 = vector.shape_cast %875 : vector<8xf32> to vector<8x1xf32>
    %cst_311 = arith.constant 3.200000e+01 : f32
    %877 = vector.broadcast %cst_311 : f32 to vector<8x1xf32>
    %878 = arith.divf %876, %877 : vector<8x1xf32>
    %cst_312 = arith.constant 9.99999974E-6 : f32
    %879 = vector.broadcast %cst_312 : f32 to vector<8x1xf32>
    %880 = arith.addf %878, %879 : vector<8x1xf32>
    %881 = math.rsqrt %880 : vector<8x1xf32>
    %882 = vector.broadcast %881 : vector<8x1xf32> to vector<8x32xf32>
    %883 = arith.mulf %873, %882 : vector<8x32xf32>
    %884 = vector.broadcast %866 : vector<1x32xf32> to vector<8x32xf32>
    %885 = arith.mulf %883, %884 : vector<8x32xf32>
    %886 = vector.broadcast %867 : vector<1x32xf32> to vector<8x32xf32>
    %887 = arith.addf %885, %886 : vector<8x32xf32>
    %888 = vector.extract_strided_slice %317 {offsets = [2, 0], sizes = [1, 32], strides = [1, 1]} : vector<4x32xf32> to vector<1x32xf32>
    %889 = vector.extract_strided_slice %317 {offsets = [3, 0], sizes = [1, 32], strides = [1, 1]} : vector<4x32xf32> to vector<1x32xf32>
    %cst_313 = arith.constant dense<0.000000e+00> : vector<8xf32>
    %890 = vector.multi_reduction <add>, %887, %cst_313 [1] : vector<8x32xf32> to vector<8xf32>
    %891 = vector.shape_cast %890 : vector<8xf32> to vector<8x1xf32>
    %cst_314 = arith.constant 3.200000e+01 : f32
    %892 = vector.broadcast %cst_314 : f32 to vector<8x1xf32>
    %893 = arith.divf %891, %892 : vector<8x1xf32>
    %894 = vector.broadcast %893 : vector<8x1xf32> to vector<8x32xf32>
    %895 = arith.subf %887, %894 : vector<8x32xf32>
    %896 = arith.mulf %895, %895 : vector<8x32xf32>
    %cst_315 = arith.constant dense<0.000000e+00> : vector<8xf32>
    %897 = vector.multi_reduction <add>, %896, %cst_315 [1] : vector<8x32xf32> to vector<8xf32>
    %898 = vector.shape_cast %897 : vector<8xf32> to vector<8x1xf32>
    %cst_316 = arith.constant 3.200000e+01 : f32
    %899 = vector.broadcast %cst_316 : f32 to vector<8x1xf32>
    %900 = arith.divf %898, %899 : vector<8x1xf32>
    %cst_317 = arith.constant 9.99999974E-6 : f32
    %901 = vector.broadcast %cst_317 : f32 to vector<8x1xf32>
    %902 = arith.addf %900, %901 : vector<8x1xf32>
    %903 = math.rsqrt %902 : vector<8x1xf32>
    %904 = vector.broadcast %903 : vector<8x1xf32> to vector<8x32xf32>
    %905 = arith.mulf %895, %904 : vector<8x32xf32>
    %906 = vector.broadcast %888 : vector<1x32xf32> to vector<8x32xf32>
    %907 = arith.mulf %905, %906 : vector<8x32xf32>
    %908 = vector.broadcast %889 : vector<1x32xf32> to vector<8x32xf32>
    %909 = arith.addf %907, %908 : vector<8x32xf32>
    %c0_318 = arith.constant 0 : index
    %c0_319 = arith.constant 0 : index
    %910 = vector.load %arg22[%c0_318, %c0_319] : memref<32x128xf32, #tpu.memory_space<vmem>>, vector<32x128xf32>
    %cst_320 = arith.constant dense<0.000000e+00> : vector<8x128xf32>
    %911 = tpu.matmul %909, %910, %cst_320 {dimension_numbers = #tpu.dot_dimension_numbers<[1], [0], [0], [1], [0, 0, 1, 1], [], []>} : vector<8x32xf32>, vector<32x128xf32>, vector<8x128xf32> -> vector<8x128xf32>
    %c0_321 = arith.constant 0 : index
    %c0_322 = arith.constant 0 : index
    %912 = vector.load %arg23[%c0_321, %c0_322] : memref<1x128xf32, #tpu.memory_space<vmem>>, vector<1x128xf32>
    %913 = vector.broadcast %912 : vector<1x128xf32> to vector<8x128xf32>
    %914 = arith.addf %911, %913 : vector<8x128xf32>
    %c0_323 = arith.constant 0 : index
    %c0_324 = arith.constant 0 : index
    %c0_325 = arith.constant 0 : index
    %915 = vector.load %arg24[%c0_323, %c0_324, %c0_325] : memref<1x8x128xf32, #tpu.memory_space<vmem>>, vector<1x8x128xf32>
    %916 = vector.shape_cast %915 : vector<1x8x128xf32> to vector<8x128xf32>
    %917 = vector.shape_cast %914 : vector<8x128xf32> to vector<1x8x128xf32>
    tpu.vector_store %arg24[%c0_323, %c0_324, %c0_325], %917 {strides = array<i32>} : memref<1x8x128xf32, #tpu.memory_space<vmem>>, vector<1x8x128xf32>,
    return
  }
  func.func @transform_0(%arg0: i32) -> (i32, i32, i32) {
    %c0_i32 = arith.constant 0 : i32
    %c0_i32_0 = arith.constant 0 : i32
    %c0_i32_1 = arith.constant 0 : i32
    return %arg0, %c0_i32, %c0_i32_0 : i32, i32, i32
  }
  func.func @transform_1(%arg0: i32) -> (i32, i32) {
    %c0_i32 = arith.constant 0 : i32
    %c0_i32_0 = arith.constant 0 : i32
    %c0_i32_1 = arith.constant 0 : i32
    return %c0_i32, %c0_i32_0 : i32, i32
  }
  func.func @transform_2(%arg0: i32) -> (i32, i32, i32) {
    %c0_i32 = arith.constant 0 : i32
    %c0_i32_0 = arith.constant 0 : i32
    %c0_i32_1 = arith.constant 0 : i32
    %c0_i32_2 = arith.constant 0 : i32
    return %c0_i32, %c0_i32_0, %c0_i32_1 : i32, i32, i32
  }
  func.func @transform_3(%arg0: i32) -> (i32, i32, i32) {
    %c0_i32 = arith.constant 0 : i32
    %c0_i32_0 = arith.constant 0 : i32
    %c0_i32_1 = arith.constant 0 : i32
    %c0_i32_2 = arith.constant 0 : i32
    return %c0_i32, %c0_i32_0, %c0_i32_1 : i32, i32, i32
  }
  func.func @transform_4(%arg0: i32) -> (i32, i32, i32) {
    %c0_i32 = arith.constant 0 : i32
    %c0_i32_0 = arith.constant 0 : i32
    %c0_i32_1 = arith.constant 0 : i32
    %c0_i32_2 = arith.constant 0 : i32
    return %c0_i32, %c0_i32_0, %c0_i32_1 : i32, i32, i32
  }
  func.func @transform_5(%arg0: i32) -> (i32, i32, i32) {
    %c0_i32 = arith.constant 0 : i32
    %c0_i32_0 = arith.constant 0 : i32
    %c0_i32_1 = arith.constant 0 : i32
    %c0_i32_2 = arith.constant 0 : i32
    return %c0_i32, %c0_i32_0, %c0_i32_1 : i32, i32, i32
  }
  func.func @transform_6(%arg0: i32) -> (i32, i32, i32) {
    %c0_i32 = arith.constant 0 : i32
    %c0_i32_0 = arith.constant 0 : i32
    %c0_i32_1 = arith.constant 0 : i32
    %c0_i32_2 = arith.constant 0 : i32
    return %c0_i32, %c0_i32_0, %c0_i32_1 : i32, i32, i32
  }
  func.func @transform_7(%arg0: i32) -> (i32, i32, i32) {
    %c0_i32 = arith.constant 0 : i32
    %c0_i32_0 = arith.constant 0 : i32
    %c0_i32_1 = arith.constant 0 : i32
    %c0_i32_2 = arith.constant 0 : i32
    return %c0_i32, %c0_i32_0, %c0_i32_1 : i32, i32, i32
  }
  func.func @transform_8(%arg0: i32) -> (i32, i32, i32) {
    %c0_i32 = arith.constant 0 : i32
    %c0_i32_0 = arith.constant 0 : i32
    %c0_i32_1 = arith.constant 0 : i32
    %c0_i32_2 = arith.constant 0 : i32
    return %c0_i32, %c0_i32_0, %c0_i32_1 : i32, i32, i32
  }
  func.func @transform_9(%arg0: i32) -> (i32, i32, i32) {
    %c0_i32 = arith.constant 0 : i32
    %c0_i32_0 = arith.constant 0 : i32
    %c0_i32_1 = arith.constant 0 : i32
    %c0_i32_2 = arith.constant 0 : i32
    return %c0_i32, %c0_i32_0, %c0_i32_1 : i32, i32, i32
  }
  func.func @transform_10(%arg0: i32) -> (i32, i32, i32) {
    %c0_i32 = arith.constant 0 : i32
    %c0_i32_0 = arith.constant 0 : i32
    %c0_i32_1 = arith.constant 0 : i32
    %c0_i32_2 = arith.constant 0 : i32
    return %c0_i32, %c0_i32_0, %c0_i32_1 : i32, i32, i32
  }
  func.func @transform_11(%arg0: i32) -> (i32, i32, i32) {
    %c0_i32 = arith.constant 0 : i32
    %c0_i32_0 = arith.constant 0 : i32
    %c0_i32_1 = arith.constant 0 : i32
    %c0_i32_2 = arith.constant 0 : i32
    return %c0_i32, %c0_i32_0, %c0_i32_1 : i32, i32, i32
  }
  func.func @transform_12(%arg0: i32) -> (i32, i32, i32) {
    %c0_i32 = arith.constant 0 : i32
    %c0_i32_0 = arith.constant 0 : i32
    %c0_i32_1 = arith.constant 0 : i32
    %c0_i32_2 = arith.constant 0 : i32
    return %c0_i32, %c0_i32_0, %c0_i32_1 : i32, i32, i32
  }
  func.func @transform_13(%arg0: i32) -> (i32, i32, i32) {
    %c0_i32 = arith.constant 0 : i32
    %c0_i32_0 = arith.constant 0 : i32
    %c0_i32_1 = arith.constant 0 : i32
    %c0_i32_2 = arith.constant 0 : i32
    return %c0_i32, %c0_i32_0, %c0_i32_1 : i32, i32, i32
  }
  func.func @transform_14(%arg0: i32) -> (i32, i32, i32) {
    %c0_i32 = arith.constant 0 : i32
    %c0_i32_0 = arith.constant 0 : i32
    %c0_i32_1 = arith.constant 0 : i32
    %c0_i32_2 = arith.constant 0 : i32
    return %c0_i32, %c0_i32_0, %c0_i32_1 : i32, i32, i32
  }
  func.func @transform_15(%arg0: i32) -> (i32, i32, i32) {
    %c0_i32 = arith.constant 0 : i32
    %c0_i32_0 = arith.constant 0 : i32
    %c0_i32_1 = arith.constant 0 : i32
    %c0_i32_2 = arith.constant 0 : i32
    return %c0_i32, %c0_i32_0, %c0_i32_1 : i32, i32, i32
  }
  func.func @transform_16(%arg0: i32) -> (i32, i32, i32) {
    %c0_i32 = arith.constant 0 : i32
    %c0_i32_0 = arith.constant 0 : i32
    %c0_i32_1 = arith.constant 0 : i32
    %c0_i32_2 = arith.constant 0 : i32
    return %c0_i32, %c0_i32_0, %c0_i32_1 : i32, i32, i32
  }
  func.func @transform_17(%arg0: i32) -> (i32, i32, i32) {
    %c0_i32 = arith.constant 0 : i32
    %c0_i32_0 = arith.constant 0 : i32
    %c0_i32_1 = arith.constant 0 : i32
    %c0_i32_2 = arith.constant 0 : i32
    return %c0_i32, %c0_i32_0, %c0_i32_1 : i32, i32, i32
  }
  func.func @transform_18(%arg0: i32) -> (i32, i32, i32) {
    %c0_i32 = arith.constant 0 : i32
    %c0_i32_0 = arith.constant 0 : i32
    %c0_i32_1 = arith.constant 0 : i32
    %c0_i32_2 = arith.constant 0 : i32
    return %c0_i32, %c0_i32_0, %c0_i32_1 : i32, i32, i32
  }
  func.func @transform_19(%arg0: i32) -> (i32, i32, i32) {
    %c0_i32 = arith.constant 0 : i32
    %c0_i32_0 = arith.constant 0 : i32
    %c0_i32_1 = arith.constant 0 : i32
    %c0_i32_2 = arith.constant 0 : i32
    return %c0_i32, %c0_i32_0, %c0_i32_1 : i32, i32, i32
  }
  func.func @transform_20(%arg0: i32) -> (i32, i32) {
    %c0_i32 = arith.constant 0 : i32
    %c0_i32_0 = arith.constant 0 : i32
    %c0_i32_1 = arith.constant 0 : i32
    return %c0_i32, %c0_i32_0 : i32, i32
  }
  func.func @transform_21(%arg0: i32) -> (i32, i32) {
    %c0_i32 = arith.constant 0 : i32
    %c0_i32_0 = arith.constant 0 : i32
    %c0_i32_1 = arith.constant 0 : i32
    return %c0_i32, %c0_i32_0 : i32, i32
  }
  func.func @transform_22(%arg0: i32) -> (i32, i32) {
    %c0_i32 = arith.constant 0 : i32
    %c0_i32_0 = arith.constant 0 : i32
    %c0_i32_1 = arith.constant 0 : i32
    return %c0_i32, %c0_i32_0 : i32, i32
  }
  func.func @transform_23(%arg0: i32) -> (i32, i32, i32) {
    %c0_i32 = arith.constant 0 : i32
    %c0_i32_0 = arith.constant 0 : i32
    %c0_i32_1 = arith.constant 0 : i32
    return %arg0, %c0_i32, %c0_i32_0 : i32, i32, i32
  }
}

</mosaic_0001>

<llo_original>
// kernel: forward.1
$region0: #{forward.1}
  #allocation0 [shape = 'u32[]', space=smem, size = 0x4, offset = 0x4, fixed_abs, tag = 'smem constant byte address 0x4 - core index']
  #allocation1 [shape = 'u32[72,128]{1,0:T(1,128)}', space=vmem, size = 0x9000, scoped, tag = 'internal scratch']
  %s0 = inlined_call_operand.vmem [shape: f32[2,8,32], index: 0, kind: input, shape index: {}]
  %s1 = inlined_call_operand.vmem [shape: f32[8,8], index: 1, kind: input, shape index: {}]
  %s2 = inlined_call_operand.vmem [shape: f32[2,32,96], index: 2, kind: input, shape index: {}]
  %s3 = inlined_call_operand.vmem [shape: f32[2,32,32], index: 3, kind: input, shape index: {}]
  %s4 = inlined_call_operand.vmem [shape: bf16[2,32,2048], index: 4, kind: input, shape index: {}]
  %s5 = inlined_call_operand.vmem [shape: bf16[2,2048,32], index: 5, kind: input, shape index: {}]
  %s6 = inlined_call_operand.vmem [shape: f32[2,1,96], index: 6, kind: input, shape index: {}]
  %s7 = inlined_call_operand.vmem [shape: f32[2,1,2048], index: 7, kind: input, shape index: {}]
  %s8 = inlined_call_operand.vmem [shape: f32[2,6,32], index: 8, kind: input, shape index: {}]
  %s9 = inlined_call_operand.vmem [shape: f32[2,32,96], index: 9, kind: input, shape index: {}]
  %s10 = inlined_call_operand.vmem [shape: f32[2,32,32], index: 10, kind: input, shape index: {}]
  %s11 = inlined_call_operand.vmem [shape: f32[2,32,32], index: 11, kind: input, shape index: {}]
  %s12 = inlined_call_operand.vmem [shape: f32[2,32,64], index: 12, kind: input, shape index: {}]
  %s13 = inlined_call_operand.vmem [shape: f32[2,32,32], index: 13, kind: input, shape index: {}]
  %s14 = inlined_call_operand.vmem [shape: bf16[2,32,2048], index: 14, kind: input, shape index: {}]
  %s15 = inlined_call_operand.vmem [shape: bf16[2,2048,32], index: 15, kind: input, shape index: {}]
  %s16 = inlined_call_operand.vmem [shape: f32[2,1,96], index: 16, kind: input, shape index: {}]
  %s17 = inlined_call_operand.vmem [shape: f32[2,1,96], index: 17, kind: input, shape index: {}]
  %s18 = inlined_call_operand.vmem [shape: f32[2,1,2048], index: 18, kind: input, shape index: {}]
  %s19 = inlined_call_operand.vmem [shape: f32[2,9,32], index: 19, kind: input, shape index: {}]
  %s20 = inlined_call_operand.vmem [shape: f32[4,32], index: 20, kind: input, shape index: {}]
  %s21 = inlined_call_operand.vmem [shape: f32[32,128], index: 21, kind: input, shape index: {}]
  %s22 = inlined_call_operand.vmem [shape: f32[1,128], index: 22, kind: input, shape index: {}]
  %s23 = inlined_call_operand.vmem [shape: f32[2,8,128], index: 23, kind: output, shape index: {}]
  %s24 = sld [smem:[#allocation0]]
  $region125: #{forward.1} parent=0
    _
  %s26 = ssub.s32 1, %s24
  %s27 = scalar_select 0, %s26, %s24
  loop: start=0, step=1, limit=4
  $region2: #{forward.1} parent=0 // loop_pre_header
    _
  $region3: #{forward.1} parent=0 // loop_header
    %s29 = sphi 0, %s33
    %p30 = scmp.ge.s32.totalorder %s29, 4
    %s39 = sphi 0, %s41
    %s42 = sphi 0, %s39
    %s43 = sphi 0, %s42
    %s59 = sphi 0, %s43
    %s63 = sphi 0, %s63
    %s65 = sphi 0, %s63
    %s66 = sphi 0, %s65
    %s80 = sphi 0, %s66
    %s84 = sphi 0, %s84
    %s86 = sphi 0, %s84
    %s87 = sphi 0, %s86
    %s101 = sphi 0, %s87
    %s105 = sphi 0, %s105
    %s107 = sphi 0, %s105
    %s108 = sphi 0, %s107
    %s122 = sphi 0, %s108
    %s126 = sphi 0, %s126
    %s128 = sphi 0, %s126
    %s129 = sphi 0, %s128
    %s143 = sphi 0, %s129
    %s147 = sphi 0, %s147
    %s149 = sphi 0, %s147
    %s150 = sphi 0, %s149
    %s164 = sphi 0, %s150
    %s168 = sphi 0, %s168
    %s170 = sphi 0, %s168
    %s171 = sphi 0, %s170
    %s185 = sphi 0, %s171
    %s189 = sphi 0, %s189
    %s191 = sphi 0, %s189
    %s192 = sphi 0, %s191
    %s206 = sphi 0, %s192
    %s210 = sphi 0, %s210
    %s212 = sphi 0, %s210
    %s213 = sphi 0, %s212
    %s227 = sphi 0, %s213
    %s231 = sphi 0, %s231
    %s233 = sphi 0, %s231
    %s234 = sphi 0, %s233
    %s248 = sphi 0, %s234
    %s252 = sphi 0, %s252
    %s254 = sphi 0, %s252
    %s255 = sphi 0, %s254
    %s269 = sphi 0, %s255
    %s273 = sphi 0, %s273
    %s275 = sphi 0, %s273
    %s276 = sphi 0, %s275
    %s290 = sphi 0, %s276
    %s294 = sphi 0, %s294
    %s296 = sphi 0, %s294
    %s297 = sphi 0, %s296
    %s311 = sphi 0, %s297
    %s315 = sphi 0, %s315
    %s317 = sphi 0, %s315
    %s318 = sphi 0, %s317
    %s332 = sphi 0, %s318
    %s336 = sphi 0, %s336
    %s338 = sphi 0, %s336
    %s339 = sphi 0, %s338
    %s353 = sphi 0, %s339
    %s357 = sphi 0, %s357
    %s359 = sphi 0, %s357
    %s360 = sphi 0, %s359
    %s374 = sphi 0, %s360
    %s378 = sphi 0, %s378
    %s380 = sphi 0, %s378
    %s381 = sphi 0, %s380
    %s395 = sphi 0, %s381
    %s399 = sphi 0, %s399
    %s401 = sphi 0, %s399
    %s402 = sphi 0, %s401
    %s416 = sphi 0, %s402
    %s420 = sphi 0, %s420
    %s422 = sphi 0, %s420
    %s423 = sphi 0, %s422
    %s437 = sphi 0, %s423
    %s441 = sphi 0, %s441
    %s443 = sphi 0, %s441
    %s444 = sphi 0, %s443
    %s458 = sphi 0, %s444
    %s462 = sphi 0, %s462
    %s464 = sphi 0, %s462
    %s465 = sphi 0, %s464
    %s479 = sphi 0, %s465
    %s483 = sphi 0, %s483
    %s485 = sphi 0, %s483
    %s486 = sphi 0, %s485
    %s500 = sphi 0, %s486
    %s504 = sphi 0, %s504
    %s506 = sphi 0, %s504
    %s507 = sphi 0, %s506
    %s521 = sphi 0, %s507
    %s527 = sphi 0, %s529
    %s530 = sphi 0, %s527
    %s531 = sphi 0, %s530
    %s547 = sphi 0, %s531
  $region4: #{forward.1} parent=0 // loop_header_branch
    %32 = sbr.rel (%p30) target = $region8
  $region5: #{forward.1} parent=0 // loop_body
    %s34 = ssub.s32 %s29, 1
    %s35 = ssub.s32 %s29, 2
    %s36 = sadd.s32 %s29, 1
    %s37 = ssub.s32 %s29, %s36
    %p38 = scmp.eq.s32.totalorder %s37, 0
    %s40 = sadd.s32 %s39, 1
    %s41 = scalar_select %p38, %s39, %s40
    %p44 = pneg %p38
    %p45 = scmp.eq.s32.totalorder %s29, 1
    %p46 = por %p44, %p45
    %p47 = scmp.ne.s32.totalorder %s39, %s42
    %p48 = scmp.eq.s32.totalorder %s29, 0
    %p49 = por %p47, %p48
    %p50 = scmp.ne.s32.totalorder %s39, %s42
    %p51 = scmp.eq.s32.totalorder %s34, 1
    %p52 = por %p50, %p51
    %p53 = scmp.ne.s32.totalorder %s42, %s43
    %p54 = scmp.eq.s32.totalorder %s34, 0
    %p55 = por %p53, %p54
    %p56 = scmp.ne.s32.totalorder %s42, %s43
    %p57 = scmp.eq.s32.totalorder %s35, 1
    %p58 = por %p56, %p57
    %p60 = scmp.ne.s32.totalorder %s43, %s59
    %p61 = scmp.eq.s32.totalorder %s35, 0
    %p62 = por %p60, %p61
    %s64 = sadd.s32 %s63, 1
    %p67 = scmp.eq.s32.totalorder %s29, 1
    %p68 = scmp.ne.s32.totalorder %s63, %s65
    %p69 = scmp.eq.s32.totalorder %s29, 0
    %p70 = por %p68, %p69
    %p71 = scmp.ne.s32.totalorder %s63, %s65
    %p72 = scmp.eq.s32.totalorder %s34, 1
    %p73 = por %p71, %p72
    %p74 = scmp.ne.s32.totalorder %s65, %s66
    %p75 = scmp.eq.s32.totalorder %s34, 0
    %p76 = por %p74, %p75
    %p77 = scmp.ne.s32.totalorder %s65, %s66
    %p78 = scmp.eq.s32.totalorder %s35, 1
    %p79 = por %p77, %p78
    %p81 = scmp.ne.s32.totalorder %s66, %s80
    %p82 = scmp.eq.s32.totalorder %s35, 0
    %p83 = por %p81, %p82
    %s85 = sadd.s32 %s84, 1
    %p88 = scmp.eq.s32.totalorder %s29, 1
    %p89 = scmp.ne.s32.totalorder %s84, %s86
    %p90 = scmp.eq.s32.totalorder %s29, 0
    %p91 = por %p89, %p90
    %p92 = scmp.ne.s32.totalorder %s84, %s86
    %p93 = scmp.eq.s32.totalorder %s34, 1
    %p94 = por %p92, %p93
    %p95 = scmp.ne.s32.totalorder %s86, %s87
    %p96 = scmp.eq.s32.totalorder %s34, 0
    %p97 = por %p95, %p96
    %p98 = scmp.ne.s32.totalorder %s86, %s87
    %p99 = scmp.eq.s32.totalorder %s35, 1
    %p100 = por %p98, %p99
    %p102 = scmp.ne.s32.totalorder %s87, %s101
    %p103 = scmp.eq.s32.totalorder %s35, 0
    %p104 = por %p102, %p103
    %s106 = sadd.s32 %s105, 1
    %p109 = scmp.eq.s32.totalorder %s29, 1
    %p110 = scmp.ne.s32.totalorder %s105, %s107
    %p111 = scmp.eq.s32.totalorder %s29, 0
    %p112 = por %p110, %p111
    %p113 = scmp.ne.s32.totalorder %s105, %s107
    %p114 = scmp.eq.s32.totalorder %s34, 1
    %p115 = por %p113, %p114
    %p116 = scmp.ne.s32.totalorder %s107, %s108
    %p117 = scmp.eq.s32.totalorder %s34, 0
    %p118 = por %p116, %p117
    %p119 = scmp.ne.s32.totalorder %s107, %s108
    %p120 = scmp.eq.s32.totalorder %s35, 1
    %p121 = por %p119, %p120
    %p123 = scmp.ne.s32.totalorder %s108, %s122
    %p124 = scmp.eq.s32.totalorder %s35, 0
    %p125 = por %p123, %p124
    %s127 = sadd.s32 %s126, 1
    %p130 = scmp.eq.s32.totalorder %s29, 1
    %p131 = scmp.ne.s32.totalorder %s126, %s128
    %p132 = scmp.eq.s32.totalorder %s29, 0
    %p133 = por %p131, %p132
    %p134 = scmp.ne.s32.totalorder %s126, %s128
    %p135 = scmp.eq.s32.totalorder %s34, 1
    %p136 = por %p134, %p135
    %p137 = scmp.ne.s32.totalorder %s128, %s129
    %p138 = scmp.eq.s32.totalorder %s34, 0
    %p139 = por %p137, %p138
    %p140 = scmp.ne.s32.totalorder %s128, %s129
    %p141 = scmp.eq.s32.totalorder %s35, 1
    %p142 = por %p140, %p141
    %p144 = scmp.ne.s32.totalorder %s129, %s143
    %p145 = scmp.eq.s32.totalorder %s35, 0
    %p146 = por %p144, %p145
    %s148 = sadd.s32 %s147, 1
    %p151 = scmp.eq.s32.totalorder %s29, 1
    %p152 = scmp.ne.s32.totalorder %s147, %s149
    %p153 = scmp.eq.s32.totalorder %s29, 0
    %p154 = por %p152, %p153
    %p155 = scmp.ne.s32.totalorder %s147, %s149
    %p156 = scmp.eq.s32.totalorder %s34, 1
    %p157 = por %p155, %p156
    %p158 = scmp.ne.s32.totalorder %s149, %s150
    %p159 = scmp.eq.s32.totalorder %s34, 0
    %p160 = por %p158, %p159
    %p161 = scmp.ne.s32.totalorder %s149, %s150
    %p162 = scmp.eq.s32.totalorder %s35, 1
    %p163 = por %p161, %p162
    %p165 = scmp.ne.s32.totalorder %s150, %s164
    %p166 = scmp.eq.s32.totalorder %s35, 0
    %p167 = por %p165, %p166
    %s169 = sadd.s32 %s168, 1
    %p172 = scmp.eq.s32.totalorder %s29, 1
    %p173 = scmp.ne.s32.totalorder %s168, %s170
    %p174 = scmp.eq.s32.totalorder %s29, 0
    %p175 = por %p173, %p174
    %p176 = scmp.ne.s32.totalorder %s168, %s170
    %p177 = scmp.eq.s32.totalorder %s34, 1
    %p178 = por %p176, %p177
    %p179 = scmp.ne.s32.totalorder %s170, %s171
    %p180 = scmp.eq.s32.totalorder %s34, 0
    %p181 = por %p179, %p180
    %p182 = scmp.ne.s32.totalorder %s170, %s171
    %p183 = scmp.eq.s32.totalorder %s35, 1
    %p184 = por %p182, %p183
    %p186 = scmp.ne.s32.totalorder %s171, %s185
    %p187 = scmp.eq.s32.totalorder %s35, 0
    %p188 = por %p186, %p187
    %s190 = sadd.s32 %s189, 1
    %p193 = scmp.eq.s32.totalorder %s29, 1
    %p194 = scmp.ne.s32.totalorder %s189, %s191
    %p195 = scmp.eq.s32.totalorder %s29, 0
    %p196 = por %p194, %p195
    %p197 = scmp.ne.s32.totalorder %s189, %s191
    %p198 = scmp.eq.s32.totalorder %s34, 1
    %p199 = por %p197, %p198
    %p200 = scmp.ne.s32.totalorder %s191, %s192
    %p201 = scmp.eq.s32.totalorder %s34, 0
    %p202 = por %p200, %p201
    %p203 = scmp.ne.s32.totalorder %s191, %s192
    %p204 = scmp.eq.s32.totalorder %s35, 1
    %p205 = por %p203, %p204
    %p207 = scmp.ne.s32.totalorder %s192, %s206
    %p208 = scmp.eq.s32.totalorder %s35, 0
    %p209 = por %p207, %p208
    %s211 = sadd.s32 %s210, 1
    %p214 = scmp.eq.s32.totalorder %s29, 1
    %p215 = scmp.ne.s32.totalorder %s210, %s212
    %p216 = scmp.eq.s32.totalorder %s29, 0
    %p217 = por %p215, %p216
    %p218 = scmp.ne.s32.totalorder %s210, %s212
    %p219 = scmp.eq.s32.totalorder %s34, 1
    %p220 = por %p218, %p219
    %p221 = scmp.ne.s32.totalorder %s212, %s213
    %p222 = scmp.eq.s32.totalorder %s34, 0
    %p223 = por %p221, %p222
    %p224 = scmp.ne.s32.totalorder %s212, %s213
    %p225 = scmp.eq.s32.totalorder %s35, 1
    %p226 = por %p224, %p225
    %p228 = scmp.ne.s32.totalorder %s213, %s227
    %p229 = scmp.eq.s32.totalorder %s35, 0
    %p230 = por %p228, %p229
    %s232 = sadd.s32 %s231, 1
    %p235 = scmp.eq.s32.totalorder %s29, 1
    %p236 = scmp.ne.s32.totalorder %s231, %s233
    %p237 = scmp.eq.s32.totalorder %s29, 0
    %p238 = por %p236, %p237
    %p239 = scmp.ne.s32.totalorder %s231, %s233
    %p240 = scmp.eq.s32.totalorder %s34, 1
    %p241 = por %p239, %p240
    %p242 = scmp.ne.s32.totalorder %s233, %s234
    %p243 = scmp.eq.s32.totalorder %s34, 0
    %p244 = por %p242, %p243
    %p245 = scmp.ne.s32.totalorder %s233, %s234
    %p246 = scmp.eq.s32.totalorder %s35, 1
    %p247 = por %p245, %p246
    %p249 = scmp.ne.s32.totalorder %s234, %s248
    %p250 = scmp.eq.s32.totalorder %s35, 0
    %p251 = por %p249, %p250
    %s253 = sadd.s32 %s252, 1
    %p256 = scmp.eq.s32.totalorder %s29, 1
    %p257 = scmp.ne.s32.totalorder %s252, %s254
    %p258 = scmp.eq.s32.totalorder %s29, 0
    %p259 = por %p257, %p258
    %p260 = scmp.ne.s32.totalorder %s252, %s254
    %p261 = scmp.eq.s32.totalorder %s34, 1
    %p262 = por %p260, %p261
    %p263 = scmp.ne.s32.totalorder %s254, %s255
    %p264 = scmp.eq.s32.totalorder %s34, 0
    %p265 = por %p263, %p264
    %p266 = scmp.ne.s32.totalorder %s254, %s255
    %p267 = scmp.eq.s32.totalorder %s35, 1
    %p268 = por %p266, %p267
    %p270 = scmp.ne.s32.totalorder %s255, %s269
    %p271 = scmp.eq.s32.totalorder %s35, 0
    %p272 = por %p270, %p271
    %s274 = sadd.s32 %s273, 1
    %p277 = scmp.eq.s32.totalorder %s29, 1
    %p278 = scmp.ne.s32.totalorder %s273, %s275
    %p279 = scmp.eq.s32.totalorder %s29, 0
    %p280 = por %p278, %p279
    %p281 = scmp.ne.s32.totalorder %s273, %s275
    %p282 = scmp.eq.s32.totalorder %s34, 1
    %p283 = por %p281, %p282
    %p284 = scmp.ne.s32.totalorder %s275, %s276
    %p285 = scmp.eq.s32.totalorder %s34, 0
    %p286 = por %p284, %p285
    %p287 = scmp.ne.s32.totalorder %s275, %s276
    %p288 = scmp.eq.s32.totalorder %s35, 1
    %p289 = por %p287, %p288
    %p291 = scmp.ne.s32.totalorder %s276, %s290
    %p292 = scmp.eq.s32.totalorder %s35, 0
    %p293 = por %p291, %p292
    %s295 = sadd.s32 %s294, 1
    %p298 = scmp.eq.s32.totalorder %s29, 1
    %p299 = scmp.ne.s32.totalorder %s294, %s296
    %p300 = scmp.eq.s32.totalorder %s29, 0
    %p301 = por %p299, %p300
    %p302 = scmp.ne.s32.totalorder %s294, %s296
    %p303 = scmp.eq.s32.totalorder %s34, 1
    %p304 = por %p302, %p303
    %p305 = scmp.ne.s32.totalorder %s296, %s297
    %p306 = scmp.eq.s32.totalorder %s34, 0
    %p307 = por %p305, %p306
    %p308 = scmp.ne.s32.totalorder %s296, %s297
    %p309 = scmp.eq.s32.totalorder %s35, 1
    %p310 = por %p308, %p309
    %p312 = scmp.ne.s32.totalorder %s297, %s311
    %p313 = scmp.eq.s32.totalorder %s35, 0
    %p314 = por %p312, %p313
    %s316 = sadd.s32 %s315, 1
    %p319 = scmp.eq.s32.totalorder %s29, 1
    %p320 = scmp.ne.s32.totalorder %s315, %s317
    %p321 = scmp.eq.s32.totalorder %s29, 0
    %p322 = por %p320, %p321
    %p323 = scmp.ne.s32.totalorder %s315, %s317
    %p324 = scmp.eq.s32.totalorder %s34, 1
    %p325 = por %p323, %p324
    %p326 = scmp.ne.s32.totalorder %s317, %s318
    %p327 = scmp.eq.s32.totalorder %s34, 0
    %p328 = por %p326, %p327
    %p329 = scmp.ne.s32.totalorder %s317, %s318
    %p330 = scmp.eq.s32.totalorder %s35, 1
    %p331 = por %p329, %p330
    %p333 = scmp.ne.s32.totalorder %s318, %s332
    %p334 = scmp.eq.s32.totalorder %s35, 0
    %p335 = por %p333, %p334
    %s337 = sadd.s32 %s336, 1
    %p340 = scmp.eq.s32.totalorder %s29, 1
    %p341 = scmp.ne.s32.totalorder %s336, %s338
    %p342 = scmp.eq.s32.totalorder %s29, 0
    %p343 = por %p341, %p342
    %p344 = scmp.ne.s32.totalorder %s336, %s338
    %p345 = scmp.eq.s32.totalorder %s34, 1
    %p346 = por %p344, %p345
    %p347 = scmp.ne.s32.totalorder %s338, %s339
    %p348 = scmp.eq.s32.totalorder %s34, 0
    %p349 = por %p347, %p348
    %p350 = scmp.ne.s32.totalorder %s338, %s339
    %p351 = scmp.eq.s32.totalorder %s35, 1
    %p352 = por %p350, %p351
    %p354 = scmp.ne.s32.totalorder %s339, %s353
    %p355 = scmp.eq.s32.totalorder %s35, 0
    %p356 = por %p354, %p355
    %s358 = sadd.s32 %s357, 1
    %p361 = scmp.eq.s32.totalorder %s29, 1
    %p362 = scmp.ne.s32.totalorder %s357, %s359
    %p363 = scmp.eq.s32.totalorder %s29, 0
    %p364 = por %p362, %p363
    %p365 = scmp.ne.s32.totalorder %s357, %s359
    %p366 = scmp.eq.s32.totalorder %s34, 1
    %p367 = por %p365, %p366
    %p368 = scmp.ne.s32.totalorder %s359, %s360
    %p369 = scmp.eq.s32.totalorder %s34, 0
    %p370 = por %p368, %p369
    %p371 = scmp.ne.s32.totalorder %s359, %s360
    %p372 = scmp.eq.s32.totalorder %s35, 1
    %p373 = por %p371, %p372
    %p375 = scmp.ne.s32.totalorder %s360, %s374
    %p376 = scmp.eq.s32.totalorder %s35, 0
    %p377 = por %p375, %p376
    %s379 = sadd.s32 %s378, 1
    %p382 = scmp.eq.s32.totalorder %s29, 1
    %p383 = scmp.ne.s32.totalorder %s378, %s380
    %p384 = scmp.eq.s32.totalorder %s29, 0
    %p385 = por %p383, %p384
    %p386 = scmp.ne.s32.totalorder %s378, %s380
    %p387 = scmp.eq.s32.totalorder %s34, 1
    %p388 = por %p386, %p387
    %p389 = scmp.ne.s32.totalorder %s380, %s381
    %p390 = scmp.eq.s32.totalorder %s34, 0
    %p391 = por %p389, %p390
    %p392 = scmp.ne.s32.totalorder %s380, %s381
    %p393 = scmp.eq.s32.totalorder %s35, 1
    %p394 = por %p392, %p393
    %p396 = scmp.ne.s32.totalorder %s381, %s395
    %p397 = scmp.eq.s32.totalorder %s35, 0
    %p398 = por %p396, %p397
    %s400 = sadd.s32 %s399, 1
    %p403 = scmp.eq.s32.totalorder %s29, 1
    %p404 = scmp.ne.s32.totalorder %s399, %s401
    %p405 = scmp.eq.s32.totalorder %s29, 0
    %p406 = por %p404, %p405
    %p407 = scmp.ne.s32.totalorder %s399, %s401
    %p408 = scmp.eq.s32.totalorder %s34, 1
    %p409 = por %p407, %p408
    %p410 = scmp.ne.s32.totalorder %s401, %s402
    %p411 = scmp.eq.s32.totalorder %s34, 0
    %p412 = por %p410, %p411
    %p413 = scmp.ne.s32.totalorder %s401, %s402
    %p414 = scmp.eq.s32.totalorder %s35, 1
    %p415 = por %p413, %p414
    %p417 = scmp.ne.s32.totalorder %s402, %s416
    %p418 = scmp.eq.s32.totalorder %s35, 0
    %p419 = por %p417, %p418
    %s421 = sadd.s32 %s420, 1
    %p424 = scmp.eq.s32.totalorder %s29, 1
    %p425 = scmp.ne.s32.totalorder %s420, %s422
    %p426 = scmp.eq.s32.totalorder %s29, 0
    %p427 = por %p425, %p426
    %p428 = scmp.ne.s32.totalorder %s420, %s422
    %p429 = scmp.eq.s32.totalorder %s34, 1
    %p430 = por %p428, %p429
    %p431 = scmp.ne.s32.totalorder %s422, %s423
    %p432 = scmp.eq.s32.totalorder %s34, 0
    %p433 = por %p431, %p432
    %p434 = scmp.ne.s32.totalorder %s422, %s423
    %p435 = scmp.eq.s32.totalorder %s35, 1
    %p436 = por %p434, %p435
    %p438 = scmp.ne.s32.totalorder %s423, %s437
    %p439 = scmp.eq.s32.totalorder %s35, 0
    %p440 = por %p438, %p439
    %s442 = sadd.s32 %s441, 1
    %p445 = scmp.eq.s32.totalorder %s29, 1
    %p446 = scmp.ne.s32.totalorder %s441, %s443
    %p447 = scmp.eq.s32.totalorder %s29, 0
    %p448 = por %p446, %p447
    %p449 = scmp.ne.s32.totalorder %s441, %s443
    %p450 = scmp.eq.s32.totalorder %s34, 1
    %p451 = por %p449, %p450
    %p452 = scmp.ne.s32.totalorder %s443, %s444
    %p453 = scmp.eq.s32.totalorder %s34, 0
    %p454 = por %p452, %p453
    %p455 = scmp.ne.s32.totalorder %s443, %s444
    %p456 = scmp.eq.s32.totalorder %s35, 1
    %p457 = por %p455, %p456
    %p459 = scmp.ne.s32.totalorder %s444, %s458
    %p460 = scmp.eq.s32.totalorder %s35, 0
    %p461 = por %p459, %p460
    %s463 = sadd.s32 %s462, 1
    %p466 = scmp.eq.s32.totalorder %s29, 1
    %p467 = scmp.ne.s32.totalorder %s462, %s464
    %p468 = scmp.eq.s32.totalorder %s29, 0
    %p469 = por %p467, %p468
    %p470 = scmp.ne.s32.totalorder %s462, %s464
    %p471 = scmp.eq.s32.totalorder %s34, 1
    %p472 = por %p470, %p471
    %p473 = scmp.ne.s32.totalorder %s464, %s465
    %p474 = scmp.eq.s32.totalorder %s34, 0
    %p475 = por %p473, %p474
    %p476 = scmp.ne.s32.totalorder %s464, %s465
    %p477 = scmp.eq.s32.totalorder %s35, 1
    %p478 = por %p476, %p477
    %p480 = scmp.ne.s32.totalorder %s465, %s479
    %p481 = scmp.eq.s32.totalorder %s35, 0
    %p482 = por %p480, %p481
    %s484 = sadd.s32 %s483, 1
    %p487 = scmp.eq.s32.totalorder %s29, 1
    %p488 = scmp.ne.s32.totalorder %s483, %s485
    %p489 = scmp.eq.s32.totalorder %s29, 0
    %p490 = por %p488, %p489
    %p491 = scmp.ne.s32.totalorder %s483, %s485
    %p492 = scmp.eq.s32.totalorder %s34, 1
    %p493 = por %p491, %p492
    %p494 = scmp.ne.s32.totalorder %s485, %s486
    %p495 = scmp.eq.s32.totalorder %s34, 0
    %p496 = por %p494, %p495
    %p497 = scmp.ne.s32.totalorder %s485, %s486
    %p498 = scmp.eq.s32.totalorder %s35, 1
    %p499 = por %p497, %p498
    %p501 = scmp.ne.s32.totalorder %s486, %s500
    %p502 = scmp.eq.s32.totalorder %s35, 0
    %p503 = por %p501, %p502
    %s505 = sadd.s32 %s504, 1
    %p508 = scmp.eq.s32.totalorder %s29, 1
    %p509 = scmp.ne.s32.totalorder %s504, %s506
    %p510 = scmp.eq.s32.totalorder %s29, 0
    %p511 = por %p509, %p510
    %p512 = scmp.ne.s32.totalorder %s504, %s506
    %p513 = scmp.eq.s32.totalorder %s34, 1
    %p514 = por %p512, %p513
    %p515 = scmp.ne.s32.totalorder %s506, %s507
    %p516 = scmp.eq.s32.totalorder %s34, 0
    %p517 = por %p515, %p516
    %p518 = scmp.ne.s32.totalorder %s506, %s507
    %p519 = scmp.eq.s32.totalorder %s35, 1
    %p520 = por %p518, %p519
    %p522 = scmp.ne.s32.totalorder %s507, %s521
    %p523 = scmp.eq.s32.totalorder %s35, 0
    %p524 = por %p522, %p523
    %s525 = ssub.s32 %s29, %s36
    %p526 = scmp.eq.s32.totalorder %s525, 0
    %s528 = sadd.s32 %s527, 1
    %s529 = scalar_select %p526, %s527, %s528
    %p532 = pneg %p526
    %p533 = scmp.eq.s32.totalorder %s29, 1
    %p534 = por %p532, %p533
    %p535 = scmp.ne.s32.totalorder %s527, %s530
    %p536 = scmp.eq.s32.totalorder %s29, 0
    %p537 = por %p535, %p536
    %p538 = scmp.ne.s32.totalorder %s527, %s530
    %p539 = scmp.eq.s32.totalorder %s34, 1
    %p540 = por %p538, %p539
    %p541 = scmp.ne.s32.totalorder %s530, %s531
    %p542 = scmp.eq.s32.totalorder %s34, 0
    %p543 = por %p541, %p542
    %p544 = scmp.ne.s32.totalorder %s530, %s531
    %p545 = scmp.eq.s32.totalorder %s35, 1
    %p546 = por %p544, %p545
    %p548 = scmp.ne.s32.totalorder %s531, %s547
    %p549 = scmp.eq.s32.totalorder %s35, 0
    %p550 = por %p548, %p549
    %p551 = scmp.le.s32.totalorder 1, %s29
    %p552 = scmp.lt.s32.totalorder %s29, 3
    %p553 = pnand %p551, %p552
    %p554 = pneg %p553
    // Predicated region
    $region9: #{forward.1} parent=5 // pred_check
      _
    $region10: #{forward.1} parent=5 // pred_check_branch
      %556 = sbr.rel (%p553) target = $region12
    $region11: #{forward.1} parent=5 // pred_region
      %s557 = ssub.s32 %s29, 1
      // Predicated region
      $region13: #{forward.1} parent=11 // pred_check
        %p558 = pneg %p76
      $region14: #{forward.1} parent=11 // pred_check_branch
        %560 = sbr.rel (%p558) target = $region16
      $region15: #{forward.1} parent=11 // pred_region
        _
      $region16: #{forward.1} parent=11 // pred_fallthru
        _
      // Predicated region
      $region17: #{forward.1} parent=11 // pred_check
        %p561 = pneg %p97
      $region18: #{forward.1} parent=11 // pred_check_branch
        %563 = sbr.rel (%p561) target = $region20
      $region19: #{forward.1} parent=11 // pred_region
        _
      $region20: #{forward.1} parent=11 // pred_fallthru
        _
      // Predicated region
      $region21: #{forward.1} parent=11 // pred_check
        %p564 = pneg %p118
      $region22: #{forward.1} parent=11 // pred_check_branch
        %566 = sbr.rel (%p564) target = $region24
      $region23: #{forward.1} parent=11 // pred_region
        _
      $region24: #{forward.1} parent=11 // pred_fallthru
        _
      // Predicated region
      $region25: #{forward.1} parent=11 // pred_check
        %p567 = pneg %p139
      $region26: #{forward.1} parent=11 // pred_check_branch
        %569 = sbr.rel (%p567) target = $region28
      $region27: #{forward.1} parent=11 // pred_region
        _
      $region28: #{forward.1} parent=11 // pred_fallthru
        _
      // Predicated region
      $region29: #{forward.1} parent=11 // pred_check
        %p570 = pneg %p160
      $region30: #{forward.1} parent=11 // pred_check_branch
        %572 = sbr.rel (%p570) target = $region32
      $region31: #{forward.1} parent=11 // pred_region
        _
      $region32: #{forward.1} parent=11 // pred_fallthru
        _
      // Predicated region
      $region33: #{forward.1} parent=11 // pred_check
        %p573 = pneg %p181
      $region34: #{forward.1} parent=11 // pred_check_branch
        %575 = sbr.rel (%p573) target = $region36
      $region35: #{forward.1} parent=11 // pred_region
        _
      $region36: #{forward.1} parent=11 // pred_fallthru
        _
      // Predicated region
      $region37: #{forward.1} parent=11 // pred_check
        %p576 = pneg %p202
      $region38: #{forward.1} parent=11 // pred_check_branch
        %578 = sbr.rel (%p576) target = $region40
      $region39: #{forward.1} parent=11 // pred_region
        _
      $region40: #{forward.1} parent=11 // pred_fallthru
        _
      // Predicated region
      $region41: #{forward.1} parent=11 // pred_check
        %p579 = pneg %p223
      $region42: #{forward.1} parent=11 // pred_check_branch
        %581 = sbr.rel (%p579) target = $region44
      $region43: #{forward.1} parent=11 // pred_region
        _
      $region44: #{forward.1} parent=11 // pred_fallthru
        _
      // Predicated region
      $region45: #{forward.1} parent=11 // pred_check
        %p582 = pneg %p244
      $region46: #{forward.1} parent=11 // pred_check_branch
        %584 = sbr.rel (%p582) target = $region48
      $region47: #{forward.1} parent=11 // pred_region
        _
      $region48: #{forward.1} parent=11 // pred_fallthru
        _
      // Predicated region
      $region49: #{forward.1} parent=11 // pred_check
        %p585 = pneg %p265
      $region50: #{forward.1} parent=11 // pred_check_branch
        %587 = sbr.rel (%p585) target = $region52
      $region51: #{forward.1} parent=11 // pred_region
        _
      $region52: #{forward.1} parent=11 // pred_fallthru
        _
      // Predicated region
      $region53: #{forward.1} parent=11 // pred_check
        %p588 = pneg %p286
      $region54: #{forward.1} parent=11 // pred_check_branch
        %590 = sbr.rel (%p588) target = $region56
      $region55: #{forward.1} parent=11 // pred_region
        _
      $region56: #{forward.1} parent=11 // pred_fallthru
        _
      // Predicated region
      $region57: #{forward.1} parent=11 // pred_check
        %p591 = pneg %p307
      $region58: #{forward.1} parent=11 // pred_check_branch
        %593 = sbr.rel (%p591) target = $region60
      $region59: #{forward.1} parent=11 // pred_region
        _
      $region60: #{forward.1} parent=11 // pred_fallthru
        _
      // Predicated region
      $region61: #{forward.1} parent=11 // pred_check
        %p594 = pneg %p328
      $region62: #{forward.1} parent=11 // pred_check_branch
        %596 = sbr.rel (%p594) target = $region64
      $region63: #{forward.1} parent=11 // pred_region
        _
      $region64: #{forward.1} parent=11 // pred_fallthru
        _
      // Predicated region
      $region65: #{forward.1} parent=11 // pred_check
        %p597 = pneg %p349
      $region66: #{forward.1} parent=11 // pred_check_branch
        %599 = sbr.rel (%p597) target = $region68
      $region67: #{forward.1} parent=11 // pred_region
        _
      $region68: #{forward.1} parent=11 // pred_fallthru
        _
      // Predicated region
      $region69: #{forward.1} parent=11 // pred_check
        %p600 = pneg %p370
      $region70: #{forward.1} parent=11 // pred_check_branch
        %602 = sbr.rel (%p600) target = $region72
      $region71: #{forward.1} parent=11 // pred_region
        _
      $region72: #{forward.1} parent=11 // pred_fallthru
        _
      // Predicated region
      $region73: #{forward.1} parent=11 // pred_check
        %p603 = pneg %p391
      $region74: #{forward.1} parent=11 // pred_check_branch
        %605 = sbr.rel (%p603) target = $region76
      $region75: #{forward.1} parent=11 // pred_region
        _
      $region76: #{forward.1} parent=11 // pred_fallthru
        _
      // Predicated region
      $region77: #{forward.1} parent=11 // pred_check
        %p606 = pneg %p412
      $region78: #{forward.1} parent=11 // pred_check_branch
        %608 = sbr.rel (%p606) target = $region80
      $region79: #{forward.1} parent=11 // pred_region
        _
      $region80: #{forward.1} parent=11 // pred_fallthru
        _
      // Predicated region
      $region81: #{forward.1} parent=11 // pred_check
        %p609 = pneg %p433
      $region82: #{forward.1} parent=11 // pred_check_branch
        %611 = sbr.rel (%p609) target = $region84
      $region83: #{forward.1} parent=11 // pred_region
        _
      $region84: #{forward.1} parent=11 // pred_fallthru
        _
      // Predicated region
      $region85: #{forward.1} parent=11 // pred_check
        %p612 = pneg %p454
      $region86: #{forward.1} parent=11 // pred_check_branch
        %614 = sbr.rel (%p612) target = $region88
      $region87: #{forward.1} parent=11 // pred_region
        _
      $region88: #{forward.1} parent=11 // pred_fallthru
        _
      // Predicated region
      $region89: #{forward.1} parent=11 // pred_check
        %p615 = pneg %p475
      $region90: #{forward.1} parent=11 // pred_check_branch
        %617 = sbr.rel (%p615) target = $region92
      $region91: #{forward.1} parent=11 // pred_region
        _
      $region92: #{forward.1} parent=11 // pred_fallthru
        _
      // Predicated region
      $region93: #{forward.1} parent=11 // pred_check
        %p618 = pneg %p496
      $region94: #{forward.1} parent=11 // pred_check_branch
        %620 = sbr.rel (%p618) target = $region96
      $region95: #{forward.1} parent=11 // pred_region
        _
      $region96: #{forward.1} parent=11 // pred_fallthru
        _
      // Predicated region
      $region97: #{forward.1} parent=11 // pred_check
        %p621 = pneg %p517
      $region98: #{forward.1} parent=11 // pred_check_branch
        %623 = sbr.rel (%p621) target = $region100
      $region99: #{forward.1} parent=11 // pred_region
        _
      $region100: #{forward.1} parent=11 // pred_fallthru
        _
    $region12: #{forward.1} parent=5 // pred_fallthru
      _
    %p624 = scmp.lt.s32.totalorder %s29, 2
    // Predicated region
    $region101: #{forward.1} parent=5 // pred_check
      %p625 = pneg %p624
    $region102: #{forward.1} parent=5 // pred_check_branch
      %627 = sbr.rel (%p625) target = $region104
    $region103: #{forward.1} parent=5 // pred_region
      // Predicated region
      $region105: #{forward.1} parent=103 // pred_check
        %p628 = pneg %p49
      $region106: #{forward.1} parent=103 // pred_check_branch
        %630 = sbr.rel (%p628) target = $region108
      $region107: #{forward.1} parent=103 // pred_region
        %p631 = scmp.lt.s32.totalorder %s29, 1
        %s632 = scalar_select %p631, %s29, 1
        %s633 = smul.addr %s632, 8
        %s634 = scalar_lea.vmem %s0, %s633
      $region108: #{forward.1} parent=103 // pred_fallthru
        _
    $region104: #{forward.1} parent=5 // pred_fallthru
      _
    %p635 = scmp.le.s32.totalorder 1, %s29
    %p636 = scmp.lt.s32.totalorder %s29, 3
    %p637 = pnand %p635, %p636
    %p638 = pneg %p637
    // Predicated region
    $region109: #{forward.1} parent=5 // pred_check
      _
    $region110: #{forward.1} parent=5 // pred_check_branch
      %640 = sbr.rel (%p637) target = $region112
    $region111: #{forward.1} parent=5 // pred_region
      %s641 = ssub.s32 %s29, 1
      %p642 = scmp.lt.s32.totalorder %s34, 1
      %s643 = scalar_select %p642, %s34, 1
      %s644 = smul.addr %s643, 8
      %s645 = scalar_lea.vmem %s0, %s644
      %p646 = pneg %p55
      %p647 = pneg %p52
      %p648 = pneg %p76
      %p649 = pneg %p73
      %p650 = pneg %p97
      %p651 = pneg %p94
      %p652 = pneg %p118
      %p653 = pneg %p115
      %p654 = pneg %p139
      %p655 = pneg %p136
      %p656 = pneg %p160
      %p657 = pneg %p157
      %p658 = pneg %p181
      %p659 = pneg %p178
      %p660 = pneg %p202
      %p661 = pneg %p199
      %p662 = pneg %p223
      %p663 = pneg %p220
      %p664 = pneg %p244
      %p665 = pneg %p241
      %p666 = pneg %p265
      %p667 = pneg %p262
      %p668 = pneg %p286
      %p669 = pneg %p283
      %p670 = pneg %p307
      %p671 = pneg %p304
      %p672 = pneg %p328
      %p673 = pneg %p325
      %p674 = pneg %p349
      %p675 = pneg %p346
      %p676 = pneg %p370
      %p677 = pneg %p367
      %p678 = pneg %p391
      %p679 = pneg %p388
      %p680 = pneg %p412
      %p681 = pneg %p409
      %p682 = pneg %p433
      %p683 = pneg %p430
      %p684 = pneg %p454
      %p685 = pneg %p451
      %p686 = pneg %p475
      %p687 = pneg %p472
      %p688 = pneg %p496
      %p689 = pneg %p493
      %p690 = pneg %p517
      %p691 = pneg %p514
      %p692 = pneg %p543
      %p693 = pneg %p540
      %p694 = scmp.lt.s32.totalorder %s34, 1
      %s695 = scalar_select %p694, %s34, 1
      %s696 = smul.addr %s695, 8
      %s697 = scalar_lea.vmem %s23, %s696
      %p698 = scmp.lt.s32.totalorder %s34, 1
      %s699 = scalar_select %p698, %s34, 1
      %s700 = smul.addr %s699, 8
      %s701 = scalar_lea.vmem %s0, %s700
      %p702 = scmp.lt.s32.totalorder %s34, 1
      %s703 = scalar_select %p702, %s34, 1
      %s704 = smul.addr %s703, 8
      %s705 = scalar_lea.vmem %s23, %s704
      %v707 = vld [vmem:[%s701] sm:$0xff]
      %v708 = vld [vmem:[%s1] sm:$0xff]
      %v709 = vld [vmem:[%s8] sm:$0x3f]
      %v710 = vld [vmem:[%s2] sm:$0xff]
      %v711 = vld [vmem:[%s2 + $0x8] sm:$0xff]
      %v712 = vld [vmem:[%s2 + $0x10] sm:$0xff]
      %v713 = vld [vmem:[%s2 + $0x18] sm:$0xff]
      %v714 = vld [vmem:[%s6] sm:$0x1]
      %v715 = vld [vmem:[%s3] sm:$0xff]
      %v716 = vld [vmem:[%s3 + $0x8] sm:$0xff]
      %v717 = vld [vmem:[%s3 + $0x10] sm:$0xff]
      %v718 = vld [vmem:[%s3 + $0x18] sm:$0xff]
      %v720 = vperm.slane %v714, 0
      %vm722 = vcmask 261120
      %v724 = vsel %vm722, %v707, 0
      %726 = vmatpush.msra.mxu0 0.0
      %727 = vmatpush.msra.mxu0 0.0
      %728 = vmatpush.msra.mxu0 0.0
      %729 = vmatpush.msra.mxu0 0.0
      %730 = vmatpush.msra.mxu0 0.0
      %731 = vmatpush.msra.mxu0 0.0
      %732 = vmatpush.msra.mxu0 0.0
      %733 = vmatpush.msra.mxu0 0.0
      %734 = vmatpush.msra.mxu0 0.0
      %735 = vmatpush.msra.mxu0 0.0
      %736 = vmatpush.msra.mxu0 0.0
      %737 = vmatpush.msra.mxu0 0.0
      %738 = vmatpush.msra.mxu0 %v713
      %739 = vmatpush.msra.mxu0 %v712
      %740 = vmatpush.msra.mxu0 %v711
      %741 = vmatpush.msra.mxu0 %v710
      %742 = vmatmul.f32.gmra.mxu0 %v724
      %v743 = vpop.f32.mrf.mxu0
      %v744 = vadd.f32 %v720, %v743
      %745 = vdwg.mxu0
      %747 = vrot.lane.b32.xlu0 %v744, 96
      %v748 = vpop.permute.xlu0 %747
      %vm749 = vcmask 64512
      %v750 = vsel %vm749, %v744, 0
      %v752 = vsel %vm749, %v748, 0
      %754 = vmatpush.xpose.msra.mxu0 0.0
      %755 = vmatpush.xpose.msra.mxu0 0.0
      %756 = vmatpush.xpose.msra.mxu0 0.0
      %757 = vmatpush.xpose.msra.mxu0 0.0
      %758 = vmatpush.xpose.msra.mxu0 0.0
      %759 = vmatpush.xpose.msra.mxu0 0.0
      %760 = vmatpush.xpose.msra.mxu0 0.0
      %761 = vmatpush.xpose.msra.mxu0 0.0
      %762 = vmatpush.xpose.msra.mxu0 0.0
      %763 = vmatpush.xpose.msra.mxu0 0.0
      %764 = vmatpush.xpose.msra.mxu0 0.0
      %765 = vmatpush.xpose.msra.mxu0 0.0
      %766 = vmatpush.xpose.msra.mxu0 0.0
      %767 = vmatpush.xpose.msra.mxu0 0.0
      %768 = vmatpush.xpose.msra.mxu0 0.0
      %769 = vmatpush.xpose.msra.mxu0 %v752
      %770 = vmatmul.f32.gmra.mxu0 %v750
      %v771 = vpop.f32.mrf.mxu0
      %v772 = vadd.f32 %v708, %v771
      %773 = vdwg.mxu0
      %v774 = vsel %vm749, %v772, -inf
      %775 = vmax.xlane.f32.xlu0 %v774
      %v776 = vpop.xlane.xlu0 %775
      %v777 = vsub.f32 %v772, %v776
      %v778 = vmul.f32 %v777, 1.442695
      %v779 = vpow.pop %v778
      %v780 = vsel %vm749, %v779, 0.0
      %781 = vadd.xlane.f32.xlu0 %v780
      %v782 = vpop.xlane.xlu0 %781
      %v783 = vrcp.pop %v782
      %v784 = vmul.f32 %v779, %v783
      %785 = vrot.lane.b32.xlu0 %v744, 64
      %v786 = vpop.permute.xlu0 %785
      %v789 = vsel %vm749, %v784, 0
      %791 = vmatpush.msra.mxu0 0.0
      %792 = vmatpush.msra.mxu0 0.0
      %793 = vmatpush.msra.mxu0 0.0
      %794 = vmatpush.msra.mxu0 0.0
      %795 = vmatpush.msra.mxu0 0.0
      %796 = vmatpush.msra.mxu0 0.0
      %797 = vmatpush.msra.mxu0 0.0
      %798 = vmatpush.msra.mxu0 0.0
      %799 = vmatpush.msra.mxu0 0.0
      %800 = vmatpush.msra.mxu0 0.0
      %801 = vmatpush.msra.mxu0 0.0
      %802 = vmatpush.msra.mxu0 0.0
      %803 = vmatpush.msra.mxu0 0.0
      %804 = vmatpush.msra.mxu0 0.0
      %805 = vmatpush.msra.mxu0 0.0
      %806 = vmatpush.msra.mxu0 %v786
      %807 = vmatmul.f32.gmra.mxu0 %v789
      %v808 = vpop.f32.mrf.mxu0
      %v809 = vadd.f32 0.0, %v808
      %810 = vdwg.mxu0
      %811 = vrot.lane.b32.xlu0 %v744, 120
      %v812 = vpop.permute.xlu0 %811
      %813 = vrot.lane.b32.xlu0 %v744, 88
      %v814 = vpop.permute.xlu0 %813
      %v815 = vsel %vm749, %v812, 0
      %v817 = vsel %vm749, %v814, 0
      %819 = vmatpush.xpose.msra.mxu0 0.0
      %820 = vmatpush.xpose.msra.mxu0 0.0
      %821 = vmatpush.xpose.msra.mxu0 0.0
      %822 = vmatpush.xpose.msra.mxu0 0.0
      %823 = vmatpush.xpose.msra.mxu0 0.0
      %824 = vmatpush.xpose.msra.mxu0 0.0
      %825 = vmatpush.xpose.msra.mxu0 0.0
      %826 = vmatpush.xpose.msra.mxu0 0.0
      %827 = vmatpush.xpose.msra.mxu0 0.0
      %828 = vmatpush.xpose.msra.mxu0 0.0
      %829 = vmatpush.xpose.msra.mxu0 0.0
      %830 = vmatpush.xpose.msra.mxu0 0.0
      %831 = vmatpush.xpose.msra.mxu0 0.0
      %832 = vmatpush.xpose.msra.mxu0 0.0
      %833 = vmatpush.xpose.msra.mxu0 0.0
      %834 = vmatpush.xpose.msra.mxu0 %v817
      %835 = vmatmul.f32.gmra.mxu0 %v815
      %v836 = vpop.f32.mrf.mxu0
      %v837 = vadd.f32 %v708, %v836
      %838 = vdwg.mxu0
      %v839 = vsel %vm749, %v837, -inf
      %840 = vmax.xlane.f32.xlu0 %v839
      %v841 = vpop.xlane.xlu0 %840
      %v842 = vsub.f32 %v837, %v841
      %v843 = vmul.f32 %v842, 1.442695
      %v844 = vpow.pop %v843
      %v845 = vsel %vm749, %v844, 0.0
      %846 = vadd.xlane.f32.xlu0 %v845
      %v847 = vpop.xlane.xlu0 %846
      %v848 = vrcp.pop %v847
      %v849 = vmul.f32 %v844, %v848
      %850 = vrot.lane.b32.xlu0 %v744, 56
      %v851 = vpop.permute.xlu0 %850
      %v854 = vsel %vm749, %v849, 0
      %856 = vmatpush.msra.mxu0 0.0
      %857 = vmatpush.msra.mxu0 0.0
      %858 = vmatpush.msra.mxu0 0.0
      %859 = vmatpush.msra.mxu0 0.0
      %860 = vmatpush.msra.mxu0 0.0
      %861 = vmatpush.msra.mxu0 0.0
      %862 = vmatpush.msra.mxu0 0.0
      %863 = vmatpush.msra.mxu0 0.0
      %864 = vmatpush.msra.mxu0 0.0
      %865 = vmatpush.msra.mxu0 0.0
      %866 = vmatpush.msra.mxu0 0.0
      %867 = vmatpush.msra.mxu0 0.0
      %868 = vmatpush.msra.mxu0 0.0
      %869 = vmatpush.msra.mxu0 0.0
      %870 = vmatpush.msra.mxu0 0.0
      %871 = vmatpush.msra.mxu0 %v851
      %872 = vmatmul.f32.gmra.mxu0 %v854
      %v873 = vpop.f32.mrf.mxu0
      %v874 = vadd.f32 0.0, %v873
      %875 = vdwg.mxu0
      %v877 = vsel %vm749, %v874, 0
      %879 = vmatpush.msra.mxu0 0.0
      %880 = vmatpush.msra.mxu0 0.0
      %881 = vmatpush.msra.mxu0 0.0
      %882 = vmatpush.msra.mxu0 0.0
      %883 = vmatpush.msra.mxu0 0.0
      %884 = vmatpush.msra.mxu0 0.0
      %885 = vmatpush.msra.mxu0 0.0
      %886 = vmatpush.msra.mxu0 0.0
      %887 = vmatpush.msra.mxu0 0.0
      %888 = vmatpush.msra.mxu0 0.0
      %889 = vmatpush.msra.mxu0 0.0
      %890 = vmatpush.msra.mxu0 0.0
      %891 = vmatpush.msra.mxu0 0.0
      %892 = vmatpush.msra.mxu0 0.0
      %893 = vmatpush.msra.mxu0 0.0
      %894 = vmatpush.msra.mxu0 %v716
      %895 = vmatmul.f32.gmra.mxu0 %v877
      %v896 = vpop.f32.mrf.mxu0
      %v897 = vadd.f32 0.0, %v896
      %898 = vdwg.mxu0
      %v900 = vsel %vm749, %v809, 0
      %902 = vmatpush.msra.mxu0 0.0
      %903 = vmatpush.msra.mxu0 0.0
      %904 = vmatpush.msra.mxu0 0.0
      %905 = vmatpush.msra.mxu0 0.0
      %906 = vmatpush.msra.mxu0 0.0
      %907 = vmatpush.msra.mxu0 0.0
      %908 = vmatpush.msra.mxu0 0.0
      %909 = vmatpush.msra.mxu0 0.0
      %910 = vmatpush.msra.mxu0 0.0
      %911 = vmatpush.msra.mxu0 0.0
      %912 = vmatpush.msra.mxu0 0.0
      %913 = vmatpush.msra.mxu0 0.0
      %914 = vmatpush.msra.mxu0 0.0
      %915 = vmatpush.msra.mxu0 0.0
      %916 = vmatpush.msra.mxu0 0.0
      %917 = vmatpush.msra.mxu0 %v715
      %918 = vmatmul.f32.gmra.mxu0 %v900
      %v919 = vpop.f32.mrf.mxu0
      %v920 = vadd.f32 %v897, %v919
      %921 = vdwg.mxu0
      %922 = vrot.lane.b32.xlu0 %v744, 112
      %v923 = vpop.permute.xlu0 %922
      %924 = vrot.lane.b32.xlu0 %v744, 80
      %v925 = vpop.permute.xlu0 %924
      %v926 = vsel %vm749, %v923, 0
      %v928 = vsel %vm749, %v925, 0
      %930 = vmatpush.xpose.msra.mxu0 0.0
      %931 = vmatpush.xpose.msra.mxu0 0.0
      %932 = vmatpush.xpose.msra.mxu0 0.0
      %933 = vmatpush.xpose.msra.mxu0 0.0
      %934 = vmatpush.xpose.msra.mxu0 0.0
      %935 = vmatpush.xpose.msra.mxu0 0.0
      %936 = vmatpush.xpose.msra.mxu0 0.0
      %937 = vmatpush.xpose.msra.mxu0 0.0
      %938 = vmatpush.xpose.msra.mxu0 0.0
      %939 = vmatpush.xpose.msra.mxu0 0.0
      %940 = vmatpush.xpose.msra.mxu0 0.0
      %941 = vmatpush.xpose.msra.mxu0 0.0
      %942 = vmatpush.xpose.msra.mxu0 0.0
      %943 = vmatpush.xpose.msra.mxu0 0.0
      %944 = vmatpush.xpose.msra.mxu0 0.0
      %945 = vmatpush.xpose.msra.mxu0 %v928
      %946 = vmatmul.f32.gmra.mxu0 %v926
      %v947 = vpop.f32.mrf.mxu0
      %v948 = vadd.f32 %v708, %v947
      %949 = vdwg.mxu0
      %v950 = vsel %vm749, %v948, -inf
      %951 = vmax.xlane.f32.xlu0 %v950
      %v952 = vpop.xlane.xlu0 %951
      %v953 = vsub.f32 %v948, %v952
      %v954 = vmul.f32 %v953, 1.442695
      %v955 = vpow.pop %v954
      %v956 = vsel %vm749, %v955, 0.0
      %957 = vadd.xlane.f32.xlu0 %v956
      %v958 = vpop.xlane.xlu0 %957
      %v959 = vrcp.pop %v958
      %v960 = vmul.f32 %v955, %v959
      %961 = vrot.lane.b32.xlu0 %v744, 48
      %v962 = vpop.permute.xlu0 %961
      %v965 = vsel %vm749, %v960, 0
      %967 = vmatpush.msra.mxu0 0.0
      %968 = vmatpush.msra.mxu0 0.0
      %969 = vmatpush.msra.mxu0 0.0
      %970 = vmatpush.msra.mxu0 0.0
      %971 = vmatpush.msra.mxu0 0.0
      %972 = vmatpush.msra.mxu0 0.0
      %973 = vmatpush.msra.mxu0 0.0
      %974 = vmatpush.msra.mxu0 0.0
      %975 = vmatpush.msra.mxu0 0.0
      %976 = vmatpush.msra.mxu0 0.0
      %977 = vmatpush.msra.mxu0 0.0
      %978 = vmatpush.msra.mxu0 0.0
      %979 = vmatpush.msra.mxu0 0.0
      %980 = vmatpush.msra.mxu0 0.0
      %981 = vmatpush.msra.mxu0 0.0
      %982 = vmatpush.msra.mxu0 %v962
      %983 = vmatmul.f32.gmra.mxu0 %v965
      %v984 = vpop.f32.mrf.mxu0
      %v985 = vadd.f32 0.0, %v984
      %986 = vdwg.mxu0
      %v988 = vsel %vm749, %v985, 0
      %990 = vmatpush.msra.mxu0 0.0
      %991 = vmatpush.msra.mxu0 0.0
      %992 = vmatpush.msra.mxu0 0.0
      %993 = vmatpush.msra.mxu0 0.0
      %994 = vmatpush.msra.mxu0 0.0
      %995 = vmatpush.msra.mxu0 0.0
      %996 = vmatpush.msra.mxu0 0.0
      %997 = vmatpush.msra.mxu0 0.0
      %998 = vmatpush.msra.mxu0 0.0
      %999 = vmatpush.msra.mxu0 0.0
      %1000 = vmatpush.msra.mxu0 0.0
      %1001 = vmatpush.msra.mxu0 0.0
      %1002 = vmatpush.msra.mxu0 0.0
      %1003 = vmatpush.msra.mxu0 0.0
      %1004 = vmatpush.msra.mxu0 0.0
      %1005 = vmatpush.msra.mxu0 %v717
      %1006 = vmatmul.f32.gmra.mxu0 %v988
      %v1007 = vpop.f32.mrf.mxu0
      %v1008 = vadd.f32 0.0, %v1007
      %1009 = vdwg.mxu0
      %v1010 = vadd.f32 %v920, %v1008
      %1011 = vrot.lane.b32.xlu0 %v744, 104
      %v1012 = vpop.permute.xlu0 %1011
      %1013 = vrot.lane.b32.xlu0 %v744, 72
      %v1014 = vpop.permute.xlu0 %1013
      %v1015 = vsel %vm749, %v1012, 0
      %v1017 = vsel %vm749, %v1014, 0
      %1019 = vmatpush.xpose.msra.mxu0 0.0
      %1020 = vmatpush.xpose.msra.mxu0 0.0
      %1021 = vmatpush.xpose.msra.mxu0 0.0
      %1022 = vmatpush.xpose.msra.mxu0 0.0
      %1023 = vmatpush.xpose.msra.mxu0 0.0
      %1024 = vmatpush.xpose.msra.mxu0 0.0
      %1025 = vmatpush.xpose.msra.mxu0 0.0
      %1026 = vmatpush.xpose.msra.mxu0 0.0
      %1027 = vmatpush.xpose.msra.mxu0 0.0
      %1028 = vmatpush.xpose.msra.mxu0 0.0
      %1029 = vmatpush.xpose.msra.mxu0 0.0
      %1030 = vmatpush.xpose.msra.mxu0 0.0
      %1031 = vmatpush.xpose.msra.mxu0 0.0
      %1032 = vmatpush.xpose.msra.mxu0 0.0
      %1033 = vmatpush.xpose.msra.mxu0 0.0
      %1034 = vmatpush.xpose.msra.mxu0 %v1017
      %1035 = vmatmul.f32.gmra.mxu0 %v1015
      %v1036 = vpop.f32.mrf.mxu0
      %v1037 = vadd.f32 %v708, %v1036
      %1038 = vdwg.mxu0
      %v1039 = vsel %vm749, %v1037, -inf
      %1040 = vmax.xlane.f32.xlu0 %v1039
      %v1041 = vpop.xlane.xlu0 %1040
      %v1042 = vsub.f32 %v1037, %v1041
      %v1043 = vmul.f32 %v1042, 1.442695
      %v1044 = vpow.pop %v1043
      %v1045 = vsel %vm749, %v1044, 0.0
      %1046 = vadd.xlane.f32.xlu0 %v1045
      %v1047 = vpop.xlane.xlu0 %1046
      %v1048 = vrcp.pop %v1047
      %v1049 = vmul.f32 %v1044, %v1048
      %1050 = vrot.lane.b32.xlu0 %v744, 40
      %v1051 = vpop.permute.xlu0 %1050
      %v1054 = vsel %vm749, %v1049, 0
      %1056 = vmatpush.msra.mxu0 0.0
      %1057 = vmatpush.msra.mxu0 0.0
      %1058 = vmatpush.msra.mxu0 0.0
      %1059 = vmatpush.msra.mxu0 0.0
      %1060 = vmatpush.msra.mxu0 0.0
      %1061 = vmatpush.msra.mxu0 0.0
      %1062 = vmatpush.msra.mxu0 0.0
      %1063 = vmatpush.msra.mxu0 0.0
      %1064 = vmatpush.msra.mxu0 0.0
      %1065 = vmatpush.msra.mxu0 0.0
      %1066 = vmatpush.msra.mxu0 0.0
      %1067 = vmatpush.msra.mxu0 0.0
      %1068 = vmatpush.msra.mxu0 0.0
      %1069 = vmatpush.msra.mxu0 0.0
      %1070 = vmatpush.msra.mxu0 0.0
      %1071 = vmatpush.msra.mxu0 %v1051
      %1072 = vmatmul.f32.gmra.mxu0 %v1054
      %v1073 = vpop.f32.mrf.mxu0
      %v1074 = vadd.f32 0.0, %v1073
      %1075 = vdwg.mxu0
      %v1077 = vsel %vm749, %v1074, 0
      %1079 = vmatpush.msra.mxu0 0.0
      %1080 = vmatpush.msra.mxu0 0.0
      %1081 = vmatpush.msra.mxu0 0.0
      %1082 = vmatpush.msra.mxu0 0.0
      %1083 = vmatpush.msra.mxu0 0.0
      %1084 = vmatpush.msra.mxu0 0.0
      %1085 = vmatpush.msra.mxu0 0.0
      %1086 = vmatpush.msra.mxu0 0.0
      %1087 = vmatpush.msra.mxu0 0.0
      %1088 = vmatpush.msra.mxu0 0.0
      %1089 = vmatpush.msra.mxu0 0.0
      %1090 = vmatpush.msra.mxu0 0.0
      %1091 = vmatpush.msra.mxu0 0.0
      %1092 = vmatpush.msra.mxu0 0.0
      %1093 = vmatpush.msra.mxu0 0.0
      %1094 = vmatpush.msra.mxu0 %v718
      %1095 = vmatmul.f32.gmra.mxu0 %v1077
      %v1096 = vpop.f32.mrf.mxu0
      %v1097 = vadd.f32 0.0, %v1096
      %1098 = vdwg.mxu0
      %v1099 = vadd.f32 %v1010, %v1097
      %v1100 = vperm.slane %v709, 0
      %v1101 = vadd.f32 %v1099, %v1100
      %v1102 = vadd.f32 %v707, %v1101
      %v1103 = vsel %vm722, %v1102, 0.0
      %1104 = vadd.xlane.f32.xlu0 %v1103
      %v1105 = vpop.xlane.xlu0 %1104
      %v1106 = vrcp.pop 32.0
      %v1107 = vmul.f32 32.0, %v1106
      %v1108 = vsub.f32 1.0, %v1107
      %v1109 = vmul.f32 %v1106, %v1108
      %v1110 = vadd.f32 %v1106, %v1109
      %vm1111 = vweird.f32 %v1106
      %v1112 = vsel %vm1111, %v1106, %v1110
      %v1113 = vmul.f32 %v1105, %v1112
      %v1114 = vsub.f32 %v1102, %v1113
      %v1115 = vmul.f32 %v1114, %v1114
      %v1116 = vsel %vm722, %v1115, 0.0
      %1117 = vadd.xlane.f32.xlu0 %v1116
      %v1118 = vpop.xlane.xlu0 %1117
      %v1119 = vmul.f32 %v1118, %v1112
      %v1120 = vadd.f32 %v1119, 1e-05
      %v1121 = vrsqrt.pop %v1120
      %v1122 = vmul.f32 %v1121, %v1120
      %v1123 = vmul.f32 %v1122, %v1121
      %v1124 = vmul.f32 0.5, %v1123
      %v1125 = vsub.f32 1.5, %v1124
      %v1126 = vmul.f32 %v1121, %v1125
      %vm1127 = vweird.f32 %v1120
      %vm1128 = vweird.f32 %v1121
      %vm1129 = vmor %vm1127, %vm1128
      %v1130 = vsel %vm1129, %v1121, %v1126
      %v1131 = vmul.f32 %v1114, %v1130
      %v1132 = vperm.slane %v709, 1
      %v1133 = vmul.f32 %v1131, %v1132
      %v1134 = vperm.slane %v709, 2
      %v1135 = vadd.f32 %v1133, %v1134
      %v1136 = vld [vmem:[%s4] sm:$0xff]
      %v1137 = vld [vmem:[%s4 + $0x8] sm:$0xff]
      %v1138 = vld [vmem:[%s4 + $0x10] sm:$0xff]
      %v1139 = vld [vmem:[%s4 + $0x18] sm:$0xff]
      %v1140 = vld [vmem:[%s4 + $0x20] sm:$0xff]
      %v1141 = vld [vmem:[%s4 + $0x28] sm:$0xff]
      %v1142 = vld [vmem:[%s4 + $0x30] sm:$0xff]
      %v1143 = vld [vmem:[%s4 + $0x38] sm:$0xff]
      %v1144 = vld [vmem:[%s4 + $0x40] sm:$0xff]
      %v1145 = vld [vmem:[%s4 + $0x48] sm:$0xff]
      %v1146 = vld [vmem:[%s4 + $0x50] sm:$0xff]
      %v1147 = vld [vmem:[%s4 + $0x58] sm:$0xff]
      %v1148 = vld [vmem:[%s4 + $0x60] sm:$0xff]
      %v1149 = vld [vmem:[%s4 + $0x68] sm:$0xff]
      %v1150 = vld [vmem:[%s4 + $0x70] sm:$0xff]
      %v1151 = vld [vmem:[%s4 + $0x78] sm:$0xff]
      %v1152 = vld [vmem:[%s4 + $0x80] sm:$0xff]
      %v1153 = vld [vmem:[%s4 + $0x88] sm:$0xff]
      %v1154 = vld [vmem:[%s4 + $0x90] sm:$0xff]
      %v1155 = vld [vmem:[%s4 + $0x98] sm:$0xff]
      %v1156 = vld [vmem:[%s4 + $0xa0] sm:$0xff]
      %v1157 = vld [vmem:[%s4 + $0xa8] sm:$0xff]
      %v1158 = vld [vmem:[%s4 + $0xb0] sm:$0xff]
      %v1159 = vld [vmem:[%s4 + $0xb8] sm:$0xff]
      %v1160 = vld [vmem:[%s4 + $0xc0] sm:$0xff]
      %v1161 = vld [vmem:[%s4 + $0xc8] sm:$0xff]
      %v1162 = vld [vmem:[%s4 + $0xd0] sm:$0xff]
      %v1163 = vld [vmem:[%s4 + $0xd8] sm:$0xff]
      %v1164 = vld [vmem:[%s4 + $0xe0] sm:$0xff]
      %v1165 = vld [vmem:[%s4 + $0xe8] sm:$0xff]
      %v1166 = vld [vmem:[%s4 + $0xf0] sm:$0xff]
      %v1167 = vld [vmem:[%s4 + $0xf8] sm:$0xff]
      %v1168 = vld [vmem:[%s7] sm:$0xff]
      %v1169 = vld [vmem:[%s7 + $0x8] sm:$0xff]
      %v1170 = vld [vmem:[%s5] sm:$0xf]
      %v1171 = vld [vmem:[%s5 + $0x4] sm:$0xf]
      %v1172 = vld [vmem:[%s5 + $0x8] sm:$0xf]
      %v1173 = vld [vmem:[%s5 + $0xc] sm:$0xf]
      %v1174 = vld [vmem:[%s5 + $0x10] sm:$0xf]
      %v1175 = vld [vmem:[%s5 + $0x14] sm:$0xf]
      %v1176 = vld [vmem:[%s5 + $0x18] sm:$0xf]
      %v1177 = vld [vmem:[%s5 + $0x1c] sm:$0xf]
      %v1178 = vld [vmem:[%s5 + $0x20] sm:$0xf]
      %v1179 = vld [vmem:[%s5 + $0x24] sm:$0xf]
      %v1180 = vld [vmem:[%s5 + $0x28] sm:$0xf]
      %v1181 = vld [vmem:[%s5 + $0x2c] sm:$0xf]
      %v1182 = vld [vmem:[%s5 + $0x30] sm:$0xf]
      %v1183 = vld [vmem:[%s5 + $0x34] sm:$0xf]
      %v1184 = vld [vmem:[%s5 + $0x38] sm:$0xf]
      %v1185 = vld [vmem:[%s5 + $0x3c] sm:$0xf]
      %v1186 = vld [vmem:[%s5 + $0x40] sm:$0xf]
      %v1187 = vld [vmem:[%s5 + $0x44] sm:$0xf]
      %v1188 = vld [vmem:[%s5 + $0x48] sm:$0xf]
      %v1189 = vld [vmem:[%s5 + $0x4c] sm:$0xf]
      %v1190 = vld [vmem:[%s5 + $0x50] sm:$0xf]
      %v1191 = vld [vmem:[%s5 + $0x54] sm:$0xf]
      %v1192 = vld [vmem:[%s5 + $0x58] sm:$0xf]
      %v1193 = vld [vmem:[%s5 + $0x5c] sm:$0xf]
      %v1194 = vld [vmem:[%s5 + $0x60] sm:$0xf]
      %v1195 = vld [vmem:[%s5 + $0x64] sm:$0xf]
      %v1196 = vld [vmem:[%s5 + $0x68] sm:$0xf]
      %v1197 = vld [vmem:[%s5 + $0x6c] sm:$0xf]
      %v1198 = vld [vmem:[%s5 + $0x70] sm:$0xf]
      %v1199 = vld [vmem:[%s5 + $0x74] sm:$0xf]
      %v1200 = vld [vmem:[%s5 + $0x78] sm:$0xf]
      %v1201 = vld [vmem:[%s5 + $0x7c] sm:$0xf]
      %v1202 = vld [vmem:[%s5 + $0x80] sm:$0xf]
      %v1203 = vld [vmem:[%s5 + $0x84] sm:$0xf]
      %v1204 = vld [vmem:[%s5 + $0x88] sm:$0xf]
      %v1205 = vld [vmem:[%s5 + $0x8c] sm:$0xf]
      %v1206 = vld [vmem:[%s5 + $0x90] sm:$0xf]
      %v1207 = vld [vmem:[%s5 + $0x94] sm:$0xf]
      %v1208 = vld [vmem:[%s5 + $0x98] sm:$0xf]
      %v1209 = vld [vmem:[%s5 + $0x9c] sm:$0xf]
      %v1210 = vld [vmem:[%s5 + $0xa0] sm:$0xf]
      %v1211 = vld [vmem:[%s5 + $0xa4] sm:$0xf]
      %v1212 = vld [vmem:[%s5 + $0xa8] sm:$0xf]
      %v1213 = vld [vmem:[%s5 + $0xac] sm:$0xf]
      %v1214 = vld [vmem:[%s5 + $0xb0] sm:$0xf]
      %v1215 = vld [vmem:[%s5 + $0xb4] sm:$0xf]
      %v1216 = vld [vmem:[%s5 + $0xb8] sm:$0xf]
      %v1217 = vld [vmem:[%s5 + $0xbc] sm:$0xf]
      %v1218 = vld [vmem:[%s5 + $0xc0] sm:$0xf]
      %v1219 = vld [vmem:[%s5 + $0xc4] sm:$0xf]
      %v1220 = vld [vmem:[%s5 + $0xc8] sm:$0xf]
      %v1221 = vld [vmem:[%s5 + $0xcc] sm:$0xf]
      %v1222 = vld [vmem:[%s5 + $0xd0] sm:$0xf]
      %v1223 = vld [vmem:[%s5 + $0xd4] sm:$0xf]
      %v1224 = vld [vmem:[%s5 + $0xd8] sm:$0xf]
      %v1225 = vld [vmem:[%s5 + $0xdc] sm:$0xf]
      %v1226 = vld [vmem:[%s5 + $0xe0] sm:$0xf]
      %v1227 = vld [vmem:[%s5 + $0xe4] sm:$0xf]
      %v1228 = vld [vmem:[%s5 + $0xe8] sm:$0xf]
      %v1229 = vld [vmem:[%s5 + $0xec] sm:$0xf]
      %v1230 = vld [vmem:[%s5 + $0xf0] sm:$0xf]
      %v1231 = vld [vmem:[%s5 + $0xf4] sm:$0xf]
      %v1232 = vld [vmem:[%s5 + $0xf8] sm:$0xf]
      %v1233 = vld [vmem:[%s5 + $0xfc] sm:$0xf]
      %v1234 = vld [vmem:[%s5 + $0x100] sm:$0xf]
      %v1235 = vld [vmem:[%s5 + $0x104] sm:$0xf]
      %v1236 = vld [vmem:[%s5 + $0x108] sm:$0xf]
      %v1237 = vld [vmem:[%s5 + $0x10c] sm:$0xf]
      %v1238 = vld [vmem:[%s5 + $0x110] sm:$0xf]
      %v1239 = vld [vmem:[%s5 + $0x114] sm:$0xf]
      %v1240 = vld [vmem:[%s5 + $0x118] sm:$0xf]
      %v1241 = vld [vmem:[%s5 + $0x11c] sm:$0xf]
      %v1242 = vld [vmem:[%s5 + $0x120] sm:$0xf]
      %v1243 = vld [vmem:[%s5 + $0x124] sm:$0xf]
      %v1244 = vld [vmem:[%s5 + $0x128] sm:$0xf]
      %v1245 = vld [vmem:[%s5 + $0x12c] sm:$0xf]
      %v1246 = vld [vmem:[%s5 + $0x130] sm:$0xf]
      %v1247 = vld [vmem:[%s5 + $0x134] sm:$0xf]
      %v1248 = vld [vmem:[%s5 + $0x138] sm:$0xf]
      %v1249 = vld [vmem:[%s5 + $0x13c] sm:$0xf]
      %v1250 = vld [vmem:[%s5 + $0x140] sm:$0xf]
      %v1251 = vld [vmem:[%s5 + $0x144] sm:$0xf]
      %v1252 = vld [vmem:[%s5 + $0x148] sm:$0xf]
      %v1253 = vld [vmem:[%s5 + $0x14c] sm:$0xf]
      %v1254 = vld [vmem:[%s5 + $0x150] sm:$0xf]
      %v1255 = vld [vmem:[%s5 + $0x154] sm:$0xf]
      %v1256 = vld [vmem:[%s5 + $0x158] sm:$0xf]
      %v1257 = vld [vmem:[%s5 + $0x15c] sm:$0xf]
      %v1258 = vld [vmem:[%s5 + $0x160] sm:$0xf]
      %v1259 = vld [vmem:[%s5 + $0x164] sm:$0xf]
      %v1260 = vld [vmem:[%s5 + $0x168] sm:$0xf]
      %v1261 = vld [vmem:[%s5 + $0x16c] sm:$0xf]
      %v1262 = vld [vmem:[%s5 + $0x170] sm:$0xf]
      %v1263 = vld [vmem:[%s5 + $0x174] sm:$0xf]
      %v1264 = vld [vmem:[%s5 + $0x178] sm:$0xf]
      %v1265 = vld [vmem:[%s5 + $0x17c] sm:$0xf]
      %v1266 = vld [vmem:[%s5 + $0x180] sm:$0xf]
      %v1267 = vld [vmem:[%s5 + $0x184] sm:$0xf]
      %v1268 = vld [vmem:[%s5 + $0x188] sm:$0xf]
      %v1269 = vld [vmem:[%s5 + $0x18c] sm:$0xf]
      %v1270 = vld [vmem:[%s5 + $0x190] sm:$0xf]
      %v1271 = vld [vmem:[%s5 + $0x194] sm:$0xf]
      %v1272 = vld [vmem:[%s5 + $0x198] sm:$0xf]
      %v1273 = vld [vmem:[%s5 + $0x19c] sm:$0xf]
      %v1274 = vld [vmem:[%s5 + $0x1a0] sm:$0xf]
      %v1275 = vld [vmem:[%s5 + $0x1a4] sm:$0xf]
      %v1276 = vld [vmem:[%s5 + $0x1a8] sm:$0xf]
      %v1277 = vld [vmem:[%s5 + $0x1ac] sm:$0xf]
      %v1278 = vld [vmem:[%s5 + $0x1b0] sm:$0xf]
      %v1279 = vld [vmem:[%s5 + $0x1b4] sm:$0xf]
      %v1280 = vld [vmem:[%s5 + $0x1b8] sm:$0xf]
      %v1281 = vld [vmem:[%s5 + $0x1bc] sm:$0xf]
      %v1282 = vld [vmem:[%s5 + $0x1c0] sm:$0xf]
      %v1283 = vld [vmem:[%s5 + $0x1c4] sm:$0xf]
      %v1284 = vld [vmem:[%s5 + $0x1c8] sm:$0xf]
      %v1285 = vld [vmem:[%s5 + $0x1cc] sm:$0xf]
      %v1286 = vld [vmem:[%s5 + $0x1d0] sm:$0xf]
      %v1287 = vld [vmem:[%s5 + $0x1d4] sm:$0xf]
      %v1288 = vld [vmem:[%s5 + $0x1d8] sm:$0xf]
      %v1289 = vld [vmem:[%s5 + $0x1dc] sm:$0xf]
      %v1290 = vld [vmem:[%s5 + $0x1e0] sm:$0xf]
      %v1291 = vld [vmem:[%s5 + $0x1e4] sm:$0xf]
      %v1292 = vld [vmem:[%s5 + $0x1e8] sm:$0xf]
      %v1293 = vld [vmem:[%s5 + $0x1ec] sm:$0xf]
      %v1294 = vld [vmem:[%s5 + $0x1f0] sm:$0xf]
      %v1295 = vld [vmem:[%s5 + $0x1f4] sm:$0xf]
      %v1296 = vld [vmem:[%s5 + $0x1f8] sm:$0xf]
      %v1297 = vld [vmem:[%s5 + $0x1fc] sm:$0xf]
      %v1298 = vld [vmem:[%s5 + $0x200] sm:$0xf]
      %v1299 = vld [vmem:[%s5 + $0x204] sm:$0xf]
      %v1300 = vld [vmem:[%s5 + $0x208] sm:$0xf]
      %v1301 = vld [vmem:[%s5 + $0x20c] sm:$0xf]
      %v1302 = vld [vmem:[%s5 + $0x210] sm:$0xf]
      %v1303 = vld [vmem:[%s5 + $0x214] sm:$0xf]
      %v1304 = vld [vmem:[%s5 + $0x218] sm:$0xf]
      %v1305 = vld [vmem:[%s5 + $0x21c] sm:$0xf]
      %v1306 = vld [vmem:[%s5 + $0x220] sm:$0xf]
      %v1307 = vld [vmem:[%s5 + $0x224] sm:$0xf]
      %v1308 = vld [vmem:[%s5 + $0x228] sm:$0xf]
      %v1309 = vld [vmem:[%s5 + $0x22c] sm:$0xf]
      %v1310 = vld [vmem:[%s5 + $0x230] sm:$0xf]
      %v1311 = vld [vmem:[%s5 + $0x234] sm:$0xf]
      %v1312 = vld [vmem:[%s5 + $0x238] sm:$0xf]
      %v1313 = vld [vmem:[%s5 + $0x23c] sm:$0xf]
      %v1314 = vld [vmem:[%s5 + $0x240] sm:$0xf]
      %v1315 = vld [vmem:[%s5 + $0x244] sm:$0xf]
      %v1316 = vld [vmem:[%s5 + $0x248] sm:$0xf]
      %v1317 = vld [vmem:[%s5 + $0x24c] sm:$0xf]
      %v1318 = vld [vmem:[%s5 + $0x250] sm:$0xf]
      %v1319 = vld [vmem:[%s5 + $0x254] sm:$0xf]
      %v1320 = vld [vmem:[%s5 + $0x258] sm:$0xf]
      %v1321 = vld [vmem:[%s5 + $0x25c] sm:$0xf]
      %v1322 = vld [vmem:[%s5 + $0x260] sm:$0xf]
      %v1323 = vld [vmem:[%s5 + $0x264] sm:$0xf]
      %v1324 = vld [vmem:[%s5 + $0x268] sm:$0xf]
      %v1325 = vld [vmem:[%s5 + $0x26c] sm:$0xf]
      %v1326 = vld [vmem:[%s5 + $0x270] sm:$0xf]
      %v1327 = vld [vmem:[%s5 + $0x274] sm:$0xf]
      %v1328 = vld [vmem:[%s5 + $0x278] sm:$0xf]
      %v1329 = vld [vmem:[%s5 + $0x27c] sm:$0xf]
      %v1330 = vld [vmem:[%s5 + $0x280] sm:$0xf]
      %v1331 = vld [vmem:[%s5 + $0x284] sm:$0xf]
      %v1332 = vld [vmem:[%s5 + $0x288] sm:$0xf]
      %v1333 = vld [vmem:[%s5 + $0x28c] sm:$0xf]
      %v1334 = vld [vmem:[%s5 + $0x290] sm:$0xf]
      %v1335 = vld [vmem:[%s5 + $0x294] sm:$0xf]
      %v1336 = vld [vmem:[%s5 + $0x298] sm:$0xf]
      %v1337 = vld [vmem:[%s5 + $0x29c] sm:$0xf]
      %v1338 = vld [vmem:[%s5 + $0x2a0] sm:$0xf]
      %v1339 = vld [vmem:[%s5 + $0x2a4] sm:$0xf]
      %v1340 = vld [vmem:[%s5 + $0x2a8] sm:$0xf]
      %v1341 = vld [vmem:[%s5 + $0x2ac] sm:$0xf]
      %v1342 = vld [vmem:[%s5 + $0x2b0] sm:$0xf]
      %v1343 = vld [vmem:[%s5 + $0x2b4] sm:$0xf]
      %v1344 = vld [vmem:[%s5 + $0x2b8] sm:$0xf]
      %v1345 = vld [vmem:[%s5 + $0x2bc] sm:$0xf]
      %v1346 = vld [vmem:[%s5 + $0x2c0] sm:$0xf]
      %v1347 = vld [vmem:[%s5 + $0x2c4] sm:$0xf]
      %v1348 = vld [vmem:[%s5 + $0x2c8] sm:$0xf]
      %v1349 = vld [vmem:[%s5 + $0x2cc] sm:$0xf]
      %v1350 = vld [vmem:[%s5 + $0x2d0] sm:$0xf]
      %v1351 = vld [vmem:[%s5 + $0x2d4] sm:$0xf]
      %v1352 = vld [vmem:[%s5 + $0x2d8] sm:$0xf]
      %v1353 = vld [vmem:[%s5 + $0x2dc] sm:$0xf]
      %v1354 = vld [vmem:[%s5 + $0x2e0] sm:$0xf]
      %v1355 = vld [vmem:[%s5 + $0x2e4] sm:$0xf]
      %v1356 = vld [vmem:[%s5 + $0x2e8] sm:$0xf]
      %v1357 = vld [vmem:[%s5 + $0x2ec] sm:$0xf]
      %v1358 = vld [vmem:[%s5 + $0x2f0] sm:$0xf]
      %v1359 = vld [vmem:[%s5 + $0x2f4] sm:$0xf]
      %v1360 = vld [vmem:[%s5 + $0x2f8] sm:$0xf]
      %v1361 = vld [vmem:[%s5 + $0x2fc] sm:$0xf]
      %v1362 = vld [vmem:[%s5 + $0x300] sm:$0xf]
      %v1363 = vld [vmem:[%s5 + $0x304] sm:$0xf]
      %v1364 = vld [vmem:[%s5 + $0x308] sm:$0xf]
      %v1365 = vld [vmem:[%s5 + $0x30c] sm:$0xf]
      %v1366 = vld [vmem:[%s5 + $0x310] sm:$0xf]
      %v1367 = vld [vmem:[%s5 + $0x314] sm:$0xf]
      %v1368 = vld [vmem:[%s5 + $0x318] sm:$0xf]
      %v1369 = vld [vmem:[%s5 + $0x31c] sm:$0xf]
      %v1370 = vld [vmem:[%s5 + $0x320] sm:$0xf]
      %v1371 = vld [vmem:[%s5 + $0x324] sm:$0xf]
      %v1372 = vld [vmem:[%s5 + $0x328] sm:$0xf]
      %v1373 = vld [vmem:[%s5 + $0x32c] sm:$0xf]
      %v1374 = vld [vmem:[%s5 + $0x330] sm:$0xf]
      %v1375 = vld [vmem:[%s5 + $0x334] sm:$0xf]
      %v1376 = vld [vmem:[%s5 + $0x338] sm:$0xf]
      %v1377 = vld [vmem:[%s5 + $0x33c] sm:$0xf]
      %v1378 = vld [vmem:[%s5 + $0x340] sm:$0xf]
      %v1379 = vld [vmem:[%s5 + $0x344] sm:$0xf]
      %v1380 = vld [vmem:[%s5 + $0x348] sm:$0xf]
      %v1381 = vld [vmem:[%s5 + $0x34c] sm:$0xf]
      %v1382 = vld [vmem:[%s5 + $0x350] sm:$0xf]
      %v1383 = vld [vmem:[%s5 + $0x354] sm:$0xf]
      %v1384 = vld [vmem:[%s5 + $0x358] sm:$0xf]
      %v1385 = vld [vmem:[%s5 + $0x35c] sm:$0xf]
      %v1386 = vld [vmem:[%s5 + $0x360] sm:$0xf]
      %v1387 = vld [vmem:[%s5 + $0x364] sm:$0xf]
      %v1388 = vld [vmem:[%s5 + $0x368] sm:$0xf]
      %v1389 = vld [vmem:[%s5 + $0x36c] sm:$0xf]
      %v1390 = vld [vmem:[%s5 + $0x370] sm:$0xf]
      %v1391 = vld [vmem:[%s5 + $0x374] sm:$0xf]
      %v1392 = vld [vmem:[%s5 + $0x378] sm:$0xf]
      %v1393 = vld [vmem:[%s5 + $0x37c] sm:$0xf]
      %v1394 = vld [vmem:[%s5 + $0x380] sm:$0xf]
      %v1395 = vld [vmem:[%s5 + $0x384] sm:$0xf]
      %v1396 = vld [vmem:[%s5 + $0x388] sm:$0xf]
      %v1397 = vld [vmem:[%s5 + $0x38c] sm:$0xf]
      %v1398 = vld [vmem:[%s5 + $0x390] sm:$0xf]
      %v1399 = vld [vmem:[%s5 + $0x394] sm:$0xf]
      %v1400 = vld [vmem:[%s5 + $0x398] sm:$0xf]
      %v1401 = vld [vmem:[%s5 + $0x39c] sm:$0xf]
      %v1402 = vld [vmem:[%s5 + $0x3a0] sm:$0xf]
      %v1403 = vld [vmem:[%s5 + $0x3a4] sm:$0xf]
      %v1404 = vld [vmem:[%s5 + $0x3a8] sm:$0xf]
      %v1405 = vld [vmem:[%s5 + $0x3ac] sm:$0xf]
      %v1406 = vld [vmem:[%s5 + $0x3b0] sm:$0xf]
      %v1407 = vld [vmem:[%s5 + $0x3b4] sm:$0xf]
      %v1408 = vld [vmem:[%s5 + $0x3b8] sm:$0xf]
      %v1409 = vld [vmem:[%s5 + $0x3bc] sm:$0xf]
      %v1410 = vld [vmem:[%s5 + $0x3c0] sm:$0xf]
      %v1411 = vld [vmem:[%s5 + $0x3c4] sm:$0xf]
      %v1412 = vld [vmem:[%s5 + $0x3c8] sm:$0xf]
      %v1413 = vld [vmem:[%s5 + $0x3cc] sm:$0xf]
      %v1414 = vld [vmem:[%s5 + $0x3d0] sm:$0xf]
      %v1415 = vld [vmem:[%s5 + $0x3d4] sm:$0xf]
      %v1416 = vld [vmem:[%s5 + $0x3d8] sm:$0xf]
      %v1417 = vld [vmem:[%s5 + $0x3dc] sm:$0xf]
      %v1418 = vld [vmem:[%s5 + $0x3e0] sm:$0xf]
      %v1419 = vld [vmem:[%s5 + $0x3e4] sm:$0xf]
      %v1420 = vld [vmem:[%s5 + $0x3e8] sm:$0xf]
      %v1421 = vld [vmem:[%s5 + $0x3ec] sm:$0xf]
      %v1422 = vld [vmem:[%s5 + $0x3f0] sm:$0xf]
      %v1423 = vld [vmem:[%s5 + $0x3f4] sm:$0xf]
      %v1424 = vld [vmem:[%s5 + $0x3f8] sm:$0xf]
      %v1425 = vld [vmem:[%s5 + $0x3fc] sm:$0xf]
      %v1426 = vpack.c.bf16 %v1135, %v1135
      %v1429 = vperm.slane %v1168, 0
      %v1430 = vperm.slane %v1168, 1
      %v1431 = vperm.slane %v1168, 2
      %v1432 = vperm.slane %v1168, 3
      %v1433 = vperm.slane %v1168, 4
      %v1434 = vperm.slane %v1168, 5
      %v1435 = vperm.slane %v1168, 6
      %v1436 = vperm.slane %v1168, 7
      %v1437 = vperm.slane %v1169, 0
      %v1438 = vperm.slane %v1169, 1
      %v1439 = vperm.slane %v1169, 2
      %v1440 = vperm.slane %v1169, 3
      %v1441 = vperm.slane %v1169, 4
      %v1442 = vperm.slane %v1169, 5
      %v1443 = vperm.slane %v1169, 6
      %v1444 = vperm.slane %v1169, 7
      %v1493 = vunpack.c.l.b16 %v1136
      %v1494 = vunpack.c.h.b16 %v1136
      %v1495 = vunpack.c.l.b16 %v1137
      %v1496 = vunpack.c.h.b16 %v1137
      %v1497 = vunpack.c.l.b16 %v1138
      %v1498 = vunpack.c.h.b16 %v1138
      %v1499 = vunpack.c.l.b16 %v1139
      %v1500 = vunpack.c.h.b16 %v1139
      %v1501 = vunpack.c.l.b16 %v1140
      %v1502 = vunpack.c.h.b16 %v1140
      %v1503 = vunpack.c.l.b16 %v1141
      %v1504 = vunpack.c.h.b16 %v1141
      %v1505 = vunpack.c.l.b16 %v1142
      %v1506 = vunpack.c.h.b16 %v1142
      %v1507 = vunpack.c.l.b16 %v1143
      %v1508 = vunpack.c.h.b16 %v1143
      %v1509 = vunpack.c.l.b16 %v1144
      %v1510 = vunpack.c.h.b16 %v1144
      %v1511 = vunpack.c.l.b16 %v1145
      %v1512 = vunpack.c.h.b16 %v1145
      %v1513 = vunpack.c.l.b16 %v1146
      %v1514 = vunpack.c.h.b16 %v1146
      %v1515 = vunpack.c.l.b16 %v1147
      %v1516 = vunpack.c.h.b16 %v1147
      %v1517 = vunpack.c.l.b16 %v1148
      %v1518 = vunpack.c.h.b16 %v1148
      %v1519 = vunpack.c.l.b16 %v1149
      %v1520 = vunpack.c.h.b16 %v1149
      %v1521 = vunpack.c.l.b16 %v1150
      %v1522 = vunpack.c.h.b16 %v1150
      %v1523 = vunpack.c.l.b16 %v1151
      %v1524 = vunpack.c.h.b16 %v1151
      %v1525 = vunpack.c.l.b16 %v1152
      %v1526 = vunpack.c.h.b16 %v1152
      %v1527 = vunpack.c.l.b16 %v1153
      %v1528 = vunpack.c.h.b16 %v1153
      %v1529 = vunpack.c.l.b16 %v1154
      %v1530 = vunpack.c.h.b16 %v1154
      %v1531 = vunpack.c.l.b16 %v1155
      %v1532 = vunpack.c.h.b16 %v1155
      %v1533 = vunpack.c.l.b16 %v1156
      %v1534 = vunpack.c.h.b16 %v1156
      %v1535 = vunpack.c.l.b16 %v1157
      %v1536 = vunpack.c.h.b16 %v1157
      %v1537 = vunpack.c.l.b16 %v1158
      %v1538 = vunpack.c.h.b16 %v1158
      %v1539 = vunpack.c.l.b16 %v1159
      %v1540 = vunpack.c.h.b16 %v1159
      %v1541 = vunpack.c.l.b16 %v1160
      %v1542 = vunpack.c.h.b16 %v1160
      %v1543 = vunpack.c.l.b16 %v1161
      %v1544 = vunpack.c.h.b16 %v1161
      %v1545 = vunpack.c.l.b16 %v1162
      %v1546 = vunpack.c.h.b16 %v1162
      %v1547 = vunpack.c.l.b16 %v1163
      %v1548 = vunpack.c.h.b16 %v1163
      %v1549 = vunpack.c.l.b16 %v1164
      %v1550 = vunpack.c.h.b16 %v1164
      %v1551 = vunpack.c.l.b16 %v1165
      %v1552 = vunpack.c.h.b16 %v1165
      %v1553 = vunpack.c.l.b16 %v1166
      %v1554 = vunpack.c.h.b16 %v1166
      %v1555 = vunpack.c.l.b16 %v1167
      %v1556 = vunpack.c.h.b16 %v1167
      %v1557 = vpack.c.b16 %v1509, %v1493
      %v1558 = vpack.c.b16 %v1510, %v1494
      %v1559 = vpack.c.b16 %v1511, %v1495
      %v1560 = vpack.c.b16 %v1512, %v1496
      %v1561 = vpack.c.b16 %v1513, %v1497
      %v1562 = vpack.c.b16 %v1514, %v1498
      %v1563 = vpack.c.b16 %v1515, %v1499
      %v1564 = vpack.c.b16 %v1516, %v1500
      %v1565 = vpack.c.b16 %v1517, %v1501
      %v1566 = vpack.c.b16 %v1518, %v1502
      %v1567 = vpack.c.b16 %v1519, %v1503
      %v1568 = vpack.c.b16 %v1520, %v1504
      %v1569 = vpack.c.b16 %v1521, %v1505
      %v1570 = vpack.c.b16 %v1522, %v1506
      %v1571 = vpack.c.b16 %v1523, %v1507
      %v1572 = vpack.c.b16 %v1524, %v1508
      %v1573 = vpack.c.b16 %v1541, %v1525
      %v1574 = vpack.c.b16 %v1542, %v1526
      %v1575 = vpack.c.b16 %v1543, %v1527
      %v1576 = vpack.c.b16 %v1544, %v1528
      %v1577 = vpack.c.b16 %v1545, %v1529
      %v1578 = vpack.c.b16 %v1546, %v1530
      %v1579 = vpack.c.b16 %v1547, %v1531
      %v1580 = vpack.c.b16 %v1548, %v1532
      %v1581 = vpack.c.b16 %v1549, %v1533
      %v1582 = vpack.c.b16 %v1550, %v1534
      %v1583 = vpack.c.b16 %v1551, %v1535
      %v1584 = vpack.c.b16 %v1552, %v1536
      %v1585 = vpack.c.b16 %v1553, %v1537
      %v1586 = vpack.c.b16 %v1554, %v1538
      %v1587 = vpack.c.b16 %v1555, %v1539
      %v1588 = vpack.c.b16 %v1556, %v1540
      %v1622 = vsel %vm722, %v1426, 0
      %1624 = vmatpush.bf16.msra.mxu0 0
      %1625 = vmatpush.bf16.msra.mxu0 0
      %1626 = vmatpush.bf16.msra.mxu0 0
      %1627 = vmatpush.bf16.msra.mxu0 0
      %1628 = vmatpush.bf16.msra.mxu0 0
      %1629 = vmatpush.bf16.msra.mxu0 0
      %1630 = vmatpush.bf16.msra.mxu0 %v1573
      %1631 = vmatpush.bf16.msra.mxu0 %v1557
      %1632 = vmatmul.bf16.gmra.mxu0 %v1622
      %v1633 = vpop.f32.mrf.mxu0
      %v1634 = vadd.f32 %v1429, %v1633
      %v1635 = vpop.f32.mrf.mxu0
      %1636 = vdwg.mxu0
      %1637 = vmatpush.bf16.msra.mxu0 0
      %1638 = vmatpush.bf16.msra.mxu0 0
      %1639 = vmatpush.bf16.msra.mxu0 0
      %1640 = vmatpush.bf16.msra.mxu0 0
      %1641 = vmatpush.bf16.msra.mxu0 0
      %1642 = vmatpush.bf16.msra.mxu0 0
      %1643 = vmatpush.bf16.msra.mxu0 %v1574
      %1644 = vmatpush.bf16.msra.mxu0 %v1558
      %1645 = vmatmul.bf16.gmra.mxu0 %v1622
      %v1646 = vpop.f32.mrf.mxu0
      %v1647 = vadd.f32 %v1430, %v1646
      %v1648 = vpop.f32.mrf.mxu0
      %1649 = vdwg.mxu0
      %1650 = vmatpush.bf16.msra.mxu0 0
      %1651 = vmatpush.bf16.msra.mxu0 0
      %1652 = vmatpush.bf16.msra.mxu0 0
      %1653 = vmatpush.bf16.msra.mxu0 0
      %1654 = vmatpush.bf16.msra.mxu0 0
      %1655 = vmatpush.bf16.msra.mxu0 0
      %1656 = vmatpush.bf16.msra.mxu0 %v1575
      %1657 = vmatpush.bf16.msra.mxu0 %v1559
      %1658 = vmatmul.bf16.gmra.mxu0 %v1622
      %v1659 = vpop.f32.mrf.mxu0
      %v1660 = vadd.f32 %v1431, %v1659
      %v1661 = vpop.f32.mrf.mxu0
      %1662 = vdwg.mxu0
      %1663 = vmatpush.bf16.msra.mxu0 0
      %1664 = vmatpush.bf16.msra.mxu0 0
      %1665 = vmatpush.bf16.msra.mxu0 0
      %1666 = vmatpush.bf16.msra.mxu0 0
      %1667 = vmatpush.bf16.msra.mxu0 0
      %1668 = vmatpush.bf16.msra.mxu0 0
      %1669 = vmatpush.bf16.msra.mxu0 %v1576
      %1670 = vmatpush.bf16.msra.mxu0 %v1560
      %1671 = vmatmul.bf16.gmra.mxu0 %v1622
      %v1672 = vpop.f32.mrf.mxu0
      %v1673 = vadd.f32 %v1432, %v1672
      %v1674 = vpop.f32.mrf.mxu0
      %1675 = vdwg.mxu0
      %1676 = vmatpush.bf16.msra.mxu0 0
      %1677 = vmatpush.bf16.msra.mxu0 0
      %1678 = vmatpush.bf16.msra.mxu0 0
      %1679 = vmatpush.bf16.msra.mxu0 0
      %1680 = vmatpush.bf16.msra.mxu0 0
      %1681 = vmatpush.bf16.msra.mxu0 0
      %1682 = vmatpush.bf16.msra.mxu0 %v1577
      %1683 = vmatpush.bf16.msra.mxu0 %v1561
      %1684 = vmatmul.bf16.gmra.mxu0 %v1622
      %v1685 = vpop.f32.mrf.mxu0
      %v1686 = vadd.f32 %v1433, %v1685
      %v1687 = vpop.f32.mrf.mxu0
      %1688 = vdwg.mxu0
      %1689 = vmatpush.bf16.msra.mxu0 0
      %1690 = vmatpush.bf16.msra.mxu0 0
      %1691 = vmatpush.bf16.msra.mxu0 0
      %1692 = vmatpush.bf16.msra.mxu0 0
      %1693 = vmatpush.bf16.msra.mxu0 0
      %1694 = vmatpush.bf16.msra.mxu0 0
      %1695 = vmatpush.bf16.msra.mxu0 %v1578
      %1696 = vmatpush.bf16.msra.mxu0 %v1562
      %1697 = vmatmul.bf16.gmra.mxu0 %v1622
      %v1698 = vpop.f32.mrf.mxu0
      %v1699 = vadd.f32 %v1434, %v1698
      %v1700 = vpop.f32.mrf.mxu0
      %1701 = vdwg.mxu0
      %1702 = vmatpush.bf16.msra.mxu0 0
      %1703 = vmatpush.bf16.msra.mxu0 0
      %1704 = vmatpush.bf16.msra.mxu0 0
      %1705 = vmatpush.bf16.msra.mxu0 0
      %1706 = vmatpush.bf16.msra.mxu0 0
      %1707 = vmatpush.bf16.msra.mxu0 0
      %1708 = vmatpush.bf16.msra.mxu0 %v1579
      %1709 = vmatpush.bf16.msra.mxu0 %v1563
      %1710 = vmatmul.bf16.gmra.mxu0 %v1622
      %v1711 = vpop.f32.mrf.mxu0
      %v1712 = vadd.f32 %v1435, %v1711
      %v1713 = vpop.f32.mrf.mxu0
      %1714 = vdwg.mxu0
      %1715 = vmatpush.bf16.msra.mxu0 0
      %1716 = vmatpush.bf16.msra.mxu0 0
      %1717 = vmatpush.bf16.msra.mxu0 0
      %1718 = vmatpush.bf16.msra.mxu0 0
      %1719 = vmatpush.bf16.msra.mxu0 0
      %1720 = vmatpush.bf16.msra.mxu0 0
      %1721 = vmatpush.bf16.msra.mxu0 %v1580
      %1722 = vmatpush.bf16.msra.mxu0 %v1564
      %1723 = vmatmul.bf16.gmra.mxu0 %v1622
      %v1724 = vpop.f32.mrf.mxu0
      %v1725 = vadd.f32 %v1436, %v1724
      %v1726 = vpop.f32.mrf.mxu0
      %1727 = vdwg.mxu0
      %1728 = vmatpush.bf16.msra.mxu0 0
      %1729 = vmatpush.bf16.msra.mxu0 0
      %1730 = vmatpush.bf16.msra.mxu0 0
      %1731 = vmatpush.bf16.msra.mxu0 0
      %1732 = vmatpush.bf16.msra.mxu0 0
      %1733 = vmatpush.bf16.msra.mxu0 0
      %1734 = vmatpush.bf16.msra.mxu0 %v1581
      %1735 = vmatpush.bf16.msra.mxu0 %v1565
      %1736 = vmatmul.bf16.gmra.mxu0 %v1622
      %v1737 = vpop.f32.mrf.mxu0
      %v1738 = vadd.f32 %v1437, %v1737
      %v1739 = vpop.f32.mrf.mxu0
      %1740 = vdwg.mxu0
      %1741 = vmatpush.bf16.msra.mxu0 0
      %1742 = vmatpush.bf16.msra.mxu0 0
      %1743 = vmatpush.bf16.msra.mxu0 0
      %1744 = vmatpush.bf16.msra.mxu0 0
      %1745 = vmatpush.bf16.msra.mxu0 0
      %1746 = vmatpush.bf16.msra.mxu0 0
      %1747 = vmatpush.bf16.msra.mxu0 %v1582
      %1748 = vmatpush.bf16.msra.mxu0 %v1566
      %1749 = vmatmul.bf16.gmra.mxu0 %v1622
      %v1750 = vpop.f32.mrf.mxu0
      %v1751 = vadd.f32 %v1438, %v1750
      %v1752 = vpop.f32.mrf.mxu0
      %1753 = vdwg.mxu0
      %1754 = vmatpush.bf16.msra.mxu0 0
      %1755 = vmatpush.bf16.msra.mxu0 0
      %1756 = vmatpush.bf16.msra.mxu0 0
      %1757 = vmatpush.bf16.msra.mxu0 0
      %1758 = vmatpush.bf16.msra.mxu0 0
      %1759 = vmatpush.bf16.msra.mxu0 0
      %1760 = vmatpush.bf16.msra.mxu0 %v1583
      %1761 = vmatpush.bf16.msra.mxu0 %v1567
      %1762 = vmatmul.bf16.gmra.mxu0 %v1622
      %v1763 = vpop.f32.mrf.mxu0
      %v1764 = vadd.f32 %v1439, %v1763
      %v1765 = vpop.f32.mrf.mxu0
      %1766 = vdwg.mxu0
      %1767 = vmatpush.bf16.msra.mxu0 0
      %1768 = vmatpush.bf16.msra.mxu0 0
      %1769 = vmatpush.bf16.msra.mxu0 0
      %1770 = vmatpush.bf16.msra.mxu0 0
      %1771 = vmatpush.bf16.msra.mxu0 0
      %1772 = vmatpush.bf16.msra.mxu0 0
      %1773 = vmatpush.bf16.msra.mxu0 %v1584
      %1774 = vmatpush.bf16.msra.mxu0 %v1568
      %1775 = vmatmul.bf16.gmra.mxu0 %v1622
      %v1776 = vpop.f32.mrf.mxu0
      %v1777 = vadd.f32 %v1440, %v1776
      %v1778 = vpop.f32.mrf.mxu0
      %1779 = vdwg.mxu0
      %1780 = vmatpush.bf16.msra.mxu0 0
      %1781 = vmatpush.bf16.msra.mxu0 0
      %1782 = vmatpush.bf16.msra.mxu0 0
      %1783 = vmatpush.bf16.msra.mxu0 0
      %1784 = vmatpush.bf16.msra.mxu0 0
      %1785 = vmatpush.bf16.msra.mxu0 0
      %1786 = vmatpush.bf16.msra.mxu0 %v1585
      %1787 = vmatpush.bf16.msra.mxu0 %v1569
      %1788 = vmatmul.bf16.gmra.mxu0 %v1622
      %v1789 = vpop.f32.mrf.mxu0
      %v1790 = vadd.f32 %v1441, %v1789
      %v1791 = vpop.f32.mrf.mxu0
      %1792 = vdwg.mxu0
      %1793 = vmatpush.bf16.msra.mxu0 0
      %1794 = vmatpush.bf16.msra.mxu0 0
      %1795 = vmatpush.bf16.msra.mxu0 0
      %1796 = vmatpush.bf16.msra.mxu0 0
      %1797 = vmatpush.bf16.msra.mxu0 0
      %1798 = vmatpush.bf16.msra.mxu0 0
      %1799 = vmatpush.bf16.msra.mxu0 %v1586
      %1800 = vmatpush.bf16.msra.mxu0 %v1570
      %1801 = vmatmul.bf16.gmra.mxu0 %v1622
      %v1802 = vpop.f32.mrf.mxu0
      %v1803 = vadd.f32 %v1442, %v1802
      %v1804 = vpop.f32.mrf.mxu0
      %1805 = vdwg.mxu0
      %1806 = vmatpush.bf16.msra.mxu0 0
      %1807 = vmatpush.bf16.msra.mxu0 0
      %1808 = vmatpush.bf16.msra.mxu0 0
      %1809 = vmatpush.bf16.msra.mxu0 0
      %1810 = vmatpush.bf16.msra.mxu0 0
      %1811 = vmatpush.bf16.msra.mxu0 0
      %1812 = vmatpush.bf16.msra.mxu0 %v1587
      %1813 = vmatpush.bf16.msra.mxu0 %v1571
      %1814 = vmatmul.bf16.gmra.mxu0 %v1622
      %v1815 = vpop.f32.mrf.mxu0
      %v1816 = vadd.f32 %v1443, %v1815
      %v1817 = vpop.f32.mrf.mxu0
      %1818 = vdwg.mxu0
      %1819 = vmatpush.bf16.msra.mxu0 0
      %1820 = vmatpush.bf16.msra.mxu0 0
      %1821 = vmatpush.bf16.msra.mxu0 0
      %1822 = vmatpush.bf16.msra.mxu0 0
      %1823 = vmatpush.bf16.msra.mxu0 0
      %1824 = vmatpush.bf16.msra.mxu0 0
      %1825 = vmatpush.bf16.msra.mxu0 %v1588
      %1826 = vmatpush.bf16.msra.mxu0 %v1572
      %1827 = vmatmul.bf16.gmra.mxu0 %v1622
      %v1828 = vpop.f32.mrf.mxu0
      %v1829 = vadd.f32 %v1444, %v1828
      %v1830 = vpop.f32.mrf.mxu0
      %1831 = vdwg.mxu0
      %v1832 = vmax.f32 %v1634, 0.0
      %v1833 = vmax.f32 %v1647, 0.0
      %v1834 = vmax.f32 %v1660, 0.0
      %v1835 = vmax.f32 %v1673, 0.0
      %v1836 = vmax.f32 %v1686, 0.0
      %v1837 = vmax.f32 %v1699, 0.0
      %v1838 = vmax.f32 %v1712, 0.0
      %v1839 = vmax.f32 %v1725, 0.0
      %v1840 = vmax.f32 %v1738, 0.0
      %v1841 = vmax.f32 %v1751, 0.0
      %v1842 = vmax.f32 %v1764, 0.0
      %v1843 = vmax.f32 %v1777, 0.0
      %v1844 = vmax.f32 %v1790, 0.0
      %v1845 = vmax.f32 %v1803, 0.0
      %v1846 = vmax.f32 %v1816, 0.0
      %v1847 = vmax.f32 %v1829, 0.0
      %v1848 = vpack.c.bf16 %v1832, %v1832
      %v1849 = vpack.c.bf16 %v1833, %v1833
      %v1850 = vpack.c.bf16 %v1834, %v1834
      %v1851 = vpack.c.bf16 %v1835, %v1835
      %v1852 = vpack.c.bf16 %v1836, %v1836
      %v1853 = vpack.c.bf16 %v1837, %v1837
      %v1854 = vpack.c.bf16 %v1838, %v1838
      %v1855 = vpack.c.bf16 %v1839, %v1839
      %v1856 = vpack.c.bf16 %v1840, %v1840
      %v1857 = vpack.c.bf16 %v1841, %v1841
      %v1858 = vpack.c.bf16 %v1842, %v1842
      %v1859 = vpack.c.bf16 %v1843, %v1843
      %v1860 = vpack.c.bf16 %v1844, %v1844
      %v1861 = vpack.c.bf16 %v1845, %v1845
      %v1862 = vpack.c.bf16 %v1846, %v1846
      %v1863 = vpack.c.bf16 %v1847, %v1847
      %v1864 = vperm.slane %v709, 3
      %v2121 = vunpack.c.l.b16 %v1170
      %v2122 = vunpack.c.l.b16 %v1171
      %v2123 = vunpack.c.l.b16 %v1172
      %v2124 = vunpack.c.l.b16 %v1173
      %v2125 = vunpack.c.l.b16 %v1174
      %v2126 = vunpack.c.l.b16 %v1175
      %v2127 = vunpack.c.l.b16 %v1176
      %v2128 = vunpack.c.l.b16 %v1177
      %v2129 = vunpack.c.l.b16 %v1178
      %v2130 = vunpack.c.l.b16 %v1179
      %v2131 = vunpack.c.l.b16 %v1180
      %v2132 = vunpack.c.l.b16 %v1181
      %v2133 = vunpack.c.l.b16 %v1182
      %v2134 = vunpack.c.l.b16 %v1183
      %v2135 = vunpack.c.l.b16 %v1184
      %v2136 = vunpack.c.l.b16 %v1185
      %v2137 = vunpack.c.l.b16 %v1186
      %v2138 = vunpack.c.l.b16 %v1187
      %v2139 = vunpack.c.l.b16 %v1188
      %v2140 = vunpack.c.l.b16 %v1189
      %v2141 = vunpack.c.l.b16 %v1190
      %v2142 = vunpack.c.l.b16 %v1191
      %v2143 = vunpack.c.l.b16 %v1192
      %v2144 = vunpack.c.l.b16 %v1193
      %v2145 = vunpack.c.l.b16 %v1194
      %v2146 = vunpack.c.l.b16 %v1195
      %v2147 = vunpack.c.l.b16 %v1196
      %v2148 = vunpack.c.l.b16 %v1197
      %v2149 = vunpack.c.l.b16 %v1198
      %v2150 = vunpack.c.l.b16 %v1199
      %v2151 = vunpack.c.l.b16 %v1200
      %v2152 = vunpack.c.l.b16 %v1201
      %v2153 = vunpack.c.l.b16 %v1202
      %v2154 = vunpack.c.l.b16 %v1203
      %v2155 = vunpack.c.l.b16 %v1204
      %v2156 = vunpack.c.l.b16 %v1205
      %v2157 = vunpack.c.l.b16 %v1206
      %v2158 = vunpack.c.l.b16 %v1207
      %v2159 = vunpack.c.l.b16 %v1208
      %v2160 = vunpack.c.l.b16 %v1209
      %v2161 = vunpack.c.l.b16 %v1210
      %v2162 = vunpack.c.l.b16 %v1211
      %v2163 = vunpack.c.l.b16 %v1212
      %v2164 = vunpack.c.l.b16 %v1213
      %v2165 = vunpack.c.l.b16 %v1214
      %v2166 = vunpack.c.l.b16 %v1215
      %v2167 = vunpack.c.l.b16 %v1216
      %v2168 = vunpack.c.l.b16 %v1217
      %v2169 = vunpack.c.l.b16 %v1218
      %v2170 = vunpack.c.l.b16 %v1219
      %v2171 = vunpack.c.l.b16 %v1220
      %v2172 = vunpack.c.l.b16 %v1221
      %v2173 = vunpack.c.l.b16 %v1222
      %v2174 = vunpack.c.l.b16 %v1223
      %v2175 = vunpack.c.l.b16 %v1224
      %v2176 = vunpack.c.l.b16 %v1225
      %v2177 = vunpack.c.l.b16 %v1226
      %v2178 = vunpack.c.l.b16 %v1227
      %v2179 = vunpack.c.l.b16 %v1228
      %v2180 = vunpack.c.l.b16 %v1229
      %v2181 = vunpack.c.l.b16 %v1230
      %v2182 = vunpack.c.l.b16 %v1231
      %v2183 = vunpack.c.l.b16 %v1232
      %v2184 = vunpack.c.l.b16 %v1233
      %v2185 = vunpack.c.l.b16 %v1234
      %v2186 = vunpack.c.l.b16 %v1235
      %v2187 = vunpack.c.l.b16 %v1236
      %v2188 = vunpack.c.l.b16 %v1237
      %v2189 = vunpack.c.l.b16 %v1238
      %v2190 = vunpack.c.l.b16 %v1239
      %v2191 = vunpack.c.l.b16 %v1240
      %v2192 = vunpack.c.l.b16 %v1241
      %v2193 = vunpack.c.l.b16 %v1242
      %v2194 = vunpack.c.l.b16 %v1243
      %v2195 = vunpack.c.l.b16 %v1244
      %v2196 = vunpack.c.l.b16 %v1245
      %v2197 = vunpack.c.l.b16 %v1246
      %v2198 = vunpack.c.l.b16 %v1247
      %v2199 = vunpack.c.l.b16 %v1248
      %v2200 = vunpack.c.l.b16 %v1249
      %v2201 = vunpack.c.l.b16 %v1250
      %v2202 = vunpack.c.l.b16 %v1251
      %v2203 = vunpack.c.l.b16 %v1252
      %v2204 = vunpack.c.l.b16 %v1253
      %v2205 = vunpack.c.l.b16 %v1254
      %v2206 = vunpack.c.l.b16 %v1255
      %v2207 = vunpack.c.l.b16 %v1256
      %v2208 = vunpack.c.l.b16 %v1257
      %v2209 = vunpack.c.l.b16 %v1258
      %v2210 = vunpack.c.l.b16 %v1259
      %v2211 = vunpack.c.l.b16 %v1260
      %v2212 = vunpack.c.l.b16 %v1261
      %v2213 = vunpack.c.l.b16 %v1262
      %v2214 = vunpack.c.l.b16 %v1263
      %v2215 = vunpack.c.l.b16 %v1264
      %v2216 = vunpack.c.l.b16 %v1265
      %v2217 = vunpack.c.l.b16 %v1266
      %v2218 = vunpack.c.l.b16 %v1267
      %v2219 = vunpack.c.l.b16 %v1268
      %v2220 = vunpack.c.l.b16 %v1269
      %v2221 = vunpack.c.l.b16 %v1270
      %v2222 = vunpack.c.l.b16 %v1271
      %v2223 = vunpack.c.l.b16 %v1272
      %v2224 = vunpack.c.l.b16 %v1273
      %v2225 = vunpack.c.l.b16 %v1274
      %v2226 = vunpack.c.l.b16 %v1275
      %v2227 = vunpack.c.l.b16 %v1276
      %v2228 = vunpack.c.l.b16 %v1277
      %v2229 = vunpack.c.l.b16 %v1278
      %v2230 = vunpack.c.l.b16 %v1279
      %v2231 = vunpack.c.l.b16 %v1280
      %v2232 = vunpack.c.l.b16 %v1281
      %v2233 = vunpack.c.l.b16 %v1282
      %v2234 = vunpack.c.l.b16 %v1283
      %v2235 = vunpack.c.l.b16 %v1284
      %v2236 = vunpack.c.l.b16 %v1285
      %v2237 = vunpack.c.l.b16 %v1286
      %v2238 = vunpack.c.l.b16 %v1287
      %v2239 = vunpack.c.l.b16 %v1288
      %v2240 = vunpack.c.l.b16 %v1289
      %v2241 = vunpack.c.l.b16 %v1290
      %v2242 = vunpack.c.l.b16 %v1291
      %v2243 = vunpack.c.l.b16 %v1292
      %v2244 = vunpack.c.l.b16 %v1293
      %v2245 = vunpack.c.l.b16 %v1294
      %v2246 = vunpack.c.l.b16 %v1295
      %v2247 = vunpack.c.l.b16 %v1296
      %v2248 = vunpack.c.l.b16 %v1297
      %v2249 = vunpack.c.l.b16 %v1298
      %v2250 = vunpack.c.l.b16 %v1299
      %v2251 = vunpack.c.l.b16 %v1300
      %v2252 = vunpack.c.l.b16 %v1301
      %v2253 = vunpack.c.l.b16 %v1302
      %v2254 = vunpack.c.l.b16 %v1303
      %v2255 = vunpack.c.l.b16 %v1304
      %v2256 = vunpack.c.l.b16 %v1305
      %v2257 = vunpack.c.l.b16 %v1306
      %v2258 = vunpack.c.l.b16 %v1307
      %v2259 = vunpack.c.l.b16 %v1308
      %v2260 = vunpack.c.l.b16 %v1309
      %v2261 = vunpack.c.l.b16 %v1310
      %v2262 = vunpack.c.l.b16 %v1311
      %v2263 = vunpack.c.l.b16 %v1312
      %v2264 = vunpack.c.l.b16 %v1313
      %v2265 = vunpack.c.l.b16 %v1314
      %v2266 = vunpack.c.l.b16 %v1315
      %v2267 = vunpack.c.l.b16 %v1316
      %v2268 = vunpack.c.l.b16 %v1317
      %v2269 = vunpack.c.l.b16 %v1318
      %v2270 = vunpack.c.l.b16 %v1319
      %v2271 = vunpack.c.l.b16 %v1320
      %v2272 = vunpack.c.l.b16 %v1321
      %v2273 = vunpack.c.l.b16 %v1322
      %v2274 = vunpack.c.l.b16 %v1323
      %v2275 = vunpack.c.l.b16 %v1324
      %v2276 = vunpack.c.l.b16 %v1325
      %v2277 = vunpack.c.l.b16 %v1326
      %v2278 = vunpack.c.l.b16 %v1327
      %v2279 = vunpack.c.l.b16 %v1328
      %v2280 = vunpack.c.l.b16 %v1329
      %v2281 = vunpack.c.l.b16 %v1330
      %v2282 = vunpack.c.l.b16 %v1331
      %v2283 = vunpack.c.l.b16 %v1332
      %v2284 = vunpack.c.l.b16 %v1333
      %v2285 = vunpack.c.l.b16 %v1334
      %v2286 = vunpack.c.l.b16 %v1335
      %v2287 = vunpack.c.l.b16 %v1336
      %v2288 = vunpack.c.l.b16 %v1337
      %v2289 = vunpack.c.l.b16 %v1338
      %v2290 = vunpack.c.l.b16 %v1339
      %v2291 = vunpack.c.l.b16 %v1340
      %v2292 = vunpack.c.l.b16 %v1341
      %v2293 = vunpack.c.l.b16 %v1342
      %v2294 = vunpack.c.l.b16 %v1343
      %v2295 = vunpack.c.l.b16 %v1344
      %v2296 = vunpack.c.l.b16 %v1345
      %v2297 = vunpack.c.l.b16 %v1346
      %v2298 = vunpack.c.l.b16 %v1347
      %v2299 = vunpack.c.l.b16 %v1348
      %v2300 = vunpack.c.l.b16 %v1349
      %v2301 = vunpack.c.l.b16 %v1350
      %v2302 = vunpack.c.l.b16 %v1351
      %v2303 = vunpack.c.l.b16 %v1352
      %v2304 = vunpack.c.l.b16 %v1353
      %v2305 = vunpack.c.l.b16 %v1354
      %v2306 = vunpack.c.l.b16 %v1355
      %v2307 = vunpack.c.l.b16 %v1356
      %v2308 = vunpack.c.l.b16 %v1357
      %v2309 = vunpack.c.l.b16 %v1358
      %v2310 = vunpack.c.l.b16 %v1359
      %v2311 = vunpack.c.l.b16 %v1360
      %v2312 = vunpack.c.l.b16 %v1361
      %v2313 = vunpack.c.l.b16 %v1362
      %v2314 = vunpack.c.l.b16 %v1363
      %v2315 = vunpack.c.l.b16 %v1364
      %v2316 = vunpack.c.l.b16 %v1365
      %v2317 = vunpack.c.l.b16 %v1366
      %v2318 = vunpack.c.l.b16 %v1367
      %v2319 = vunpack.c.l.b16 %v1368
      %v2320 = vunpack.c.l.b16 %v1369
      %v2321 = vunpack.c.l.b16 %v1370
      %v2322 = vunpack.c.l.b16 %v1371
      %v2323 = vunpack.c.l.b16 %v1372
      %v2324 = vunpack.c.l.b16 %v1373
      %v2325 = vunpack.c.l.b16 %v1374
      %v2326 = vunpack.c.l.b16 %v1375
      %v2327 = vunpack.c.l.b16 %v1376
      %v2328 = vunpack.c.l.b16 %v1377
      %v2329 = vunpack.c.l.b16 %v1378
      %v2330 = vunpack.c.l.b16 %v1379
      %v2331 = vunpack.c.l.b16 %v1380
      %v2332 = vunpack.c.l.b16 %v1381
      %v2333 = vunpack.c.l.b16 %v1382
      %v2334 = vunpack.c.l.b16 %v1383
      %v2335 = vunpack.c.l.b16 %v1384
      %v2336 = vunpack.c.l.b16 %v1385
      %v2337 = vunpack.c.l.b16 %v1386
      %v2338 = vunpack.c.l.b16 %v1387
      %v2339 = vunpack.c.l.b16 %v1388
      %v2340 = vunpack.c.l.b16 %v1389
      %v2341 = vunpack.c.l.b16 %v1390
      %v2342 = vunpack.c.l.b16 %v1391
      %v2343 = vunpack.c.l.b16 %v1392
      %v2344 = vunpack.c.l.b16 %v1393
      %v2345 = vunpack.c.l.b16 %v1394
      %v2346 = vunpack.c.l.b16 %v1395
      %v2347 = vunpack.c.l.b16 %v1396
      %v2348 = vunpack.c.l.b16 %v1397
      %v2349 = vunpack.c.l.b16 %v1398
      %v2350 = vunpack.c.l.b16 %v1399
      %v2351 = vunpack.c.l.b16 %v1400
      %v2352 = vunpack.c.l.b16 %v1401
      %v2353 = vunpack.c.l.b16 %v1402
      %v2354 = vunpack.c.l.b16 %v1403
      %v2355 = vunpack.c.l.b16 %v1404
      %v2356 = vunpack.c.l.b16 %v1405
      %v2357 = vunpack.c.l.b16 %v1406
      %v2358 = vunpack.c.l.b16 %v1407
      %v2359 = vunpack.c.l.b16 %v1408
      %v2360 = vunpack.c.l.b16 %v1409
      %v2361 = vunpack.c.l.b16 %v1410
      %v2362 = vunpack.c.l.b16 %v1411
      %v2363 = vunpack.c.l.b16 %v1412
      %v2364 = vunpack.c.l.b16 %v1413
      %v2365 = vunpack.c.l.b16 %v1414
      %v2366 = vunpack.c.l.b16 %v1415
      %v2367 = vunpack.c.l.b16 %v1416
      %v2368 = vunpack.c.l.b16 %v1417
      %v2369 = vunpack.c.l.b16 %v1418
      %v2370 = vunpack.c.l.b16 %v1419
      %v2371 = vunpack.c.l.b16 %v1420
      %v2372 = vunpack.c.l.b16 %v1421
      %v2373 = vunpack.c.l.b16 %v1422
      %v2374 = vunpack.c.l.b16 %v1423
      %v2375 = vunpack.c.l.b16 %v1424
      %v2376 = vunpack.c.l.b16 %v1425
      %v2377 = vpack.c.b16 %v2122, %v2121
      %v2378 = vpack.c.b16 %v2124, %v2123
      %v2379 = vpack.c.b16 %v2126, %v2125
      %v2380 = vpack.c.b16 %v2128, %v2127
      %v2381 = vpack.c.b16 %v2130, %v2129
      %v2382 = vpack.c.b16 %v2132, %v2131
      %v2383 = vpack.c.b16 %v2134, %v2133
      %v2384 = vpack.c.b16 %v2136, %v2135
      %v2385 = vpack.c.b16 %v2138, %v2137
      %v2386 = vpack.c.b16 %v2140, %v2139
      %v2387 = vpack.c.b16 %v2142, %v2141
      %v2388 = vpack.c.b16 %v2144, %v2143
      %v2389 = vpack.c.b16 %v2146, %v2145
      %v2390 = vpack.c.b16 %v2148, %v2147
      %v2391 = vpack.c.b16 %v2150, %v2149
      %v2392 = vpack.c.b16 %v2152, %v2151
      %v2393 = vpack.c.b16 %v2154, %v2153
      %v2394 = vpack.c.b16 %v2156, %v2155
      %v2395 = vpack.c.b16 %v2158, %v2157
      %v2396 = vpack.c.b16 %v2160, %v2159
      %v2397 = vpack.c.b16 %v2162, %v2161
      %v2398 = vpack.c.b16 %v2164, %v2163
      %v2399 = vpack.c.b16 %v2166, %v2165
      %v2400 = vpack.c.b16 %v2168, %v2167
      %v2401 = vpack.c.b16 %v2170, %v2169
      %v2402 = vpack.c.b16 %v2172, %v2171
      %v2403 = vpack.c.b16 %v2174, %v2173
      %v2404 = vpack.c.b16 %v2176, %v2175
      %v2405 = vpack.c.b16 %v2178, %v2177
      %v2406 = vpack.c.b16 %v2180, %v2179
      %v2407 = vpack.c.b16 %v2182, %v2181
      %v2408 = vpack.c.b16 %v2184, %v2183
      %v2409 = vpack.c.b16 %v2186, %v2185
      %v2410 = vpack.c.b16 %v2188, %v2187
      %v2411 = vpack.c.b16 %v2190, %v2189
      %v2412 = vpack.c.b16 %v2192, %v2191
      %v2413 = vpack.c.b16 %v2194, %v2193
      %v2414 = vpack.c.b16 %v2196, %v2195
      %v2415 = vpack.c.b16 %v2198, %v2197
      %v2416 = vpack.c.b16 %v2200, %v2199
      %v2417 = vpack.c.b16 %v2202, %v2201
      %v2418 = vpack.c.b16 %v2204, %v2203
      %v2419 = vpack.c.b16 %v2206, %v2205
      %v2420 = vpack.c.b16 %v2208, %v2207
      %v2421 = vpack.c.b16 %v2210, %v2209
      %v2422 = vpack.c.b16 %v2212, %v2211
      %v2423 = vpack.c.b16 %v2214, %v2213
      %v2424 = vpack.c.b16 %v2216, %v2215
      %v2425 = vpack.c.b16 %v2218, %v2217
      %v2426 = vpack.c.b16 %v2220, %v2219
      %v2427 = vpack.c.b16 %v2222, %v2221
      %v2428 = vpack.c.b16 %v2224, %v2223
      %v2429 = vpack.c.b16 %v2226, %v2225
      %v2430 = vpack.c.b16 %v2228, %v2227
      %v2431 = vpack.c.b16 %v2230, %v2229
      %v2432 = vpack.c.b16 %v2232, %v2231
      %v2433 = vpack.c.b16 %v2234, %v2233
      %v2434 = vpack.c.b16 %v2236, %v2235
      %v2435 = vpack.c.b16 %v2238, %v2237
      %v2436 = vpack.c.b16 %v2240, %v2239
      %v2437 = vpack.c.b16 %v2242, %v2241
      %v2438 = vpack.c.b16 %v2244, %v2243
      %v2439 = vpack.c.b16 %v2246, %v2245
      %v2440 = vpack.c.b16 %v2248, %v2247
      %v2441 = vpack.c.b16 %v2250, %v2249
      %v2442 = vpack.c.b16 %v2252, %v2251
      %v2443 = vpack.c.b16 %v2254, %v2253
      %v2444 = vpack.c.b16 %v2256, %v2255
      %v2445 = vpack.c.b16 %v2258, %v2257
      %v2446 = vpack.c.b16 %v2260, %v2259
      %v2447 = vpack.c.b16 %v2262, %v2261
      %v2448 = vpack.c.b16 %v2264, %v2263
      %v2449 = vpack.c.b16 %v2266, %v2265
      %v2450 = vpack.c.b16 %v2268, %v2267
      %v2451 = vpack.c.b16 %v2270, %v2269
      %v2452 = vpack.c.b16 %v2272, %v2271
      %v2453 = vpack.c.b16 %v2274, %v2273
      %v2454 = vpack.c.b16 %v2276, %v2275
      %v2455 = vpack.c.b16 %v2278, %v2277
      %v2456 = vpack.c.b16 %v2280, %v2279
      %v2457 = vpack.c.b16 %v2282, %v2281
      %v2458 = vpack.c.b16 %v2284, %v2283
      %v2459 = vpack.c.b16 %v2286, %v2285
      %v2460 = vpack.c.b16 %v2288, %v2287
      %v2461 = vpack.c.b16 %v2290, %v2289
      %v2462 = vpack.c.b16 %v2292, %v2291
      %v2463 = vpack.c.b16 %v2294, %v2293
      %v2464 = vpack.c.b16 %v2296, %v2295
      %v2465 = vpack.c.b16 %v2298, %v2297
      %v2466 = vpack.c.b16 %v2300, %v2299
      %v2467 = vpack.c.b16 %v2302, %v2301
      %v2468 = vpack.c.b16 %v2304, %v2303
      %v2469 = vpack.c.b16 %v2306, %v2305
      %v2470 = vpack.c.b16 %v2308, %v2307
      %v2471 = vpack.c.b16 %v2310, %v2309
      %v2472 = vpack.c.b16 %v2312, %v2311
      %v2473 = vpack.c.b16 %v2314, %v2313
      %v2474 = vpack.c.b16 %v2316, %v2315
      %v2475 = vpack.c.b16 %v2318, %v2317
      %v2476 = vpack.c.b16 %v2320, %v2319
      %v2477 = vpack.c.b16 %v2322, %v2321
      %v2478 = vpack.c.b16 %v2324, %v2323
      %v2479 = vpack.c.b16 %v2326, %v2325
      %v2480 = vpack.c.b16 %v2328, %v2327
      %v2481 = vpack.c.b16 %v2330, %v2329
      %v2482 = vpack.c.b16 %v2332, %v2331
      %v2483 = vpack.c.b16 %v2334, %v2333
      %v2484 = vpack.c.b16 %v2336, %v2335
      %v2485 = vpack.c.b16 %v2338, %v2337
      %v2486 = vpack.c.b16 %v2340, %v2339
      %v2487 = vpack.c.b16 %v2342, %v2341
      %v2488 = vpack.c.b16 %v2344, %v2343
      %v2489 = vpack.c.b16 %v2346, %v2345
      %v2490 = vpack.c.b16 %v2348, %v2347
      %v2491 = vpack.c.b16 %v2350, %v2349
      %v2492 = vpack.c.b16 %v2352, %v2351
      %v2493 = vpack.c.b16 %v2354, %v2353
      %v2494 = vpack.c.b16 %v2356, %v2355
      %v2495 = vpack.c.b16 %v2358, %v2357
      %v2496 = vpack.c.b16 %v2360, %v2359
      %v2497 = vpack.c.b16 %v2362, %v2361
      %v2498 = vpack.c.b16 %v2364, %v2363
      %v2499 = vpack.c.b16 %v2366, %v2365
      %v2500 = vpack.c.b16 %v2368, %v2367
      %v2501 = vpack.c.b16 %v2370, %v2369
      %v2502 = vpack.c.b16 %v2372, %v2371
      %v2503 = vpack.c.b16 %v2374, %v2373
      %v2504 = vpack.c.b16 %v2376, %v2375
      %2633 = vmatpush.bf16.msra.mxu0 %v2384
      %2634 = vmatpush.bf16.msra.mxu0 %v2383
      %2635 = vmatpush.bf16.msra.mxu0 %v2382
      %2636 = vmatpush.bf16.msra.mxu0 %v2381
      %2637 = vmatpush.bf16.msra.mxu0 %v2380
      %2638 = vmatpush.bf16.msra.mxu0 %v2379
      %2639 = vmatpush.bf16.msra.mxu0 %v2378
      %2640 = vmatpush.bf16.msra.mxu0 %v2377
      %2641 = vmatmul.bf16.gmra.mxu0 %v1848
      %v2642 = vpop.f32.mrf.mxu0
      %v2643 = vadd.f32 %v1864, %v2642
      %v2644 = vpop.f32.mrf.mxu0
      %2645 = vdwg.mxu0
      %2646 = vmatpush.bf16.msra.mxu0 %v2392
      %2647 = vmatpush.bf16.msra.mxu0 %v2391
      %2648 = vmatpush.bf16.msra.mxu0 %v2390
      %2649 = vmatpush.bf16.msra.mxu0 %v2389
      %2650 = vmatpush.bf16.msra.mxu0 %v2388
      %2651 = vmatpush.bf16.msra.mxu0 %v2387
      %2652 = vmatpush.bf16.msra.mxu0 %v2386
      %2653 = vmatpush.bf16.msra.mxu0 %v2385
      %2654 = vmatmul.bf16.gmra.mxu0 %v1849
      %v2655 = vpop.f32.mrf.mxu0
      %v2656 = vadd.f32 %v2643, %v2655
      %v2657 = vpop.f32.mrf.mxu0
      %2658 = vdwg.mxu0
      %2659 = vmatpush.bf16.msra.mxu0 %v2400
      %2660 = vmatpush.bf16.msra.mxu0 %v2399
      %2661 = vmatpush.bf16.msra.mxu0 %v2398
      %2662 = vmatpush.bf16.msra.mxu0 %v2397
      %2663 = vmatpush.bf16.msra.mxu0 %v2396
      %2664 = vmatpush.bf16.msra.mxu0 %v2395
      %2665 = vmatpush.bf16.msra.mxu0 %v2394
      %2666 = vmatpush.bf16.msra.mxu0 %v2393
      %2667 = vmatmul.bf16.gmra.mxu0 %v1850
      %v2668 = vpop.f32.mrf.mxu0
      %v2669 = vadd.f32 %v2656, %v2668
      %v2670 = vpop.f32.mrf.mxu0
      %2671 = vdwg.mxu0
      %2672 = vmatpush.bf16.msra.mxu0 %v2408
      %2673 = vmatpush.bf16.msra.mxu0 %v2407
      %2674 = vmatpush.bf16.msra.mxu0 %v2406
      %2675 = vmatpush.bf16.msra.mxu0 %v2405
      %2676 = vmatpush.bf16.msra.mxu0 %v2404
      %2677 = vmatpush.bf16.msra.mxu0 %v2403
      %2678 = vmatpush.bf16.msra.mxu0 %v2402
      %2679 = vmatpush.bf16.msra.mxu0 %v2401
      %2680 = vmatmul.bf16.gmra.mxu0 %v1851
      %v2681 = vpop.f32.mrf.mxu0
      %v2682 = vadd.f32 %v2669, %v2681
      %v2683 = vpop.f32.mrf.mxu0
      %2684 = vdwg.mxu0
      %2685 = vmatpush.bf16.msra.mxu0 %v2416
      %2686 = vmatpush.bf16.msra.mxu0 %v2415
      %2687 = vmatpush.bf16.msra.mxu0 %v2414
      %2688 = vmatpush.bf16.msra.mxu0 %v2413
      %2689 = vmatpush.bf16.msra.mxu0 %v2412
      %2690 = vmatpush.bf16.msra.mxu0 %v2411
      %2691 = vmatpush.bf16.msra.mxu0 %v2410
      %2692 = vmatpush.bf16.msra.mxu0 %v2409
      %2693 = vmatmul.bf16.gmra.mxu0 %v1852
      %v2694 = vpop.f32.mrf.mxu0
      %v2695 = vadd.f32 %v2682, %v2694
      %v2696 = vpop.f32.mrf.mxu0
      %2697 = vdwg.mxu0
      %2698 = vmatpush.bf16.msra.mxu0 %v2424
      %2699 = vmatpush.bf16.msra.mxu0 %v2423
      %2700 = vmatpush.bf16.msra.mxu0 %v2422
      %2701 = vmatpush.bf16.msra.mxu0 %v2421
      %2702 = vmatpush.bf16.msra.mxu0 %v2420
      %2703 = vmatpush.bf16.msra.mxu0 %v2419
      %2704 = vmatpush.bf16.msra.mxu0 %v2418
      %2705 = vmatpush.bf16.msra.mxu0 %v2417
      %2706 = vmatmul.bf16.gmra.mxu0 %v1853
      %v2707 = vpop.f32.mrf.mxu0
      %v2708 = vadd.f32 %v2695, %v2707
      %v2709 = vpop.f32.mrf.mxu0
      %2710 = vdwg.mxu0
      %2711 = vmatpush.bf16.msra.mxu0 %v2432
      %2712 = vmatpush.bf16.msra.mxu0 %v2431
      %2713 = vmatpush.bf16.msra.mxu0 %v2430
      %2714 = vmatpush.bf16.msra.mxu0 %v2429
      %2715 = vmatpush.bf16.msra.mxu0 %v2428
      %2716 = vmatpush.bf16.msra.mxu0 %v2427
      %2717 = vmatpush.bf16.msra.mxu0 %v2426
      %2718 = vmatpush.bf16.msra.mxu0 %v2425
      %2719 = vmatmul.bf16.gmra.mxu0 %v1854
      %v2720 = vpop.f32.mrf.mxu0
      %v2721 = vadd.f32 %v2708, %v2720
      %v2722 = vpop.f32.mrf.mxu0
      %2723 = vdwg.mxu0
      %2724 = vmatpush.bf16.msra.mxu0 %v2440
      %2725 = vmatpush.bf16.msra.mxu0 %v2439
      %2726 = vmatpush.bf16.msra.mxu0 %v2438
      %2727 = vmatpush.bf16.msra.mxu0 %v2437
      %2728 = vmatpush.bf16.msra.mxu0 %v2436
      %2729 = vmatpush.bf16.msra.mxu0 %v2435
      %2730 = vmatpush.bf16.msra.mxu0 %v2434
      %2731 = vmatpush.bf16.msra.mxu0 %v2433
      %2732 = vmatmul.bf16.gmra.mxu0 %v1855
      %v2733 = vpop.f32.mrf.mxu0
      %v2734 = vadd.f32 %v2721, %v2733
      %v2735 = vpop.f32.mrf.mxu0
      %2736 = vdwg.mxu0
      %2737 = vmatpush.bf16.msra.mxu0 %v2448
      %2738 = vmatpush.bf16.msra.mxu0 %v2447
      %2739 = vmatpush.bf16.msra.mxu0 %v2446
      %2740 = vmatpush.bf16.msra.mxu0 %v2445
      %2741 = vmatpush.bf16.msra.mxu0 %v2444
      %2742 = vmatpush.bf16.msra.mxu0 %v2443
      %2743 = vmatpush.bf16.msra.mxu0 %v2442
      %2744 = vmatpush.bf16.msra.mxu0 %v2441
      %2745 = vmatmul.bf16.gmra.mxu0 %v1856
      %v2746 = vpop.f32.mrf.mxu0
      %v2747 = vadd.f32 %v2734, %v2746
      %v2748 = vpop.f32.mrf.mxu0
      %2749 = vdwg.mxu0
      %2750 = vmatpush.bf16.msra.mxu0 %v2456
      %2751 = vmatpush.bf16.msra.mxu0 %v2455
      %2752 = vmatpush.bf16.msra.mxu0 %v2454
      %2753 = vmatpush.bf16.msra.mxu0 %v2453
      %2754 = vmatpush.bf16.msra.mxu0 %v2452
      %2755 = vmatpush.bf16.msra.mxu0 %v2451
      %2756 = vmatpush.bf16.msra.mxu0 %v2450
      %2757 = vmatpush.bf16.msra.mxu0 %v2449
      %2758 = vmatmul.bf16.gmra.mxu0 %v1857
      %v2759 = vpop.f32.mrf.mxu0
      %v2760 = vadd.f32 %v2747, %v2759
      %v2761 = vpop.f32.mrf.mxu0
      %2762 = vdwg.mxu0
      %2763 = vmatpush.bf16.msra.mxu0 %v2464
      %2764 = vmatpush.bf16.msra.mxu0 %v2463
      %2765 = vmatpush.bf16.msra.mxu0 %v2462
      %2766 = vmatpush.bf16.msra.mxu0 %v2461
      %2767 = vmatpush.bf16.msra.mxu0 %v2460
      %2768 = vmatpush.bf16.msra.mxu0 %v2459
      %2769 = vmatpush.bf16.msra.mxu0 %v2458
      %2770 = vmatpush.bf16.msra.mxu0 %v2457
      %2771 = vmatmul.bf16.gmra.mxu0 %v1858
      %v2772 = vpop.f32.mrf.mxu0
      %v2773 = vadd.f32 %v2760, %v2772
      %v2774 = vpop.f32.mrf.mxu0
      %2775 = vdwg.mxu0
      %2776 = vmatpush.bf16.msra.mxu0 %v2472
      %2777 = vmatpush.bf16.msra.mxu0 %v2471
      %2778 = vmatpush.bf16.msra.mxu0 %v2470
      %2779 = vmatpush.bf16.msra.mxu0 %v2469
      %2780 = vmatpush.bf16.msra.mxu0 %v2468
      %2781 = vmatpush.bf16.msra.mxu0 %v2467
      %2782 = vmatpush.bf16.msra.mxu0 %v2466
      %2783 = vmatpush.bf16.msra.mxu0 %v2465
      %2784 = vmatmul.bf16.gmra.mxu0 %v1859
      %v2785 = vpop.f32.mrf.mxu0
      %v2786 = vadd.f32 %v2773, %v2785
      %v2787 = vpop.f32.mrf.mxu0
      %2788 = vdwg.mxu0
      %2789 = vmatpush.bf16.msra.mxu0 %v2480
      %2790 = vmatpush.bf16.msra.mxu0 %v2479
      %2791 = vmatpush.bf16.msra.mxu0 %v2478
      %2792 = vmatpush.bf16.msra.mxu0 %v2477
      %2793 = vmatpush.bf16.msra.mxu0 %v2476
      %2794 = vmatpush.bf16.msra.mxu0 %v2475
      %2795 = vmatpush.bf16.msra.mxu0 %v2474
      %2796 = vmatpush.bf16.msra.mxu0 %v2473
      %2797 = vmatmul.bf16.gmra.mxu0 %v1860
      %v2798 = vpop.f32.mrf.mxu0
      %v2799 = vadd.f32 %v2786, %v2798
      %v2800 = vpop.f32.mrf.mxu0
      %2801 = vdwg.mxu0
      %2802 = vmatpush.bf16.msra.mxu0 %v2488
      %2803 = vmatpush.bf16.msra.mxu0 %v2487
      %2804 = vmatpush.bf16.msra.mxu0 %v2486
      %2805 = vmatpush.bf16.msra.mxu0 %v2485
      %2806 = vmatpush.bf16.msra.mxu0 %v2484
      %2807 = vmatpush.bf16.msra.mxu0 %v2483
      %2808 = vmatpush.bf16.msra.mxu0 %v2482
      %2809 = vmatpush.bf16.msra.mxu0 %v2481
      %2810 = vmatmul.bf16.gmra.mxu0 %v1861
      %v2811 = vpop.f32.mrf.mxu0
      %v2812 = vadd.f32 %v2799, %v2811
      %v2813 = vpop.f32.mrf.mxu0
      %2814 = vdwg.mxu0
      %2815 = vmatpush.bf16.msra.mxu0 %v2496
      %2816 = vmatpush.bf16.msra.mxu0 %v2495
      %2817 = vmatpush.bf16.msra.mxu0 %v2494
      %2818 = vmatpush.bf16.msra.mxu0 %v2493
      %2819 = vmatpush.bf16.msra.mxu0 %v2492
      %2820 = vmatpush.bf16.msra.mxu0 %v2491
      %2821 = vmatpush.bf16.msra.mxu0 %v2490
      %2822 = vmatpush.bf16.msra.mxu0 %v2489
      %2823 = vmatmul.bf16.gmra.mxu0 %v1862
      %v2824 = vpop.f32.mrf.mxu0
      %v2825 = vadd.f32 %v2812, %v2824
      %v2826 = vpop.f32.mrf.mxu0
      %2827 = vdwg.mxu0
      %2828 = vmatpush.bf16.msra.mxu0 %v2504
      %2829 = vmatpush.bf16.msra.mxu0 %v2503
      %2830 = vmatpush.bf16.msra.mxu0 %v2502
      %2831 = vmatpush.bf16.msra.mxu0 %v2501
      %2832 = vmatpush.bf16.msra.mxu0 %v2500
      %2833 = vmatpush.bf16.msra.mxu0 %v2499
      %2834 = vmatpush.bf16.msra.mxu0 %v2498
      %2835 = vmatpush.bf16.msra.mxu0 %v2497
      %2836 = vmatmul.bf16.gmra.mxu0 %v1863
      %v2837 = vpop.f32.mrf.mxu0
      %v2838 = vadd.f32 %v2825, %v2837
      %v2839 = vpop.f32.mrf.mxu0
      %2840 = vdwg.mxu0
      %v2841 = vadd.f32 %v1135, %v2838
      %v2842 = vsel %vm722, %v2841, 0.0
      %2843 = vadd.xlane.f32.xlu0 %v2842
      %v2844 = vpop.xlane.xlu0 %2843
      %v2845 = vmul.f32 %v2844, %v1112
      %v2846 = vsub.f32 %v2841, %v2845
      %v2847 = vmul.f32 %v2846, %v2846
      %v2848 = vsel %vm722, %v2847, 0.0
      %2849 = vadd.xlane.f32.xlu0 %v2848
      %v2850 = vpop.xlane.xlu0 %2849
      %v2851 = vmul.f32 %v2850, %v1112
      %v2852 = vadd.f32 %v2851, 1e-05
      %v2853 = vrsqrt.pop %v2852
      %v2854 = vmul.f32 %v2853, %v2852
      %v2855 = vmul.f32 %v2854, %v2853
      %v2856 = vmul.f32 0.5, %v2855
      %v2857 = vsub.f32 1.5, %v2856
      %v2858 = vmul.f32 %v2853, %v2857
      %vm2859 = vweird.f32 %v2852
      %vm2860 = vweird.f32 %v2853
      %vm2861 = vmor %vm2859, %vm2860
      %v2862 = vsel %vm2861, %v2853, %v2858
      %v2863 = vmul.f32 %v2846, %v2862
      %v2864 = vperm.slane %v709, 4
      %v2865 = vmul.f32 %v2863, %v2864
      %v2866 = vperm.slane %v709, 5
      %v2867 = vadd.f32 %v2865, %v2866
      %s2868 = scalar_lea.vmem %s8, 8
      %v2869 = vld [vmem:[%s2868] sm:$0x3f]
      %s2870 = scalar_lea.vmem %s2, 32
      %v2871 = vld [vmem:[%s2870] sm:$0xff]
      %v2872 = vld [vmem:[%s2870 + $0x8] sm:$0xff]
      %v2873 = vld [vmem:[%s2870 + $0x10] sm:$0xff]
      %v2874 = vld [vmem:[%s2870 + $0x18] sm:$0xff]
      %s2875 = scalar_lea.vmem %s6, 1
      %v2876 = vld [vmem:[%s2875] sm:$0x1]
      %s2877 = scalar_lea.vmem %s3, 32
      %v2878 = vld [vmem:[%s2877] sm:$0xff]
      %v2879 = vld [vmem:[%s2877 + $0x8] sm:$0xff]
      %v2880 = vld [vmem:[%s2877 + $0x10] sm:$0xff]
      %v2881 = vld [vmem:[%s2877 + $0x18] sm:$0xff]
      %v2883 = vperm.slane %v2876, 0
      %v2886 = vsel %vm722, %v2867, 0
      %2888 = vmatpush.msra.mxu0 0.0
      %2889 = vmatpush.msra.mxu0 0.0
      %2890 = vmatpush.msra.mxu0 0.0
      %2891 = vmatpush.msra.mxu0 0.0
      %2892 = vmatpush.msra.mxu0 0.0
      %2893 = vmatpush.msra.mxu0 0.0
      %2894 = vmatpush.msra.mxu0 0.0
      %2895 = vmatpush.msra.mxu0 0.0
      %2896 = vmatpush.msra.mxu0 0.0
      %2897 = vmatpush.msra.mxu0 0.0
      %2898 = vmatpush.msra.mxu0 0.0
      %2899 = vmatpush.msra.mxu0 0.0
      %2900 = vmatpush.msra.mxu0 %v2874
      %2901 = vmatpush.msra.mxu0 %v2873
      %2902 = vmatpush.msra.mxu0 %v2872
      %2903 = vmatpush.msra.mxu0 %v2871
      %2904 = vmatmul.f32.gmra.mxu0 %v2886
      %v2905 = vpop.f32.mrf.mxu0
      %v2906 = vadd.f32 %v2883, %v2905
      %2907 = vdwg.mxu0
      %2909 = vrot.lane.b32.xlu0 %v2906, 96
      %v2910 = vpop.permute.xlu0 %2909
      %v2911 = vsel %vm749, %v2906, 0
      %v2913 = vsel %vm749, %v2910, 0
      %2915 = vmatpush.xpose.msra.mxu0 0.0
      %2916 = vmatpush.xpose.msra.mxu0 0.0
      %2917 = vmatpush.xpose.msra.mxu0 0.0
      %2918 = vmatpush.xpose.msra.mxu0 0.0
      %2919 = vmatpush.xpose.msra.mxu0 0.0
      %2920 = vmatpush.xpose.msra.mxu0 0.0
      %2921 = vmatpush.xpose.msra.mxu0 0.0
      %2922 = vmatpush.xpose.msra.mxu0 0.0
      %2923 = vmatpush.xpose.msra.mxu0 0.0
      %2924 = vmatpush.xpose.msra.mxu0 0.0
      %2925 = vmatpush.xpose.msra.mxu0 0.0
      %2926 = vmatpush.xpose.msra.mxu0 0.0
      %2927 = vmatpush.xpose.msra.mxu0 0.0
      %2928 = vmatpush.xpose.msra.mxu0 0.0
      %2929 = vmatpush.xpose.msra.mxu0 0.0
      %2930 = vmatpush.xpose.msra.mxu0 %v2913
      %2931 = vmatmul.f32.gmra.mxu0 %v2911
      %v2932 = vpop.f32.mrf.mxu0
      %v2933 = vadd.f32 %v708, %v2932
      %2934 = vdwg.mxu0
      %v2935 = vsel %vm749, %v2933, -inf
      %2936 = vmax.xlane.f32.xlu0 %v2935
      %v2937 = vpop.xlane.xlu0 %2936
      %v2938 = vsub.f32 %v2933, %v2937
      %v2939 = vmul.f32 %v2938, 1.442695
      %v2940 = vpow.pop %v2939
      %v2941 = vsel %vm749, %v2940, 0.0
      %2942 = vadd.xlane.f32.xlu0 %v2941
      %v2943 = vpop.xlane.xlu0 %2942
      %v2944 = vrcp.pop %v2943
      %v2945 = vmul.f32 %v2940, %v2944
      %2946 = vrot.lane.b32.xlu0 %v2906, 64
      %v2947 = vpop.permute.xlu0 %2946
      %v2950 = vsel %vm749, %v2945, 0
      %2952 = vmatpush.msra.mxu0 0.0
      %2953 = vmatpush.msra.mxu0 0.0
      %2954 = vmatpush.msra.mxu0 0.0
      %2955 = vmatpush.msra.mxu0 0.0
      %2956 = vmatpush.msra.mxu0 0.0
      %2957 = vmatpush.msra.mxu0 0.0
      %2958 = vmatpush.msra.mxu0 0.0
      %2959 = vmatpush.msra.mxu0 0.0
      %2960 = vmatpush.msra.mxu0 0.0
      %2961 = vmatpush.msra.mxu0 0.0
      %2962 = vmatpush.msra.mxu0 0.0
      %2963 = vmatpush.msra.mxu0 0.0
      %2964 = vmatpush.msra.mxu0 0.0
      %2965 = vmatpush.msra.mxu0 0.0
      %2966 = vmatpush.msra.mxu0 0.0
      %2967 = vmatpush.msra.mxu0 %v2947
      %2968 = vmatmul.f32.gmra.mxu0 %v2950
      %v2969 = vpop.f32.mrf.mxu0
      %v2970 = vadd.f32 0.0, %v2969
      %2971 = vdwg.mxu0
      %2972 = vrot.lane.b32.xlu0 %v2906, 120
      %v2973 = vpop.permute.xlu0 %2972
      %2974 = vrot.lane.b32.xlu0 %v2906, 88
      %v2975 = vpop.permute.xlu0 %2974
      %v2976 = vsel %vm749, %v2973, 0
      %v2978 = vsel %vm749, %v2975, 0
      %2980 = vmatpush.xpose.msra.mxu0 0.0
      %2981 = vmatpush.xpose.msra.mxu0 0.0
      %2982 = vmatpush.xpose.msra.mxu0 0.0
      %2983 = vmatpush.xpose.msra.mxu0 0.0
      %2984 = vmatpush.xpose.msra.mxu0 0.0
      %2985 = vmatpush.xpose.msra.mxu0 0.0
      %2986 = vmatpush.xpose.msra.mxu0 0.0
      %2987 = vmatpush.xpose.msra.mxu0 0.0
      %2988 = vmatpush.xpose.msra.mxu0 0.0
      %2989 = vmatpush.xpose.msra.mxu0 0.0
      %2990 = vmatpush.xpose.msra.mxu0 0.0
      %2991 = vmatpush.xpose.msra.mxu0 0.0
      %2992 = vmatpush.xpose.msra.mxu0 0.0
      %2993 = vmatpush.xpose.msra.mxu0 0.0
      %2994 = vmatpush.xpose.msra.mxu0 0.0
      %2995 = vmatpush.xpose.msra.mxu0 %v2978
      %2996 = vmatmul.f32.gmra.mxu0 %v2976
      %v2997 = vpop.f32.mrf.mxu0
      %v2998 = vadd.f32 %v708, %v2997
      %2999 = vdwg.mxu0
      %v3000 = vsel %vm749, %v2998, -inf
      %3001 = vmax.xlane.f32.xlu0 %v3000
      %v3002 = vpop.xlane.xlu0 %3001
      %v3003 = vsub.f32 %v2998, %v3002
      %v3004 = vmul.f32 %v3003, 1.442695
      %v3005 = vpow.pop %v3004
      %v3006 = vsel %vm749, %v3005, 0.0
      %3007 = vadd.xlane.f32.xlu0 %v3006
      %v3008 = vpop.xlane.xlu0 %3007
      %v3009 = vrcp.pop %v3008
      %v3010 = vmul.f32 %v3005, %v3009
      %3011 = vrot.lane.b32.xlu0 %v2906, 56
      %v3012 = vpop.permute.xlu0 %3011
      %v3015 = vsel %vm749, %v3010, 0
      %3017 = vmatpush.msra.mxu0 0.0
      %3018 = vmatpush.msra.mxu0 0.0
      %3019 = vmatpush.msra.mxu0 0.0
      %3020 = vmatpush.msra.mxu0 0.0
      %3021 = vmatpush.msra.mxu0 0.0
      %3022 = vmatpush.msra.mxu0 0.0
      %3023 = vmatpush.msra.mxu0 0.0
      %3024 = vmatpush.msra.mxu0 0.0
      %3025 = vmatpush.msra.mxu0 0.0
      %3026 = vmatpush.msra.mxu0 0.0
      %3027 = vmatpush.msra.mxu0 0.0
      %3028 = vmatpush.msra.mxu0 0.0
      %3029 = vmatpush.msra.mxu0 0.0
      %3030 = vmatpush.msra.mxu0 0.0
      %3031 = vmatpush.msra.mxu0 0.0
      %3032 = vmatpush.msra.mxu0 %v3012
      %3033 = vmatmul.f32.gmra.mxu0 %v3015
      %v3034 = vpop.f32.mrf.mxu0
      %v3035 = vadd.f32 0.0, %v3034
      %3036 = vdwg.mxu0
      %v3038 = vsel %vm749, %v3035, 0
      %3040 = vmatpush.msra.mxu0 0.0
      %3041 = vmatpush.msra.mxu0 0.0
      %3042 = vmatpush.msra.mxu0 0.0
      %3043 = vmatpush.msra.mxu0 0.0
      %3044 = vmatpush.msra.mxu0 0.0
      %3045 = vmatpush.msra.mxu0 0.0
      %3046 = vmatpush.msra.mxu0 0.0
      %3047 = vmatpush.msra.mxu0 0.0
      %3048 = vmatpush.msra.mxu0 0.0
      %3049 = vmatpush.msra.mxu0 0.0
      %3050 = vmatpush.msra.mxu0 0.0
      %3051 = vmatpush.msra.mxu0 0.0
      %3052 = vmatpush.msra.mxu0 0.0
      %3053 = vmatpush.msra.mxu0 0.0
      %3054 = vmatpush.msra.mxu0 0.0
      %3055 = vmatpush.msra.mxu0 %v2879
      %3056 = vmatmul.f32.gmra.mxu0 %v3038
      %v3057 = vpop.f32.mrf.mxu0
      %v3058 = vadd.f32 0.0, %v3057
      %3059 = vdwg.mxu0
      %v3061 = vsel %vm749, %v2970, 0
      %3063 = vmatpush.msra.mxu0 0.0
      %3064 = vmatpush.msra.mxu0 0.0
      %3065 = vmatpush.msra.mxu0 0.0
      %3066 = vmatpush.msra.mxu0 0.0
      %3067 = vmatpush.msra.mxu0 0.0
      %3068 = vmatpush.msra.mxu0 0.0
      %3069 = vmatpush.msra.mxu0 0.0
      %3070 = vmatpush.msra.mxu0 0.0
      %3071 = vmatpush.msra.mxu0 0.0
      %3072 = vmatpush.msra.mxu0 0.0
      %3073 = vmatpush.msra.mxu0 0.0
      %3074 = vmatpush.msra.mxu0 0.0
      %3075 = vmatpush.msra.mxu0 0.0
      %3076 = vmatpush.msra.mxu0 0.0
      %3077 = vmatpush.msra.mxu0 0.0
      %3078 = vmatpush.msra.mxu0 %v2878
      %3079 = vmatmul.f32.gmra.mxu0 %v3061
      %v3080 = vpop.f32.mrf.mxu0
      %v3081 = vadd.f32 %v3058, %v3080
      %3082 = vdwg.mxu0
      %3083 = vrot.lane.b32.xlu0 %v2906, 112
      %v3084 = vpop.permute.xlu0 %3083
      %3085 = vrot.lane.b32.xlu0 %v2906, 80
      %v3086 = vpop.permute.xlu0 %3085
      %v3087 = vsel %vm749, %v3084, 0
      %v3089 = vsel %vm749, %v3086, 0
      %3091 = vmatpush.xpose.msra.mxu0 0.0
      %3092 = vmatpush.xpose.msra.mxu0 0.0
      %3093 = vmatpush.xpose.msra.mxu0 0.0
      %3094 = vmatpush.xpose.msra.mxu0 0.0
      %3095 = vmatpush.xpose.msra.mxu0 0.0
      %3096 = vmatpush.xpose.msra.mxu0 0.0
      %3097 = vmatpush.xpose.msra.mxu0 0.0
      %3098 = vmatpush.xpose.msra.mxu0 0.0
      %3099 = vmatpush.xpose.msra.mxu0 0.0
      %3100 = vmatpush.xpose.msra.mxu0 0.0
      %3101 = vmatpush.xpose.msra.mxu0 0.0
      %3102 = vmatpush.xpose.msra.mxu0 0.0
      %3103 = vmatpush.xpose.msra.mxu0 0.0
      %3104 = vmatpush.xpose.msra.mxu0 0.0
      %3105 = vmatpush.xpose.msra.mxu0 0.0
      %3106 = vmatpush.xpose.msra.mxu0 %v3089
      %3107 = vmatmul.f32.gmra.mxu0 %v3087
      %v3108 = vpop.f32.mrf.mxu0
      %v3109 = vadd.f32 %v708, %v3108
      %3110 = vdwg.mxu0
      %v3111 = vsel %vm749, %v3109, -inf
      %3112 = vmax.xlane.f32.xlu0 %v3111
      %v3113 = vpop.xlane.xlu0 %3112
      %v3114 = vsub.f32 %v3109, %v3113
      %v3115 = vmul.f32 %v3114, 1.442695
      %v3116 = vpow.pop %v3115
      %v3117 = vsel %vm749, %v3116, 0.0
      %3118 = vadd.xlane.f32.xlu0 %v3117
      %v3119 = vpop.xlane.xlu0 %3118
      %v3120 = vrcp.pop %v3119
      %v3121 = vmul.f32 %v3116, %v3120
      %3122 = vrot.lane.b32.xlu0 %v2906, 48
      %v3123 = vpop.permute.xlu0 %3122
      %v3126 = vsel %vm749, %v3121, 0
      %3128 = vmatpush.msra.mxu0 0.0
      %3129 = vmatpush.msra.mxu0 0.0
      %3130 = vmatpush.msra.mxu0 0.0
      %3131 = vmatpush.msra.mxu0 0.0
      %3132 = vmatpush.msra.mxu0 0.0
      %3133 = vmatpush.msra.mxu0 0.0
      %3134 = vmatpush.msra.mxu0 0.0
      %3135 = vmatpush.msra.mxu0 0.0
      %3136 = vmatpush.msra.mxu0 0.0
      %3137 = vmatpush.msra.mxu0 0.0
      %3138 = vmatpush.msra.mxu0 0.0
      %3139 = vmatpush.msra.mxu0 0.0
      %3140 = vmatpush.msra.mxu0 0.0
      %3141 = vmatpush.msra.mxu0 0.0
      %3142 = vmatpush.msra.mxu0 0.0
      %3143 = vmatpush.msra.mxu0 %v3123
      %3144 = vmatmul.f32.gmra.mxu0 %v3126
      %v3145 = vpop.f32.mrf.mxu0
      %v3146 = vadd.f32 0.0, %v3145
      %3147 = vdwg.mxu0
      %v3149 = vsel %vm749, %v3146, 0
      %3151 = vmatpush.msra.mxu0 0.0
      %3152 = vmatpush.msra.mxu0 0.0
      %3153 = vmatpush.msra.mxu0 0.0
      %3154 = vmatpush.msra.mxu0 0.0
      %3155 = vmatpush.msra.mxu0 0.0
      %3156 = vmatpush.msra.mxu0 0.0
      %3157 = vmatpush.msra.mxu0 0.0
      %3158 = vmatpush.msra.mxu0 0.0
      %3159 = vmatpush.msra.mxu0 0.0
      %3160 = vmatpush.msra.mxu0 0.0
      %3161 = vmatpush.msra.mxu0 0.0
      %3162 = vmatpush.msra.mxu0 0.0
      %3163 = vmatpush.msra.mxu0 0.0
      %3164 = vmatpush.msra.mxu0 0.0
      %3165 = vmatpush.msra.mxu0 0.0
      %3166 = vmatpush.msra.mxu0 %v2880
      %3167 = vmatmul.f32.gmra.mxu0 %v3149
      %v3168 = vpop.f32.mrf.mxu0
      %v3169 = vadd.f32 0.0, %v3168
      %3170 = vdwg.mxu0
      %v3171 = vadd.f32 %v3081, %v3169
      %3172 = vrot.lane.b32.xlu0 %v2906, 104
      %v3173 = vpop.permute.xlu0 %3172
      %3174 = vrot.lane.b32.xlu0 %v2906, 72
      %v3175 = vpop.permute.xlu0 %3174
      %v3176 = vsel %vm749, %v3173, 0
      %v3178 = vsel %vm749, %v3175, 0
      %3180 = vmatpush.xpose.msra.mxu0 0.0
      %3181 = vmatpush.xpose.msra.mxu0 0.0
      %3182 = vmatpush.xpose.msra.mxu0 0.0
      %3183 = vmatpush.xpose.msra.mxu0 0.0
      %3184 = vmatpush.xpose.msra.mxu0 0.0
      %3185 = vmatpush.xpose.msra.mxu0 0.0
      %3186 = vmatpush.xpose.msra.mxu0 0.0
      %3187 = vmatpush.xpose.msra.mxu0 0.0
      %3188 = vmatpush.xpose.msra.mxu0 0.0
      %3189 = vmatpush.xpose.msra.mxu0 0.0
      %3190 = vmatpush.xpose.msra.mxu0 0.0
      %3191 = vmatpush.xpose.msra.mxu0 0.0
      %3192 = vmatpush.xpose.msra.mxu0 0.0
      %3193 = vmatpush.xpose.msra.mxu0 0.0
      %3194 = vmatpush.xpose.msra.mxu0 0.0
      %3195 = vmatpush.xpose.msra.mxu0 %v3178
      %3196 = vmatmul.f32.gmra.mxu0 %v3176
      %v3197 = vpop.f32.mrf.mxu0
      %v3198 = vadd.f32 %v708, %v3197
      %3199 = vdwg.mxu0
      %v3200 = vsel %vm749, %v3198, -inf
      %3201 = vmax.xlane.f32.xlu0 %v3200
      %v3202 = vpop.xlane.xlu0 %3201
      %v3203 = vsub.f32 %v3198, %v3202
      %v3204 = vmul.f32 %v3203, 1.442695
      %v3205 = vpow.pop %v3204
      %v3206 = vsel %vm749, %v3205, 0.0
      %3207 = vadd.xlane.f32.xlu0 %v3206
      %v3208 = vpop.xlane.xlu0 %3207
      %v3209 = vrcp.pop %v3208
      %v3210 = vmul.f32 %v3205, %v3209
      %3211 = vrot.lane.b32.xlu0 %v2906, 40
      %v3212 = vpop.permute.xlu0 %3211
      %v3215 = vsel %vm749, %v3210, 0
      %3217 = vmatpush.msra.mxu0 0.0
      %3218 = vmatpush.msra.mxu0 0.0
      %3219 = vmatpush.msra.mxu0 0.0
      %3220 = vmatpush.msra.mxu0 0.0
      %3221 = vmatpush.msra.mxu0 0.0
      %3222 = vmatpush.msra.mxu0 0.0
      %3223 = vmatpush.msra.mxu0 0.0
      %3224 = vmatpush.msra.mxu0 0.0
      %3225 = vmatpush.msra.mxu0 0.0
      %3226 = vmatpush.msra.mxu0 0.0
      %3227 = vmatpush.msra.mxu0 0.0
      %3228 = vmatpush.msra.mxu0 0.0
      %3229 = vmatpush.msra.mxu0 0.0
      %3230 = vmatpush.msra.mxu0 0.0
      %3231 = vmatpush.msra.mxu0 0.0
      %3232 = vmatpush.msra.mxu0 %v3212
      %3233 = vmatmul.f32.gmra.mxu0 %v3215
      %v3234 = vpop.f32.mrf.mxu0
      %v3235 = vadd.f32 0.0, %v3234
      %3236 = vdwg.mxu0
      %v3238 = vsel %vm749, %v3235, 0
      %3240 = vmatpush.msra.mxu0 0.0
      %3241 = vmatpush.msra.mxu0 0.0
      %3242 = vmatpush.msra.mxu0 0.0
      %3243 = vmatpush.msra.mxu0 0.0
      %3244 = vmatpush.msra.mxu0 0.0
      %3245 = vmatpush.msra.mxu0 0.0
      %3246 = vmatpush.msra.mxu0 0.0
      %3247 = vmatpush.msra.mxu0 0.0
      %3248 = vmatpush.msra.mxu0 0.0
      %3249 = vmatpush.msra.mxu0 0.0
      %3250 = vmatpush.msra.mxu0 0.0
      %3251 = vmatpush.msra.mxu0 0.0
      %3252 = vmatpush.msra.mxu0 0.0
      %3253 = vmatpush.msra.mxu0 0.0
      %3254 = vmatpush.msra.mxu0 0.0
      %3255 = vmatpush.msra.mxu0 %v2881
      %3256 = vmatmul.f32.gmra.mxu0 %v3238
      %v3257 = vpop.f32.mrf.mxu0
      %v3258 = vadd.f32 0.0, %v3257
      %3259 = vdwg.mxu0
      %v3260 = vadd.f32 %v3171, %v3258
      %v3261 = vperm.slane %v2869, 0
      %v3262 = vadd.f32 %v3260, %v3261
      %v3263 = vadd.f32 %v2867, %v3262
      %v3264 = vsel %vm722, %v3263, 0.0
      %3265 = vadd.xlane.f32.xlu0 %v3264
      %v3266 = vpop.xlane.xlu0 %3265
      %v3267 = vmul.f32 %v3266, %v1112
      %v3268 = vsub.f32 %v3263, %v3267
      %v3269 = vmul.f32 %v3268, %v3268
      %v3270 = vsel %vm722, %v3269, 0.0
      %3271 = vadd.xlane.f32.xlu0 %v3270
      %v3272 = vpop.xlane.xlu0 %3271
      %v3273 = vmul.f32 %v3272, %v1112
      %v3274 = vadd.f32 %v3273, 1e-05
      %v3275 = vrsqrt.pop %v3274
      %v3276 = vmul.f32 %v3275, %v3274
      %v3277 = vmul.f32 %v3276, %v3275
      %v3278 = vmul.f32 0.5, %v3277
      %v3279 = vsub.f32 1.5, %v3278
      %v3280 = vmul.f32 %v3275, %v3279
      %vm3281 = vweird.f32 %v3274
      %vm3282 = vweird.f32 %v3275
      %vm3283 = vmor %vm3281, %vm3282
      %v3284 = vsel %vm3283, %v3275, %v3280
      %v3285 = vmul.f32 %v3268, %v3284
      %v3286 = vperm.slane %v2869, 1
      %v3287 = vmul.f32 %v3285, %v3286
      %v3288 = vperm.slane %v2869, 2
      %v3289 = vadd.f32 %v3287, %v3288
      %s3290 = scalar_lea.vmem %s4, 256
      %v3291 = vld [vmem:[%s3290] sm:$0xff]
      %v3292 = vld [vmem:[%s3290 + $0x8] sm:$0xff]
      %v3293 = vld [vmem:[%s3290 + $0x10] sm:$0xff]
      %v3294 = vld [vmem:[%s3290 + $0x18] sm:$0xff]
      %v3295 = vld [vmem:[%s3290 + $0x20] sm:$0xff]
      %v3296 = vld [vmem:[%s3290 + $0x28] sm:$0xff]
      %v3297 = vld [vmem:[%s3290 + $0x30] sm:$0xff]
      %v3298 = vld [vmem:[%s3290 + $0x38] sm:$0xff]
      %v3299 = vld [vmem:[%s3290 + $0x40] sm:$0xff]
      %v3300 = vld [vmem:[%s3290 + $0x48] sm:$0xff]
      %v3301 = vld [vmem:[%s3290 + $0x50] sm:$0xff]
      %v3302 = vld [vmem:[%s3290 + $0x58] sm:$0xff]
      %v3303 = vld [vmem:[%s3290 + $0x60] sm:$0xff]
      %v3304 = vld [vmem:[%s3290 + $0x68] sm:$0xff]
      %v3305 = vld [vmem:[%s3290 + $0x70] sm:$0xff]
      %v3306 = vld [vmem:[%s3290 + $0x78] sm:$0xff]
      %v3307 = vld [vmem:[%s3290 + $0x80] sm:$0xff]
      %v3308 = vld [vmem:[%s3290 + $0x88] sm:$0xff]
      %v3309 = vld [vmem:[%s3290 + $0x90] sm:$0xff]
      %v3310 = vld [vmem:[%s3290 + $0x98] sm:$0xff]
      %v3311 = vld [vmem:[%s3290 + $0xa0] sm:$0xff]
      %v3312 = vld [vmem:[%s3290 + $0xa8] sm:$0xff]
      %v3313 = vld [vmem:[%s3290 + $0xb0] sm:$0xff]
      %v3314 = vld [vmem:[%s3290 + $0xb8] sm:$0xff]
      %v3315 = vld [vmem:[%s3290 + $0xc0] sm:$0xff]
      %v3316 = vld [vmem:[%s3290 + $0xc8] sm:$0xff]
      %v3317 = vld [vmem:[%s3290 + $0xd0] sm:$0xff]
      %v3318 = vld [vmem:[%s3290 + $0xd8] sm:$0xff]
      %v3319 = vld [vmem:[%s3290 + $0xe0] sm:$0xff]
      %v3320 = vld [vmem:[%s3290 + $0xe8] sm:$0xff]
      %v3321 = vld [vmem:[%s3290 + $0xf0] sm:$0xff]
      %v3322 = vld [vmem:[%s3290 + $0xf8] sm:$0xff]
      %s3323 = scalar_lea.vmem %s7, 16
      %v3324 = vld [vmem:[%s3323] sm:$0xff]
      %v3325 = vld [vmem:[%s3323 + $0x8] sm:$0xff]
      %s3326 = scalar_lea.vmem %s5, 1024
      %v3327 = vld [vmem:[%s3326] sm:$0xf]
      %v3328 = vld [vmem:[%s3326 + $0x4] sm:$0xf]
      %v3329 = vld [vmem:[%s3326 + $0x8] sm:$0xf]
      %v3330 = vld [vmem:[%s3326 + $0xc] sm:$0xf]
      %v3331 = vld [vmem:[%s3326 + $0x10] sm:$0xf]
      %v3332 = vld [vmem:[%s3326 + $0x14] sm:$0xf]
      %v3333 = vld [vmem:[%s3326 + $0x18] sm:$0xf]
      %v3334 = vld [vmem:[%s3326 + $0x1c] sm:$0xf]
      %v3335 = vld [vmem:[%s3326 + $0x20] sm:$0xf]
      %v3336 = vld [vmem:[%s3326 + $0x24] sm:$0xf]
      %v3337 = vld [vmem:[%s3326 + $0x28] sm:$0xf]
      %v3338 = vld [vmem:[%s3326 + $0x2c] sm:$0xf]
      %v3339 = vld [vmem:[%s3326 + $0x30] sm:$0xf]
      %v3340 = vld [vmem:[%s3326 + $0x34] sm:$0xf]
      %v3341 = vld [vmem:[%s3326 + $0x38] sm:$0xf]
      %v3342 = vld [vmem:[%s3326 + $0x3c] sm:$0xf]
      %v3343 = vld [vmem:[%s3326 + $0x40] sm:$0xf]
      %v3344 = vld [vmem:[%s3326 + $0x44] sm:$0xf]
      %v3345 = vld [vmem:[%s3326 + $0x48] sm:$0xf]
      %v3346 = vld [vmem:[%s3326 + $0x4c] sm:$0xf]
      %v3347 = vld [vmem:[%s3326 + $0x50] sm:$0xf]
      %v3348 = vld [vmem:[%s3326 + $0x54] sm:$0xf]
      %v3349 = vld [vmem:[%s3326 + $0x58] sm:$0xf]
      %v3350 = vld [vmem:[%s3326 + $0x5c] sm:$0xf]
      %v3351 = vld [vmem:[%s3326 + $0x60] sm:$0xf]
      %v3352 = vld [vmem:[%s3326 + $0x64] sm:$0xf]
      %v3353 = vld [vmem:[%s3326 + $0x68] sm:$0xf]
      %v3354 = vld [vmem:[%s3326 + $0x6c] sm:$0xf]
      %v3355 = vld [vmem:[%s3326 + $0x70] sm:$0xf]
      %v3356 = vld [vmem:[%s3326 + $0x74] sm:$0xf]
      %v3357 = vld [vmem:[%s3326 + $0x78] sm:$0xf]
      %v3358 = vld [vmem:[%s3326 + $0x7c] sm:$0xf]
      %v3359 = vld [vmem:[%s3326 + $0x80] sm:$0xf]
      %v3360 = vld [vmem:[%s3326 + $0x84] sm:$0xf]
      %v3361 = vld [vmem:[%s3326 + $0x88] sm:$0xf]
      %v3362 = vld [vmem:[%s3326 + $0x8c] sm:$0xf]
      %v3363 = vld [vmem:[%s3326 + $0x90] sm:$0xf]
      %v3364 = vld [vmem:[%s3326 + $0x94] sm:$0xf]
      %v3365 = vld [vmem:[%s3326 + $0x98] sm:$0xf]
      %v3366 = vld [vmem:[%s3326 + $0x9c] sm:$0xf]
      %v3367 = vld [vmem:[%s3326 + $0xa0] sm:$0xf]
      %v3368 = vld [vmem:[%s3326 + $0xa4] sm:$0xf]
      %v3369 = vld [vmem:[%s3326 + $0xa8] sm:$0xf]
      %v3370 = vld [vmem:[%s3326 + $0xac] sm:$0xf]
      %v3371 = vld [vmem:[%s3326 + $0xb0] sm:$0xf]
      %v3372 = vld [vmem:[%s3326 + $0xb4] sm:$0xf]
      %v3373 = vld [vmem:[%s3326 + $0xb8] sm:$0xf]
      %v3374 = vld [vmem:[%s3326 + $0xbc] sm:$0xf]
      %v3375 = vld [vmem:[%s3326 + $0xc0] sm:$0xf]
      %v3376 = vld [vmem:[%s3326 + $0xc4] sm:$0xf]
      %v3377 = vld [vmem:[%s3326 + $0xc8] sm:$0xf]
      %v3378 = vld [vmem:[%s3326 + $0xcc] sm:$0xf]
      %v3379 = vld [vmem:[%s3326 + $0xd0] sm:$0xf]
      %v3380 = vld [vmem:[%s3326 + $0xd4] sm:$0xf]
      %v3381 = vld [vmem:[%s3326 + $0xd8] sm:$0xf]
      %v3382 = vld [vmem:[%s3326 + $0xdc] sm:$0xf]
      %v3383 = vld [vmem:[%s3326 + $0xe0] sm:$0xf]
      %v3384 = vld [vmem:[%s3326 + $0xe4] sm:$0xf]
      %v3385 = vld [vmem:[%s3326 + $0xe8] sm:$0xf]
      %v3386 = vld [vmem:[%s3326 + $0xec] sm:$0xf]
      %v3387 = vld [vmem:[%s3326 + $0xf0] sm:$0xf]
      %v3388 = vld [vmem:[%s3326 + $0xf4] sm:$0xf]
      %v3389 = vld [vmem:[%s3326 + $0xf8] sm:$0xf]
      %v3390 = vld [vmem:[%s3326 + $0xfc] sm:$0xf]
      %v3391 = vld [vmem:[%s3326 + $0x100] sm:$0xf]
      %v3392 = vld [vmem:[%s3326 + $0x104] sm:$0xf]
      %v3393 = vld [vmem:[%s3326 + $0x108] sm:$0xf]
      %v3394 = vld [vmem:[%s3326 + $0x10c] sm:$0xf]
      %v3395 = vld [vmem:[%s3326 + $0x110] sm:$0xf]
      %v3396 = vld [vmem:[%s3326 + $0x114] sm:$0xf]
      %v3397 = vld [vmem:[%s3326 + $0x118] sm:$0xf]
      %v3398 = vld [vmem:[%s3326 + $0x11c] sm:$0xf]
      %v3399 = vld [vmem:[%s3326 + $0x120] sm:$0xf]
      %v3400 = vld [vmem:[%s3326 + $0x124] sm:$0xf]
      %v3401 = vld [vmem:[%s3326 + $0x128] sm:$0xf]
      %v3402 = vld [vmem:[%s3326 + $0x12c] sm:$0xf]
      %v3403 = vld [vmem:[%s3326 + $0x130] sm:$0xf]
      %v3404 = vld [vmem:[%s3326 + $0x134] sm:$0xf]
      %v3405 = vld [vmem:[%s3326 + $0x138] sm:$0xf]
      %v3406 = vld [vmem:[%s3326 + $0x13c] sm:$0xf]
      %v3407 = vld [vmem:[%s3326 + $0x140] sm:$0xf]
      %v3408 = vld [vmem:[%s3326 + $0x144] sm:$0xf]
      %v3409 = vld [vmem:[%s3326 + $0x148] sm:$0xf]
      %v3410 = vld [vmem:[%s3326 + $0x14c] sm:$0xf]
      %v3411 = vld [vmem:[%s3326 + $0x150] sm:$0xf]
      %v3412 = vld [vmem:[%s3326 + $0x154] sm:$0xf]
      %v3413 = vld [vmem:[%s3326 + $0x158] sm:$0xf]
      %v3414 = vld [vmem:[%s3326 + $0x15c] sm:$0xf]
      %v3415 = vld [vmem:[%s3326 + $0x160] sm:$0xf]
      %v3416 = vld [vmem:[%s3326 + $0x164] sm:$0xf]
      %v3417 = vld [vmem:[%s3326 + $0x168] sm:$0xf]
      %v3418 = vld [vmem:[%s3326 + $0x16c] sm:$0xf]
      %v3419 = vld [vmem:[%s3326 + $0x170] sm:$0xf]
      %v3420 = vld [vmem:[%s3326 + $0x174] sm:$0xf]
      %v3421 = vld [vmem:[%s3326 + $0x178] sm:$0xf]
      %v3422 = vld [vmem:[%s3326 + $0x17c] sm:$0xf]
      %v3423 = vld [vmem:[%s3326 + $0x180] sm:$0xf]
      %v3424 = vld [vmem:[%s3326 + $0x184] sm:$0xf]
      %v3425 = vld [vmem:[%s3326 + $0x188] sm:$0xf]
      %v3426 = vld [vmem:[%s3326 + $0x18c] sm:$0xf]
      %v3427 = vld [vmem:[%s3326 + $0x190] sm:$0xf]
      %v3428 = vld [vmem:[%s3326 + $0x194] sm:$0xf]
      %v3429 = vld [vmem:[%s3326 + $0x198] sm:$0xf]
      %v3430 = vld [vmem:[%s3326 + $0x19c] sm:$0xf]
      %v3431 = vld [vmem:[%s3326 + $0x1a0] sm:$0xf]
      %v3432 = vld [vmem:[%s3326 + $0x1a4] sm:$0xf]
      %v3433 = vld [vmem:[%s3326 + $0x1a8] sm:$0xf]
      %v3434 = vld [vmem:[%s3326 + $0x1ac] sm:$0xf]
      %v3435 = vld [vmem:[%s3326 + $0x1b0] sm:$0xf]
      %v3436 = vld [vmem:[%s3326 + $0x1b4] sm:$0xf]
      %v3437 = vld [vmem:[%s3326 + $0x1b8] sm:$0xf]
      %v3438 = vld [vmem:[%s3326 + $0x1bc] sm:$0xf]
      %v3439 = vld [vmem:[%s3326 + $0x1c0] sm:$0xf]
      %v3440 = vld [vmem:[%s3326 + $0x1c4] sm:$0xf]
      %v3441 = vld [vmem:[%s3326 + $0x1c8] sm:$0xf]
      %v3442 = vld [vmem:[%s3326 + $0x1cc] sm:$0xf]
      %v3443 = vld [vmem:[%s3326 + $0x1d0] sm:$0xf]
      %v3444 = vld [vmem:[%s3326 + $0x1d4] sm:$0xf]
      %v3445 = vld [vmem:[%s3326 + $0x1d8] sm:$0xf]
      %v3446 = vld [vmem:[%s3326 + $0x1dc] sm:$0xf]
      %v3447 = vld [vmem:[%s3326 + $0x1e0] sm:$0xf]
      %v3448 = vld [vmem:[%s3326 + $0x1e4] sm:$0xf]
      %v3449 = vld [vmem:[%s3326 + $0x1e8] sm:$0xf]
      %v3450 = vld [vmem:[%s3326 + $0x1ec] sm:$0xf]
      %v3451 = vld [vmem:[%s3326 + $0x1f0] sm:$0xf]
      %v3452 = vld [vmem:[%s3326 + $0x1f4] sm:$0xf]
      %v3453 = vld [vmem:[%s3326 + $0x1f8] sm:$0xf]
      %v3454 = vld [vmem:[%s3326 + $0x1fc] sm:$0xf]
      %v3455 = vld [vmem:[%s3326 + $0x200] sm:$0xf]
      %v3456 = vld [vmem:[%s3326 + $0x204] sm:$0xf]
      %v3457 = vld [vmem:[%s3326 + $0x208] sm:$0xf]
      %v3458 = vld [vmem:[%s3326 + $0x20c] sm:$0xf]
      %v3459 = vld [vmem:[%s3326 + $0x210] sm:$0xf]
      %v3460 = vld [vmem:[%s3326 + $0x214] sm:$0xf]
      %v3461 = vld [vmem:[%s3326 + $0x218] sm:$0xf]
      %v3462 = vld [vmem:[%s3326 + $0x21c] sm:$0xf]
      %v3463 = vld [vmem:[%s3326 + $0x220] sm:$0xf]
      %v3464 = vld [vmem:[%s3326 + $0x224] sm:$0xf]
      %v3465 = vld [vmem:[%s3326 + $0x228] sm:$0xf]
      %v3466 = vld [vmem:[%s3326 + $0x22c] sm:$0xf]
      %v3467 = vld [vmem:[%s3326 + $0x230] sm:$0xf]
      %v3468 = vld [vmem:[%s3326 + $0x234] sm:$0xf]
      %v3469 = vld [vmem:[%s3326 + $0x238] sm:$0xf]
      %v3470 = vld [vmem:[%s3326 + $0x23c] sm:$0xf]
      %v3471 = vld [vmem:[%s3326 + $0x240] sm:$0xf]
      %v3472 = vld [vmem:[%s3326 + $0x244] sm:$0xf]
      %v3473 = vld [vmem:[%s3326 + $0x248] sm:$0xf]
      %v3474 = vld [vmem:[%s3326 + $0x24c] sm:$0xf]
      %v3475 = vld [vmem:[%s3326 + $0x250] sm:$0xf]
      %v3476 = vld [vmem:[%s3326 + $0x254] sm:$0xf]
      %v3477 = vld [vmem:[%s3326 + $0x258] sm:$0xf]
      %v3478 = vld [vmem:[%s3326 + $0x25c] sm:$0xf]
      %v3479 = vld [vmem:[%s3326 + $0x260] sm:$0xf]
      %v3480 = vld [vmem:[%s3326 + $0x264] sm:$0xf]
      %v3481 = vld [vmem:[%s3326 + $0x268] sm:$0xf]
      %v3482 = vld [vmem:[%s3326 + $0x26c] sm:$0xf]
      %v3483 = vld [vmem:[%s3326 + $0x270] sm:$0xf]
      %v3484 = vld [vmem:[%s3326 + $0x274] sm:$0xf]
      %v3485 = vld [vmem:[%s3326 + $0x278] sm:$0xf]
      %v3486 = vld [vmem:[%s3326 + $0x27c] sm:$0xf]
      %v3487 = vld [vmem:[%s3326 + $0x280] sm:$0xf]
      %v3488 = vld [vmem:[%s3326 + $0x284] sm:$0xf]
      %v3489 = vld [vmem:[%s3326 + $0x288] sm:$0xf]
      %v3490 = vld [vmem:[%s3326 + $0x28c] sm:$0xf]
      %v3491 = vld [vmem:[%s3326 + $0x290] sm:$0xf]
      %v3492 = vld [vmem:[%s3326 + $0x294] sm:$0xf]
      %v3493 = vld [vmem:[%s3326 + $0x298] sm:$0xf]
      %v3494 = vld [vmem:[%s3326 + $0x29c] sm:$0xf]
      %v3495 = vld [vmem:[%s3326 + $0x2a0] sm:$0xf]
      %v3496 = vld [vmem:[%s3326 + $0x2a4] sm:$0xf]
      %v3497 = vld [vmem:[%s3326 + $0x2a8] sm:$0xf]
      %v3498 = vld [vmem:[%s3326 + $0x2ac] sm:$0xf]
      %v3499 = vld [vmem:[%s3326 + $0x2b0] sm:$0xf]
      %v3500 = vld [vmem:[%s3326 + $0x2b4] sm:$0xf]
      %v3501 = vld [vmem:[%s3326 + $0x2b8] sm:$0xf]
      %v3502 = vld [vmem:[%s3326 + $0x2bc] sm:$0xf]
      %v3503 = vld [vmem:[%s3326 + $0x2c0] sm:$0xf]
      %v3504 = vld [vmem:[%s3326 + $0x2c4] sm:$0xf]
      %v3505 = vld [vmem:[%s3326 + $0x2c8] sm:$0xf]
      %v3506 = vld [vmem:[%s3326 + $0x2cc] sm:$0xf]
      %v3507 = vld [vmem:[%s3326 + $0x2d0] sm:$0xf]
      %v3508 = vld [vmem:[%s3326 + $0x2d4] sm:$0xf]
      %v3509 = vld [vmem:[%s3326 + $0x2d8] sm:$0xf]
      %v3510 = vld [vmem:[%s3326 + $0x2dc] sm:$0xf]
      %v3511 = vld [vmem:[%s3326 + $0x2e0] sm:$0xf]
      %v3512 = vld [vmem:[%s3326 + $0x2e4] sm:$0xf]
      %v3513 = vld [vmem:[%s3326 + $0x2e8] sm:$0xf]
      %v3514 = vld [vmem:[%s3326 + $0x2ec] sm:$0xf]
      %v3515 = vld [vmem:[%s3326 + $0x2f0] sm:$0xf]
      %v3516 = vld [vmem:[%s3326 + $0x2f4] sm:$0xf]
      %v3517 = vld [vmem:[%s3326 + $0x2f8] sm:$0xf]
      %v3518 = vld [vmem:[%s3326 + $0x2fc] sm:$0xf]
      %v3519 = vld [vmem:[%s3326 + $0x300] sm:$0xf]
      %v3520 = vld [vmem:[%s3326 + $0x304] sm:$0xf]
      %v3521 = vld [vmem:[%s3326 + $0x308] sm:$0xf]
      %v3522 = vld [vmem:[%s3326 + $0x30c] sm:$0xf]
      %v3523 = vld [vmem:[%s3326 + $0x310] sm:$0xf]
      %v3524 = vld [vmem:[%s3326 + $0x314] sm:$0xf]
      %v3525 = vld [vmem:[%s3326 + $0x318] sm:$0xf]
      %v3526 = vld [vmem:[%s3326 + $0x31c] sm:$0xf]
      %v3527 = vld [vmem:[%s3326 + $0x320] sm:$0xf]
      %v3528 = vld [vmem:[%s3326 + $0x324] sm:$0xf]
      %v3529 = vld [vmem:[%s3326 + $0x328] sm:$0xf]
      %v3530 = vld [vmem:[%s3326 + $0x32c] sm:$0xf]
      %v3531 = vld [vmem:[%s3326 + $0x330] sm:$0xf]
      %v3532 = vld [vmem:[%s3326 + $0x334] sm:$0xf]
      %v3533 = vld [vmem:[%s3326 + $0x338] sm:$0xf]
      %v3534 = vld [vmem:[%s3326 + $0x33c] sm:$0xf]
      %v3535 = vld [vmem:[%s3326 + $0x340] sm:$0xf]
      %v3536 = vld [vmem:[%s3326 + $0x344] sm:$0xf]
      %v3537 = vld [vmem:[%s3326 + $0x348] sm:$0xf]
      %v3538 = vld [vmem:[%s3326 + $0x34c] sm:$0xf]
      %v3539 = vld [vmem:[%s3326 + $0x350] sm:$0xf]
      %v3540 = vld [vmem:[%s3326 + $0x354] sm:$0xf]
      %v3541 = vld [vmem:[%s3326 + $0x358] sm:$0xf]
      %v3542 = vld [vmem:[%s3326 + $0x35c] sm:$0xf]
      %v3543 = vld [vmem:[%s3326 + $0x360] sm:$0xf]
      %v3544 = vld [vmem:[%s3326 + $0x364] sm:$0xf]
      %v3545 = vld [vmem:[%s3326 + $0x368] sm:$0xf]
      %v3546 = vld [vmem:[%s3326 + $0x36c] sm:$0xf]
      %v3547 = vld [vmem:[%s3326 + $0x370] sm:$0xf]
      %v3548 = vld [vmem:[%s3326 + $0x374] sm:$0xf]
      %v3549 = vld [vmem:[%s3326 + $0x378] sm:$0xf]
      %v3550 = vld [vmem:[%s3326 + $0x37c] sm:$0xf]
      %v3551 = vld [vmem:[%s3326 + $0x380] sm:$0xf]
      %v3552 = vld [vmem:[%s3326 + $0x384] sm:$0xf]
      %v3553 = vld [vmem:[%s3326 + $0x388] sm:$0xf]
      %v3554 = vld [vmem:[%s3326 + $0x38c] sm:$0xf]
      %v3555 = vld [vmem:[%s3326 + $0x390] sm:$0xf]
      %v3556 = vld [vmem:[%s3326 + $0x394] sm:$0xf]
      %v3557 = vld [vmem:[%s3326 + $0x398] sm:$0xf]
      %v3558 = vld [vmem:[%s3326 + $0x39c] sm:$0xf]
      %v3559 = vld [vmem:[%s3326 + $0x3a0] sm:$0xf]
      %v3560 = vld [vmem:[%s3326 + $0x3a4] sm:$0xf]
      %v3561 = vld [vmem:[%s3326 + $0x3a8] sm:$0xf]
      %v3562 = vld [vmem:[%s3326 + $0x3ac] sm:$0xf]
      %v3563 = vld [vmem:[%s3326 + $0x3b0] sm:$0xf]
      %v3564 = vld [vmem:[%s3326 + $0x3b4] sm:$0xf]
      %v3565 = vld [vmem:[%s3326 + $0x3b8] sm:$0xf]
      %v3566 = vld [vmem:[%s3326 + $0x3bc] sm:$0xf]
      %v3567 = vld [vmem:[%s3326 + $0x3c0] sm:$0xf]
      %v3568 = vld [vmem:[%s3326 + $0x3c4] sm:$0xf]
      %v3569 = vld [vmem:[%s3326 + $0x3c8] sm:$0xf]
      %v3570 = vld [vmem:[%s3326 + $0x3cc] sm:$0xf]
      %v3571 = vld [vmem:[%s3326 + $0x3d0] sm:$0xf]
      %v3572 = vld [vmem:[%s3326 + $0x3d4] sm:$0xf]
      %v3573 = vld [vmem:[%s3326 + $0x3d8] sm:$0xf]
      %v3574 = vld [vmem:[%s3326 + $0x3dc] sm:$0xf]
      %v3575 = vld [vmem:[%s3326 + $0x3e0] sm:$0xf]
      %v3576 = vld [vmem:[%s3326 + $0x3e4] sm:$0xf]
      %v3577 = vld [vmem:[%s3326 + $0x3e8] sm:$0xf]
      %v3578 = vld [vmem:[%s3326 + $0x3ec] sm:$0xf]
      %v3579 = vld [vmem:[%s3326 + $0x3f0] sm:$0xf]
      %v3580 = vld [vmem:[%s3326 + $0x3f4] sm:$0xf]
      %v3581 = vld [vmem:[%s3326 + $0x3f8] sm:$0xf]
      %v3582 = vld [vmem:[%s3326 + $0x3fc] sm:$0xf]
      %v3583 = vpack.c.bf16 %v3289, %v3289
      %v3586 = vperm.slane %v3324, 0
      %v3587 = vperm.slane %v3324, 1
      %v3588 = vperm.slane %v3324, 2
      %v3589 = vperm.slane %v3324, 3
      %v3590 = vperm.slane %v3324, 4
      %v3591 = vperm.slane %v3324, 5
      %v3592 = vperm.slane %v3324, 6
      %v3593 = vperm.slane %v3324, 7
      %v3594 = vperm.slane %v3325, 0
      %v3595 = vperm.slane %v3325, 1
      %v3596 = vperm.slane %v3325, 2
      %v3597 = vperm.slane %v3325, 3
      %v3598 = vperm.slane %v3325, 4
      %v3599 = vperm.slane %v3325, 5
      %v3600 = vperm.slane %v3325, 6
      %v3601 = vperm.slane %v3325, 7
      %v3650 = vunpack.c.l.b16 %v3291
      %v3651 = vunpack.c.h.b16 %v3291
      %v3652 = vunpack.c.l.b16 %v3292
      %v3653 = vunpack.c.h.b16 %v3292
      %v3654 = vunpack.c.l.b16 %v3293
      %v3655 = vunpack.c.h.b16 %v3293
      %v3656 = vunpack.c.l.b16 %v3294
      %v3657 = vunpack.c.h.b16 %v3294
      %v3658 = vunpack.c.l.b16 %v3295
      %v3659 = vunpack.c.h.b16 %v3295
      %v3660 = vunpack.c.l.b16 %v3296
      %v3661 = vunpack.c.h.b16 %v3296
      %v3662 = vunpack.c.l.b16 %v3297
      %v3663 = vunpack.c.h.b16 %v3297
      %v3664 = vunpack.c.l.b16 %v3298
      %v3665 = vunpack.c.h.b16 %v3298
      %v3666 = vunpack.c.l.b16 %v3299
      %v3667 = vunpack.c.h.b16 %v3299
      %v3668 = vunpack.c.l.b16 %v3300
      %v3669 = vunpack.c.h.b16 %v3300
      %v3670 = vunpack.c.l.b16 %v3301
      %v3671 = vunpack.c.h.b16 %v3301
      %v3672 = vunpack.c.l.b16 %v3302
      %v3673 = vunpack.c.h.b16 %v3302
      %v3674 = vunpack.c.l.b16 %v3303
      %v3675 = vunpack.c.h.b16 %v3303
      %v3676 = vunpack.c.l.b16 %v3304
      %v3677 = vunpack.c.h.b16 %v3304
      %v3678 = vunpack.c.l.b16 %v3305
      %v3679 = vunpack.c.h.b16 %v3305
      %v3680 = vunpack.c.l.b16 %v3306
      %v3681 = vunpack.c.h.b16 %v3306
      %v3682 = vunpack.c.l.b16 %v3307
      %v3683 = vunpack.c.h.b16 %v3307
      %v3684 = vunpack.c.l.b16 %v3308
      %v3685 = vunpack.c.h.b16 %v3308
      %v3686 = vunpack.c.l.b16 %v3309
      %v3687 = vunpack.c.h.b16 %v3309
      %v3688 = vunpack.c.l.b16 %v3310
      %v3689 = vunpack.c.h.b16 %v3310
      %v3690 = vunpack.c.l.b16 %v3311
      %v3691 = vunpack.c.h.b16 %v3311
      %v3692 = vunpack.c.l.b16 %v3312
      %v3693 = vunpack.c.h.b16 %v3312
      %v3694 = vunpack.c.l.b16 %v3313
      %v3695 = vunpack.c.h.b16 %v3313
      %v3696 = vunpack.c.l.b16 %v3314
      %v3697 = vunpack.c.h.b16 %v3314
      %v3698 = vunpack.c.l.b16 %v3315
      %v3699 = vunpack.c.h.b16 %v3315
      %v3700 = vunpack.c.l.b16 %v3316
      %v3701 = vunpack.c.h.b16 %v3316
      %v3702 = vunpack.c.l.b16 %v3317
      %v3703 = vunpack.c.h.b16 %v3317
      %v3704 = vunpack.c.l.b16 %v3318
      %v3705 = vunpack.c.h.b16 %v3318
      %v3706 = vunpack.c.l.b16 %v3319
      %v3707 = vunpack.c.h.b16 %v3319
      %v3708 = vunpack.c.l.b16 %v3320
      %v3709 = vunpack.c.h.b16 %v3320
      %v3710 = vunpack.c.l.b16 %v3321
      %v3711 = vunpack.c.h.b16 %v3321
      %v3712 = vunpack.c.l.b16 %v3322
      %v3713 = vunpack.c.h.b16 %v3322
      %v3714 = vpack.c.b16 %v3666, %v3650
      %v3715 = vpack.c.b16 %v3667, %v3651
      %v3716 = vpack.c.b16 %v3668, %v3652
      %v3717 = vpack.c.b16 %v3669, %v3653
      %v3718 = vpack.c.b16 %v3670, %v3654
      %v3719 = vpack.c.b16 %v3671, %v3655
      %v3720 = vpack.c.b16 %v3672, %v3656
      %v3721 = vpack.c.b16 %v3673, %v3657
      %v3722 = vpack.c.b16 %v3674, %v3658
      %v3723 = vpack.c.b16 %v3675, %v3659
      %v3724 = vpack.c.b16 %v3676, %v3660
      %v3725 = vpack.c.b16 %v3677, %v3661
      %v3726 = vpack.c.b16 %v3678, %v3662
      %v3727 = vpack.c.b16 %v3679, %v3663
      %v3728 = vpack.c.b16 %v3680, %v3664
      %v3729 = vpack.c.b16 %v3681, %v3665
      %v3730 = vpack.c.b16 %v3698, %v3682
      %v3731 = vpack.c.b16 %v3699, %v3683
      %v3732 = vpack.c.b16 %v3700, %v3684
      %v3733 = vpack.c.b16 %v3701, %v3685
      %v3734 = vpack.c.b16 %v3702, %v3686
      %v3735 = vpack.c.b16 %v3703, %v3687
      %v3736 = vpack.c.b16 %v3704, %v3688
      %v3737 = vpack.c.b16 %v3705, %v3689
      %v3738 = vpack.c.b16 %v3706, %v3690
      %v3739 = vpack.c.b16 %v3707, %v3691
      %v3740 = vpack.c.b16 %v3708, %v3692
      %v3741 = vpack.c.b16 %v3709, %v3693
      %v3742 = vpack.c.b16 %v3710, %v3694
      %v3743 = vpack.c.b16 %v3711, %v3695
      %v3744 = vpack.c.b16 %v3712, %v3696
      %v3745 = vpack.c.b16 %v3713, %v3697
      %v3779 = vsel %vm722, %v3583, 0
      %3781 = vmatpush.bf16.msra.mxu0 0
      %3782 = vmatpush.bf16.msra.mxu0 0
      %3783 = vmatpush.bf16.msra.mxu0 0
      %3784 = vmatpush.bf16.msra.mxu0 0
      %3785 = vmatpush.bf16.msra.mxu0 0
      %3786 = vmatpush.bf16.msra.mxu0 0
      %3787 = vmatpush.bf16.msra.mxu0 %v3730
      %3788 = vmatpush.bf16.msra.mxu0 %v3714
      %3789 = vmatmul.bf16.gmra.mxu0 %v3779
      %v3790 = vpop.f32.mrf.mxu0
      %v3791 = vadd.f32 %v3586, %v3790
      %v3792 = vpop.f32.mrf.mxu0
      %3793 = vdwg.mxu0
      %3794 = vmatpush.bf16.msra.mxu0 0
      %3795 = vmatpush.bf16.msra.mxu0 0
      %3796 = vmatpush.bf16.msra.mxu0 0
      %3797 = vmatpush.bf16.msra.mxu0 0
      %3798 = vmatpush.bf16.msra.mxu0 0
      %3799 = vmatpush.bf16.msra.mxu0 0
      %3800 = vmatpush.bf16.msra.mxu0 %v3731
      %3801 = vmatpush.bf16.msra.mxu0 %v3715
      %3802 = vmatmul.bf16.gmra.mxu0 %v3779
      %v3803 = vpop.f32.mrf.mxu0
      %v3804 = vadd.f32 %v3587, %v3803
      %v3805 = vpop.f32.mrf.mxu0
      %3806 = vdwg.mxu0
      %3807 = vmatpush.bf16.msra.mxu0 0
      %3808 = vmatpush.bf16.msra.mxu0 0
      %3809 = vmatpush.bf16.msra.mxu0 0
      %3810 = vmatpush.bf16.msra.mxu0 0
      %3811 = vmatpush.bf16.msra.mxu0 0
      %3812 = vmatpush.bf16.msra.mxu0 0
      %3813 = vmatpush.bf16.msra.mxu0 %v3732
      %3814 = vmatpush.bf16.msra.mxu0 %v3716
      %3815 = vmatmul.bf16.gmra.mxu0 %v3779
      %v3816 = vpop.f32.mrf.mxu0
      %v3817 = vadd.f32 %v3588, %v3816
      %v3818 = vpop.f32.mrf.mxu0
      %3819 = vdwg.mxu0
      %3820 = vmatpush.bf16.msra.mxu0 0
      %3821 = vmatpush.bf16.msra.mxu0 0
      %3822 = vmatpush.bf16.msra.mxu0 0
      %3823 = vmatpush.bf16.msra.mxu0 0
      %3824 = vmatpush.bf16.msra.mxu0 0
      %3825 = vmatpush.bf16.msra.mxu0 0
      %3826 = vmatpush.bf16.msra.mxu0 %v3733
      %3827 = vmatpush.bf16.msra.mxu0 %v3717
      %3828 = vmatmul.bf16.gmra.mxu0 %v3779
      %v3829 = vpop.f32.mrf.mxu0
      %v3830 = vadd.f32 %v3589, %v3829
      %v3831 = vpop.f32.mrf.mxu0
      %3832 = vdwg.mxu0
      %3833 = vmatpush.bf16.msra.mxu0 0
      %3834 = vmatpush.bf16.msra.mxu0 0
      %3835 = vmatpush.bf16.msra.mxu0 0
      %3836 = vmatpush.bf16.msra.mxu0 0
      %3837 = vmatpush.bf16.msra.mxu0 0
      %3838 = vmatpush.bf16.msra.mxu0 0
      %3839 = vmatpush.bf16.msra.mxu0 %v3734
      %3840 = vmatpush.bf16.msra.mxu0 %v3718
      %3841 = vmatmul.bf16.gmra.mxu0 %v3779
      %v3842 = vpop.f32.mrf.mxu0
      %v3843 = vadd.f32 %v3590, %v3842
      %v3844 = vpop.f32.mrf.mxu0
      %3845 = vdwg.mxu0
      %3846 = vmatpush.bf16.msra.mxu0 0
      %3847 = vmatpush.bf16.msra.mxu0 0
      %3848 = vmatpush.bf16.msra.mxu0 0
      %3849 = vmatpush.bf16.msra.mxu0 0
      %3850 = vmatpush.bf16.msra.mxu0 0
      %3851 = vmatpush.bf16.msra.mxu0 0
      %3852 = vmatpush.bf16.msra.mxu0 %v3735
      %3853 = vmatpush.bf16.msra.mxu0 %v3719
      %3854 = vmatmul.bf16.gmra.mxu0 %v3779
      %v3855 = vpop.f32.mrf.mxu0
      %v3856 = vadd.f32 %v3591, %v3855
      %v3857 = vpop.f32.mrf.mxu0
      %3858 = vdwg.mxu0
      %3859 = vmatpush.bf16.msra.mxu0 0
      %3860 = vmatpush.bf16.msra.mxu0 0
      %3861 = vmatpush.bf16.msra.mxu0 0
      %3862 = vmatpush.bf16.msra.mxu0 0
      %3863 = vmatpush.bf16.msra.mxu0 0
      %3864 = vmatpush.bf16.msra.mxu0 0
      %3865 = vmatpush.bf16.msra.mxu0 %v3736
      %3866 = vmatpush.bf16.msra.mxu0 %v3720
      %3867 = vmatmul.bf16.gmra.mxu0 %v3779
      %v3868 = vpop.f32.mrf.mxu0
      %v3869 = vadd.f32 %v3592, %v3868
      %v3870 = vpop.f32.mrf.mxu0
      %3871 = vdwg.mxu0
      %3872 = vmatpush.bf16.msra.mxu0 0
      %3873 = vmatpush.bf16.msra.mxu0 0
      %3874 = vmatpush.bf16.msra.mxu0 0
      %3875 = vmatpush.bf16.msra.mxu0 0
      %3876 = vmatpush.bf16.msra.mxu0 0
      %3877 = vmatpush.bf16.msra.mxu0 0
      %3878 = vmatpush.bf16.msra.mxu0 %v3737
      %3879 = vmatpush.bf16.msra.mxu0 %v3721
      %3880 = vmatmul.bf16.gmra.mxu0 %v3779
      %v3881 = vpop.f32.mrf.mxu0
      %v3882 = vadd.f32 %v3593, %v3881
      %v3883 = vpop.f32.mrf.mxu0
      %3884 = vdwg.mxu0
      %3885 = vmatpush.bf16.msra.mxu0 0
      %3886 = vmatpush.bf16.msra.mxu0 0
      %3887 = vmatpush.bf16.msra.mxu0 0
      %3888 = vmatpush.bf16.msra.mxu0 0
      %3889 = vmatpush.bf16.msra.mxu0 0
      %3890 = vmatpush.bf16.msra.mxu0 0
      %3891 = vmatpush.bf16.msra.mxu0 %v3738
      %3892 = vmatpush.bf16.msra.mxu0 %v3722
      %3893 = vmatmul.bf16.gmra.mxu0 %v3779
      %v3894 = vpop.f32.mrf.mxu0
      %v3895 = vadd.f32 %v3594, %v3894
      %v3896 = vpop.f32.mrf.mxu0
      %3897 = vdwg.mxu0
      %3898 = vmatpush.bf16.msra.mxu0 0
      %3899 = vmatpush.bf16.msra.mxu0 0
      %3900 = vmatpush.bf16.msra.mxu0 0
      %3901 = vmatpush.bf16.msra.mxu0 0
      %3902 = vmatpush.bf16.msra.mxu0 0
      %3903 = vmatpush.bf16.msra.mxu0 0
      %3904 = vmatpush.bf16.msra.mxu0 %v3739
      %3905 = vmatpush.bf16.msra.mxu0 %v3723
      %3906 = vmatmul.bf16.gmra.mxu0 %v3779
      %v3907 = vpop.f32.mrf.mxu0
      %v3908 = vadd.f32 %v3595, %v3907
      %v3909 = vpop.f32.mrf.mxu0
      %3910 = vdwg.mxu0
      %3911 = vmatpush.bf16.msra.mxu0 0
      %3912 = vmatpush.bf16.msra.mxu0 0
      %3913 = vmatpush.bf16.msra.mxu0 0
      %3914 = vmatpush.bf16.msra.mxu0 0
      %3915 = vmatpush.bf16.msra.mxu0 0
      %3916 = vmatpush.bf16.msra.mxu0 0
      %3917 = vmatpush.bf16.msra.mxu0 %v3740
      %3918 = vmatpush.bf16.msra.mxu0 %v3724
      %3919 = vmatmul.bf16.gmra.mxu0 %v3779
      %v3920 = vpop.f32.mrf.mxu0
      %v3921 = vadd.f32 %v3596, %v3920
      %v3922 = vpop.f32.mrf.mxu0
      %3923 = vdwg.mxu0
      %3924 = vmatpush.bf16.msra.mxu0 0
      %3925 = vmatpush.bf16.msra.mxu0 0
      %3926 = vmatpush.bf16.msra.mxu0 0
      %3927 = vmatpush.bf16.msra.mxu0 0
      %3928 = vmatpush.bf16.msra.mxu0 0
      %3929 = vmatpush.bf16.msra.mxu0 0
      %3930 = vmatpush.bf16.msra.mxu0 %v3741
      %3931 = vmatpush.bf16.msra.mxu0 %v3725
      %3932 = vmatmul.bf16.gmra.mxu0 %v3779
      %v3933 = vpop.f32.mrf.mxu0
      %v3934 = vadd.f32 %v3597, %v3933
      %v3935 = vpop.f32.mrf.mxu0
      %3936 = vdwg.mxu0
      %3937 = vmatpush.bf16.msra.mxu0 0
      %3938 = vmatpush.bf16.msra.mxu0 0
      %3939 = vmatpush.bf16.msra.mxu0 0
      %3940 = vmatpush.bf16.msra.mxu0 0
      %3941 = vmatpush.bf16.msra.mxu0 0
      %3942 = vmatpush.bf16.msra.mxu0 0
      %3943 = vmatpush.bf16.msra.mxu0 %v3742
      %3944 = vmatpush.bf16.msra.mxu0 %v3726
      %3945 = vmatmul.bf16.gmra.mxu0 %v3779
      %v3946 = vpop.f32.mrf.mxu0
      %v3947 = vadd.f32 %v3598, %v3946
      %v3948 = vpop.f32.mrf.mxu0
      %3949 = vdwg.mxu0
      %3950 = vmatpush.bf16.msra.mxu0 0
      %3951 = vmatpush.bf16.msra.mxu0 0
      %3952 = vmatpush.bf16.msra.mxu0 0
      %3953 = vmatpush.bf16.msra.mxu0 0
      %3954 = vmatpush.bf16.msra.mxu0 0
      %3955 = vmatpush.bf16.msra.mxu0 0
      %3956 = vmatpush.bf16.msra.mxu0 %v3743
      %3957 = vmatpush.bf16.msra.mxu0 %v3727
      %3958 = vmatmul.bf16.gmra.mxu0 %v3779
      %v3959 = vpop.f32.mrf.mxu0
      %v3960 = vadd.f32 %v3599, %v3959
      %v3961 = vpop.f32.mrf.mxu0
      %3962 = vdwg.mxu0
      %3963 = vmatpush.bf16.msra.mxu0 0
      %3964 = vmatpush.bf16.msra.mxu0 0
      %3965 = vmatpush.bf16.msra.mxu0 0
      %3966 = vmatpush.bf16.msra.mxu0 0
      %3967 = vmatpush.bf16.msra.mxu0 0
      %3968 = vmatpush.bf16.msra.mxu0 0
      %3969 = vmatpush.bf16.msra.mxu0 %v3744
      %3970 = vmatpush.bf16.msra.mxu0 %v3728
      %3971 = vmatmul.bf16.gmra.mxu0 %v3779
      %v3972 = vpop.f32.mrf.mxu0
      %v3973 = vadd.f32 %v3600, %v3972
      %v3974 = vpop.f32.mrf.mxu0
      %3975 = vdwg.mxu0
      %3976 = vmatpush.bf16.msra.mxu0 0
      %3977 = vmatpush.bf16.msra.mxu0 0
      %3978 = vmatpush.bf16.msra.mxu0 0
      %3979 = vmatpush.bf16.msra.mxu0 0
      %3980 = vmatpush.bf16.msra.mxu0 0
      %3981 = vmatpush.bf16.msra.mxu0 0
      %3982 = vmatpush.bf16.msra.mxu0 %v3745
      %3983 = vmatpush.bf16.msra.mxu0 %v3729
      %3984 = vmatmul.bf16.gmra.mxu0 %v3779
      %v3985 = vpop.f32.mrf.mxu0
      %v3986 = vadd.f32 %v3601, %v3985
      %v3987 = vpop.f32.mrf.mxu0
      %3988 = vdwg.mxu0
      %v3989 = vmax.f32 %v3791, 0.0
      %v3990 = vmax.f32 %v3804, 0.0
      %v3991 = vmax.f32 %v3817, 0.0
      %v3992 = vmax.f32 %v3830, 0.0
      %v3993 = vmax.f32 %v3843, 0.0
      %v3994 = vmax.f32 %v3856, 0.0
      %v3995 = vmax.f32 %v3869, 0.0
      %v3996 = vmax.f32 %v3882, 0.0
      %v3997 = vmax.f32 %v3895, 0.0
      %v3998 = vmax.f32 %v3908, 0.0
      %v3999 = vmax.f32 %v3921, 0.0
      %v4000 = vmax.f32 %v3934, 0.0
      %v4001 = vmax.f32 %v3947, 0.0
      %v4002 = vmax.f32 %v3960, 0.0
      %v4003 = vmax.f32 %v3973, 0.0
      %v4004 = vmax.f32 %v3986, 0.0
      %v4005 = vpack.c.bf16 %v3989, %v3989
      %v4006 = vpack.c.bf16 %v3990, %v3990
      %v4007 = vpack.c.bf16 %v3991, %v3991
      %v4008 = vpack.c.bf16 %v3992, %v3992
      %v4009 = vpack.c.bf16 %v3993, %v3993
      %v4010 = vpack.c.bf16 %v3994, %v3994
      %v4011 = vpack.c.bf16 %v3995, %v3995
      %v4012 = vpack.c.bf16 %v3996, %v3996
      %v4013 = vpack.c.bf16 %v3997, %v3997
      %v4014 = vpack.c.bf16 %v3998, %v3998
      %v4015 = vpack.c.bf16 %v3999, %v3999
      %v4016 = vpack.c.bf16 %v4000, %v4000
      %v4017 = vpack.c.bf16 %v4001, %v4001
      %v4018 = vpack.c.bf16 %v4002, %v4002
      %v4019 = vpack.c.bf16 %v4003, %v4003
      %v4020 = vpack.c.bf16 %v4004, %v4004
      %v4021 = vperm.slane %v2869, 3
      %v4278 = vunpack.c.l.b16 %v3327
      %v4279 = vunpack.c.l.b16 %v3328
      %v4280 = vunpack.c.l.b16 %v3329
      %v4281 = vunpack.c.l.b16 %v3330
      %v4282 = vunpack.c.l.b16 %v3331
      %v4283 = vunpack.c.l.b16 %v3332
      %v4284 = vunpack.c.l.b16 %v3333
      %v4285 = vunpack.c.l.b16 %v3334
      %v4286 = vunpack.c.l.b16 %v3335
      %v4287 = vunpack.c.l.b16 %v3336
      %v4288 = vunpack.c.l.b16 %v3337
      %v4289 = vunpack.c.l.b16 %v3338
      %v4290 = vunpack.c.l.b16 %v3339
      %v4291 = vunpack.c.l.b16 %v3340
      %v4292 = vunpack.c.l.b16 %v3341
      %v4293 = vunpack.c.l.b16 %v3342
      %v4294 = vunpack.c.l.b16 %v3343
      %v4295 = vunpack.c.l.b16 %v3344
      %v4296 = vunpack.c.l.b16 %v3345
      %v4297 = vunpack.c.l.b16 %v3346
      %v4298 = vunpack.c.l.b16 %v3347
      %v4299 = vunpack.c.l.b16 %v3348
      %v4300 = vunpack.c.l.b16 %v3349
      %v4301 = vunpack.c.l.b16 %v3350
      %v4302 = vunpack.c.l.b16 %v3351
      %v4303 = vunpack.c.l.b16 %v3352
      %v4304 = vunpack.c.l.b16 %v3353
      %v4305 = vunpack.c.l.b16 %v3354
      %v4306 = vunpack.c.l.b16 %v3355
      %v4307 = vunpack.c.l.b16 %v3356
      %v4308 = vunpack.c.l.b16 %v3357
      %v4309 = vunpack.c.l.b16 %v3358
      %v4310 = vunpack.c.l.b16 %v3359
      %v4311 = vunpack.c.l.b16 %v3360
      %v4312 = vunpack.c.l.b16 %v3361
      %v4313 = vunpack.c.l.b16 %v3362
      %v4314 = vunpack.c.l.b16 %v3363
      %v4315 = vunpack.c.l.b16 %v3364
      %v4316 = vunpack.c.l.b16 %v3365
      %v4317 = vunpack.c.l.b16 %v3366
      %v4318 = vunpack.c.l.b16 %v3367
      %v4319 = vunpack.c.l.b16 %v3368
      %v4320 = vunpack.c.l.b16 %v3369
      %v4321 = vunpack.c.l.b16 %v3370
      %v4322 = vunpack.c.l.b16 %v3371
      %v4323 = vunpack.c.l.b16 %v3372
      %v4324 = vunpack.c.l.b16 %v3373
      %v4325 = vunpack.c.l.b16 %v3374
      %v4326 = vunpack.c.l.b16 %v3375
      %v4327 = vunpack.c.l.b16 %v3376
      %v4328 = vunpack.c.l.b16 %v3377
      %v4329 = vunpack.c.l.b16 %v3378
      %v4330 = vunpack.c.l.b16 %v3379
      %v4331 = vunpack.c.l.b16 %v3380
      %v4332 = vunpack.c.l.b16 %v3381
      %v4333 = vunpack.c.l.b16 %v3382
      %v4334 = vunpack.c.l.b16 %v3383
      %v4335 = vunpack.c.l.b16 %v3384
      %v4336 = vunpack.c.l.b16 %v3385
      %v4337 = vunpack.c.l.b16 %v3386
      %v4338 = vunpack.c.l.b16 %v3387
      %v4339 = vunpack.c.l.b16 %v3388
      %v4340 = vunpack.c.l.b16 %v3389
      %v4341 = vunpack.c.l.b16 %v3390
      %v4342 = vunpack.c.l.b16 %v3391
      %v4343 = vunpack.c.l.b16 %v3392
      %v4344 = vunpack.c.l.b16 %v3393
      %v4345 = vunpack.c.l.b16 %v3394
      %v4346 = vunpack.c.l.b16 %v3395
      %v4347 = vunpack.c.l.b16 %v3396
      %v4348 = vunpack.c.l.b16 %v3397
      %v4349 = vunpack.c.l.b16 %v3398
      %v4350 = vunpack.c.l.b16 %v3399
      %v4351 = vunpack.c.l.b16 %v3400
      %v4352 = vunpack.c.l.b16 %v3401
      %v4353 = vunpack.c.l.b16 %v3402
      %v4354 = vunpack.c.l.b16 %v3403
      %v4355 = vunpack.c.l.b16 %v3404
      %v4356 = vunpack.c.l.b16 %v3405
      %v4357 = vunpack.c.l.b16 %v3406
      %v4358 = vunpack.c.l.b16 %v3407
      %v4359 = vunpack.c.l.b16 %v3408
      %v4360 = vunpack.c.l.b16 %v3409
      %v4361 = vunpack.c.l.b16 %v3410
      %v4362 = vunpack.c.l.b16 %v3411
      %v4363 = vunpack.c.l.b16 %v3412
      %v4364 = vunpack.c.l.b16 %v3413
      %v4365 = vunpack.c.l.b16 %v3414
      %v4366 = vunpack.c.l.b16 %v3415
      %v4367 = vunpack.c.l.b16 %v3416
      %v4368 = vunpack.c.l.b16 %v3417
      %v4369 = vunpack.c.l.b16 %v3418
      %v4370 = vunpack.c.l.b16 %v3419
      %v4371 = vunpack.c.l.b16 %v3420
      %v4372 = vunpack.c.l.b16 %v3421
      %v4373 = vunpack.c.l.b16 %v3422
      %v4374 = vunpack.c.l.b16 %v3423
      %v4375 = vunpack.c.l.b16 %v3424
      %v4376 = vunpack.c.l.b16 %v3425
      %v4377 = vunpack.c.l.b16 %v3426
      %v4378 = vunpack.c.l.b16 %v3427
      %v4379 = vunpack.c.l.b16 %v3428
      %v4380 = vunpack.c.l.b16 %v3429
      %v4381 = vunpack.c.l.b16 %v3430
      %v4382 = vunpack.c.l.b16 %v3431
      %v4383 = vunpack.c.l.b16 %v3432
      %v4384 = vunpack.c.l.b16 %v3433
      %v4385 = vunpack.c.l.b16 %v3434
      %v4386 = vunpack.c.l.b16 %v3435
      %v4387 = vunpack.c.l.b16 %v3436
      %v4388 = vunpack.c.l.b16 %v3437
      %v4389 = vunpack.c.l.b16 %v3438
      %v4390 = vunpack.c.l.b16 %v3439
      %v4391 = vunpack.c.l.b16 %v3440
      %v4392 = vunpack.c.l.b16 %v3441
      %v4393 = vunpack.c.l.b16 %v3442
      %v4394 = vunpack.c.l.b16 %v3443
      %v4395 = vunpack.c.l.b16 %v3444
      %v4396 = vunpack.c.l.b16 %v3445
      %v4397 = vunpack.c.l.b16 %v3446
      %v4398 = vunpack.c.l.b16 %v3447
      %v4399 = vunpack.c.l.b16 %v3448
      %v4400 = vunpack.c.l.b16 %v3449
      %v4401 = vunpack.c.l.b16 %v3450
      %v4402 = vunpack.c.l.b16 %v3451
      %v4403 = vunpack.c.l.b16 %v3452
      %v4404 = vunpack.c.l.b16 %v3453
      %v4405 = vunpack.c.l.b16 %v3454
      %v4406 = vunpack.c.l.b16 %v3455
      %v4407 = vunpack.c.l.b16 %v3456
      %v4408 = vunpack.c.l.b16 %v3457
      %v4409 = vunpack.c.l.b16 %v3458
      %v4410 = vunpack.c.l.b16 %v3459
      %v4411 = vunpack.c.l.b16 %v3460
      %v4412 = vunpack.c.l.b16 %v3461
      %v4413 = vunpack.c.l.b16 %v3462
      %v4414 = vunpack.c.l.b16 %v3463
      %v4415 = vunpack.c.l.b16 %v3464
      %v4416 = vunpack.c.l.b16 %v3465
      %v4417 = vunpack.c.l.b16 %v3466
      %v4418 = vunpack.c.l.b16 %v3467
      %v4419 = vunpack.c.l.b16 %v3468
      %v4420 = vunpack.c.l.b16 %v3469
      %v4421 = vunpack.c.l.b16 %v3470
      %v4422 = vunpack.c.l.b16 %v3471
      %v4423 = vunpack.c.l.b16 %v3472
      %v4424 = vunpack.c.l.b16 %v3473
      %v4425 = vunpack.c.l.b16 %v3474
      %v4426 = vunpack.c.l.b16 %v3475
      %v4427 = vunpack.c.l.b16 %v3476
      %v4428 = vunpack.c.l.b16 %v3477
      %v4429 = vunpack.c.l.b16 %v3478
      %v4430 = vunpack.c.l.b16 %v3479
      %v4431 = vunpack.c.l.b16 %v3480
      %v4432 = vunpack.c.l.b16 %v3481
      %v4433 = vunpack.c.l.b16 %v3482
      %v4434 = vunpack.c.l.b16 %v3483
      %v4435 = vunpack.c.l.b16 %v3484
      %v4436 = vunpack.c.l.b16 %v3485
      %v4437 = vunpack.c.l.b16 %v3486
      %v4438 = vunpack.c.l.b16 %v3487
      %v4439 = vunpack.c.l.b16 %v3488
      %v4440 = vunpack.c.l.b16 %v3489
      %v4441 = vunpack.c.l.b16 %v3490
      %v4442 = vunpack.c.l.b16 %v3491
      %v4443 = vunpack.c.l.b16 %v3492
      %v4444 = vunpack.c.l.b16 %v3493
      %v4445 = vunpack.c.l.b16 %v3494
      %v4446 = vunpack.c.l.b16 %v3495
      %v4447 = vunpack.c.l.b16 %v3496
      %v4448 = vunpack.c.l.b16 %v3497
      %v4449 = vunpack.c.l.b16 %v3498
      %v4450 = vunpack.c.l.b16 %v3499
      %v4451 = vunpack.c.l.b16 %v3500
      %v4452 = vunpack.c.l.b16 %v3501
      %v4453 = vunpack.c.l.b16 %v3502
      %v4454 = vunpack.c.l.b16 %v3503
      %v4455 = vunpack.c.l.b16 %v3504
      %v4456 = vunpack.c.l.b16 %v3505
      %v4457 = vunpack.c.l.b16 %v3506
      %v4458 = vunpack.c.l.b16 %v3507
      %v4459 = vunpack.c.l.b16 %v3508
      %v4460 = vunpack.c.l.b16 %v3509
      %v4461 = vunpack.c.l.b16 %v3510
      %v4462 = vunpack.c.l.b16 %v3511
      %v4463 = vunpack.c.l.b16 %v3512
      %v4464 = vunpack.c.l.b16 %v3513
      %v4465 = vunpack.c.l.b16 %v3514
      %v4466 = vunpack.c.l.b16 %v3515
      %v4467 = vunpack.c.l.b16 %v3516
      %v4468 = vunpack.c.l.b16 %v3517
      %v4469 = vunpack.c.l.b16 %v3518
      %v4470 = vunpack.c.l.b16 %v3519
      %v4471 = vunpack.c.l.b16 %v3520
      %v4472 = vunpack.c.l.b16 %v3521
      %v4473 = vunpack.c.l.b16 %v3522
      %v4474 = vunpack.c.l.b16 %v3523
      %v4475 = vunpack.c.l.b16 %v3524
      %v4476 = vunpack.c.l.b16 %v3525
      %v4477 = vunpack.c.l.b16 %v3526
      %v4478 = vunpack.c.l.b16 %v3527
      %v4479 = vunpack.c.l.b16 %v3528
      %v4480 = vunpack.c.l.b16 %v3529
      %v4481 = vunpack.c.l.b16 %v3530
      %v4482 = vunpack.c.l.b16 %v3531
      %v4483 = vunpack.c.l.b16 %v3532
      %v4484 = vunpack.c.l.b16 %v3533
      %v4485 = vunpack.c.l.b16 %v3534
      %v4486 = vunpack.c.l.b16 %v3535
      %v4487 = vunpack.c.l.b16 %v3536
      %v4488 = vunpack.c.l.b16 %v3537
      %v4489 = vunpack.c.l.b16 %v3538
      %v4490 = vunpack.c.l.b16 %v3539
      %v4491 = vunpack.c.l.b16 %v3540
      %v4492 = vunpack.c.l.b16 %v3541
      %v4493 = vunpack.c.l.b16 %v3542
      %v4494 = vunpack.c.l.b16 %v3543
      %v4495 = vunpack.c.l.b16 %v3544
      %v4496 = vunpack.c.l.b16 %v3545
      %v4497 = vunpack.c.l.b16 %v3546
      %v4498 = vunpack.c.l.b16 %v3547
      %v4499 = vunpack.c.l.b16 %v3548
      %v4500 = vunpack.c.l.b16 %v3549
      %v4501 = vunpack.c.l.b16 %v3550
      %v4502 = vunpack.c.l.b16 %v3551
      %v4503 = vunpack.c.l.b16 %v3552
      %v4504 = vunpack.c.l.b16 %v3553
      %v4505 = vunpack.c.l.b16 %v3554
      %v4506 = vunpack.c.l.b16 %v3555
      %v4507 = vunpack.c.l.b16 %v3556
      %v4508 = vunpack.c.l.b16 %v3557
      %v4509 = vunpack.c.l.b16 %v3558
      %v4510 = vunpack.c.l.b16 %v3559
      %v4511 = vunpack.c.l.b16 %v3560
      %v4512 = vunpack.c.l.b16 %v3561
      %v4513 = vunpack.c.l.b16 %v3562
      %v4514 = vunpack.c.l.b16 %v3563
      %v4515 = vunpack.c.l.b16 %v3564
      %v4516 = vunpack.c.l.b16 %v3565
      %v4517 = vunpack.c.l.b16 %v3566
      %v4518 = vunpack.c.l.b16 %v3567
      %v4519 = vunpack.c.l.b16 %v3568
      %v4520 = vunpack.c.l.b16 %v3569
      %v4521 = vunpack.c.l.b16 %v3570
      %v4522 = vunpack.c.l.b16 %v3571
      %v4523 = vunpack.c.l.b16 %v3572
      %v4524 = vunpack.c.l.b16 %v3573
      %v4525 = vunpack.c.l.b16 %v3574
      %v4526 = vunpack.c.l.b16 %v3575
      %v4527 = vunpack.c.l.b16 %v3576
      %v4528 = vunpack.c.l.b16 %v3577
      %v4529 = vunpack.c.l.b16 %v3578
      %v4530 = vunpack.c.l.b16 %v3579
      %v4531 = vunpack.c.l.b16 %v3580
      %v4532 = vunpack.c.l.b16 %v3581
      %v4533 = vunpack.c.l.b16 %v3582
      %v4534 = vpack.c.b16 %v4279, %v4278
      %v4535 = vpack.c.b16 %v4281, %v4280
      %v4536 = vpack.c.b16 %v4283, %v4282
      %v4537 = vpack.c.b16 %v4285, %v4284
      %v4538 = vpack.c.b16 %v4287, %v4286
      %v4539 = vpack.c.b16 %v4289, %v4288
      %v4540 = vpack.c.b16 %v4291, %v4290
      %v4541 = vpack.c.b16 %v4293, %v4292
      %v4542 = vpack.c.b16 %v4295, %v4294
      %v4543 = vpack.c.b16 %v4297, %v4296
      %v4544 = vpack.c.b16 %v4299, %v4298
      %v4545 = vpack.c.b16 %v4301, %v4300
      %v4546 = vpack.c.b16 %v4303, %v4302
      %v4547 = vpack.c.b16 %v4305, %v4304
      %v4548 = vpack.c.b16 %v4307, %v4306
      %v4549 = vpack.c.b16 %v4309, %v4308
      %v4550 = vpack.c.b16 %v4311, %v4310
      %v4551 = vpack.c.b16 %v4313, %v4312
      %v4552 = vpack.c.b16 %v4315, %v4314
      %v4553 = vpack.c.b16 %v4317, %v4316
      %v4554 = vpack.c.b16 %v4319, %v4318
      %v4555 = vpack.c.b16 %v4321, %v4320
      %v4556 = vpack.c.b16 %v4323, %v4322
      %v4557 = vpack.c.b16 %v4325, %v4324
      %v4558 = vpack.c.b16 %v4327, %v4326
      %v4559 = vpack.c.b16 %v4329, %v4328
      %v4560 = vpack.c.b16 %v4331, %v4330
      %v4561 = vpack.c.b16 %v4333, %v4332
      %v4562 = vpack.c.b16 %v4335, %v4334
      %v4563 = vpack.c.b16 %v4337, %v4336
      %v4564 = vpack.c.b16 %v4339, %v4338
      %v4565 = vpack.c.b16 %v4341, %v4340
      %v4566 = vpack.c.b16 %v4343, %v4342
      %v4567 = vpack.c.b16 %v4345, %v4344
      %v4568 = vpack.c.b16 %v4347, %v4346
      %v4569 = vpack.c.b16 %v4349, %v4348
      %v4570 = vpack.c.b16 %v4351, %v4350
      %v4571 = vpack.c.b16 %v4353, %v4352
      %v4572 = vpack.c.b16 %v4355, %v4354
      %v4573 = vpack.c.b16 %v4357, %v4356
      %v4574 = vpack.c.b16 %v4359, %v4358
      %v4575 = vpack.c.b16 %v4361, %v4360
      %v4576 = vpack.c.b16 %v4363, %v4362
      %v4577 = vpack.c.b16 %v4365, %v4364
      %v4578 = vpack.c.b16 %v4367, %v4366
      %v4579 = vpack.c.b16 %v4369, %v4368
      %v4580 = vpack.c.b16 %v4371, %v4370
      %v4581 = vpack.c.b16 %v4373, %v4372
      %v4582 = vpack.c.b16 %v4375, %v4374
      %v4583 = vpack.c.b16 %v4377, %v4376
      %v4584 = vpack.c.b16 %v4379, %v4378
      %v4585 = vpack.c.b16 %v4381, %v4380
      %v4586 = vpack.c.b16 %v4383, %v4382
      %v4587 = vpack.c.b16 %v4385, %v4384
      %v4588 = vpack.c.b16 %v4387, %v4386
      %v4589 = vpack.c.b16 %v4389, %v4388
      %v4590 = vpack.c.b16 %v4391, %v4390
      %v4591 = vpack.c.b16 %v4393, %v4392
      %v4592 = vpack.c.b16 %v4395, %v4394
      %v4593 = vpack.c.b16 %v4397, %v4396
      %v4594 = vpack.c.b16 %v4399, %v4398
      %v4595 = vpack.c.b16 %v4401, %v4400
      %v4596 = vpack.c.b16 %v4403, %v4402
      %v4597 = vpack.c.b16 %v4405, %v4404
      %v4598 = vpack.c.b16 %v4407, %v4406
      %v4599 = vpack.c.b16 %v4409, %v4408
      %v4600 = vpack.c.b16 %v4411, %v4410
      %v4601 = vpack.c.b16 %v4413, %v4412
      %v4602 = vpack.c.b16 %v4415, %v4414
      %v4603 = vpack.c.b16 %v4417, %v4416
      %v4604 = vpack.c.b16 %v4419, %v4418
      %v4605 = vpack.c.b16 %v4421, %v4420
      %v4606 = vpack.c.b16 %v4423, %v4422
      %v4607 = vpack.c.b16 %v4425, %v4424
      %v4608 = vpack.c.b16 %v4427, %v4426
      %v4609 = vpack.c.b16 %v4429, %v4428
      %v4610 = vpack.c.b16 %v4431, %v4430
      %v4611 = vpack.c.b16 %v4433, %v4432
      %v4612 = vpack.c.b16 %v4435, %v4434
      %v4613 = vpack.c.b16 %v4437, %v4436
      %v4614 = vpack.c.b16 %v4439, %v4438
      %v4615 = vpack.c.b16 %v4441, %v4440
      %v4616 = vpack.c.b16 %v4443, %v4442
      %v4617 = vpack.c.b16 %v4445, %v4444
      %v4618 = vpack.c.b16 %v4447, %v4446
      %v4619 = vpack.c.b16 %v4449, %v4448
      %v4620 = vpack.c.b16 %v4451, %v4450
      %v4621 = vpack.c.b16 %v4453, %v4452
      %v4622 = vpack.c.b16 %v4455, %v4454
      %v4623 = vpack.c.b16 %v4457, %v4456
      %v4624 = vpack.c.b16 %v4459, %v4458
      %v4625 = vpack.c.b16 %v4461, %v4460
      %v4626 = vpack.c.b16 %v4463, %v4462
      %v4627 = vpack.c.b16 %v4465, %v4464
      %v4628 = vpack.c.b16 %v4467, %v4466
      %v4629 = vpack.c.b16 %v4469, %v4468
      %v4630 = vpack.c.b16 %v4471, %v4470
      %v4631 = vpack.c.b16 %v4473, %v4472
      %v4632 = vpack.c.b16 %v4475, %v4474
      %v4633 = vpack.c.b16 %v4477, %v4476
      %v4634 = vpack.c.b16 %v4479, %v4478
      %v4635 = vpack.c.b16 %v4481, %v4480
      %v4636 = vpack.c.b16 %v4483, %v4482
      %v4637 = vpack.c.b16 %v4485, %v4484
      %v4638 = vpack.c.b16 %v4487, %v4486
      %v4639 = vpack.c.b16 %v4489, %v4488
      %v4640 = vpack.c.b16 %v4491, %v4490
      %v4641 = vpack.c.b16 %v4493, %v4492
      %v4642 = vpack.c.b16 %v4495, %v4494
      %v4643 = vpack.c.b16 %v4497, %v4496
      %v4644 = vpack.c.b16 %v4499, %v4498
      %v4645 = vpack.c.b16 %v4501, %v4500
      %v4646 = vpack.c.b16 %v4503, %v4502
      %v4647 = vpack.c.b16 %v4505, %v4504
      %v4648 = vpack.c.b16 %v4507, %v4506
      %v4649 = vpack.c.b16 %v4509, %v4508
      %v4650 = vpack.c.b16 %v4511, %v4510
      %v4651 = vpack.c.b16 %v4513, %v4512
      %v4652 = vpack.c.b16 %v4515, %v4514
      %v4653 = vpack.c.b16 %v4517, %v4516
      %v4654 = vpack.c.b16 %v4519, %v4518
      %v4655 = vpack.c.b16 %v4521, %v4520
      %v4656 = vpack.c.b16 %v4523, %v4522
      %v4657 = vpack.c.b16 %v4525, %v4524
      %v4658 = vpack.c.b16 %v4527, %v4526
      %v4659 = vpack.c.b16 %v4529, %v4528
      %v4660 = vpack.c.b16 %v4531, %v4530
      %v4661 = vpack.c.b16 %v4533, %v4532
      %4790 = vmatpush.bf16.msra.mxu0 %v4541
      %4791 = vmatpush.bf16.msra.mxu0 %v4540
      %4792 = vmatpush.bf16.msra.mxu0 %v4539
      %4793 = vmatpush.bf16.msra.mxu0 %v4538
      %4794 = vmatpush.bf16.msra.mxu0 %v4537
      %4795 = vmatpush.bf16.msra.mxu0 %v4536
      %4796 = vmatpush.bf16.msra.mxu0 %v4535
      %4797 = vmatpush.bf16.msra.mxu0 %v4534
      %4798 = vmatmul.bf16.gmra.mxu0 %v4005
      %v4799 = vpop.f32.mrf.mxu0
      %v4800 = vadd.f32 %v4021, %v4799
      %v4801 = vpop.f32.mrf.mxu0
      %4802 = vdwg.mxu0
      %4803 = vmatpush.bf16.msra.mxu0 %v4549
      %4804 = vmatpush.bf16.msra.mxu0 %v4548
      %4805 = vmatpush.bf16.msra.mxu0 %v4547
      %4806 = vmatpush.bf16.msra.mxu0 %v4546
      %4807 = vmatpush.bf16.msra.mxu0 %v4545
      %4808 = vmatpush.bf16.msra.mxu0 %v4544
      %4809 = vmatpush.bf16.msra.mxu0 %v4543
      %4810 = vmatpush.bf16.msra.mxu0 %v4542
      %4811 = vmatmul.bf16.gmra.mxu0 %v4006
      %v4812 = vpop.f32.mrf.mxu0
      %v4813 = vadd.f32 %v4800, %v4812
      %v4814 = vpop.f32.mrf.mxu0
      %4815 = vdwg.mxu0
      %4816 = vmatpush.bf16.msra.mxu0 %v4557
      %4817 = vmatpush.bf16.msra.mxu0 %v4556
      %4818 = vmatpush.bf16.msra.mxu0 %v4555
      %4819 = vmatpush.bf16.msra.mxu0 %v4554
      %4820 = vmatpush.bf16.msra.mxu0 %v4553
      %4821 = vmatpush.bf16.msra.mxu0 %v4552
      %4822 = vmatpush.bf16.msra.mxu0 %v4551
      %4823 = vmatpush.bf16.msra.mxu0 %v4550
      %4824 = vmatmul.bf16.gmra.mxu0 %v4007
      %v4825 = vpop.f32.mrf.mxu0
      %v4826 = vadd.f32 %v4813, %v4825
      %v4827 = vpop.f32.mrf.mxu0
      %4828 = vdwg.mxu0
      %4829 = vmatpush.bf16.msra.mxu0 %v4565
      %4830 = vmatpush.bf16.msra.mxu0 %v4564
      %4831 = vmatpush.bf16.msra.mxu0 %v4563
      %4832 = vmatpush.bf16.msra.mxu0 %v4562
      %4833 = vmatpush.bf16.msra.mxu0 %v4561
      %4834 = vmatpush.bf16.msra.mxu0 %v4560
      %4835 = vmatpush.bf16.msra.mxu0 %v4559
      %4836 = vmatpush.bf16.msra.mxu0 %v4558
      %4837 = vmatmul.bf16.gmra.mxu0 %v4008
      %v4838 = vpop.f32.mrf.mxu0
      %v4839 = vadd.f32 %v4826, %v4838
      %v4840 = vpop.f32.mrf.mxu0
      %4841 = vdwg.mxu0
      %4842 = vmatpush.bf16.msra.mxu0 %v4573
      %4843 = vmatpush.bf16.msra.mxu0 %v4572
      %4844 = vmatpush.bf16.msra.mxu0 %v4571
      %4845 = vmatpush.bf16.msra.mxu0 %v4570
      %4846 = vmatpush.bf16.msra.mxu0 %v4569
      %4847 = vmatpush.bf16.msra.mxu0 %v4568
      %4848 = vmatpush.bf16.msra.mxu0 %v4567
      %4849 = vmatpush.bf16.msra.mxu0 %v4566
      %4850 = vmatmul.bf16.gmra.mxu0 %v4009
      %v4851 = vpop.f32.mrf.mxu0
      %v4852 = vadd.f32 %v4839, %v4851
      %v4853 = vpop.f32.mrf.mxu0
      %4854 = vdwg.mxu0
      %4855 = vmatpush.bf16.msra.mxu0 %v4581
      %4856 = vmatpush.bf16.msra.mxu0 %v4580
      %4857 = vmatpush.bf16.msra.mxu0 %v4579
      %4858 = vmatpush.bf16.msra.mxu0 %v4578
      %4859 = vmatpush.bf16.msra.mxu0 %v4577
      %4860 = vmatpush.bf16.msra.mxu0 %v4576
      %4861 = vmatpush.bf16.msra.mxu0 %v4575
      %4862 = vmatpush.bf16.msra.mxu0 %v4574
      %4863 = vmatmul.bf16.gmra.mxu0 %v4010
      %v4864 = vpop.f32.mrf.mxu0
      %v4865 = vadd.f32 %v4852, %v4864
      %v4866 = vpop.f32.mrf.mxu0
      %4867 = vdwg.mxu0
      %4868 = vmatpush.bf16.msra.mxu0 %v4589
      %4869 = vmatpush.bf16.msra.mxu0 %v4588
      %4870 = vmatpush.bf16.msra.mxu0 %v4587
      %4871 = vmatpush.bf16.msra.mxu0 %v4586
      %4872 = vmatpush.bf16.msra.mxu0 %v4585
      %4873 = vmatpush.bf16.msra.mxu0 %v4584
      %4874 = vmatpush.bf16.msra.mxu0 %v4583
      %4875 = vmatpush.bf16.msra.mxu0 %v4582
      %4876 = vmatmul.bf16.gmra.mxu0 %v4011
      %v4877 = vpop.f32.mrf.mxu0
      %v4878 = vadd.f32 %v4865, %v4877
      %v4879 = vpop.f32.mrf.mxu0
      %4880 = vdwg.mxu0
      %4881 = vmatpush.bf16.msra.mxu0 %v4597
      %4882 = vmatpush.bf16.msra.mxu0 %v4596
      %4883 = vmatpush.bf16.msra.mxu0 %v4595
      %4884 = vmatpush.bf16.msra.mxu0 %v4594
      %4885 = vmatpush.bf16.msra.mxu0 %v4593
      %4886 = vmatpush.bf16.msra.mxu0 %v4592
      %4887 = vmatpush.bf16.msra.mxu0 %v4591
      %4888 = vmatpush.bf16.msra.mxu0 %v4590
      %4889 = vmatmul.bf16.gmra.mxu0 %v4012
      %v4890 = vpop.f32.mrf.mxu0
      %v4891 = vadd.f32 %v4878, %v4890
      %v4892 = vpop.f32.mrf.mxu0
      %4893 = vdwg.mxu0
      %4894 = vmatpush.bf16.msra.mxu0 %v4605
      %4895 = vmatpush.bf16.msra.mxu0 %v4604
      %4896 = vmatpush.bf16.msra.mxu0 %v4603
      %4897 = vmatpush.bf16.msra.mxu0 %v4602
      %4898 = vmatpush.bf16.msra.mxu0 %v4601
      %4899 = vmatpush.bf16.msra.mxu0 %v4600
      %4900 = vmatpush.bf16.msra.mxu0 %v4599
      %4901 = vmatpush.bf16.msra.mxu0 %v4598
      %4902 = vmatmul.bf16.gmra.mxu0 %v4013
      %v4903 = vpop.f32.mrf.mxu0
      %v4904 = vadd.f32 %v4891, %v4903
      %v4905 = vpop.f32.mrf.mxu0
      %4906 = vdwg.mxu0
      %4907 = vmatpush.bf16.msra.mxu0 %v4613
      %4908 = vmatpush.bf16.msra.mxu0 %v4612
      %4909 = vmatpush.bf16.msra.mxu0 %v4611
      %4910 = vmatpush.bf16.msra.mxu0 %v4610
      %4911 = vmatpush.bf16.msra.mxu0 %v4609
      %4912 = vmatpush.bf16.msra.mxu0 %v4608
      %4913 = vmatpush.bf16.msra.mxu0 %v4607
      %4914 = vmatpush.bf16.msra.mxu0 %v4606
      %4915 = vmatmul.bf16.gmra.mxu0 %v4014
      %v4916 = vpop.f32.mrf.mxu0
      %v4917 = vadd.f32 %v4904, %v4916
      %v4918 = vpop.f32.mrf.mxu0
      %4919 = vdwg.mxu0
      %4920 = vmatpush.bf16.msra.mxu0 %v4621
      %4921 = vmatpush.bf16.msra.mxu0 %v4620
      %4922 = vmatpush.bf16.msra.mxu0 %v4619
      %4923 = vmatpush.bf16.msra.mxu0 %v4618
      %4924 = vmatpush.bf16.msra.mxu0 %v4617
      %4925 = vmatpush.bf16.msra.mxu0 %v4616
      %4926 = vmatpush.bf16.msra.mxu0 %v4615
      %4927 = vmatpush.bf16.msra.mxu0 %v4614
      %4928 = vmatmul.bf16.gmra.mxu0 %v4015
      %v4929 = vpop.f32.mrf.mxu0
      %v4930 = vadd.f32 %v4917, %v4929
      %v4931 = vpop.f32.mrf.mxu0
      %4932 = vdwg.mxu0
      %4933 = vmatpush.bf16.msra.mxu0 %v4629
      %4934 = vmatpush.bf16.msra.mxu0 %v4628
      %4935 = vmatpush.bf16.msra.mxu0 %v4627
      %4936 = vmatpush.bf16.msra.mxu0 %v4626
      %4937 = vmatpush.bf16.msra.mxu0 %v4625
      %4938 = vmatpush.bf16.msra.mxu0 %v4624
      %4939 = vmatpush.bf16.msra.mxu0 %v4623
      %4940 = vmatpush.bf16.msra.mxu0 %v4622
      %4941 = vmatmul.bf16.gmra.mxu0 %v4016
      %v4942 = vpop.f32.mrf.mxu0
      %v4943 = vadd.f32 %v4930, %v4942
      %v4944 = vpop.f32.mrf.mxu0
      %4945 = vdwg.mxu0
      %4946 = vmatpush.bf16.msra.mxu0 %v4637
      %4947 = vmatpush.bf16.msra.mxu0 %v4636
      %4948 = vmatpush.bf16.msra.mxu0 %v4635
      %4949 = vmatpush.bf16.msra.mxu0 %v4634
      %4950 = vmatpush.bf16.msra.mxu0 %v4633
      %4951 = vmatpush.bf16.msra.mxu0 %v4632
      %4952 = vmatpush.bf16.msra.mxu0 %v4631
      %4953 = vmatpush.bf16.msra.mxu0 %v4630
      %4954 = vmatmul.bf16.gmra.mxu0 %v4017
      %v4955 = vpop.f32.mrf.mxu0
      %v4956 = vadd.f32 %v4943, %v4955
      %v4957 = vpop.f32.mrf.mxu0
      %4958 = vdwg.mxu0
      %4959 = vmatpush.bf16.msra.mxu0 %v4645
      %4960 = vmatpush.bf16.msra.mxu0 %v4644
      %4961 = vmatpush.bf16.msra.mxu0 %v4643
      %4962 = vmatpush.bf16.msra.mxu0 %v4642
      %4963 = vmatpush.bf16.msra.mxu0 %v4641
      %4964 = vmatpush.bf16.msra.mxu0 %v4640
      %4965 = vmatpush.bf16.msra.mxu0 %v4639
      %4966 = vmatpush.bf16.msra.mxu0 %v4638
      %4967 = vmatmul.bf16.gmra.mxu0 %v4018
      %v4968 = vpop.f32.mrf.mxu0
      %v4969 = vadd.f32 %v4956, %v4968
      %v4970 = vpop.f32.mrf.mxu0
      %4971 = vdwg.mxu0
      %4972 = vmatpush.bf16.msra.mxu0 %v4653
      %4973 = vmatpush.bf16.msra.mxu0 %v4652
      %4974 = vmatpush.bf16.msra.mxu0 %v4651
      %4975 = vmatpush.bf16.msra.mxu0 %v4650
      %4976 = vmatpush.bf16.msra.mxu0 %v4649
      %4977 = vmatpush.bf16.msra.mxu0 %v4648
      %4978 = vmatpush.bf16.msra.mxu0 %v4647
      %4979 = vmatpush.bf16.msra.mxu0 %v4646
      %4980 = vmatmul.bf16.gmra.mxu0 %v4019
      %v4981 = vpop.f32.mrf.mxu0
      %v4982 = vadd.f32 %v4969, %v4981
      %v4983 = vpop.f32.mrf.mxu0
      %4984 = vdwg.mxu0
      %4985 = vmatpush.bf16.msra.mxu0 %v4661
      %4986 = vmatpush.bf16.msra.mxu0 %v4660
      %4987 = vmatpush.bf16.msra.mxu0 %v4659
      %4988 = vmatpush.bf16.msra.mxu0 %v4658
      %4989 = vmatpush.bf16.msra.mxu0 %v4657
      %4990 = vmatpush.bf16.msra.mxu0 %v4656
      %4991 = vmatpush.bf16.msra.mxu0 %v4655
      %4992 = vmatpush.bf16.msra.mxu0 %v4654
      %4993 = vmatmul.bf16.gmra.mxu0 %v4020
      %v4994 = vpop.f32.mrf.mxu0
      %v4995 = vadd.f32 %v4982, %v4994
      %v4996 = vpop.f32.mrf.mxu0
      %4997 = vdwg.mxu0
      %v4998 = vadd.f32 %v3289, %v4995
      %v4999 = vsel %vm722, %v4998, 0.0
      %5000 = vadd.xlane.f32.xlu0 %v4999
      %v5001 = vpop.xlane.xlu0 %5000
      %v5002 = vmul.f32 %v5001, %v1112
      %v5003 = vsub.f32 %v4998, %v5002
      %v5004 = vmul.f32 %v5003, %v5003
      %v5005 = vsel %vm722, %v5004, 0.0
      %5006 = vadd.xlane.f32.xlu0 %v5005
      %v5007 = vpop.xlane.xlu0 %5006
      %v5008 = vmul.f32 %v5007, %v1112
      %v5009 = vadd.f32 %v5008, 1e-05
      %v5010 = vrsqrt.pop %v5009
      %v5011 = vmul.f32 %v5010, %v5009
      %v5012 = vmul.f32 %v5011, %v5010
      %v5013 = vmul.f32 0.5, %v5012
      %v5014 = vsub.f32 1.5, %v5013
      %v5015 = vmul.f32 %v5010, %v5014
      %vm5016 = vweird.f32 %v5009
      %vm5017 = vweird.f32 %v5010
      %vm5018 = vmor %vm5016, %vm5017
      %v5019 = vsel %vm5018, %v5010, %v5015
      %v5020 = vmul.f32 %v5003, %v5019
      %v5021 = vperm.slane %v2869, 4
      %v5022 = vmul.f32 %v5020, %v5021
      %v5023 = vperm.slane %v2869, 5
      %v5024 = vadd.f32 %v5022, %v5023
      %v5025 = vld [vmem:[%s20] sm:$0xf]
      %v5026 = vsel %vm722, %v5024, 0.0
      %5027 = vadd.xlane.f32.xlu0 %v5026
      %v5028 = vpop.xlane.xlu0 %5027
      %v5029 = vmul.f32 %v5028, %v1112
      %v5030 = vsub.f32 %v5024, %v5029
      %v5031 = vmul.f32 %v5030, %v5030
      %v5032 = vsel %vm722, %v5031, 0.0
      %5033 = vadd.xlane.f32.xlu0 %v5032
      %v5034 = vpop.xlane.xlu0 %5033
      %v5035 = vmul.f32 %v5034, %v1112
      %v5036 = vadd.f32 %v5035, 1e-05
      %v5037 = vrsqrt.pop %v5036
      %v5038 = vmul.f32 %v5037, %v5036
      %v5039 = vmul.f32 %v5038, %v5037
      %v5040 = vmul.f32 0.5, %v5039
      %v5041 = vsub.f32 1.5, %v5040
      %v5042 = vmul.f32 %v5037, %v5041
      %vm5043 = vweird.f32 %v5036
      %vm5044 = vweird.f32 %v5037
      %vm5045 = vmor %vm5043, %vm5044
      %v5046 = vsel %vm5045, %v5037, %v5042
      %v5047 = vmul.f32 %v5030, %v5046
      %v5048 = vperm.slane %v5025, 0
      %v5049 = vmul.f32 %v5047, %v5048
      %v5050 = vperm.slane %v5025, 1
      %v5051 = vadd.f32 %v5049, %v5050
      %v5052 = vld [vmem:[%s19] sm:$0xff]
      %v5053 = vld [vmem:[%s19 + $0x8] sm:$0x1]
      %v5054 = vld [vmem:[%s9] sm:$0xff]
      %v5055 = vld [vmem:[%s9 + $0x8] sm:$0xff]
      %v5056 = vld [vmem:[%s9 + $0x10] sm:$0xff]
      %v5057 = vld [vmem:[%s9 + $0x18] sm:$0xff]
      %v5058 = vld [vmem:[%s16] sm:$0x1]
      %v5059 = vld [vmem:[%s10] sm:$0xff]
      %v5060 = vld [vmem:[%s10 + $0x8] sm:$0xff]
      %v5061 = vld [vmem:[%s10 + $0x10] sm:$0xff]
      %v5062 = vld [vmem:[%s10 + $0x18] sm:$0xff]
      %v5064 = vperm.slane %v5058, 0
      %5066 = vmatpush.msra.mxu0 0.0
      %5067 = vmatpush.msra.mxu0 0.0
      %5068 = vmatpush.msra.mxu0 0.0
      %5069 = vmatpush.msra.mxu0 0.0
      %5070 = vmatpush.msra.mxu0 0.0
      %5071 = vmatpush.msra.mxu0 0.0
      %5072 = vmatpush.msra.mxu0 0.0
      %5073 = vmatpush.msra.mxu0 0.0
      %5074 = vmatpush.msra.mxu0 0.0
      %5075 = vmatpush.msra.mxu0 0.0
      %5076 = vmatpush.msra.mxu0 0.0
      %5077 = vmatpush.msra.mxu0 0.0
      %5078 = vmatpush.msra.mxu0 %v5057
      %5079 = vmatpush.msra.mxu0 %v5056
      %5080 = vmatpush.msra.mxu0 %v5055
      %5081 = vmatpush.msra.mxu0 %v5054
      %5082 = vmatmul.f32.gmra.mxu0 %v724
      %v5083 = vpop.f32.mrf.mxu0
      %v5084 = vadd.f32 %v5064, %v5083
      %5085 = vdwg.mxu0
      %5087 = vrot.lane.b32.xlu0 %v5084, 96
      %v5088 = vpop.permute.xlu0 %5087
      %v5089 = vsel %vm749, %v5084, 0
      %v5091 = vsel %vm749, %v5088, 0
      %5093 = vmatpush.xpose.msra.mxu0 0.0
      %5094 = vmatpush.xpose.msra.mxu0 0.0
      %5095 = vmatpush.xpose.msra.mxu0 0.0
      %5096 = vmatpush.xpose.msra.mxu0 0.0
      %5097 = vmatpush.xpose.msra.mxu0 0.0
      %5098 = vmatpush.xpose.msra.mxu0 0.0
      %5099 = vmatpush.xpose.msra.mxu0 0.0
      %5100 = vmatpush.xpose.msra.mxu0 0.0
      %5101 = vmatpush.xpose.msra.mxu0 0.0
      %5102 = vmatpush.xpose.msra.mxu0 0.0
      %5103 = vmatpush.xpose.msra.mxu0 0.0
      %5104 = vmatpush.xpose.msra.mxu0 0.0
      %5105 = vmatpush.xpose.msra.mxu0 0.0
      %5106 = vmatpush.xpose.msra.mxu0 0.0
      %5107 = vmatpush.xpose.msra.mxu0 0.0
      %5108 = vmatpush.xpose.msra.mxu0 %v5091
      %5109 = vmatmul.f32.gmra.mxu0 %v5089
      %v5110 = vpop.f32.mrf.mxu0
      %v5111 = vadd.f32 %v708, %v5110
      %5112 = vdwg.mxu0
      %v5113 = vsel %vm749, %v5111, -inf
      %5114 = vmax.xlane.f32.xlu0 %v5113
      %v5115 = vpop.xlane.xlu0 %5114
      %v5116 = vsub.f32 %v5111, %v5115
      %v5117 = vmul.f32 %v5116, 1.442695
      %v5118 = vpow.pop %v5117
      %v5119 = vsel %vm749, %v5118, 0.0
      %5120 = vadd.xlane.f32.xlu0 %v5119
      %v5121 = vpop.xlane.xlu0 %5120
      %v5122 = vrcp.pop %v5121
      %v5123 = vmul.f32 %v5118, %v5122
      %5124 = vrot.lane.b32.xlu0 %v5084, 64
      %v5125 = vpop.permute.xlu0 %5124
      %v5128 = vsel %vm749, %v5123, 0
      %5130 = vmatpush.msra.mxu0 0.0
      %5131 = vmatpush.msra.mxu0 0.0
      %5132 = vmatpush.msra.mxu0 0.0
      %5133 = vmatpush.msra.mxu0 0.0
      %5134 = vmatpush.msra.mxu0 0.0
      %5135 = vmatpush.msra.mxu0 0.0
      %5136 = vmatpush.msra.mxu0 0.0
      %5137 = vmatpush.msra.mxu0 0.0
      %5138 = vmatpush.msra.mxu0 0.0
      %5139 = vmatpush.msra.mxu0 0.0
      %5140 = vmatpush.msra.mxu0 0.0
      %5141 = vmatpush.msra.mxu0 0.0
      %5142 = vmatpush.msra.mxu0 0.0
      %5143 = vmatpush.msra.mxu0 0.0
      %5144 = vmatpush.msra.mxu0 0.0
      %5145 = vmatpush.msra.mxu0 %v5125
      %5146 = vmatmul.f32.gmra.mxu0 %v5128
      %v5147 = vpop.f32.mrf.mxu0
      %v5148 = vadd.f32 0.0, %v5147
      %5149 = vdwg.mxu0
      %5150 = vrot.lane.b32.xlu0 %v5084, 120
      %v5151 = vpop.permute.xlu0 %5150
      %5152 = vrot.lane.b32.xlu0 %v5084, 88
      %v5153 = vpop.permute.xlu0 %5152
      %v5154 = vsel %vm749, %v5151, 0
      %v5156 = vsel %vm749, %v5153, 0
      %5158 = vmatpush.xpose.msra.mxu0 0.0
      %5159 = vmatpush.xpose.msra.mxu0 0.0
      %5160 = vmatpush.xpose.msra.mxu0 0.0
      %5161 = vmatpush.xpose.msra.mxu0 0.0
      %5162 = vmatpush.xpose.msra.mxu0 0.0
      %5163 = vmatpush.xpose.msra.mxu0 0.0
      %5164 = vmatpush.xpose.msra.mxu0 0.0
      %5165 = vmatpush.xpose.msra.mxu0 0.0
      %5166 = vmatpush.xpose.msra.mxu0 0.0
      %5167 = vmatpush.xpose.msra.mxu0 0.0
      %5168 = vmatpush.xpose.msra.mxu0 0.0
      %5169 = vmatpush.xpose.msra.mxu0 0.0
      %5170 = vmatpush.xpose.msra.mxu0 0.0
      %5171 = vmatpush.xpose.msra.mxu0 0.0
      %5172 = vmatpush.xpose.msra.mxu0 0.0
      %5173 = vmatpush.xpose.msra.mxu0 %v5156
      %5174 = vmatmul.f32.gmra.mxu0 %v5154
      %v5175 = vpop.f32.mrf.mxu0
      %v5176 = vadd.f32 %v708, %v5175
      %5177 = vdwg.mxu0
      %v5178 = vsel %vm749, %v5176, -inf
      %5179 = vmax.xlane.f32.xlu0 %v5178
      %v5180 = vpop.xlane.xlu0 %5179
      %v5181 = vsub.f32 %v5176, %v5180
      %v5182 = vmul.f32 %v5181, 1.442695
      %v5183 = vpow.pop %v5182
      %v5184 = vsel %vm749, %v5183, 0.0
      %5185 = vadd.xlane.f32.xlu0 %v5184
      %v5186 = vpop.xlane.xlu0 %5185
      %v5187 = vrcp.pop %v5186
      %v5188 = vmul.f32 %v5183, %v5187
      %5189 = vrot.lane.b32.xlu0 %v5084, 56
      %v5190 = vpop.permute.xlu0 %5189
      %v5193 = vsel %vm749, %v5188, 0
      %5195 = vmatpush.msra.mxu0 0.0
      %5196 = vmatpush.msra.mxu0 0.0
      %5197 = vmatpush.msra.mxu0 0.0
      %5198 = vmatpush.msra.mxu0 0.0
      %5199 = vmatpush.msra.mxu0 0.0
      %5200 = vmatpush.msra.mxu0 0.0
      %5201 = vmatpush.msra.mxu0 0.0
      %5202 = vmatpush.msra.mxu0 0.0
      %5203 = vmatpush.msra.mxu0 0.0
      %5204 = vmatpush.msra.mxu0 0.0
      %5205 = vmatpush.msra.mxu0 0.0
      %5206 = vmatpush.msra.mxu0 0.0
      %5207 = vmatpush.msra.mxu0 0.0
      %5208 = vmatpush.msra.mxu0 0.0
      %5209 = vmatpush.msra.mxu0 0.0
      %5210 = vmatpush.msra.mxu0 %v5190
      %5211 = vmatmul.f32.gmra.mxu0 %v5193
      %v5212 = vpop.f32.mrf.mxu0
      %v5213 = vadd.f32 0.0, %v5212
      %5214 = vdwg.mxu0
      %v5216 = vsel %vm749, %v5213, 0
      %5218 = vmatpush.msra.mxu0 0.0
      %5219 = vmatpush.msra.mxu0 0.0
      %5220 = vmatpush.msra.mxu0 0.0
      %5221 = vmatpush.msra.mxu0 0.0
      %5222 = vmatpush.msra.mxu0 0.0
      %5223 = vmatpush.msra.mxu0 0.0
      %5224 = vmatpush.msra.mxu0 0.0
      %5225 = vmatpush.msra.mxu0 0.0
      %5226 = vmatpush.msra.mxu0 0.0
      %5227 = vmatpush.msra.mxu0 0.0
      %5228 = vmatpush.msra.mxu0 0.0
      %5229 = vmatpush.msra.mxu0 0.0
      %5230 = vmatpush.msra.mxu0 0.0
      %5231 = vmatpush.msra.mxu0 0.0
      %5232 = vmatpush.msra.mxu0 0.0
      %5233 = vmatpush.msra.mxu0 %v5060
      %5234 = vmatmul.f32.gmra.mxu0 %v5216
      %v5235 = vpop.f32.mrf.mxu0
      %v5236 = vadd.f32 0.0, %v5235
      %5237 = vdwg.mxu0
      %v5239 = vsel %vm749, %v5148, 0
      %5241 = vmatpush.msra.mxu0 0.0
      %5242 = vmatpush.msra.mxu0 0.0
      %5243 = vmatpush.msra.mxu0 0.0
      %5244 = vmatpush.msra.mxu0 0.0
      %5245 = vmatpush.msra.mxu0 0.0
      %5246 = vmatpush.msra.mxu0 0.0
      %5247 = vmatpush.msra.mxu0 0.0
      %5248 = vmatpush.msra.mxu0 0.0
      %5249 = vmatpush.msra.mxu0 0.0
      %5250 = vmatpush.msra.mxu0 0.0
      %5251 = vmatpush.msra.mxu0 0.0
      %5252 = vmatpush.msra.mxu0 0.0
      %5253 = vmatpush.msra.mxu0 0.0
      %5254 = vmatpush.msra.mxu0 0.0
      %5255 = vmatpush.msra.mxu0 0.0
      %5256 = vmatpush.msra.mxu0 %v5059
      %5257 = vmatmul.f32.gmra.mxu0 %v5239
      %v5258 = vpop.f32.mrf.mxu0
      %v5259 = vadd.f32 %v5236, %v5258
      %5260 = vdwg.mxu0
      %5261 = vrot.lane.b32.xlu0 %v5084, 112
      %v5262 = vpop.permute.xlu0 %5261
      %5263 = vrot.lane.b32.xlu0 %v5084, 80
      %v5264 = vpop.permute.xlu0 %5263
      %v5265 = vsel %vm749, %v5262, 0
      %v5267 = vsel %vm749, %v5264, 0
      %5269 = vmatpush.xpose.msra.mxu0 0.0
      %5270 = vmatpush.xpose.msra.mxu0 0.0
      %5271 = vmatpush.xpose.msra.mxu0 0.0
      %5272 = vmatpush.xpose.msra.mxu0 0.0
      %5273 = vmatpush.xpose.msra.mxu0 0.0
      %5274 = vmatpush.xpose.msra.mxu0 0.0
      %5275 = vmatpush.xpose.msra.mxu0 0.0
      %5276 = vmatpush.xpose.msra.mxu0 0.0
      %5277 = vmatpush.xpose.msra.mxu0 0.0
      %5278 = vmatpush.xpose.msra.mxu0 0.0
      %5279 = vmatpush.xpose.msra.mxu0 0.0
      %5280 = vmatpush.xpose.msra.mxu0 0.0
      %5281 = vmatpush.xpose.msra.mxu0 0.0
      %5282 = vmatpush.xpose.msra.mxu0 0.0
      %5283 = vmatpush.xpose.msra.mxu0 0.0
      %5284 = vmatpush.xpose.msra.mxu0 %v5267
      %5285 = vmatmul.f32.gmra.mxu0 %v5265
      %v5286 = vpop.f32.mrf.mxu0
      %v5287 = vadd.f32 %v708, %v5286
      %5288 = vdwg.mxu0
      %v5289 = vsel %vm749, %v5287, -inf
      %5290 = vmax.xlane.f32.xlu0 %v5289
      %v5291 = vpop.xlane.xlu0 %5290
      %v5292 = vsub.f32 %v5287, %v5291
      %v5293 = vmul.f32 %v5292, 1.442695
      %v5294 = vpow.pop %v5293
      %v5295 = vsel %vm749, %v5294, 0.0
      %5296 = vadd.xlane.f32.xlu0 %v5295
      %v5297 = vpop.xlane.xlu0 %5296
      %v5298 = vrcp.pop %v5297
      %v5299 = vmul.f32 %v5294, %v5298
      %5300 = vrot.lane.b32.xlu0 %v5084, 48
      %v5301 = vpop.permute.xlu0 %5300
      %v5304 = vsel %vm749, %v5299, 0
      %5306 = vmatpush.msra.mxu0 0.0
      %5307 = vmatpush.msra.mxu0 0.0
      %5308 = vmatpush.msra.mxu0 0.0
      %5309 = vmatpush.msra.mxu0 0.0
      %5310 = vmatpush.msra.mxu0 0.0
      %5311 = vmatpush.msra.mxu0 0.0
      %5312 = vmatpush.msra.mxu0 0.0
      %5313 = vmatpush.msra.mxu0 0.0
      %5314 = vmatpush.msra.mxu0 0.0
      %5315 = vmatpush.msra.mxu0 0.0
      %5316 = vmatpush.msra.mxu0 0.0
      %5317 = vmatpush.msra.mxu0 0.0
      %5318 = vmatpush.msra.mxu0 0.0
      %5319 = vmatpush.msra.mxu0 0.0
      %5320 = vmatpush.msra.mxu0 0.0
      %5321 = vmatpush.msra.mxu0 %v5301
      %5322 = vmatmul.f32.gmra.mxu0 %v5304
      %v5323 = vpop.f32.mrf.mxu0
      %v5324 = vadd.f32 0.0, %v5323
      %5325 = vdwg.mxu0
      %v5327 = vsel %vm749, %v5324, 0
      %5329 = vmatpush.msra.mxu0 0.0
      %5330 = vmatpush.msra.mxu0 0.0
      %5331 = vmatpush.msra.mxu0 0.0
      %5332 = vmatpush.msra.mxu0 0.0
      %5333 = vmatpush.msra.mxu0 0.0
      %5334 = vmatpush.msra.mxu0 0.0
      %5335 = vmatpush.msra.mxu0 0.0
      %5336 = vmatpush.msra.mxu0 0.0
      %5337 = vmatpush.msra.mxu0 0.0
      %5338 = vmatpush.msra.mxu0 0.0
      %5339 = vmatpush.msra.mxu0 0.0
      %5340 = vmatpush.msra.mxu0 0.0
      %5341 = vmatpush.msra.mxu0 0.0
      %5342 = vmatpush.msra.mxu0 0.0
      %5343 = vmatpush.msra.mxu0 0.0
      %5344 = vmatpush.msra.mxu0 %v5061
      %5345 = vmatmul.f32.gmra.mxu0 %v5327
      %v5346 = vpop.f32.mrf.mxu0
      %v5347 = vadd.f32 0.0, %v5346
      %5348 = vdwg.mxu0
      %v5349 = vadd.f32 %v5259, %v5347
      %5350 = vrot.lane.b32.xlu0 %v5084, 104
      %v5351 = vpop.permute.xlu0 %5350
      %5352 = vrot.lane.b32.xlu0 %v5084, 72
      %v5353 = vpop.permute.xlu0 %5352
      %v5354 = vsel %vm749, %v5351, 0
      %v5356 = vsel %vm749, %v5353, 0
      %5358 = vmatpush.xpose.msra.mxu0 0.0
      %5359 = vmatpush.xpose.msra.mxu0 0.0
      %5360 = vmatpush.xpose.msra.mxu0 0.0
      %5361 = vmatpush.xpose.msra.mxu0 0.0
      %5362 = vmatpush.xpose.msra.mxu0 0.0
      %5363 = vmatpush.xpose.msra.mxu0 0.0
      %5364 = vmatpush.xpose.msra.mxu0 0.0
      %5365 = vmatpush.xpose.msra.mxu0 0.0
      %5366 = vmatpush.xpose.msra.mxu0 0.0
      %5367 = vmatpush.xpose.msra.mxu0 0.0
      %5368 = vmatpush.xpose.msra.mxu0 0.0
      %5369 = vmatpush.xpose.msra.mxu0 0.0
      %5370 = vmatpush.xpose.msra.mxu0 0.0
      %5371 = vmatpush.xpose.msra.mxu0 0.0
      %5372 = vmatpush.xpose.msra.mxu0 0.0
      %5373 = vmatpush.xpose.msra.mxu0 %v5356
      %5374 = vmatmul.f32.gmra.mxu0 %v5354
      %v5375 = vpop.f32.mrf.mxu0
      %v5376 = vadd.f32 %v708, %v5375
      %5377 = vdwg.mxu0
      %v5378 = vsel %vm749, %v5376, -inf
      %5379 = vmax.xlane.f32.xlu0 %v5378
      %v5380 = vpop.xlane.xlu0 %5379
      %v5381 = vsub.f32 %v5376, %v5380
      %v5382 = vmul.f32 %v5381, 1.442695
      %v5383 = vpow.pop %v5382
      %v5384 = vsel %vm749, %v5383, 0.0
      %5385 = vadd.xlane.f32.xlu0 %v5384
      %v5386 = vpop.xlane.xlu0 %5385
      %v5387 = vrcp.pop %v5386
      %v5388 = vmul.f32 %v5383, %v5387
      %5389 = vrot.lane.b32.xlu0 %v5084, 40
      %v5390 = vpop.permute.xlu0 %5389
      %v5393 = vsel %vm749, %v5388, 0
      %5395 = vmatpush.msra.mxu0 0.0
      %5396 = vmatpush.msra.mxu0 0.0
      %5397 = vmatpush.msra.mxu0 0.0
      %5398 = vmatpush.msra.mxu0 0.0
      %5399 = vmatpush.msra.mxu0 0.0
      %5400 = vmatpush.msra.mxu0 0.0
      %5401 = vmatpush.msra.mxu0 0.0
      %5402 = vmatpush.msra.mxu0 0.0
      %5403 = vmatpush.msra.mxu0 0.0
      %5404 = vmatpush.msra.mxu0 0.0
      %5405 = vmatpush.msra.mxu0 0.0
      %5406 = vmatpush.msra.mxu0 0.0
      %5407 = vmatpush.msra.mxu0 0.0
      %5408 = vmatpush.msra.mxu0 0.0
      %5409 = vmatpush.msra.mxu0 0.0
      %5410 = vmatpush.msra.mxu0 %v5390
      %5411 = vmatmul.f32.gmra.mxu0 %v5393
      %v5412 = vpop.f32.mrf.mxu0
      %v5413 = vadd.f32 0.0, %v5412
      %5414 = vdwg.mxu0
      %v5416 = vsel %vm749, %v5413, 0
      %5418 = vmatpush.msra.mxu0 0.0
      %5419 = vmatpush.msra.mxu0 0.0
      %5420 = vmatpush.msra.mxu0 0.0
      %5421 = vmatpush.msra.mxu0 0.0
      %5422 = vmatpush.msra.mxu0 0.0
      %5423 = vmatpush.msra.mxu0 0.0
      %5424 = vmatpush.msra.mxu0 0.0
      %5425 = vmatpush.msra.mxu0 0.0
      %5426 = vmatpush.msra.mxu0 0.0
      %5427 = vmatpush.msra.mxu0 0.0
      %5428 = vmatpush.msra.mxu0 0.0
      %5429 = vmatpush.msra.mxu0 0.0
      %5430 = vmatpush.msra.mxu0 0.0
      %5431 = vmatpush.msra.mxu0 0.0
      %5432 = vmatpush.msra.mxu0 0.0
      %5433 = vmatpush.msra.mxu0 %v5062
      %5434 = vmatmul.f32.gmra.mxu0 %v5416
      %v5435 = vpop.f32.mrf.mxu0
      %v5436 = vadd.f32 0.0, %v5435
      %5437 = vdwg.mxu0
      %v5438 = vadd.f32 %v5349, %v5436
      %v5439 = vperm.slane %v5052, 0
      %v5440 = vadd.f32 %v5438, %v5439
      %v5441 = vadd.f32 %v707, %v5440
      %v5442 = vsel %vm722, %v5441, 0.0
      %5443 = vadd.xlane.f32.xlu0 %v5442
      %v5444 = vpop.xlane.xlu0 %5443
      %v5445 = vmul.f32 %v5444, %v1112
      %v5446 = vsub.f32 %v5441, %v5445
      %v5447 = vmul.f32 %v5446, %v5446
      %v5448 = vsel %vm722, %v5447, 0.0
      %5449 = vadd.xlane.f32.xlu0 %v5448
      %v5450 = vpop.xlane.xlu0 %5449
      %v5451 = vmul.f32 %v5450, %v1112
      %v5452 = vadd.f32 %v5451, 1e-05
      %v5453 = vrsqrt.pop %v5452
      %v5454 = vmul.f32 %v5453, %v5452
      %v5455 = vmul.f32 %v5454, %v5453
      %v5456 = vmul.f32 0.5, %v5455
      %v5457 = vsub.f32 1.5, %v5456
      %v5458 = vmul.f32 %v5453, %v5457
      %vm5459 = vweird.f32 %v5452
      %vm5460 = vweird.f32 %v5453
      %vm5461 = vmor %vm5459, %vm5460
      %v5462 = vsel %vm5461, %v5453, %v5458
      %v5463 = vmul.f32 %v5446, %v5462
      %v5464 = vperm.slane %v5052, 1
      %v5465 = vmul.f32 %v5463, %v5464
      %v5466 = vperm.slane %v5052, 2
      %v5467 = vadd.f32 %v5465, %v5466
      %v5468 = vld [vmem:[%s11] sm:$0xff]
      %v5469 = vld [vmem:[%s11 + $0x8] sm:$0xff]
      %v5470 = vld [vmem:[%s11 + $0x10] sm:$0xff]
      %v5471 = vld [vmem:[%s11 + $0x18] sm:$0xff]
      %v5472 = vld [vmem:[%s12] sm:$0xff]
      %v5473 = vld [vmem:[%s12 + $0x8] sm:$0xff]
      %v5474 = vld [vmem:[%s12 + $0x10] sm:$0xff]
      %v5475 = vld [vmem:[%s12 + $0x18] sm:$0xff]
      %v5476 = vld [vmem:[%s17] sm:$0x1]
      %v5477 = vld [vmem:[%s13] sm:$0xff]
      %v5478 = vld [vmem:[%s13 + $0x8] sm:$0xff]
      %v5479 = vld [vmem:[%s13 + $0x10] sm:$0xff]
      %v5480 = vld [vmem:[%s13 + $0x18] sm:$0xff]
      %v5482 = vperm.slane %v5476, 0
      %v5485 = vsel %vm722, %v5467, 0
      %5487 = vmatpush.msra.mxu0 0.0
      %5488 = vmatpush.msra.mxu0 0.0
      %5489 = vmatpush.msra.mxu0 0.0
      %5490 = vmatpush.msra.mxu0 0.0
      %5491 = vmatpush.msra.mxu0 0.0
      %5492 = vmatpush.msra.mxu0 0.0
      %5493 = vmatpush.msra.mxu0 0.0
      %5494 = vmatpush.msra.mxu0 0.0
      %5495 = vmatpush.msra.mxu0 0.0
      %5496 = vmatpush.msra.mxu0 0.0
      %5497 = vmatpush.msra.mxu0 0.0
      %5498 = vmatpush.msra.mxu0 0.0
      %5499 = vmatpush.msra.mxu0 %v5471
      %5500 = vmatpush.msra.mxu0 %v5470
      %5501 = vmatpush.msra.mxu0 %v5469
      %5502 = vmatpush.msra.mxu0 %v5468
      %5503 = vmatmul.f32.gmra.mxu0 %v5485
      %v5504 = vpop.f32.mrf.mxu0
      %v5505 = vadd.f32 %v5482, %v5504
      %5506 = vdwg.mxu0
      %5507 = vrot.lane.b32.xlu0 %v5482, 96
      %v5508 = vpop.permute.xlu0 %5507
      %v5511 = vsel %vm722, %v5051, 0
      %5513 = vmatpush.msra.mxu0 0.0
      %5514 = vmatpush.msra.mxu0 0.0
      %5515 = vmatpush.msra.mxu0 0.0
      %5516 = vmatpush.msra.mxu0 0.0
      %5517 = vmatpush.msra.mxu0 0.0
      %5518 = vmatpush.msra.mxu0 0.0
      %5519 = vmatpush.msra.mxu0 0.0
      %5520 = vmatpush.msra.mxu0 0.0
      %5521 = vmatpush.msra.mxu0 0.0
      %5522 = vmatpush.msra.mxu0 0.0
      %5523 = vmatpush.msra.mxu0 0.0
      %5524 = vmatpush.msra.mxu0 0.0
      %5525 = vmatpush.msra.mxu0 %v5475
      %5526 = vmatpush.msra.mxu0 %v5474
      %5527 = vmatpush.msra.mxu0 %v5473
      %5528 = vmatpush.msra.mxu0 %v5472
      %5529 = vmatmul.f32.gmra.mxu0 %v5511
      %v5530 = vpop.f32.mrf.mxu0
      %v5531 = vadd.f32 %v5508, %v5530
      %5532 = vdwg.mxu0
      %v5534 = vsel %vm749, %v5505, 0
      %v5537 = vsel %vm749, %v5531, 0
      %5539 = vmatpush.xpose.msra.mxu0 0.0
      %5540 = vmatpush.xpose.msra.mxu0 0.0
      %5541 = vmatpush.xpose.msra.mxu0 0.0
      %5542 = vmatpush.xpose.msra.mxu0 0.0
      %5543 = vmatpush.xpose.msra.mxu0 0.0
      %5544 = vmatpush.xpose.msra.mxu0 0.0
      %5545 = vmatpush.xpose.msra.mxu0 0.0
      %5546 = vmatpush.xpose.msra.mxu0 0.0
      %5547 = vmatpush.xpose.msra.mxu0 0.0
      %5548 = vmatpush.xpose.msra.mxu0 0.0
      %5549 = vmatpush.xpose.msra.mxu0 0.0
      %5550 = vmatpush.xpose.msra.mxu0 0.0
      %5551 = vmatpush.xpose.msra.mxu0 0.0
      %5552 = vmatpush.xpose.msra.mxu0 0.0
      %5553 = vmatpush.xpose.msra.mxu0 0.0
      %5554 = vmatpush.xpose.msra.mxu0 %v5537
      %5555 = vmatmul.f32.gmra.mxu0 %v5534
      %v5556 = vpop.f32.mrf.mxu0
      %v5557 = vadd.f32 0.0, %v5556
      %5558 = vdwg.mxu0
      %v5559 = vsel %vm749, %v5557, -inf
      %5560 = vmax.xlane.f32.xlu0 %v5559
      %v5561 = vpop.xlane.xlu0 %5560
      %v5562 = vsub.f32 %v5557, %v5561
      %v5563 = vmul.f32 %v5562, 1.442695
      %v5564 = vpow.pop %v5563
      %v5565 = vsel %vm749, %v5564, 0.0
      %5566 = vadd.xlane.f32.xlu0 %v5565
      %v5567 = vpop.xlane.xlu0 %5566
      %v5568 = vrcp.pop %v5567
      %v5569 = vmul.f32 %v5564, %v5568
      %5570 = vrot.lane.b32.xlu0 %v5531, 96
      %v5571 = vpop.permute.xlu0 %5570
      %v5574 = vsel %vm749, %v5569, 0
      %5576 = vmatpush.msra.mxu0 0.0
      %5577 = vmatpush.msra.mxu0 0.0
      %5578 = vmatpush.msra.mxu0 0.0
      %5579 = vmatpush.msra.mxu0 0.0
      %5580 = vmatpush.msra.mxu0 0.0
      %5581 = vmatpush.msra.mxu0 0.0
      %5582 = vmatpush.msra.mxu0 0.0
      %5583 = vmatpush.msra.mxu0 0.0
      %5584 = vmatpush.msra.mxu0 0.0
      %5585 = vmatpush.msra.mxu0 0.0
      %5586 = vmatpush.msra.mxu0 0.0
      %5587 = vmatpush.msra.mxu0 0.0
      %5588 = vmatpush.msra.mxu0 0.0
      %5589 = vmatpush.msra.mxu0 0.0
      %5590 = vmatpush.msra.mxu0 0.0
      %5591 = vmatpush.msra.mxu0 %v5571
      %5592 = vmatmul.f32.gmra.mxu0 %v5574
      %v5593 = vpop.f32.mrf.mxu0
      %v5594 = vadd.f32 0.0, %v5593
      %5595 = vdwg.mxu0
      %5596 = vrot.lane.b32.xlu0 %v5505, 120
      %v5597 = vpop.permute.xlu0 %5596
      %5598 = vrot.lane.b32.xlu0 %v5531, 120
      %v5599 = vpop.permute.xlu0 %5598
      %v5600 = vsel %vm749, %v5597, 0
      %v5602 = vsel %vm749, %v5599, 0
      %5604 = vmatpush.xpose.msra.mxu0 0.0
      %5605 = vmatpush.xpose.msra.mxu0 0.0
      %5606 = vmatpush.xpose.msra.mxu0 0.0
      %5607 = vmatpush.xpose.msra.mxu0 0.0
      %5608 = vmatpush.xpose.msra.mxu0 0.0
      %5609 = vmatpush.xpose.msra.mxu0 0.0
      %5610 = vmatpush.xpose.msra.mxu0 0.0
      %5611 = vmatpush.xpose.msra.mxu0 0.0
      %5612 = vmatpush.xpose.msra.mxu0 0.0
      %5613 = vmatpush.xpose.msra.mxu0 0.0
      %5614 = vmatpush.xpose.msra.mxu0 0.0
      %5615 = vmatpush.xpose.msra.mxu0 0.0
      %5616 = vmatpush.xpose.msra.mxu0 0.0
      %5617 = vmatpush.xpose.msra.mxu0 0.0
      %5618 = vmatpush.xpose.msra.mxu0 0.0
      %5619 = vmatpush.xpose.msra.mxu0 %v5602
      %5620 = vmatmul.f32.gmra.mxu0 %v5600
      %v5621 = vpop.f32.mrf.mxu0
      %v5622 = vadd.f32 0.0, %v5621
      %5623 = vdwg.mxu0
      %v5624 = vsel %vm749, %v5622, -inf
      %5625 = vmax.xlane.f32.xlu0 %v5624
      %v5626 = vpop.xlane.xlu0 %5625
      %v5627 = vsub.f32 %v5622, %v5626
      %v5628 = vmul.f32 %v5627, 1.442695
      %v5629 = vpow.pop %v5628
      %v5630 = vsel %vm749, %v5629, 0.0
      %5631 = vadd.xlane.f32.xlu0 %v5630
      %v5632 = vpop.xlane.xlu0 %5631
      %v5633 = vrcp.pop %v5632
      %v5634 = vmul.f32 %v5629, %v5633
      %5635 = vrot.lane.b32.xlu0 %v5531, 88
      %v5636 = vpop.permute.xlu0 %5635
      %v5639 = vsel %vm749, %v5634, 0
      %5641 = vmatpush.msra.mxu0 0.0
      %5642 = vmatpush.msra.mxu0 0.0
      %5643 = vmatpush.msra.mxu0 0.0
      %5644 = vmatpush.msra.mxu0 0.0
      %5645 = vmatpush.msra.mxu0 0.0
      %5646 = vmatpush.msra.mxu0 0.0
      %5647 = vmatpush.msra.mxu0 0.0
      %5648 = vmatpush.msra.mxu0 0.0
      %5649 = vmatpush.msra.mxu0 0.0
      %5650 = vmatpush.msra.mxu0 0.0
      %5651 = vmatpush.msra.mxu0 0.0
      %5652 = vmatpush.msra.mxu0 0.0
      %5653 = vmatpush.msra.mxu0 0.0
      %5654 = vmatpush.msra.mxu0 0.0
      %5655 = vmatpush.msra.mxu0 0.0
      %5656 = vmatpush.msra.mxu0 %v5636
      %5657 = vmatmul.f32.gmra.mxu0 %v5639
      %v5658 = vpop.f32.mrf.mxu0
      %v5659 = vadd.f32 0.0, %v5658
      %5660 = vdwg.mxu0
      %v5662 = vsel %vm749, %v5659, 0
      %5664 = vmatpush.msra.mxu0 0.0
      %5665 = vmatpush.msra.mxu0 0.0
      %5666 = vmatpush.msra.mxu0 0.0
      %5667 = vmatpush.msra.mxu0 0.0
      %5668 = vmatpush.msra.mxu0 0.0
      %5669 = vmatpush.msra.mxu0 0.0
      %5670 = vmatpush.msra.mxu0 0.0
      %5671 = vmatpush.msra.mxu0 0.0
      %5672 = vmatpush.msra.mxu0 0.0
      %5673 = vmatpush.msra.mxu0 0.0
      %5674 = vmatpush.msra.mxu0 0.0
      %5675 = vmatpush.msra.mxu0 0.0
      %5676 = vmatpush.msra.mxu0 0.0
      %5677 = vmatpush.msra.mxu0 0.0
      %5678 = vmatpush.msra.mxu0 0.0
      %5679 = vmatpush.msra.mxu0 %v5478
      %5680 = vmatmul.f32.gmra.mxu0 %v5662
      %v5681 = vpop.f32.mrf.mxu0
      %v5682 = vadd.f32 0.0, %v5681
      %5683 = vdwg.mxu0
      %v5685 = vsel %vm749, %v5594, 0
      %5687 = vmatpush.msra.mxu0 0.0
      %5688 = vmatpush.msra.mxu0 0.0
      %5689 = vmatpush.msra.mxu0 0.0
      %5690 = vmatpush.msra.mxu0 0.0
      %5691 = vmatpush.msra.mxu0 0.0
      %5692 = vmatpush.msra.mxu0 0.0
      %5693 = vmatpush.msra.mxu0 0.0
      %5694 = vmatpush.msra.mxu0 0.0
      %5695 = vmatpush.msra.mxu0 0.0
      %5696 = vmatpush.msra.mxu0 0.0
      %5697 = vmatpush.msra.mxu0 0.0
      %5698 = vmatpush.msra.mxu0 0.0
      %5699 = vmatpush.msra.mxu0 0.0
      %5700 = vmatpush.msra.mxu0 0.0
      %5701 = vmatpush.msra.mxu0 0.0
      %5702 = vmatpush.msra.mxu0 %v5477
      %5703 = vmatmul.f32.gmra.mxu0 %v5685
      %v5704 = vpop.f32.mrf.mxu0
      %v5705 = vadd.f32 %v5682, %v5704
      %5706 = vdwg.mxu0
      %5707 = vrot.lane.b32.xlu0 %v5505, 112
      %v5708 = vpop.permute.xlu0 %5707
      %5709 = vrot.lane.b32.xlu0 %v5531, 112
      %v5710 = vpop.permute.xlu0 %5709
      %v5711 = vsel %vm749, %v5708, 0
      %v5713 = vsel %vm749, %v5710, 0
      %5715 = vmatpush.xpose.msra.mxu0 0.0
      %5716 = vmatpush.xpose.msra.mxu0 0.0
      %5717 = vmatpush.xpose.msra.mxu0 0.0
      %5718 = vmatpush.xpose.msra.mxu0 0.0
      %5719 = vmatpush.xpose.msra.mxu0 0.0
      %5720 = vmatpush.xpose.msra.mxu0 0.0
      %5721 = vmatpush.xpose.msra.mxu0 0.0
      %5722 = vmatpush.xpose.msra.mxu0 0.0
      %5723 = vmatpush.xpose.msra.mxu0 0.0
      %5724 = vmatpush.xpose.msra.mxu0 0.0
      %5725 = vmatpush.xpose.msra.mxu0 0.0
      %5726 = vmatpush.xpose.msra.mxu0 0.0
      %5727 = vmatpush.xpose.msra.mxu0 0.0
      %5728 = vmatpush.xpose.msra.mxu0 0.0
      %5729 = vmatpush.xpose.msra.mxu0 0.0
      %5730 = vmatpush.xpose.msra.mxu0 %v5713
      %5731 = vmatmul.f32.gmra.mxu0 %v5711
      %v5732 = vpop.f32.mrf.mxu0
      %v5733 = vadd.f32 0.0, %v5732
      %5734 = vdwg.mxu0
      %v5735 = vsel %vm749, %v5733, -inf
      %5736 = vmax.xlane.f32.xlu0 %v5735
      %v5737 = vpop.xlane.xlu0 %5736
      %v5738 = vsub.f32 %v5733, %v5737
      %v5739 = vmul.f32 %v5738, 1.442695
      %v5740 = vpow.pop %v5739
      %v5741 = vsel %vm749, %v5740, 0.0
      %5742 = vadd.xlane.f32.xlu0 %v5741
      %v5743 = vpop.xlane.xlu0 %5742
      %v5744 = vrcp.pop %v5743
      %v5745 = vmul.f32 %v5740, %v5744
      %5746 = vrot.lane.b32.xlu0 %v5531, 80
      %v5747 = vpop.permute.xlu0 %5746
      %v5750 = vsel %vm749, %v5745, 0
      %5752 = vmatpush.msra.mxu0 0.0
      %5753 = vmatpush.msra.mxu0 0.0
      %5754 = vmatpush.msra.mxu0 0.0
      %5755 = vmatpush.msra.mxu0 0.0
      %5756 = vmatpush.msra.mxu0 0.0
      %5757 = vmatpush.msra.mxu0 0.0
      %5758 = vmatpush.msra.mxu0 0.0
      %5759 = vmatpush.msra.mxu0 0.0
      %5760 = vmatpush.msra.mxu0 0.0
      %5761 = vmatpush.msra.mxu0 0.0
      %5762 = vmatpush.msra.mxu0 0.0
      %5763 = vmatpush.msra.mxu0 0.0
      %5764 = vmatpush.msra.mxu0 0.0
      %5765 = vmatpush.msra.mxu0 0.0
      %5766 = vmatpush.msra.mxu0 0.0
      %5767 = vmatpush.msra.mxu0 %v5747
      %5768 = vmatmul.f32.gmra.mxu0 %v5750
      %v5769 = vpop.f32.mrf.mxu0
      %v5770 = vadd.f32 0.0, %v5769
      %5771 = vdwg.mxu0
      %v5773 = vsel %vm749, %v5770, 0
      %5775 = vmatpush.msra.mxu0 0.0
      %5776 = vmatpush.msra.mxu0 0.0
      %5777 = vmatpush.msra.mxu0 0.0
      %5778 = vmatpush.msra.mxu0 0.0
      %5779 = vmatpush.msra.mxu0 0.0
      %5780 = vmatpush.msra.mxu0 0.0
      %5781 = vmatpush.msra.mxu0 0.0
      %5782 = vmatpush.msra.mxu0 0.0
      %5783 = vmatpush.msra.mxu0 0.0
      %5784 = vmatpush.msra.mxu0 0.0
      %5785 = vmatpush.msra.mxu0 0.0
      %5786 = vmatpush.msra.mxu0 0.0
      %5787 = vmatpush.msra.mxu0 0.0
      %5788 = vmatpush.msra.mxu0 0.0
      %5789 = vmatpush.msra.mxu0 0.0
      %5790 = vmatpush.msra.mxu0 %v5479
      %5791 = vmatmul.f32.gmra.mxu0 %v5773
      %v5792 = vpop.f32.mrf.mxu0
      %v5793 = vadd.f32 0.0, %v5792
      %5794 = vdwg.mxu0
      %v5795 = vadd.f32 %v5705, %v5793
      %5796 = vrot.lane.b32.xlu0 %v5505, 104
      %v5797 = vpop.permute.xlu0 %5796
      %5798 = vrot.lane.b32.xlu0 %v5531, 104
      %v5799 = vpop.permute.xlu0 %5798
      %v5800 = vsel %vm749, %v5797, 0
      %v5802 = vsel %vm749, %v5799, 0
      %5804 = vmatpush.xpose.msra.mxu0 0.0
      %5805 = vmatpush.xpose.msra.mxu0 0.0
      %5806 = vmatpush.xpose.msra.mxu0 0.0
      %5807 = vmatpush.xpose.msra.mxu0 0.0
      %5808 = vmatpush.xpose.msra.mxu0 0.0
      %5809 = vmatpush.xpose.msra.mxu0 0.0
      %5810 = vmatpush.xpose.msra.mxu0 0.0
      %5811 = vmatpush.xpose.msra.mxu0 0.0
      %5812 = vmatpush.xpose.msra.mxu0 0.0
      %5813 = vmatpush.xpose.msra.mxu0 0.0
      %5814 = vmatpush.xpose.msra.mxu0 0.0
      %5815 = vmatpush.xpose.msra.mxu0 0.0
      %5816 = vmatpush.xpose.msra.mxu0 0.0
      %5817 = vmatpush.xpose.msra.mxu0 0.0
      %5818 = vmatpush.xpose.msra.mxu0 0.0
      %5819 = vmatpush.xpose.msra.mxu0 %v5802
      %5820 = vmatmul.f32.gmra.mxu0 %v5800
      %v5821 = vpop.f32.mrf.mxu0
      %v5822 = vadd.f32 0.0, %v5821
      %5823 = vdwg.mxu0
      %v5824 = vsel %vm749, %v5822, -inf
      %5825 = vmax.xlane.f32.xlu0 %v5824
      %v5826 = vpop.xlane.xlu0 %5825
      %v5827 = vsub.f32 %v5822, %v5826
      %v5828 = vmul.f32 %v5827, 1.442695
      %v5829 = vpow.pop %v5828
      %v5830 = vsel %vm749, %v5829, 0.0
      %5831 = vadd.xlane.f32.xlu0 %v5830
      %v5832 = vpop.xlane.xlu0 %5831
      %v5833 = vrcp.pop %v5832
      %v5834 = vmul.f32 %v5829, %v5833
      %5835 = vrot.lane.b32.xlu0 %v5531, 72
      %v5836 = vpop.permute.xlu0 %5835
      %v5839 = vsel %vm749, %v5834, 0
      %5841 = vmatpush.msra.mxu0 0.0
      %5842 = vmatpush.msra.mxu0 0.0
      %5843 = vmatpush.msra.mxu0 0.0
      %5844 = vmatpush.msra.mxu0 0.0
      %5845 = vmatpush.msra.mxu0 0.0
      %5846 = vmatpush.msra.mxu0 0.0
      %5847 = vmatpush.msra.mxu0 0.0
      %5848 = vmatpush.msra.mxu0 0.0
      %5849 = vmatpush.msra.mxu0 0.0
      %5850 = vmatpush.msra.mxu0 0.0
      %5851 = vmatpush.msra.mxu0 0.0
      %5852 = vmatpush.msra.mxu0 0.0
      %5853 = vmatpush.msra.mxu0 0.0
      %5854 = vmatpush.msra.mxu0 0.0
      %5855 = vmatpush.msra.mxu0 0.0
      %5856 = vmatpush.msra.mxu0 %v5836
      %5857 = vmatmul.f32.gmra.mxu0 %v5839
      %v5858 = vpop.f32.mrf.mxu0
      %v5859 = vadd.f32 0.0, %v5858
      %5860 = vdwg.mxu0
      %v5862 = vsel %vm749, %v5859, 0
      %5864 = vmatpush.msra.mxu0 0.0
      %5865 = vmatpush.msra.mxu0 0.0
      %5866 = vmatpush.msra.mxu0 0.0
      %5867 = vmatpush.msra.mxu0 0.0
      %5868 = vmatpush.msra.mxu0 0.0
      %5869 = vmatpush.msra.mxu0 0.0
      %5870 = vmatpush.msra.mxu0 0.0
      %5871 = vmatpush.msra.mxu0 0.0
      %5872 = vmatpush.msra.mxu0 0.0
      %5873 = vmatpush.msra.mxu0 0.0
      %5874 = vmatpush.msra.mxu0 0.0
      %5875 = vmatpush.msra.mxu0 0.0
      %5876 = vmatpush.msra.mxu0 0.0
      %5877 = vmatpush.msra.mxu0 0.0
      %5878 = vmatpush.msra.mxu0 0.0
      %5879 = vmatpush.msra.mxu0 %v5480
      %5880 = vmatmul.f32.gmra.mxu0 %v5862
      %v5881 = vpop.f32.mrf.mxu0
      %v5882 = vadd.f32 0.0, %v5881
      %5883 = vdwg.mxu0
      %v5884 = vadd.f32 %v5795, %v5882
      %v5885 = vperm.slane %v5052, 3
      %v5886 = vadd.f32 %v5884, %v5885
      %v5887 = vadd.f32 %v5467, %v5886
      %v5888 = vsel %vm722, %v5887, 0.0
      %5889 = vadd.xlane.f32.xlu0 %v5888
      %v5890 = vpop.xlane.xlu0 %5889
      %v5891 = vmul.f32 %v5890, %v1112
      %v5892 = vsub.f32 %v5887, %v5891
      %v5893 = vmul.f32 %v5892, %v5892
      %v5894 = vsel %vm722, %v5893, 0.0
      %5895 = vadd.xlane.f32.xlu0 %v5894
      %v5896 = vpop.xlane.xlu0 %5895
      %v5897 = vmul.f32 %v5896, %v1112
      %v5898 = vadd.f32 %v5897, 1e-05
      %v5899 = vrsqrt.pop %v5898
      %v5900 = vmul.f32 %v5899, %v5898
      %v5901 = vmul.f32 %v5900, %v5899
      %v5902 = vmul.f32 0.5, %v5901
      %v5903 = vsub.f32 1.5, %v5902
      %v5904 = vmul.f32 %v5899, %v5903
      %vm5905 = vweird.f32 %v5898
      %vm5906 = vweird.f32 %v5899
      %vm5907 = vmor %vm5905, %vm5906
      %v5908 = vsel %vm5907, %v5899, %v5904
      %v5909 = vmul.f32 %v5892, %v5908
      %v5910 = vperm.slane %v5052, 4
      %v5911 = vmul.f32 %v5909, %v5910
      %v5912 = vperm.slane %v5052, 5
      %v5913 = vadd.f32 %v5911, %v5912
      %v5914 = vld [vmem:[%s14] sm:$0xff]
      %v5915 = vld [vmem:[%s14 + $0x8] sm:$0xff]
      %v5916 = vld [vmem:[%s14 + $0x10] sm:$0xff]
      %v5917 = vld [vmem:[%s14 + $0x18] sm:$0xff]
      %v5918 = vld [vmem:[%s14 + $0x20] sm:$0xff]
      %v5919 = vld [vmem:[%s14 + $0x28] sm:$0xff]
      %v5920 = vld [vmem:[%s14 + $0x30] sm:$0xff]
      %v5921 = vld [vmem:[%s14 + $0x38] sm:$0xff]
      %v5922 = vld [vmem:[%s14 + $0x40] sm:$0xff]
      %v5923 = vld [vmem:[%s14 + $0x48] sm:$0xff]
      %v5924 = vld [vmem:[%s14 + $0x50] sm:$0xff]
      %v5925 = vld [vmem:[%s14 + $0x58] sm:$0xff]
      %v5926 = vld [vmem:[%s14 + $0x60] sm:$0xff]
      %v5927 = vld [vmem:[%s14 + $0x68] sm:$0xff]
      %v5928 = vld [vmem:[%s14 + $0x70] sm:$0xff]
      %v5929 = vld [vmem:[%s14 + $0x78] sm:$0xff]
      %v5930 = vld [vmem:[%s14 + $0x80] sm:$0xff]
      %v5931 = vld [vmem:[%s14 + $0x88] sm:$0xff]
      %v5932 = vld [vmem:[%s14 + $0x90] sm:$0xff]
      %v5933 = vld [vmem:[%s14 + $0x98] sm:$0xff]
      %v5934 = vld [vmem:[%s14 + $0xa0] sm:$0xff]
      %v5935 = vld [vmem:[%s14 + $0xa8] sm:$0xff]
      %v5936 = vld [vmem:[%s14 + $0xb0] sm:$0xff]
      %v5937 = vld [vmem:[%s14 + $0xb8] sm:$0xff]
      %v5938 = vld [vmem:[%s14 + $0xc0] sm:$0xff]
      %v5939 = vld [vmem:[%s14 + $0xc8] sm:$0xff]
      %v5940 = vld [vmem:[%s14 + $0xd0] sm:$0xff]
      %v5941 = vld [vmem:[%s14 + $0xd8] sm:$0xff]
      %v5942 = vld [vmem:[%s14 + $0xe0] sm:$0xff]
      %v5943 = vld [vmem:[%s14 + $0xe8] sm:$0xff]
      %v5944 = vld [vmem:[%s14 + $0xf0] sm:$0xff]
      %v5945 = vld [vmem:[%s14 + $0xf8] sm:$0xff]
      %v5946 = vld [vmem:[%s18] sm:$0xff]
      %v5947 = vld [vmem:[%s18 + $0x8] sm:$0xff]
      %v5948 = vld [vmem:[%s15] sm:$0xf]
      %v5949 = vld [vmem:[%s15 + $0x4] sm:$0xf]
      %v5950 = vld [vmem:[%s15 + $0x8] sm:$0xf]
      %v5951 = vld [vmem:[%s15 + $0xc] sm:$0xf]
      %v5952 = vld [vmem:[%s15 + $0x10] sm:$0xf]
      %v5953 = vld [vmem:[%s15 + $0x14] sm:$0xf]
      %v5954 = vld [vmem:[%s15 + $0x18] sm:$0xf]
      %v5955 = vld [vmem:[%s15 + $0x1c] sm:$0xf]
      %v5956 = vld [vmem:[%s15 + $0x20] sm:$0xf]
      %v5957 = vld [vmem:[%s15 + $0x24] sm:$0xf]
      %v5958 = vld [vmem:[%s15 + $0x28] sm:$0xf]
      %v5959 = vld [vmem:[%s15 + $0x2c] sm:$0xf]
      %v5960 = vld [vmem:[%s15 + $0x30] sm:$0xf]
      %v5961 = vld [vmem:[%s15 + $0x34] sm:$0xf]
      %v5962 = vld [vmem:[%s15 + $0x38] sm:$0xf]
      %v5963 = vld [vmem:[%s15 + $0x3c] sm:$0xf]
      %v5964 = vld [vmem:[%s15 + $0x40] sm:$0xf]
      %v5965 = vld [vmem:[%s15 + $0x44] sm:$0xf]
      %v5966 = vld [vmem:[%s15 + $0x48] sm:$0xf]
      %v5967 = vld [vmem:[%s15 + $0x4c] sm:$0xf]
      %v5968 = vld [vmem:[%s15 + $0x50] sm:$0xf]
      %v5969 = vld [vmem:[%s15 + $0x54] sm:$0xf]
      %v5970 = vld [vmem:[%s15 + $0x58] sm:$0xf]
      %v5971 = vld [vmem:[%s15 + $0x5c] sm:$0xf]
      %v5972 = vld [vmem:[%s15 + $0x60] sm:$0xf]
      %v5973 = vld [vmem:[%s15 + $0x64] sm:$0xf]
      %v5974 = vld [vmem:[%s15 + $0x68] sm:$0xf]
      %v5975 = vld [vmem:[%s15 + $0x6c] sm:$0xf]
      %v5976 = vld [vmem:[%s15 + $0x70] sm:$0xf]
      %v5977 = vld [vmem:[%s15 + $0x74] sm:$0xf]
      %v5978 = vld [vmem:[%s15 + $0x78] sm:$0xf]
      %v5979 = vld [vmem:[%s15 + $0x7c] sm:$0xf]
      %v5980 = vld [vmem:[%s15 + $0x80] sm:$0xf]
      %v5981 = vld [vmem:[%s15 + $0x84] sm:$0xf]
      %v5982 = vld [vmem:[%s15 + $0x88] sm:$0xf]
      %v5983 = vld [vmem:[%s15 + $0x8c] sm:$0xf]
      %v5984 = vld [vmem:[%s15 + $0x90] sm:$0xf]
      %v5985 = vld [vmem:[%s15 + $0x94] sm:$0xf]
      %v5986 = vld [vmem:[%s15 + $0x98] sm:$0xf]
      %v5987 = vld [vmem:[%s15 + $0x9c] sm:$0xf]
      %v5988 = vld [vmem:[%s15 + $0xa0] sm:$0xf]
      %v5989 = vld [vmem:[%s15 + $0xa4] sm:$0xf]
      %v5990 = vld [vmem:[%s15 + $0xa8] sm:$0xf]
      %v5991 = vld [vmem:[%s15 + $0xac] sm:$0xf]
      %v5992 = vld [vmem:[%s15 + $0xb0] sm:$0xf]
      %v5993 = vld [vmem:[%s15 + $0xb4] sm:$0xf]
      %v5994 = vld [vmem:[%s15 + $0xb8] sm:$0xf]
      %v5995 = vld [vmem:[%s15 + $0xbc] sm:$0xf]
      %v5996 = vld [vmem:[%s15 + $0xc0] sm:$0xf]
      %v5997 = vld [vmem:[%s15 + $0xc4] sm:$0xf]
      %v5998 = vld [vmem:[%s15 + $0xc8] sm:$0xf]
      %v5999 = vld [vmem:[%s15 + $0xcc] sm:$0xf]
      %v6000 = vld [vmem:[%s15 + $0xd0] sm:$0xf]
      %v6001 = vld [vmem:[%s15 + $0xd4] sm:$0xf]
      %v6002 = vld [vmem:[%s15 + $0xd8] sm:$0xf]
      %v6003 = vld [vmem:[%s15 + $0xdc] sm:$0xf]
      %v6004 = vld [vmem:[%s15 + $0xe0] sm:$0xf]
      %v6005 = vld [vmem:[%s15 + $0xe4] sm:$0xf]
      %v6006 = vld [vmem:[%s15 + $0xe8] sm:$0xf]
      %v6007 = vld [vmem:[%s15 + $0xec] sm:$0xf]
      %v6008 = vld [vmem:[%s15 + $0xf0] sm:$0xf]
      %v6009 = vld [vmem:[%s15 + $0xf4] sm:$0xf]
      %v6010 = vld [vmem:[%s15 + $0xf8] sm:$0xf]
      %v6011 = vld [vmem:[%s15 + $0xfc] sm:$0xf]
      %v6012 = vld [vmem:[%s15 + $0x100] sm:$0xf]
      %v6013 = vld [vmem:[%s15 + $0x104] sm:$0xf]
      %v6014 = vld [vmem:[%s15 + $0x108] sm:$0xf]
      %v6015 = vld [vmem:[%s15 + $0x10c] sm:$0xf]
      %v6016 = vld [vmem:[%s15 + $0x110] sm:$0xf]
      %v6017 = vld [vmem:[%s15 + $0x114] sm:$0xf]
      %v6018 = vld [vmem:[%s15 + $0x118] sm:$0xf]
      %v6019 = vld [vmem:[%s15 + $0x11c] sm:$0xf]
      %v6020 = vld [vmem:[%s15 + $0x120] sm:$0xf]
      %v6021 = vld [vmem:[%s15 + $0x124] sm:$0xf]
      %v6022 = vld [vmem:[%s15 + $0x128] sm:$0xf]
      %v6023 = vld [vmem:[%s15 + $0x12c] sm:$0xf]
      %v6024 = vld [vmem:[%s15 + $0x130] sm:$0xf]
      %v6025 = vld [vmem:[%s15 + $0x134] sm:$0xf]
      %v6026 = vld [vmem:[%s15 + $0x138] sm:$0xf]
      %v6027 = vld [vmem:[%s15 + $0x13c] sm:$0xf]
      %v6028 = vld [vmem:[%s15 + $0x140] sm:$0xf]
      %v6029 = vld [vmem:[%s15 + $0x144] sm:$0xf]
      %v6030 = vld [vmem:[%s15 + $0x148] sm:$0xf]
      %v6031 = vld [vmem:[%s15 + $0x14c] sm:$0xf]
      %v6032 = vld [vmem:[%s15 + $0x150] sm:$0xf]
      %v6033 = vld [vmem:[%s15 + $0x154] sm:$0xf]
      %v6034 = vld [vmem:[%s15 + $0x158] sm:$0xf]
      %v6035 = vld [vmem:[%s15 + $0x15c] sm:$0xf]
      %v6036 = vld [vmem:[%s15 + $0x160] sm:$0xf]
      %v6037 = vld [vmem:[%s15 + $0x164] sm:$0xf]
      %v6038 = vld [vmem:[%s15 + $0x168] sm:$0xf]
      %v6039 = vld [vmem:[%s15 + $0x16c] sm:$0xf]
      %v6040 = vld [vmem:[%s15 + $0x170] sm:$0xf]
      %v6041 = vld [vmem:[%s15 + $0x174] sm:$0xf]
      %v6042 = vld [vmem:[%s15 + $0x178] sm:$0xf]
      %v6043 = vld [vmem:[%s15 + $0x17c] sm:$0xf]
      %v6044 = vld [vmem:[%s15 + $0x180] sm:$0xf]
      %v6045 = vld [vmem:[%s15 + $0x184] sm:$0xf]
      %v6046 = vld [vmem:[%s15 + $0x188] sm:$0xf]
      %v6047 = vld [vmem:[%s15 + $0x18c] sm:$0xf]
      %v6048 = vld [vmem:[%s15 + $0x190] sm:$0xf]
      %v6049 = vld [vmem:[%s15 + $0x194] sm:$0xf]
      %v6050 = vld [vmem:[%s15 + $0x198] sm:$0xf]
      %v6051 = vld [vmem:[%s15 + $0x19c] sm:$0xf]
      %v6052 = vld [vmem:[%s15 + $0x1a0] sm:$0xf]
      %v6053 = vld [vmem:[%s15 + $0x1a4] sm:$0xf]
      %v6054 = vld [vmem:[%s15 + $0x1a8] sm:$0xf]
      %v6055 = vld [vmem:[%s15 + $0x1ac] sm:$0xf]
      %v6056 = vld [vmem:[%s15 + $0x1b0] sm:$0xf]
      %v6057 = vld [vmem:[%s15 + $0x1b4] sm:$0xf]
      %v6058 = vld [vmem:[%s15 + $0x1b8] sm:$0xf]
      %v6059 = vld [vmem:[%s15 + $0x1bc] sm:$0xf]
      %v6060 = vld [vmem:[%s15 + $0x1c0] sm:$0xf]
      %v6061 = vld [vmem:[%s15 + $0x1c4] sm:$0xf]
      %v6062 = vld [vmem:[%s15 + $0x1c8] sm:$0xf]
      %v6063 = vld [vmem:[%s15 + $0x1cc] sm:$0xf]
      %v6064 = vld [vmem:[%s15 + $0x1d0] sm:$0xf]
      %v6065 = vld [vmem:[%s15 + $0x1d4] sm:$0xf]
      %v6066 = vld [vmem:[%s15 + $0x1d8] sm:$0xf]
      %v6067 = vld [vmem:[%s15 + $0x1dc] sm:$0xf]
      %v6068 = vld [vmem:[%s15 + $0x1e0] sm:$0xf]
      %v6069 = vld [vmem:[%s15 + $0x1e4] sm:$0xf]
      %v6070 = vld [vmem:[%s15 + $0x1e8] sm:$0xf]
      %v6071 = vld [vmem:[%s15 + $0x1ec] sm:$0xf]
      %v6072 = vld [vmem:[%s15 + $0x1f0] sm:$0xf]
      %v6073 = vld [vmem:[%s15 + $0x1f4] sm:$0xf]
      %v6074 = vld [vmem:[%s15 + $0x1f8] sm:$0xf]
      %v6075 = vld [vmem:[%s15 + $0x1fc] sm:$0xf]
      %v6076 = vld [vmem:[%s15 + $0x200] sm:$0xf]
      %v6077 = vld [vmem:[%s15 + $0x204] sm:$0xf]
      %v6078 = vld [vmem:[%s15 + $0x208] sm:$0xf]
      %v6079 = vld [vmem:[%s15 + $0x20c] sm:$0xf]
      %v6080 = vld [vmem:[%s15 + $0x210] sm:$0xf]
      %v6081 = vld [vmem:[%s15 + $0x214] sm:$0xf]
      %v6082 = vld [vmem:[%s15 + $0x218] sm:$0xf]
      %v6083 = vld [vmem:[%s15 + $0x21c] sm:$0xf]
      %v6084 = vld [vmem:[%s15 + $0x220] sm:$0xf]
      %v6085 = vld [vmem:[%s15 + $0x224] sm:$0xf]
      %v6086 = vld [vmem:[%s15 + $0x228] sm:$0xf]
      %v6087 = vld [vmem:[%s15 + $0x22c] sm:$0xf]
      %v6088 = vld [vmem:[%s15 + $0x230] sm:$0xf]
      %v6089 = vld [vmem:[%s15 + $0x234] sm:$0xf]
      %v6090 = vld [vmem:[%s15 + $0x238] sm:$0xf]
      %v6091 = vld [vmem:[%s15 + $0x23c] sm:$0xf]
      %v6092 = vld [vmem:[%s15 + $0x240] sm:$0xf]
      %v6093 = vld [vmem:[%s15 + $0x244] sm:$0xf]
      %v6094 = vld [vmem:[%s15 + $0x248] sm:$0xf]
      %v6095 = vld [vmem:[%s15 + $0x24c] sm:$0xf]
      %v6096 = vld [vmem:[%s15 + $0x250] sm:$0xf]
      %v6097 = vld [vmem:[%s15 + $0x254] sm:$0xf]
      %v6098 = vld [vmem:[%s15 + $0x258] sm:$0xf]
      %v6099 = vld [vmem:[%s15 + $0x25c] sm:$0xf]
      %v6100 = vld [vmem:[%s15 + $0x260] sm:$0xf]
      %v6101 = vld [vmem:[%s15 + $0x264] sm:$0xf]
      %v6102 = vld [vmem:[%s15 + $0x268] sm:$0xf]
      %v6103 = vld [vmem:[%s15 + $0x26c] sm:$0xf]
      %v6104 = vld [vmem:[%s15 + $0x270] sm:$0xf]
      %v6105 = vld [vmem:[%s15 + $0x274] sm:$0xf]
      %v6106 = vld [vmem:[%s15 + $0x278] sm:$0xf]
      %v6107 = vld [vmem:[%s15 + $0x27c] sm:$0xf]
      %v6108 = vld [vmem:[%s15 + $0x280] sm:$0xf]
      %v6109 = vld [vmem:[%s15 + $0x284] sm:$0xf]
      %v6110 = vld [vmem:[%s15 + $0x288] sm:$0xf]
      %v6111 = vld [vmem:[%s15 + $0x28c] sm:$0xf]
      %v6112 = vld [vmem:[%s15 + $0x290] sm:$0xf]
      %v6113 = vld [vmem:[%s15 + $0x294] sm:$0xf]
      %v6114 = vld [vmem:[%s15 + $0x298] sm:$0xf]
      %v6115 = vld [vmem:[%s15 + $0x29c] sm:$0xf]
      %v6116 = vld [vmem:[%s15 + $0x2a0] sm:$0xf]
      %v6117 = vld [vmem:[%s15 + $0x2a4] sm:$0xf]
      %v6118 = vld [vmem:[%s15 + $0x2a8] sm:$0xf]
      %v6119 = vld [vmem:[%s15 + $0x2ac] sm:$0xf]
      %v6120 = vld [vmem:[%s15 + $0x2b0] sm:$0xf]
      %v6121 = vld [vmem:[%s15 + $0x2b4] sm:$0xf]
      %v6122 = vld [vmem:[%s15 + $0x2b8] sm:$0xf]
      %v6123 = vld [vmem:[%s15 + $0x2bc] sm:$0xf]
      %v6124 = vld [vmem:[%s15 + $0x2c0] sm:$0xf]
      %v6125 = vld [vmem:[%s15 + $0x2c4] sm:$0xf]
      %v6126 = vld [vmem:[%s15 + $0x2c8] sm:$0xf]
      %v6127 = vld [vmem:[%s15 + $0x2cc] sm:$0xf]
      %v6128 = vld [vmem:[%s15 + $0x2d0] sm:$0xf]
      %v6129 = vld [vmem:[%s15 + $0x2d4] sm:$0xf]
      %v6130 = vld [vmem:[%s15 + $0x2d8] sm:$0xf]
      %v6131 = vld [vmem:[%s15 + $0x2dc] sm:$0xf]
      %v6132 = vld [vmem:[%s15 + $0x2e0] sm:$0xf]
      %v6133 = vld [vmem:[%s15 + $0x2e4] sm:$0xf]
      %v6134 = vld [vmem:[%s15 + $0x2e8] sm:$0xf]
      %v6135 = vld [vmem:[%s15 + $0x2ec] sm:$0xf]
      %v6136 = vld [vmem:[%s15 + $0x2f0] sm:$0xf]
      %v6137 = vld [vmem:[%s15 + $0x2f4] sm:$0xf]
      %v6138 = vld [vmem:[%s15 + $0x2f8] sm:$0xf]
      %v6139 = vld [vmem:[%s15 + $0x2fc] sm:$0xf]
      %v6140 = vld [vmem:[%s15 + $0x300] sm:$0xf]
      %v6141 = vld [vmem:[%s15 + $0x304] sm:$0xf]
      %v6142 = vld [vmem:[%s15 + $0x308] sm:$0xf]
      %v6143 = vld [vmem:[%s15 + $0x30c] sm:$0xf]
      %v6144 = vld [vmem:[%s15 + $0x310] sm:$0xf]
      %v6145 = vld [vmem:[%s15 + $0x314] sm:$0xf]
      %v6146 = vld [vmem:[%s15 + $0x318] sm:$0xf]
      %v6147 = vld [vmem:[%s15 + $0x31c] sm:$0xf]
      %v6148 = vld [vmem:[%s15 + $0x320] sm:$0xf]
      %v6149 = vld [vmem:[%s15 + $0x324] sm:$0xf]
      %v6150 = vld [vmem:[%s15 + $0x328] sm:$0xf]
      %v6151 = vld [vmem:[%s15 + $0x32c] sm:$0xf]
      %v6152 = vld [vmem:[%s15 + $0x330] sm:$0xf]
      %v6153 = vld [vmem:[%s15 + $0x334] sm:$0xf]
      %v6154 = vld [vmem:[%s15 + $0x338] sm:$0xf]
      %v6155 = vld [vmem:[%s15 + $0x33c] sm:$0xf]
      %v6156 = vld [vmem:[%s15 + $0x340] sm:$0xf]
      %v6157 = vld [vmem:[%s15 + $0x344] sm:$0xf]
      %v6158 = vld [vmem:[%s15 + $0x348] sm:$0xf]
      %v6159 = vld [vmem:[%s15 + $0x34c] sm:$0xf]
      %v6160 = vld [vmem:[%s15 + $0x350] sm:$0xf]
      %v6161 = vld [vmem:[%s15 + $0x354] sm:$0xf]
      %v6162 = vld [vmem:[%s15 + $0x358] sm:$0xf]
      %v6163 = vld [vmem:[%s15 + $0x35c] sm:$0xf]
      %v6164 = vld [vmem:[%s15 + $0x360] sm:$0xf]
      %v6165 = vld [vmem:[%s15 + $0x364] sm:$0xf]
      %v6166 = vld [vmem:[%s15 + $0x368] sm:$0xf]
      %v6167 = vld [vmem:[%s15 + $0x36c] sm:$0xf]
      %v6168 = vld [vmem:[%s15 + $0x370] sm:$0xf]
      %v6169 = vld [vmem:[%s15 + $0x374] sm:$0xf]
      %v6170 = vld [vmem:[%s15 + $0x378] sm:$0xf]
      %v6171 = vld [vmem:[%s15 + $0x37c] sm:$0xf]
      %v6172 = vld [vmem:[%s15 + $0x380] sm:$0xf]
      %v6173 = vld [vmem:[%s15 + $0x384] sm:$0xf]
      %v6174 = vld [vmem:[%s15 + $0x388] sm:$0xf]
      %v6175 = vld [vmem:[%s15 + $0x38c] sm:$0xf]
      %v6176 = vld [vmem:[%s15 + $0x390] sm:$0xf]
      %v6177 = vld [vmem:[%s15 + $0x394] sm:$0xf]
      %v6178 = vld [vmem:[%s15 + $0x398] sm:$0xf]
      %v6179 = vld [vmem:[%s15 + $0x39c] sm:$0xf]
      %v6180 = vld [vmem:[%s15 + $0x3a0] sm:$0xf]
      %v6181 = vld [vmem:[%s15 + $0x3a4] sm:$0xf]
      %v6182 = vld [vmem:[%s15 + $0x3a8] sm:$0xf]
      %v6183 = vld [vmem:[%s15 + $0x3ac] sm:$0xf]
      %v6184 = vld [vmem:[%s15 + $0x3b0] sm:$0xf]
      %v6185 = vld [vmem:[%s15 + $0x3b4] sm:$0xf]
      %v6186 = vld [vmem:[%s15 + $0x3b8] sm:$0xf]
      %v6187 = vld [vmem:[%s15 + $0x3bc] sm:$0xf]
      %v6188 = vld [vmem:[%s15 + $0x3c0] sm:$0xf]
      %v6189 = vld [vmem:[%s15 + $0x3c4] sm:$0xf]
      %v6190 = vld [vmem:[%s15 + $0x3c8] sm:$0xf]
      %v6191 = vld [vmem:[%s15 + $0x3cc] sm:$0xf]
      %v6192 = vld [vmem:[%s15 + $0x3d0] sm:$0xf]
      %v6193 = vld [vmem:[%s15 + $0x3d4] sm:$0xf]
      %v6194 = vld [vmem:[%s15 + $0x3d8] sm:$0xf]
      %v6195 = vld [vmem:[%s15 + $0x3dc] sm:$0xf]
      %v6196 = vld [vmem:[%s15 + $0x3e0] sm:$0xf]
      %v6197 = vld [vmem:[%s15 + $0x3e4] sm:$0xf]
      %v6198 = vld [vmem:[%s15 + $0x3e8] sm:$0xf]
      %v6199 = vld [vmem:[%s15 + $0x3ec] sm:$0xf]
      %v6200 = vld [vmem:[%s15 + $0x3f0] sm:$0xf]
      %v6201 = vld [vmem:[%s15 + $0x3f4] sm:$0xf]
      %v6202 = vld [vmem:[%s15 + $0x3f8] sm:$0xf]
      %v6203 = vld [vmem:[%s15 + $0x3fc] sm:$0xf]
      %v6204 = vpack.c.bf16 %v5913, %v5913
      %v6207 = vperm.slane %v5946, 0
      %v6208 = vperm.slane %v5946, 1
      %v6209 = vperm.slane %v5946, 2
      %v6210 = vperm.slane %v5946, 3
      %v6211 = vperm.slane %v5946, 4
      %v6212 = vperm.slane %v5946, 5
      %v6213 = vperm.slane %v5946, 6
      %v6214 = vperm.slane %v5946, 7
      %v6215 = vperm.slane %v5947, 0
      %v6216 = vperm.slane %v5947, 1
      %v6217 = vperm.slane %v5947, 2
      %v6218 = vperm.slane %v5947, 3
      %v6219 = vperm.slane %v5947, 4
      %v6220 = vperm.slane %v5947, 5
      %v6221 = vperm.slane %v5947, 6
      %v6222 = vperm.slane %v5947, 7
      %v6271 = vunpack.c.l.b16 %v5914
      %v6272 = vunpack.c.h.b16 %v5914
      %v6273 = vunpack.c.l.b16 %v5915
      %v6274 = vunpack.c.h.b16 %v5915
      %v6275 = vunpack.c.l.b16 %v5916
      %v6276 = vunpack.c.h.b16 %v5916
      %v6277 = vunpack.c.l.b16 %v5917
      %v6278 = vunpack.c.h.b16 %v5917
      %v6279 = vunpack.c.l.b16 %v5918
      %v6280 = vunpack.c.h.b16 %v5918
      %v6281 = vunpack.c.l.b16 %v5919
      %v6282 = vunpack.c.h.b16 %v5919
      %v6283 = vunpack.c.l.b16 %v5920
      %v6284 = vunpack.c.h.b16 %v5920
      %v6285 = vunpack.c.l.b16 %v5921
      %v6286 = vunpack.c.h.b16 %v5921
      %v6287 = vunpack.c.l.b16 %v5922
      %v6288 = vunpack.c.h.b16 %v5922
      %v6289 = vunpack.c.l.b16 %v5923
      %v6290 = vunpack.c.h.b16 %v5923
      %v6291 = vunpack.c.l.b16 %v5924
      %v6292 = vunpack.c.h.b16 %v5924
      %v6293 = vunpack.c.l.b16 %v5925
      %v6294 = vunpack.c.h.b16 %v5925
      %v6295 = vunpack.c.l.b16 %v5926
      %v6296 = vunpack.c.h.b16 %v5926
      %v6297 = vunpack.c.l.b16 %v5927
      %v6298 = vunpack.c.h.b16 %v5927
      %v6299 = vunpack.c.l.b16 %v5928
      %v6300 = vunpack.c.h.b16 %v5928
      %v6301 = vunpack.c.l.b16 %v5929
      %v6302 = vunpack.c.h.b16 %v5929
      %v6303 = vunpack.c.l.b16 %v5930
      %v6304 = vunpack.c.h.b16 %v5930
      %v6305 = vunpack.c.l.b16 %v5931
      %v6306 = vunpack.c.h.b16 %v5931
      %v6307 = vunpack.c.l.b16 %v5932
      %v6308 = vunpack.c.h.b16 %v5932
      %v6309 = vunpack.c.l.b16 %v5933
      %v6310 = vunpack.c.h.b16 %v5933
      %v6311 = vunpack.c.l.b16 %v5934
      %v6312 = vunpack.c.h.b16 %v5934
      %v6313 = vunpack.c.l.b16 %v5935
      %v6314 = vunpack.c.h.b16 %v5935
      %v6315 = vunpack.c.l.b16 %v5936
      %v6316 = vunpack.c.h.b16 %v5936
      %v6317 = vunpack.c.l.b16 %v5937
      %v6318 = vunpack.c.h.b16 %v5937
      %v6319 = vunpack.c.l.b16 %v5938
      %v6320 = vunpack.c.h.b16 %v5938
      %v6321 = vunpack.c.l.b16 %v5939
      %v6322 = vunpack.c.h.b16 %v5939
      %v6323 = vunpack.c.l.b16 %v5940
      %v6324 = vunpack.c.h.b16 %v5940
      %v6325 = vunpack.c.l.b16 %v5941
      %v6326 = vunpack.c.h.b16 %v5941
      %v6327 = vunpack.c.l.b16 %v5942
      %v6328 = vunpack.c.h.b16 %v5942
      %v6329 = vunpack.c.l.b16 %v5943
      %v6330 = vunpack.c.h.b16 %v5943
      %v6331 = vunpack.c.l.b16 %v5944
      %v6332 = vunpack.c.h.b16 %v5944
      %v6333 = vunpack.c.l.b16 %v5945
      %v6334 = vunpack.c.h.b16 %v5945
      %v6335 = vpack.c.b16 %v6287, %v6271
      %v6336 = vpack.c.b16 %v6288, %v6272
      %v6337 = vpack.c.b16 %v6289, %v6273
      %v6338 = vpack.c.b16 %v6290, %v6274
      %v6339 = vpack.c.b16 %v6291, %v6275
      %v6340 = vpack.c.b16 %v6292, %v6276
      %v6341 = vpack.c.b16 %v6293, %v6277
      %v6342 = vpack.c.b16 %v6294, %v6278
      %v6343 = vpack.c.b16 %v6295, %v6279
      %v6344 = vpack.c.b16 %v6296, %v6280
      %v6345 = vpack.c.b16 %v6297, %v6281
      %v6346 = vpack.c.b16 %v6298, %v6282
      %v6347 = vpack.c.b16 %v6299, %v6283
      %v6348 = vpack.c.b16 %v6300, %v6284
      %v6349 = vpack.c.b16 %v6301, %v6285
      %v6350 = vpack.c.b16 %v6302, %v6286
      %v6351 = vpack.c.b16 %v6319, %v6303
      %v6352 = vpack.c.b16 %v6320, %v6304
      %v6353 = vpack.c.b16 %v6321, %v6305
      %v6354 = vpack.c.b16 %v6322, %v6306
      %v6355 = vpack.c.b16 %v6323, %v6307
      %v6356 = vpack.c.b16 %v6324, %v6308
      %v6357 = vpack.c.b16 %v6325, %v6309
      %v6358 = vpack.c.b16 %v6326, %v6310
      %v6359 = vpack.c.b16 %v6327, %v6311
      %v6360 = vpack.c.b16 %v6328, %v6312
      %v6361 = vpack.c.b16 %v6329, %v6313
      %v6362 = vpack.c.b16 %v6330, %v6314
      %v6363 = vpack.c.b16 %v6331, %v6315
      %v6364 = vpack.c.b16 %v6332, %v6316
      %v6365 = vpack.c.b16 %v6333, %v6317
      %v6366 = vpack.c.b16 %v6334, %v6318
      %v6400 = vsel %vm722, %v6204, 0
      %6402 = vmatpush.bf16.msra.mxu0 0
      %6403 = vmatpush.bf16.msra.mxu0 0
      %6404 = vmatpush.bf16.msra.mxu0 0
      %6405 = vmatpush.bf16.msra.mxu0 0
      %6406 = vmatpush.bf16.msra.mxu0 0
      %6407 = vmatpush.bf16.msra.mxu0 0
      %6408 = vmatpush.bf16.msra.mxu0 %v6351
      %6409 = vmatpush.bf16.msra.mxu0 %v6335
      %6410 = vmatmul.bf16.gmra.mxu0 %v6400
      %v6411 = vpop.f32.mrf.mxu0
      %v6412 = vadd.f32 %v6207, %v6411
      %v6413 = vpop.f32.mrf.mxu0
      %6414 = vdwg.mxu0
      %6415 = vmatpush.bf16.msra.mxu0 0
      %6416 = vmatpush.bf16.msra.mxu0 0
      %6417 = vmatpush.bf16.msra.mxu0 0
      %6418 = vmatpush.bf16.msra.mxu0 0
      %6419 = vmatpush.bf16.msra.mxu0 0
      %6420 = vmatpush.bf16.msra.mxu0 0
      %6421 = vmatpush.bf16.msra.mxu0 %v6352
      %6422 = vmatpush.bf16.msra.mxu0 %v6336
      %6423 = vmatmul.bf16.gmra.mxu0 %v6400
      %v6424 = vpop.f32.mrf.mxu0
      %v6425 = vadd.f32 %v6208, %v6424
      %v6426 = vpop.f32.mrf.mxu0
      %6427 = vdwg.mxu0
      %6428 = vmatpush.bf16.msra.mxu0 0
      %6429 = vmatpush.bf16.msra.mxu0 0
      %6430 = vmatpush.bf16.msra.mxu0 0
      %6431 = vmatpush.bf16.msra.mxu0 0
      %6432 = vmatpush.bf16.msra.mxu0 0
      %6433 = vmatpush.bf16.msra.mxu0 0
      %6434 = vmatpush.bf16.msra.mxu0 %v6353
      %6435 = vmatpush.bf16.msra.mxu0 %v6337
      %6436 = vmatmul.bf16.gmra.mxu0 %v6400
      %v6437 = vpop.f32.mrf.mxu0
      %v6438 = vadd.f32 %v6209, %v6437
      %v6439 = vpop.f32.mrf.mxu0
      %6440 = vdwg.mxu0
      %6441 = vmatpush.bf16.msra.mxu0 0
      %6442 = vmatpush.bf16.msra.mxu0 0
      %6443 = vmatpush.bf16.msra.mxu0 0
      %6444 = vmatpush.bf16.msra.mxu0 0
      %6445 = vmatpush.bf16.msra.mxu0 0
      %6446 = vmatpush.bf16.msra.mxu0 0
      %6447 = vmatpush.bf16.msra.mxu0 %v6354
      %6448 = vmatpush.bf16.msra.mxu0 %v6338
      %6449 = vmatmul.bf16.gmra.mxu0 %v6400
      %v6450 = vpop.f32.mrf.mxu0
      %v6451 = vadd.f32 %v6210, %v6450
      %v6452 = vpop.f32.mrf.mxu0
      %6453 = vdwg.mxu0
      %6454 = vmatpush.bf16.msra.mxu0 0
      %6455 = vmatpush.bf16.msra.mxu0 0
      %6456 = vmatpush.bf16.msra.mxu0 0
      %6457 = vmatpush.bf16.msra.mxu0 0
      %6458 = vmatpush.bf16.msra.mxu0 0
      %6459 = vmatpush.bf16.msra.mxu0 0
      %6460 = vmatpush.bf16.msra.mxu0 %v6355
      %6461 = vmatpush.bf16.msra.mxu0 %v6339
      %6462 = vmatmul.bf16.gmra.mxu0 %v6400
      %v6463 = vpop.f32.mrf.mxu0
      %v6464 = vadd.f32 %v6211, %v6463
      %v6465 = vpop.f32.mrf.mxu0
      %6466 = vdwg.mxu0
      %6467 = vmatpush.bf16.msra.mxu0 0
      %6468 = vmatpush.bf16.msra.mxu0 0
      %6469 = vmatpush.bf16.msra.mxu0 0
      %6470 = vmatpush.bf16.msra.mxu0 0
      %6471 = vmatpush.bf16.msra.mxu0 0
      %6472 = vmatpush.bf16.msra.mxu0 0
      %6473 = vmatpush.bf16.msra.mxu0 %v6356
      %6474 = vmatpush.bf16.msra.mxu0 %v6340
      %6475 = vmatmul.bf16.gmra.mxu0 %v6400
      %v6476 = vpop.f32.mrf.mxu0
      %v6477 = vadd.f32 %v6212, %v6476
      %v6478 = vpop.f32.mrf.mxu0
      %6479 = vdwg.mxu0
      %6480 = vmatpush.bf16.msra.mxu0 0
      %6481 = vmatpush.bf16.msra.mxu0 0
      %6482 = vmatpush.bf16.msra.mxu0 0
      %6483 = vmatpush.bf16.msra.mxu0 0
      %6484 = vmatpush.bf16.msra.mxu0 0
      %6485 = vmatpush.bf16.msra.mxu0 0
      %6486 = vmatpush.bf16.msra.mxu0 %v6357
      %6487 = vmatpush.bf16.msra.mxu0 %v6341
      %6488 = vmatmul.bf16.gmra.mxu0 %v6400
      %v6489 = vpop.f32.mrf.mxu0
      %v6490 = vadd.f32 %v6213, %v6489
      %v6491 = vpop.f32.mrf.mxu0
      %6492 = vdwg.mxu0
      %6493 = vmatpush.bf16.msra.mxu0 0
      %6494 = vmatpush.bf16.msra.mxu0 0
      %6495 = vmatpush.bf16.msra.mxu0 0
      %6496 = vmatpush.bf16.msra.mxu0 0
      %6497 = vmatpush.bf16.msra.mxu0 0
      %6498 = vmatpush.bf16.msra.mxu0 0
      %6499 = vmatpush.bf16.msra.mxu0 %v6358
      %6500 = vmatpush.bf16.msra.mxu0 %v6342
      %6501 = vmatmul.bf16.gmra.mxu0 %v6400
      %v6502 = vpop.f32.mrf.mxu0
      %v6503 = vadd.f32 %v6214, %v6502
      %v6504 = vpop.f32.mrf.mxu0
      %6505 = vdwg.mxu0
      %6506 = vmatpush.bf16.msra.mxu0 0
      %6507 = vmatpush.bf16.msra.mxu0 0
      %6508 = vmatpush.bf16.msra.mxu0 0
      %6509 = vmatpush.bf16.msra.mxu0 0
      %6510 = vmatpush.bf16.msra.mxu0 0
      %6511 = vmatpush.bf16.msra.mxu0 0
      %6512 = vmatpush.bf16.msra.mxu0 %v6359
      %6513 = vmatpush.bf16.msra.mxu0 %v6343
      %6514 = vmatmul.bf16.gmra.mxu0 %v6400
      %v6515 = vpop.f32.mrf.mxu0
      %v6516 = vadd.f32 %v6215, %v6515
      %v6517 = vpop.f32.mrf.mxu0
      %6518 = vdwg.mxu0
      %6519 = vmatpush.bf16.msra.mxu0 0
      %6520 = vmatpush.bf16.msra.mxu0 0
      %6521 = vmatpush.bf16.msra.mxu0 0
      %6522 = vmatpush.bf16.msra.mxu0 0
      %6523 = vmatpush.bf16.msra.mxu0 0
      %6524 = vmatpush.bf16.msra.mxu0 0
      %6525 = vmatpush.bf16.msra.mxu0 %v6360
      %6526 = vmatpush.bf16.msra.mxu0 %v6344
      %6527 = vmatmul.bf16.gmra.mxu0 %v6400
      %v6528 = vpop.f32.mrf.mxu0
      %v6529 = vadd.f32 %v6216, %v6528
      %v6530 = vpop.f32.mrf.mxu0
      %6531 = vdwg.mxu0
      %6532 = vmatpush.bf16.msra.mxu0 0
      %6533 = vmatpush.bf16.msra.mxu0 0
      %6534 = vmatpush.bf16.msra.mxu0 0
      %6535 = vmatpush.bf16.msra.mxu0 0
      %6536 = vmatpush.bf16.msra.mxu0 0
      %6537 = vmatpush.bf16.msra.mxu0 0
      %6538 = vmatpush.bf16.msra.mxu0 %v6361
      %6539 = vmatpush.bf16.msra.mxu0 %v6345
      %6540 = vmatmul.bf16.gmra.mxu0 %v6400
      %v6541 = vpop.f32.mrf.mxu0
      %v6542 = vadd.f32 %v6217, %v6541
      %v6543 = vpop.f32.mrf.mxu0
      %6544 = vdwg.mxu0
      %6545 = vmatpush.bf16.msra.mxu0 0
      %6546 = vmatpush.bf16.msra.mxu0 0
      %6547 = vmatpush.bf16.msra.mxu0 0
      %6548 = vmatpush.bf16.msra.mxu0 0
      %6549 = vmatpush.bf16.msra.mxu0 0
      %6550 = vmatpush.bf16.msra.mxu0 0
      %6551 = vmatpush.bf16.msra.mxu0 %v6362
      %6552 = vmatpush.bf16.msra.mxu0 %v6346
      %6553 = vmatmul.bf16.gmra.mxu0 %v6400
      %v6554 = vpop.f32.mrf.mxu0
      %v6555 = vadd.f32 %v6218, %v6554
      %v6556 = vpop.f32.mrf.mxu0
      %6557 = vdwg.mxu0
      %6558 = vmatpush.bf16.msra.mxu0 0
      %6559 = vmatpush.bf16.msra.mxu0 0
      %6560 = vmatpush.bf16.msra.mxu0 0
      %6561 = vmatpush.bf16.msra.mxu0 0
      %6562 = vmatpush.bf16.msra.mxu0 0
      %6563 = vmatpush.bf16.msra.mxu0 0
      %6564 = vmatpush.bf16.msra.mxu0 %v6363
      %6565 = vmatpush.bf16.msra.mxu0 %v6347
      %6566 = vmatmul.bf16.gmra.mxu0 %v6400
      %v6567 = vpop.f32.mrf.mxu0
      %v6568 = vadd.f32 %v6219, %v6567
      %v6569 = vpop.f32.mrf.mxu0
      %6570 = vdwg.mxu0
      %6571 = vmatpush.bf16.msra.mxu0 0
      %6572 = vmatpush.bf16.msra.mxu0 0
      %6573 = vmatpush.bf16.msra.mxu0 0
      %6574 = vmatpush.bf16.msra.mxu0 0
      %6575 = vmatpush.bf16.msra.mxu0 0
      %6576 = vmatpush.bf16.msra.mxu0 0
      %6577 = vmatpush.bf16.msra.mxu0 %v6364
      %6578 = vmatpush.bf16.msra.mxu0 %v6348
      %6579 = vmatmul.bf16.gmra.mxu0 %v6400
      %v6580 = vpop.f32.mrf.mxu0
      %v6581 = vadd.f32 %v6220, %v6580
      %v6582 = vpop.f32.mrf.mxu0
      %6583 = vdwg.mxu0
      %6584 = vmatpush.bf16.msra.mxu0 0
      %6585 = vmatpush.bf16.msra.mxu0 0
      %6586 = vmatpush.bf16.msra.mxu0 0
      %6587 = vmatpush.bf16.msra.mxu0 0
      %6588 = vmatpush.bf16.msra.mxu0 0
      %6589 = vmatpush.bf16.msra.mxu0 0
      %6590 = vmatpush.bf16.msra.mxu0 %v6365
      %6591 = vmatpush.bf16.msra.mxu0 %v6349
      %6592 = vmatmul.bf16.gmra.mxu0 %v6400
      %v6593 = vpop.f32.mrf.mxu0
      %v6594 = vadd.f32 %v6221, %v6593
      %v6595 = vpop.f32.mrf.mxu0
      %6596 = vdwg.mxu0
      %6597 = vmatpush.bf16.msra.mxu0 0
      %6598 = vmatpush.bf16.msra.mxu0 0
      %6599 = vmatpush.bf16.msra.mxu0 0
      %6600 = vmatpush.bf16.msra.mxu0 0
      %6601 = vmatpush.bf16.msra.mxu0 0
      %6602 = vmatpush.bf16.msra.mxu0 0
      %6603 = vmatpush.bf16.msra.mxu0 %v6366
      %6604 = vmatpush.bf16.msra.mxu0 %v6350
      %6605 = vmatmul.bf16.gmra.mxu0 %v6400
      %v6606 = vpop.f32.mrf.mxu0
      %v6607 = vadd.f32 %v6222, %v6606
      %v6608 = vpop.f32.mrf.mxu0
      %6609 = vdwg.mxu0
      %v6610 = vmax.f32 %v6412, 0.0
      %v6611 = vmax.f32 %v6425, 0.0
      %v6612 = vmax.f32 %v6438, 0.0
      %v6613 = vmax.f32 %v6451, 0.0
      %v6614 = vmax.f32 %v6464, 0.0
      %v6615 = vmax.f32 %v6477, 0.0
      %v6616 = vmax.f32 %v6490, 0.0
      %v6617 = vmax.f32 %v6503, 0.0
      %v6618 = vmax.f32 %v6516, 0.0
      %v6619 = vmax.f32 %v6529, 0.0
      %v6620 = vmax.f32 %v6542, 0.0
      %v6621 = vmax.f32 %v6555, 0.0
      %v6622 = vmax.f32 %v6568, 0.0
      %v6623 = vmax.f32 %v6581, 0.0
      %v6624 = vmax.f32 %v6594, 0.0
      %v6625 = vmax.f32 %v6607, 0.0
      %v6626 = vpack.c.bf16 %v6610, %v6610
      %v6627 = vpack.c.bf16 %v6611, %v6611
      %v6628 = vpack.c.bf16 %v6612, %v6612
      %v6629 = vpack.c.bf16 %v6613, %v6613
      %v6630 = vpack.c.bf16 %v6614, %v6614
      %v6631 = vpack.c.bf16 %v6615, %v6615
      %v6632 = vpack.c.bf16 %v6616, %v6616
      %v6633 = vpack.c.bf16 %v6617, %v6617
      %v6634 = vpack.c.bf16 %v6618, %v6618
      %v6635 = vpack.c.bf16 %v6619, %v6619
      %v6636 = vpack.c.bf16 %v6620, %v6620
      %v6637 = vpack.c.bf16 %v6621, %v6621
      %v6638 = vpack.c.bf16 %v6622, %v6622
      %v6639 = vpack.c.bf16 %v6623, %v6623
      %v6640 = vpack.c.bf16 %v6624, %v6624
      %v6641 = vpack.c.bf16 %v6625, %v6625
      %v6642 = vperm.slane %v5052, 6
      %v6899 = vunpack.c.l.b16 %v5948
      %v6900 = vunpack.c.l.b16 %v5949
      %v6901 = vunpack.c.l.b16 %v5950
      %v6902 = vunpack.c.l.b16 %v5951
      %v6903 = vunpack.c.l.b16 %v5952
      %v6904 = vunpack.c.l.b16 %v5953
      %v6905 = vunpack.c.l.b16 %v5954
      %v6906 = vunpack.c.l.b16 %v5955
      %v6907 = vunpack.c.l.b16 %v5956
      %v6908 = vunpack.c.l.b16 %v5957
      %v6909 = vunpack.c.l.b16 %v5958
      %v6910 = vunpack.c.l.b16 %v5959
      %v6911 = vunpack.c.l.b16 %v5960
      %v6912 = vunpack.c.l.b16 %v5961
      %v6913 = vunpack.c.l.b16 %v5962
      %v6914 = vunpack.c.l.b16 %v5963
      %v6915 = vunpack.c.l.b16 %v5964
      %v6916 = vunpack.c.l.b16 %v5965
      %v6917 = vunpack.c.l.b16 %v5966
      %v6918 = vunpack.c.l.b16 %v5967
      %v6919 = vunpack.c.l.b16 %v5968
      %v6920 = vunpack.c.l.b16 %v5969
      %v6921 = vunpack.c.l.b16 %v5970
      %v6922 = vunpack.c.l.b16 %v5971
      %v6923 = vunpack.c.l.b16 %v5972
      %v6924 = vunpack.c.l.b16 %v5973
      %v6925 = vunpack.c.l.b16 %v5974
      %v6926 = vunpack.c.l.b16 %v5975
      %v6927 = vunpack.c.l.b16 %v5976
      %v6928 = vunpack.c.l.b16 %v5977
      %v6929 = vunpack.c.l.b16 %v5978
      %v6930 = vunpack.c.l.b16 %v5979
      %v6931 = vunpack.c.l.b16 %v5980
      %v6932 = vunpack.c.l.b16 %v5981
      %v6933 = vunpack.c.l.b16 %v5982
      %v6934 = vunpack.c.l.b16 %v5983
      %v6935 = vunpack.c.l.b16 %v5984
      %v6936 = vunpack.c.l.b16 %v5985
      %v6937 = vunpack.c.l.b16 %v5986
      %v6938 = vunpack.c.l.b16 %v5987
      %v6939 = vunpack.c.l.b16 %v5988
      %v6940 = vunpack.c.l.b16 %v5989
      %v6941 = vunpack.c.l.b16 %v5990
      %v6942 = vunpack.c.l.b16 %v5991
      %v6943 = vunpack.c.l.b16 %v5992
      %v6944 = vunpack.c.l.b16 %v5993
      %v6945 = vunpack.c.l.b16 %v5994
      %v6946 = vunpack.c.l.b16 %v5995
      %v6947 = vunpack.c.l.b16 %v5996
      %v6948 = vunpack.c.l.b16 %v5997
      %v6949 = vunpack.c.l.b16 %v5998
      %v6950 = vunpack.c.l.b16 %v5999
      %v6951 = vunpack.c.l.b16 %v6000
      %v6952 = vunpack.c.l.b16 %v6001
      %v6953 = vunpack.c.l.b16 %v6002
      %v6954 = vunpack.c.l.b16 %v6003
      %v6955 = vunpack.c.l.b16 %v6004
      %v6956 = vunpack.c.l.b16 %v6005
      %v6957 = vunpack.c.l.b16 %v6006
      %v6958 = vunpack.c.l.b16 %v6007
      %v6959 = vunpack.c.l.b16 %v6008
      %v6960 = vunpack.c.l.b16 %v6009
      %v6961 = vunpack.c.l.b16 %v6010
      %v6962 = vunpack.c.l.b16 %v6011
      %v6963 = vunpack.c.l.b16 %v6012
      %v6964 = vunpack.c.l.b16 %v6013
      %v6965 = vunpack.c.l.b16 %v6014
      %v6966 = vunpack.c.l.b16 %v6015
      %v6967 = vunpack.c.l.b16 %v6016
      %v6968 = vunpack.c.l.b16 %v6017
      %v6969 = vunpack.c.l.b16 %v6018
      %v6970 = vunpack.c.l.b16 %v6019
      %v6971 = vunpack.c.l.b16 %v6020
      %v6972 = vunpack.c.l.b16 %v6021
      %v6973 = vunpack.c.l.b16 %v6022
      %v6974 = vunpack.c.l.b16 %v6023
      %v6975 = vunpack.c.l.b16 %v6024
      %v6976 = vunpack.c.l.b16 %v6025
      %v6977 = vunpack.c.l.b16 %v6026
      %v6978 = vunpack.c.l.b16 %v6027
      %v6979 = vunpack.c.l.b16 %v6028
      %v6980 = vunpack.c.l.b16 %v6029
      %v6981 = vunpack.c.l.b16 %v6030
      %v6982 = vunpack.c.l.b16 %v6031
      %v6983 = vunpack.c.l.b16 %v6032
      %v6984 = vunpack.c.l.b16 %v6033
      %v6985 = vunpack.c.l.b16 %v6034
      %v6986 = vunpack.c.l.b16 %v6035
      %v6987 = vunpack.c.l.b16 %v6036
      %v6988 = vunpack.c.l.b16 %v6037
      %v6989 = vunpack.c.l.b16 %v6038
      %v6990 = vunpack.c.l.b16 %v6039
      %v6991 = vunpack.c.l.b16 %v6040
      %v6992 = vunpack.c.l.b16 %v6041
      %v6993 = vunpack.c.l.b16 %v6042
      %v6994 = vunpack.c.l.b16 %v6043
      %v6995 = vunpack.c.l.b16 %v6044
      %v6996 = vunpack.c.l.b16 %v6045
      %v6997 = vunpack.c.l.b16 %v6046
      %v6998 = vunpack.c.l.b16 %v6047
      %v6999 = vunpack.c.l.b16 %v6048
      %v7000 = vunpack.c.l.b16 %v6049
      %v7001 = vunpack.c.l.b16 %v6050
      %v7002 = vunpack.c.l.b16 %v6051
      %v7003 = vunpack.c.l.b16 %v6052
      %v7004 = vunpack.c.l.b16 %v6053
      %v7005 = vunpack.c.l.b16 %v6054
      %v7006 = vunpack.c.l.b16 %v6055
      %v7007 = vunpack.c.l.b16 %v6056
      %v7008 = vunpack.c.l.b16 %v6057
      %v7009 = vunpack.c.l.b16 %v6058
      %v7010 = vunpack.c.l.b16 %v6059
      %v7011 = vunpack.c.l.b16 %v6060
      %v7012 = vunpack.c.l.b16 %v6061
      %v7013 = vunpack.c.l.b16 %v6062
      %v7014 = vunpack.c.l.b16 %v6063
      %v7015 = vunpack.c.l.b16 %v6064
      %v7016 = vunpack.c.l.b16 %v6065
      %v7017 = vunpack.c.l.b16 %v6066
      %v7018 = vunpack.c.l.b16 %v6067
      %v7019 = vunpack.c.l.b16 %v6068
      %v7020 = vunpack.c.l.b16 %v6069
      %v7021 = vunpack.c.l.b16 %v6070
      %v7022 = vunpack.c.l.b16 %v6071
      %v7023 = vunpack.c.l.b16 %v6072
      %v7024 = vunpack.c.l.b16 %v6073
      %v7025 = vunpack.c.l.b16 %v6074
      %v7026 = vunpack.c.l.b16 %v6075
      %v7027 = vunpack.c.l.b16 %v6076
      %v7028 = vunpack.c.l.b16 %v6077
      %v7029 = vunpack.c.l.b16 %v6078
      %v7030 = vunpack.c.l.b16 %v6079
      %v7031 = vunpack.c.l.b16 %v6080
      %v7032 = vunpack.c.l.b16 %v6081
      %v7033 = vunpack.c.l.b16 %v6082
      %v7034 = vunpack.c.l.b16 %v6083
      %v7035 = vunpack.c.l.b16 %v6084
      %v7036 = vunpack.c.l.b16 %v6085
      %v7037 = vunpack.c.l.b16 %v6086
      %v7038 = vunpack.c.l.b16 %v6087
      %v7039 = vunpack.c.l.b16 %v6088
      %v7040 = vunpack.c.l.b16 %v6089
      %v7041 = vunpack.c.l.b16 %v6090
      %v7042 = vunpack.c.l.b16 %v6091
      %v7043 = vunpack.c.l.b16 %v6092
      %v7044 = vunpack.c.l.b16 %v6093
      %v7045 = vunpack.c.l.b16 %v6094
      %v7046 = vunpack.c.l.b16 %v6095
      %v7047 = vunpack.c.l.b16 %v6096
      %v7048 = vunpack.c.l.b16 %v6097
      %v7049 = vunpack.c.l.b16 %v6098
      %v7050 = vunpack.c.l.b16 %v6099
      %v7051 = vunpack.c.l.b16 %v6100
      %v7052 = vunpack.c.l.b16 %v6101
      %v7053 = vunpack.c.l.b16 %v6102
      %v7054 = vunpack.c.l.b16 %v6103
      %v7055 = vunpack.c.l.b16 %v6104
      %v7056 = vunpack.c.l.b16 %v6105
      %v7057 = vunpack.c.l.b16 %v6106
      %v7058 = vunpack.c.l.b16 %v6107
      %v7059 = vunpack.c.l.b16 %v6108
      %v7060 = vunpack.c.l.b16 %v6109
      %v7061 = vunpack.c.l.b16 %v6110
      %v7062 = vunpack.c.l.b16 %v6111
      %v7063 = vunpack.c.l.b16 %v6112
      %v7064 = vunpack.c.l.b16 %v6113
      %v7065 = vunpack.c.l.b16 %v6114
      %v7066 = vunpack.c.l.b16 %v6115
      %v7067 = vunpack.c.l.b16 %v6116
      %v7068 = vunpack.c.l.b16 %v6117
      %v7069 = vunpack.c.l.b16 %v6118
      %v7070 = vunpack.c.l.b16 %v6119
      %v7071 = vunpack.c.l.b16 %v6120
      %v7072 = vunpack.c.l.b16 %v6121
      %v7073 = vunpack.c.l.b16 %v6122
      %v7074 = vunpack.c.l.b16 %v6123
      %v7075 = vunpack.c.l.b16 %v6124
      %v7076 = vunpack.c.l.b16 %v6125
      %v7077 = vunpack.c.l.b16 %v6126
      %v7078 = vunpack.c.l.b16 %v6127
      %v7079 = vunpack.c.l.b16 %v6128
      %v7080 = vunpack.c.l.b16 %v6129
      %v7081 = vunpack.c.l.b16 %v6130
      %v7082 = vunpack.c.l.b16 %v6131
      %v7083 = vunpack.c.l.b16 %v6132
      %v7084 = vunpack.c.l.b16 %v6133
      %v7085 = vunpack.c.l.b16 %v6134
      %v7086 = vunpack.c.l.b16 %v6135
      %v7087 = vunpack.c.l.b16 %v6136
      %v7088 = vunpack.c.l.b16 %v6137
      %v7089 = vunpack.c.l.b16 %v6138
      %v7090 = vunpack.c.l.b16 %v6139
      %v7091 = vunpack.c.l.b16 %v6140
      %v7092 = vunpack.c.l.b16 %v6141
      %v7093 = vunpack.c.l.b16 %v6142
      %v7094 = vunpack.c.l.b16 %v6143
      %v7095 = vunpack.c.l.b16 %v6144
      %v7096 = vunpack.c.l.b16 %v6145
      %v7097 = vunpack.c.l.b16 %v6146
      %v7098 = vunpack.c.l.b16 %v6147
      %v7099 = vunpack.c.l.b16 %v6148
      %v7100 = vunpack.c.l.b16 %v6149
      %v7101 = vunpack.c.l.b16 %v6150
      %v7102 = vunpack.c.l.b16 %v6151
      %v7103 = vunpack.c.l.b16 %v6152
      %v7104 = vunpack.c.l.b16 %v6153
      %v7105 = vunpack.c.l.b16 %v6154
      %v7106 = vunpack.c.l.b16 %v6155
      %v7107 = vunpack.c.l.b16 %v6156
      %v7108 = vunpack.c.l.b16 %v6157
      %v7109 = vunpack.c.l.b16 %v6158
      %v7110 = vunpack.c.l.b16 %v6159
      %v7111 = vunpack.c.l.b16 %v6160
      %v7112 = vunpack.c.l.b16 %v6161
      %v7113 = vunpack.c.l.b16 %v6162
      %v7114 = vunpack.c.l.b16 %v6163
      %v7115 = vunpack.c.l.b16 %v6164
      %v7116 = vunpack.c.l.b16 %v6165
      %v7117 = vunpack.c.l.b16 %v6166
      %v7118 = vunpack.c.l.b16 %v6167
      %v7119 = vunpack.c.l.b16 %v6168
      %v7120 = vunpack.c.l.b16 %v6169
      %v7121 = vunpack.c.l.b16 %v6170
      %v7122 = vunpack.c.l.b16 %v6171
      %v7123 = vunpack.c.l.b16 %v6172
      %v7124 = vunpack.c.l.b16 %v6173
      %v7125 = vunpack.c.l.b16 %v6174
      %v7126 = vunpack.c.l.b16 %v6175
      %v7127 = vunpack.c.l.b16 %v6176
      %v7128 = vunpack.c.l.b16 %v6177
      %v7129 = vunpack.c.l.b16 %v6178
      %v7130 = vunpack.c.l.b16 %v6179
      %v7131 = vunpack.c.l.b16 %v6180
      %v7132 = vunpack.c.l.b16 %v6181
      %v7133 = vunpack.c.l.b16 %v6182
      %v7134 = vunpack.c.l.b16 %v6183
      %v7135 = vunpack.c.l.b16 %v6184
      %v7136 = vunpack.c.l.b16 %v6185
      %v7137 = vunpack.c.l.b16 %v6186
      %v7138 = vunpack.c.l.b16 %v6187
      %v7139 = vunpack.c.l.b16 %v6188
      %v7140 = vunpack.c.l.b16 %v6189
      %v7141 = vunpack.c.l.b16 %v6190
      %v7142 = vunpack.c.l.b16 %v6191
      %v7143 = vunpack.c.l.b16 %v6192
      %v7144 = vunpack.c.l.b16 %v6193
      %v7145 = vunpack.c.l.b16 %v6194
      %v7146 = vunpack.c.l.b16 %v6195
      %v7147 = vunpack.c.l.b16 %v6196
      %v7148 = vunpack.c.l.b16 %v6197
      %v7149 = vunpack.c.l.b16 %v6198
      %v7150 = vunpack.c.l.b16 %v6199
      %v7151 = vunpack.c.l.b16 %v6200
      %v7152 = vunpack.c.l.b16 %v6201
      %v7153 = vunpack.c.l.b16 %v6202
      %v7154 = vunpack.c.l.b16 %v6203
      %v7155 = vpack.c.b16 %v6900, %v6899
      %v7156 = vpack.c.b16 %v6902, %v6901
      %v7157 = vpack.c.b16 %v6904, %v6903
      %v7158 = vpack.c.b16 %v6906, %v6905
      %v7159 = vpack.c.b16 %v6908, %v6907
      %v7160 = vpack.c.b16 %v6910, %v6909
      %v7161 = vpack.c.b16 %v6912, %v6911
      %v7162 = vpack.c.b16 %v6914, %v6913
      %v7163 = vpack.c.b16 %v6916, %v6915
      %v7164 = vpack.c.b16 %v6918, %v6917
      %v7165 = vpack.c.b16 %v6920, %v6919
      %v7166 = vpack.c.b16 %v6922, %v6921
      %v7167 = vpack.c.b16 %v6924, %v6923
      %v7168 = vpack.c.b16 %v6926, %v6925
      %v7169 = vpack.c.b16 %v6928, %v6927
      %v7170 = vpack.c.b16 %v6930, %v6929
      %v7171 = vpack.c.b16 %v6932, %v6931
      %v7172 = vpack.c.b16 %v6934, %v6933
      %v7173 = vpack.c.b16 %v6936, %v6935
      %v7174 = vpack.c.b16 %v6938, %v6937
      %v7175 = vpack.c.b16 %v6940, %v6939
      %v7176 = vpack.c.b16 %v6942, %v6941
      %v7177 = vpack.c.b16 %v6944, %v6943
      %v7178 = vpack.c.b16 %v6946, %v6945
      %v7179 = vpack.c.b16 %v6948, %v6947
      %v7180 = vpack.c.b16 %v6950, %v6949
      %v7181 = vpack.c.b16 %v6952, %v6951
      %v7182 = vpack.c.b16 %v6954, %v6953
      %v7183 = vpack.c.b16 %v6956, %v6955
      %v7184 = vpack.c.b16 %v6958, %v6957
      %v7185 = vpack.c.b16 %v6960, %v6959
      %v7186 = vpack.c.b16 %v6962, %v6961
      %v7187 = vpack.c.b16 %v6964, %v6963
      %v7188 = vpack.c.b16 %v6966, %v6965
      %v7189 = vpack.c.b16 %v6968, %v6967
      %v7190 = vpack.c.b16 %v6970, %v6969
      %v7191 = vpack.c.b16 %v6972, %v6971
      %v7192 = vpack.c.b16 %v6974, %v6973
      %v7193 = vpack.c.b16 %v6976, %v6975
      %v7194 = vpack.c.b16 %v6978, %v6977
      %v7195 = vpack.c.b16 %v6980, %v6979
      %v7196 = vpack.c.b16 %v6982, %v6981
      %v7197 = vpack.c.b16 %v6984, %v6983
      %v7198 = vpack.c.b16 %v6986, %v6985
      %v7199 = vpack.c.b16 %v6988, %v6987
      %v7200 = vpack.c.b16 %v6990, %v6989
      %v7201 = vpack.c.b16 %v6992, %v6991
      %v7202 = vpack.c.b16 %v6994, %v6993
      %v7203 = vpack.c.b16 %v6996, %v6995
      %v7204 = vpack.c.b16 %v6998, %v6997
      %v7205 = vpack.c.b16 %v7000, %v6999
      %v7206 = vpack.c.b16 %v7002, %v7001
      %v7207 = vpack.c.b16 %v7004, %v7003
      %v7208 = vpack.c.b16 %v7006, %v7005
      %v7209 = vpack.c.b16 %v7008, %v7007
      %v7210 = vpack.c.b16 %v7010, %v7009
      %v7211 = vpack.c.b16 %v7012, %v7011
      %v7212 = vpack.c.b16 %v7014, %v7013
      %v7213 = vpack.c.b16 %v7016, %v7015
      %v7214 = vpack.c.b16 %v7018, %v7017
      %v7215 = vpack.c.b16 %v7020, %v7019
      %v7216 = vpack.c.b16 %v7022, %v7021
      %v7217 = vpack.c.b16 %v7024, %v7023
      %v7218 = vpack.c.b16 %v7026, %v7025
      %v7219 = vpack.c.b16 %v7028, %v7027
      %v7220 = vpack.c.b16 %v7030, %v7029
      %v7221 = vpack.c.b16 %v7032, %v7031
      %v7222 = vpack.c.b16 %v7034, %v7033
      %v7223 = vpack.c.b16 %v7036, %v7035
      %v7224 = vpack.c.b16 %v7038, %v7037
      %v7225 = vpack.c.b16 %v7040, %v7039
      %v7226 = vpack.c.b16 %v7042, %v7041
      %v7227 = vpack.c.b16 %v7044, %v7043
      %v7228 = vpack.c.b16 %v7046, %v7045
      %v7229 = vpack.c.b16 %v7048, %v7047
      %v7230 = vpack.c.b16 %v7050, %v7049
      %v7231 = vpack.c.b16 %v7052, %v7051
      %v7232 = vpack.c.b16 %v7054, %v7053
      %v7233 = vpack.c.b16 %v7056, %v7055
      %v7234 = vpack.c.b16 %v7058, %v7057
      %v7235 = vpack.c.b16 %v7060, %v7059
      %v7236 = vpack.c.b16 %v7062, %v7061
      %v7237 = vpack.c.b16 %v7064, %v7063
      %v7238 = vpack.c.b16 %v7066, %v7065
      %v7239 = vpack.c.b16 %v7068, %v7067
      %v7240 = vpack.c.b16 %v7070, %v7069
      %v7241 = vpack.c.b16 %v7072, %v7071
      %v7242 = vpack.c.b16 %v7074, %v7073
      %v7243 = vpack.c.b16 %v7076, %v7075
      %v7244 = vpack.c.b16 %v7078, %v7077
      %v7245 = vpack.c.b16 %v7080, %v7079
      %v7246 = vpack.c.b16 %v7082, %v7081
      %v7247 = vpack.c.b16 %v7084, %v7083
      %v7248 = vpack.c.b16 %v7086, %v7085
      %v7249 = vpack.c.b16 %v7088, %v7087
      %v7250 = vpack.c.b16 %v7090, %v7089
      %v7251 = vpack.c.b16 %v7092, %v7091
      %v7252 = vpack.c.b16 %v7094, %v7093
      %v7253 = vpack.c.b16 %v7096, %v7095
      %v7254 = vpack.c.b16 %v7098, %v7097
      %v7255 = vpack.c.b16 %v7100, %v7099
      %v7256 = vpack.c.b16 %v7102, %v7101
      %v7257 = vpack.c.b16 %v7104, %v7103
      %v7258 = vpack.c.b16 %v7106, %v7105
      %v7259 = vpack.c.b16 %v7108, %v7107
      %v7260 = vpack.c.b16 %v7110, %v7109
      %v7261 = vpack.c.b16 %v7112, %v7111
      %v7262 = vpack.c.b16 %v7114, %v7113
      %v7263 = vpack.c.b16 %v7116, %v7115
      %v7264 = vpack.c.b16 %v7118, %v7117
      %v7265 = vpack.c.b16 %v7120, %v7119
      %v7266 = vpack.c.b16 %v7122, %v7121
      %v7267 = vpack.c.b16 %v7124, %v7123
      %v7268 = vpack.c.b16 %v7126, %v7125
      %v7269 = vpack.c.b16 %v7128, %v7127
      %v7270 = vpack.c.b16 %v7130, %v7129
      %v7271 = vpack.c.b16 %v7132, %v7131
      %v7272 = vpack.c.b16 %v7134, %v7133
      %v7273 = vpack.c.b16 %v7136, %v7135
      %v7274 = vpack.c.b16 %v7138, %v7137
      %v7275 = vpack.c.b16 %v7140, %v7139
      %v7276 = vpack.c.b16 %v7142, %v7141
      %v7277 = vpack.c.b16 %v7144, %v7143
      %v7278 = vpack.c.b16 %v7146, %v7145
      %v7279 = vpack.c.b16 %v7148, %v7147
      %v7280 = vpack.c.b16 %v7150, %v7149
      %v7281 = vpack.c.b16 %v7152, %v7151
      %v7282 = vpack.c.b16 %v7154, %v7153
      %7411 = vmatpush.bf16.msra.mxu0 %v7162
      %7412 = vmatpush.bf16.msra.mxu0 %v7161
      %7413 = vmatpush.bf16.msra.mxu0 %v7160
      %7414 = vmatpush.bf16.msra.mxu0 %v7159
      %7415 = vmatpush.bf16.msra.mxu0 %v7158
      %7416 = vmatpush.bf16.msra.mxu0 %v7157
      %7417 = vmatpush.bf16.msra.mxu0 %v7156
      %7418 = vmatpush.bf16.msra.mxu0 %v7155
      %7419 = vmatmul.bf16.gmra.mxu0 %v6626
      %v7420 = vpop.f32.mrf.mxu0
      %v7421 = vadd.f32 %v6642, %v7420
      %v7422 = vpop.f32.mrf.mxu0
      %7423 = vdwg.mxu0
      %7424 = vmatpush.bf16.msra.mxu0 %v7170
      %7425 = vmatpush.bf16.msra.mxu0 %v7169
      %7426 = vmatpush.bf16.msra.mxu0 %v7168
      %7427 = vmatpush.bf16.msra.mxu0 %v7167
      %7428 = vmatpush.bf16.msra.mxu0 %v7166
      %7429 = vmatpush.bf16.msra.mxu0 %v7165
      %7430 = vmatpush.bf16.msra.mxu0 %v7164
      %7431 = vmatpush.bf16.msra.mxu0 %v7163
      %7432 = vmatmul.bf16.gmra.mxu0 %v6627
      %v7433 = vpop.f32.mrf.mxu0
      %v7434 = vadd.f32 %v7421, %v7433
      %v7435 = vpop.f32.mrf.mxu0
      %7436 = vdwg.mxu0
      %7437 = vmatpush.bf16.msra.mxu0 %v7178
      %7438 = vmatpush.bf16.msra.mxu0 %v7177
      %7439 = vmatpush.bf16.msra.mxu0 %v7176
      %7440 = vmatpush.bf16.msra.mxu0 %v7175
      %7441 = vmatpush.bf16.msra.mxu0 %v7174
      %7442 = vmatpush.bf16.msra.mxu0 %v7173
      %7443 = vmatpush.bf16.msra.mxu0 %v7172
      %7444 = vmatpush.bf16.msra.mxu0 %v7171
      %7445 = vmatmul.bf16.gmra.mxu0 %v6628
      %v7446 = vpop.f32.mrf.mxu0
      %v7447 = vadd.f32 %v7434, %v7446
      %v7448 = vpop.f32.mrf.mxu0
      %7449 = vdwg.mxu0
      %7450 = vmatpush.bf16.msra.mxu0 %v7186
      %7451 = vmatpush.bf16.msra.mxu0 %v7185
      %7452 = vmatpush.bf16.msra.mxu0 %v7184
      %7453 = vmatpush.bf16.msra.mxu0 %v7183
      %7454 = vmatpush.bf16.msra.mxu0 %v7182
      %7455 = vmatpush.bf16.msra.mxu0 %v7181
      %7456 = vmatpush.bf16.msra.mxu0 %v7180
      %7457 = vmatpush.bf16.msra.mxu0 %v7179
      %7458 = vmatmul.bf16.gmra.mxu0 %v6629
      %v7459 = vpop.f32.mrf.mxu0
      %v7460 = vadd.f32 %v7447, %v7459
      %v7461 = vpop.f32.mrf.mxu0
      %7462 = vdwg.mxu0
      %7463 = vmatpush.bf16.msra.mxu0 %v7194
      %7464 = vmatpush.bf16.msra.mxu0 %v7193
      %7465 = vmatpush.bf16.msra.mxu0 %v7192
      %7466 = vmatpush.bf16.msra.mxu0 %v7191
      %7467 = vmatpush.bf16.msra.mxu0 %v7190
      %7468 = vmatpush.bf16.msra.mxu0 %v7189
      %7469 = vmatpush.bf16.msra.mxu0 %v7188
      %7470 = vmatpush.bf16.msra.mxu0 %v7187
      %7471 = vmatmul.bf16.gmra.mxu0 %v6630
      %v7472 = vpop.f32.mrf.mxu0
      %v7473 = vadd.f32 %v7460, %v7472
      %v7474 = vpop.f32.mrf.mxu0
      %7475 = vdwg.mxu0
      %7476 = vmatpush.bf16.msra.mxu0 %v7202
      %7477 = vmatpush.bf16.msra.mxu0 %v7201
      %7478 = vmatpush.bf16.msra.mxu0 %v7200
      %7479 = vmatpush.bf16.msra.mxu0 %v7199
      %7480 = vmatpush.bf16.msra.mxu0 %v7198
      %7481 = vmatpush.bf16.msra.mxu0 %v7197
      %7482 = vmatpush.bf16.msra.mxu0 %v7196
      %7483 = vmatpush.bf16.msra.mxu0 %v7195
      %7484 = vmatmul.bf16.gmra.mxu0 %v6631
      %v7485 = vpop.f32.mrf.mxu0
      %v7486 = vadd.f32 %v7473, %v7485
      %v7487 = vpop.f32.mrf.mxu0
      %7488 = vdwg.mxu0
      %7489 = vmatpush.bf16.msra.mxu0 %v7210
      %7490 = vmatpush.bf16.msra.mxu0 %v7209
      %7491 = vmatpush.bf16.msra.mxu0 %v7208
      %7492 = vmatpush.bf16.msra.mxu0 %v7207
      %7493 = vmatpush.bf16.msra.mxu0 %v7206
      %7494 = vmatpush.bf16.msra.mxu0 %v7205
      %7495 = vmatpush.bf16.msra.mxu0 %v7204
      %7496 = vmatpush.bf16.msra.mxu0 %v7203
      %7497 = vmatmul.bf16.gmra.mxu0 %v6632
      %v7498 = vpop.f32.mrf.mxu0
      %v7499 = vadd.f32 %v7486, %v7498
      %v7500 = vpop.f32.mrf.mxu0
      %7501 = vdwg.mxu0
      %7502 = vmatpush.bf16.msra.mxu0 %v7218
      %7503 = vmatpush.bf16.msra.mxu0 %v7217
      %7504 = vmatpush.bf16.msra.mxu0 %v7216
      %7505 = vmatpush.bf16.msra.mxu0 %v7215
      %7506 = vmatpush.bf16.msra.mxu0 %v7214
      %7507 = vmatpush.bf16.msra.mxu0 %v7213
      %7508 = vmatpush.bf16.msra.mxu0 %v7212
      %7509 = vmatpush.bf16.msra.mxu0 %v7211
      %7510 = vmatmul.bf16.gmra.mxu0 %v6633
      %v7511 = vpop.f32.mrf.mxu0
      %v7512 = vadd.f32 %v7499, %v7511
      %v7513 = vpop.f32.mrf.mxu0
      %7514 = vdwg.mxu0
      %7515 = vmatpush.bf16.msra.mxu0 %v7226
      %7516 = vmatpush.bf16.msra.mxu0 %v7225
      %7517 = vmatpush.bf16.msra.mxu0 %v7224
      %7518 = vmatpush.bf16.msra.mxu0 %v7223
      %7519 = vmatpush.bf16.msra.mxu0 %v7222
      %7520 = vmatpush.bf16.msra.mxu0 %v7221
      %7521 = vmatpush.bf16.msra.mxu0 %v7220
      %7522 = vmatpush.bf16.msra.mxu0 %v7219
      %7523 = vmatmul.bf16.gmra.mxu0 %v6634
      %v7524 = vpop.f32.mrf.mxu0
      %v7525 = vadd.f32 %v7512, %v7524
      %v7526 = vpop.f32.mrf.mxu0
      %7527 = vdwg.mxu0
      %7528 = vmatpush.bf16.msra.mxu0 %v7234
      %7529 = vmatpush.bf16.msra.mxu0 %v7233
      %7530 = vmatpush.bf16.msra.mxu0 %v7232
      %7531 = vmatpush.bf16.msra.mxu0 %v7231
      %7532 = vmatpush.bf16.msra.mxu0 %v7230
      %7533 = vmatpush.bf16.msra.mxu0 %v7229
      %7534 = vmatpush.bf16.msra.mxu0 %v7228
      %7535 = vmatpush.bf16.msra.mxu0 %v7227
      %7536 = vmatmul.bf16.gmra.mxu0 %v6635
      %v7537 = vpop.f32.mrf.mxu0
      %v7538 = vadd.f32 %v7525, %v7537
      %v7539 = vpop.f32.mrf.mxu0
      %7540 = vdwg.mxu0
      %7541 = vmatpush.bf16.msra.mxu0 %v7242
      %7542 = vmatpush.bf16.msra.mxu0 %v7241
      %7543 = vmatpush.bf16.msra.mxu0 %v7240
      %7544 = vmatpush.bf16.msra.mxu0 %v7239
      %7545 = vmatpush.bf16.msra.mxu0 %v7238
      %7546 = vmatpush.bf16.msra.mxu0 %v7237
      %7547 = vmatpush.bf16.msra.mxu0 %v7236
      %7548 = vmatpush.bf16.msra.mxu0 %v7235
      %7549 = vmatmul.bf16.gmra.mxu0 %v6636
      %v7550 = vpop.f32.mrf.mxu0
      %v7551 = vadd.f32 %v7538, %v7550
      %v7552 = vpop.f32.mrf.mxu0
      %7553 = vdwg.mxu0
      %7554 = vmatpush.bf16.msra.mxu0 %v7250
      %7555 = vmatpush.bf16.msra.mxu0 %v7249
      %7556 = vmatpush.bf16.msra.mxu0 %v7248
      %7557 = vmatpush.bf16.msra.mxu0 %v7247
      %7558 = vmatpush.bf16.msra.mxu0 %v7246
      %7559 = vmatpush.bf16.msra.mxu0 %v7245
      %7560 = vmatpush.bf16.msra.mxu0 %v7244
      %7561 = vmatpush.bf16.msra.mxu0 %v7243
      %7562 = vmatmul.bf16.gmra.mxu0 %v6637
      %v7563 = vpop.f32.mrf.mxu0
      %v7564 = vadd.f32 %v7551, %v7563
      %v7565 = vpop.f32.mrf.mxu0
      %7566 = vdwg.mxu0
      %7567 = vmatpush.bf16.msra.mxu0 %v7258
      %7568 = vmatpush.bf16.msra.mxu0 %v7257
      %7569 = vmatpush.bf16.msra.mxu0 %v7256
      %7570 = vmatpush.bf16.msra.mxu0 %v7255
      %7571 = vmatpush.bf16.msra.mxu0 %v7254
      %7572 = vmatpush.bf16.msra.mxu0 %v7253
      %7573 = vmatpush.bf16.msra.mxu0 %v7252
      %7574 = vmatpush.bf16.msra.mxu0 %v7251
      %7575 = vmatmul.bf16.gmra.mxu0 %v6638
      %v7576 = vpop.f32.mrf.mxu0
      %v7577 = vadd.f32 %v7564, %v7576
      %v7578 = vpop.f32.mrf.mxu0
      %7579 = vdwg.mxu0
      %7580 = vmatpush.bf16.msra.mxu0 %v7266
      %7581 = vmatpush.bf16.msra.mxu0 %v7265
      %7582 = vmatpush.bf16.msra.mxu0 %v7264
      %7583 = vmatpush.bf16.msra.mxu0 %v7263
      %7584 = vmatpush.bf16.msra.mxu0 %v7262
      %7585 = vmatpush.bf16.msra.mxu0 %v7261
      %7586 = vmatpush.bf16.msra.mxu0 %v7260
      %7587 = vmatpush.bf16.msra.mxu0 %v7259
      %7588 = vmatmul.bf16.gmra.mxu0 %v6639
      %v7589 = vpop.f32.mrf.mxu0
      %v7590 = vadd.f32 %v7577, %v7589
      %v7591 = vpop.f32.mrf.mxu0
      %7592 = vdwg.mxu0
      %7593 = vmatpush.bf16.msra.mxu0 %v7274
      %7594 = vmatpush.bf16.msra.mxu0 %v7273
      %7595 = vmatpush.bf16.msra.mxu0 %v7272
      %7596 = vmatpush.bf16.msra.mxu0 %v7271
      %7597 = vmatpush.bf16.msra.mxu0 %v7270
      %7598 = vmatpush.bf16.msra.mxu0 %v7269
      %7599 = vmatpush.bf16.msra.mxu0 %v7268
      %7600 = vmatpush.bf16.msra.mxu0 %v7267
      %7601 = vmatmul.bf16.gmra.mxu0 %v6640
      %v7602 = vpop.f32.mrf.mxu0
      %v7603 = vadd.f32 %v7590, %v7602
      %v7604 = vpop.f32.mrf.mxu0
      %7605 = vdwg.mxu0
      %7606 = vmatpush.bf16.msra.mxu0 %v7282
      %7607 = vmatpush.bf16.msra.mxu0 %v7281
      %7608 = vmatpush.bf16.msra.mxu0 %v7280
      %7609 = vmatpush.bf16.msra.mxu0 %v7279
      %7610 = vmatpush.bf16.msra.mxu0 %v7278
      %7611 = vmatpush.bf16.msra.mxu0 %v7277
      %7612 = vmatpush.bf16.msra.mxu0 %v7276
      %7613 = vmatpush.bf16.msra.mxu0 %v7275
      %7614 = vmatmul.bf16.gmra.mxu0 %v6641
      %v7615 = vpop.f32.mrf.mxu0
      %v7616 = vadd.f32 %v7603, %v7615
      %v7617 = vpop.f32.mrf.mxu0
      %7618 = vdwg.mxu0
      %v7619 = vadd.f32 %v5913, %v7616
      %v7620 = vsel %vm722, %v7619, 0.0
      %7621 = vadd.xlane.f32.xlu0 %v7620
      %v7622 = vpop.xlane.xlu0 %7621
      %v7623 = vmul.f32 %v7622, %v1112
      %v7624 = vsub.f32 %v7619, %v7623
      %v7625 = vmul.f32 %v7624, %v7624
      %v7626 = vsel %vm722, %v7625, 0.0
      %7627 = vadd.xlane.f32.xlu0 %v7626
      %v7628 = vpop.xlane.xlu0 %7627
      %v7629 = vmul.f32 %v7628, %v1112
      %v7630 = vadd.f32 %v7629, 1e-05
      %v7631 = vrsqrt.pop %v7630
      %v7632 = vmul.f32 %v7631, %v7630
      %v7633 = vmul.f32 %v7632, %v7631
      %v7634 = vmul.f32 0.5, %v7633
      %v7635 = vsub.f32 1.5, %v7634
      %v7636 = vmul.f32 %v7631, %v7635
      %vm7637 = vweird.f32 %v7630
      %vm7638 = vweird.f32 %v7631
      %vm7639 = vmor %vm7637, %vm7638
      %v7640 = vsel %vm7639, %v7631, %v7636
      %v7641 = vmul.f32 %v7624, %v7640
      %v7642 = vperm.slane %v5052, 7
      %v7643 = vmul.f32 %v7641, %v7642
      %v7644 = vperm.slane %v5053, 0
      %v7645 = vadd.f32 %v7643, %v7644
      %s7646 = scalar_lea.vmem %s19, 16
      %v7647 = vld [vmem:[%s7646] sm:$0xff]
      %v7648 = vld [vmem:[%s7646 + $0x8] sm:$0x1]
      %s7649 = scalar_lea.vmem %s9, 32
      %v7650 = vld [vmem:[%s7649] sm:$0xff]
      %v7651 = vld [vmem:[%s7649 + $0x8] sm:$0xff]
      %v7652 = vld [vmem:[%s7649 + $0x10] sm:$0xff]
      %v7653 = vld [vmem:[%s7649 + $0x18] sm:$0xff]
      %s7654 = scalar_lea.vmem %s16, 1
      %v7655 = vld [vmem:[%s7654] sm:$0x1]
      %s7656 = scalar_lea.vmem %s10, 32
      %v7657 = vld [vmem:[%s7656] sm:$0xff]
      %v7658 = vld [vmem:[%s7656 + $0x8] sm:$0xff]
      %v7659 = vld [vmem:[%s7656 + $0x10] sm:$0xff]
      %v7660 = vld [vmem:[%s7656 + $0x18] sm:$0xff]
      %v7662 = vperm.slane %v7655, 0
      %v7665 = vsel %vm722, %v7645, 0
      %7667 = vmatpush.msra.mxu0 0.0
      %7668 = vmatpush.msra.mxu0 0.0
      %7669 = vmatpush.msra.mxu0 0.0
      %7670 = vmatpush.msra.mxu0 0.0
      %7671 = vmatpush.msra.mxu0 0.0
      %7672 = vmatpush.msra.mxu0 0.0
      %7673 = vmatpush.msra.mxu0 0.0
      %7674 = vmatpush.msra.mxu0 0.0
      %7675 = vmatpush.msra.mxu0 0.0
      %7676 = vmatpush.msra.mxu0 0.0
      %7677 = vmatpush.msra.mxu0 0.0
      %7678 = vmatpush.msra.mxu0 0.0
      %7679 = vmatpush.msra.mxu0 %v7653
      %7680 = vmatpush.msra.mxu0 %v7652
      %7681 = vmatpush.msra.mxu0 %v7651
      %7682 = vmatpush.msra.mxu0 %v7650
      %7683 = vmatmul.f32.gmra.mxu0 %v7665
      %v7684 = vpop.f32.mrf.mxu0
      %v7685 = vadd.f32 %v7662, %v7684
      %7686 = vdwg.mxu0
      %7688 = vrot.lane.b32.xlu0 %v7685, 96
      %v7689 = vpop.permute.xlu0 %7688
      %v7690 = vsel %vm749, %v7685, 0
      %v7692 = vsel %vm749, %v7689, 0
      %7694 = vmatpush.xpose.msra.mxu0 0.0
      %7695 = vmatpush.xpose.msra.mxu0 0.0
      %7696 = vmatpush.xpose.msra.mxu0 0.0
      %7697 = vmatpush.xpose.msra.mxu0 0.0
      %7698 = vmatpush.xpose.msra.mxu0 0.0
      %7699 = vmatpush.xpose.msra.mxu0 0.0
      %7700 = vmatpush.xpose.msra.mxu0 0.0
      %7701 = vmatpush.xpose.msra.mxu0 0.0
      %7702 = vmatpush.xpose.msra.mxu0 0.0
      %7703 = vmatpush.xpose.msra.mxu0 0.0
      %7704 = vmatpush.xpose.msra.mxu0 0.0
      %7705 = vmatpush.xpose.msra.mxu0 0.0
      %7706 = vmatpush.xpose.msra.mxu0 0.0
      %7707 = vmatpush.xpose.msra.mxu0 0.0
      %7708 = vmatpush.xpose.msra.mxu0 0.0
      %7709 = vmatpush.xpose.msra.mxu0 %v7692
      %7710 = vmatmul.f32.gmra.mxu0 %v7690
      %v7711 = vpop.f32.mrf.mxu0
      %v7712 = vadd.f32 %v708, %v7711
      %7713 = vdwg.mxu0
      %v7714 = vsel %vm749, %v7712, -inf
      %7715 = vmax.xlane.f32.xlu0 %v7714
      %v7716 = vpop.xlane.xlu0 %7715
      %v7717 = vsub.f32 %v7712, %v7716
      %v7718 = vmul.f32 %v7717, 1.442695
      %v7719 = vpow.pop %v7718
      %v7720 = vsel %vm749, %v7719, 0.0
      %7721 = vadd.xlane.f32.xlu0 %v7720
      %v7722 = vpop.xlane.xlu0 %7721
      %v7723 = vrcp.pop %v7722
      %v7724 = vmul.f32 %v7719, %v7723
      %7725 = vrot.lane.b32.xlu0 %v7685, 64
      %v7726 = vpop.permute.xlu0 %7725
      %v7729 = vsel %vm749, %v7724, 0
      %7731 = vmatpush.msra.mxu0 0.0
      %7732 = vmatpush.msra.mxu0 0.0
      %7733 = vmatpush.msra.mxu0 0.0
      %7734 = vmatpush.msra.mxu0 0.0
      %7735 = vmatpush.msra.mxu0 0.0
      %7736 = vmatpush.msra.mxu0 0.0
      %7737 = vmatpush.msra.mxu0 0.0
      %7738 = vmatpush.msra.mxu0 0.0
      %7739 = vmatpush.msra.mxu0 0.0
      %7740 = vmatpush.msra.mxu0 0.0
      %7741 = vmatpush.msra.mxu0 0.0
      %7742 = vmatpush.msra.mxu0 0.0
      %7743 = vmatpush.msra.mxu0 0.0
      %7744 = vmatpush.msra.mxu0 0.0
      %7745 = vmatpush.msra.mxu0 0.0
      %7746 = vmatpush.msra.mxu0 %v7726
      %7747 = vmatmul.f32.gmra.mxu0 %v7729
      %v7748 = vpop.f32.mrf.mxu0
      %v7749 = vadd.f32 0.0, %v7748
      %7750 = vdwg.mxu0
      %7751 = vrot.lane.b32.xlu0 %v7685, 120
      %v7752 = vpop.permute.xlu0 %7751
      %7753 = vrot.lane.b32.xlu0 %v7685, 88
      %v7754 = vpop.permute.xlu0 %7753
      %v7755 = vsel %vm749, %v7752, 0
      %v7757 = vsel %vm749, %v7754, 0
      %7759 = vmatpush.xpose.msra.mxu0 0.0
      %7760 = vmatpush.xpose.msra.mxu0 0.0
      %7761 = vmatpush.xpose.msra.mxu0 0.0
      %7762 = vmatpush.xpose.msra.mxu0 0.0
      %7763 = vmatpush.xpose.msra.mxu0 0.0
      %7764 = vmatpush.xpose.msra.mxu0 0.0
      %7765 = vmatpush.xpose.msra.mxu0 0.0
      %7766 = vmatpush.xpose.msra.mxu0 0.0
      %7767 = vmatpush.xpose.msra.mxu0 0.0
      %7768 = vmatpush.xpose.msra.mxu0 0.0
      %7769 = vmatpush.xpose.msra.mxu0 0.0
      %7770 = vmatpush.xpose.msra.mxu0 0.0
      %7771 = vmatpush.xpose.msra.mxu0 0.0
      %7772 = vmatpush.xpose.msra.mxu0 0.0
      %7773 = vmatpush.xpose.msra.mxu0 0.0
      %7774 = vmatpush.xpose.msra.mxu0 %v7757
      %7775 = vmatmul.f32.gmra.mxu0 %v7755
      %v7776 = vpop.f32.mrf.mxu0
      %v7777 = vadd.f32 %v708, %v7776
      %7778 = vdwg.mxu0
      %v7779 = vsel %vm749, %v7777, -inf
      %7780 = vmax.xlane.f32.xlu0 %v7779
      %v7781 = vpop.xlane.xlu0 %7780
      %v7782 = vsub.f32 %v7777, %v7781
      %v7783 = vmul.f32 %v7782, 1.442695
      %v7784 = vpow.pop %v7783
      %v7785 = vsel %vm749, %v7784, 0.0
      %7786 = vadd.xlane.f32.xlu0 %v7785
      %v7787 = vpop.xlane.xlu0 %7786
      %v7788 = vrcp.pop %v7787
      %v7789 = vmul.f32 %v7784, %v7788
      %7790 = vrot.lane.b32.xlu0 %v7685, 56
      %v7791 = vpop.permute.xlu0 %7790
      %v7794 = vsel %vm749, %v7789, 0
      %7796 = vmatpush.msra.mxu0 0.0
      %7797 = vmatpush.msra.mxu0 0.0
      %7798 = vmatpush.msra.mxu0 0.0
      %7799 = vmatpush.msra.mxu0 0.0
      %7800 = vmatpush.msra.mxu0 0.0
      %7801 = vmatpush.msra.mxu0 0.0
      %7802 = vmatpush.msra.mxu0 0.0
      %7803 = vmatpush.msra.mxu0 0.0
      %7804 = vmatpush.msra.mxu0 0.0
      %7805 = vmatpush.msra.mxu0 0.0
      %7806 = vmatpush.msra.mxu0 0.0
      %7807 = vmatpush.msra.mxu0 0.0
      %7808 = vmatpush.msra.mxu0 0.0
      %7809 = vmatpush.msra.mxu0 0.0
      %7810 = vmatpush.msra.mxu0 0.0
      %7811 = vmatpush.msra.mxu0 %v7791
      %7812 = vmatmul.f32.gmra.mxu0 %v7794
      %v7813 = vpop.f32.mrf.mxu0
      %v7814 = vadd.f32 0.0, %v7813
      %7815 = vdwg.mxu0
      %v7817 = vsel %vm749, %v7814, 0
      %7819 = vmatpush.msra.mxu0 0.0
      %7820 = vmatpush.msra.mxu0 0.0
      %7821 = vmatpush.msra.mxu0 0.0
      %7822 = vmatpush.msra.mxu0 0.0
      %7823 = vmatpush.msra.mxu0 0.0
      %7824 = vmatpush.msra.mxu0 0.0
      %7825 = vmatpush.msra.mxu0 0.0
      %7826 = vmatpush.msra.mxu0 0.0
      %7827 = vmatpush.msra.mxu0 0.0
      %7828 = vmatpush.msra.mxu0 0.0
      %7829 = vmatpush.msra.mxu0 0.0
      %7830 = vmatpush.msra.mxu0 0.0
      %7831 = vmatpush.msra.mxu0 0.0
      %7832 = vmatpush.msra.mxu0 0.0
      %7833 = vmatpush.msra.mxu0 0.0
      %7834 = vmatpush.msra.mxu0 %v7658
      %7835 = vmatmul.f32.gmra.mxu0 %v7817
      %v7836 = vpop.f32.mrf.mxu0
      %v7837 = vadd.f32 0.0, %v7836
      %7838 = vdwg.mxu0
      %v7840 = vsel %vm749, %v7749, 0
      %7842 = vmatpush.msra.mxu0 0.0
      %7843 = vmatpush.msra.mxu0 0.0
      %7844 = vmatpush.msra.mxu0 0.0
      %7845 = vmatpush.msra.mxu0 0.0
      %7846 = vmatpush.msra.mxu0 0.0
      %7847 = vmatpush.msra.mxu0 0.0
      %7848 = vmatpush.msra.mxu0 0.0
      %7849 = vmatpush.msra.mxu0 0.0
      %7850 = vmatpush.msra.mxu0 0.0
      %7851 = vmatpush.msra.mxu0 0.0
      %7852 = vmatpush.msra.mxu0 0.0
      %7853 = vmatpush.msra.mxu0 0.0
      %7854 = vmatpush.msra.mxu0 0.0
      %7855 = vmatpush.msra.mxu0 0.0
      %7856 = vmatpush.msra.mxu0 0.0
      %7857 = vmatpush.msra.mxu0 %v7657
      %7858 = vmatmul.f32.gmra.mxu0 %v7840
      %v7859 = vpop.f32.mrf.mxu0
      %v7860 = vadd.f32 %v7837, %v7859
      %7861 = vdwg.mxu0
      %7862 = vrot.lane.b32.xlu0 %v7685, 112
      %v7863 = vpop.permute.xlu0 %7862
      %7864 = vrot.lane.b32.xlu0 %v7685, 80
      %v7865 = vpop.permute.xlu0 %7864
      %v7866 = vsel %vm749, %v7863, 0
      %v7868 = vsel %vm749, %v7865, 0
      %7870 = vmatpush.xpose.msra.mxu0 0.0
      %7871 = vmatpush.xpose.msra.mxu0 0.0
      %7872 = vmatpush.xpose.msra.mxu0 0.0
      %7873 = vmatpush.xpose.msra.mxu0 0.0
      %7874 = vmatpush.xpose.msra.mxu0 0.0
      %7875 = vmatpush.xpose.msra.mxu0 0.0
      %7876 = vmatpush.xpose.msra.mxu0 0.0
      %7877 = vmatpush.xpose.msra.mxu0 0.0
      %7878 = vmatpush.xpose.msra.mxu0 0.0
      %7879 = vmatpush.xpose.msra.mxu0 0.0
      %7880 = vmatpush.xpose.msra.mxu0 0.0
      %7881 = vmatpush.xpose.msra.mxu0 0.0
      %7882 = vmatpush.xpose.msra.mxu0 0.0
      %7883 = vmatpush.xpose.msra.mxu0 0.0
      %7884 = vmatpush.xpose.msra.mxu0 0.0
      %7885 = vmatpush.xpose.msra.mxu0 %v7868
      %7886 = vmatmul.f32.gmra.mxu0 %v7866
      %v7887 = vpop.f32.mrf.mxu0
      %v7888 = vadd.f32 %v708, %v7887
      %7889 = vdwg.mxu0
      %v7890 = vsel %vm749, %v7888, -inf
      %7891 = vmax.xlane.f32.xlu0 %v7890
      %v7892 = vpop.xlane.xlu0 %7891
      %v7893 = vsub.f32 %v7888, %v7892
      %v7894 = vmul.f32 %v7893, 1.442695
      %v7895 = vpow.pop %v7894
      %v7896 = vsel %vm749, %v7895, 0.0
      %7897 = vadd.xlane.f32.xlu0 %v7896
      %v7898 = vpop.xlane.xlu0 %7897
      %v7899 = vrcp.pop %v7898
      %v7900 = vmul.f32 %v7895, %v7899
      %7901 = vrot.lane.b32.xlu0 %v7685, 48
      %v7902 = vpop.permute.xlu0 %7901
      %v7905 = vsel %vm749, %v7900, 0
      %7907 = vmatpush.msra.mxu0 0.0
      %7908 = vmatpush.msra.mxu0 0.0
      %7909 = vmatpush.msra.mxu0 0.0
      %7910 = vmatpush.msra.mxu0 0.0
      %7911 = vmatpush.msra.mxu0 0.0
      %7912 = vmatpush.msra.mxu0 0.0
      %7913 = vmatpush.msra.mxu0 0.0
      %7914 = vmatpush.msra.mxu0 0.0
      %7915 = vmatpush.msra.mxu0 0.0
      %7916 = vmatpush.msra.mxu0 0.0
      %7917 = vmatpush.msra.mxu0 0.0
      %7918 = vmatpush.msra.mxu0 0.0
      %7919 = vmatpush.msra.mxu0 0.0
      %7920 = vmatpush.msra.mxu0 0.0
      %7921 = vmatpush.msra.mxu0 0.0
      %7922 = vmatpush.msra.mxu0 %v7902
      %7923 = vmatmul.f32.gmra.mxu0 %v7905
      %v7924 = vpop.f32.mrf.mxu0
      %v7925 = vadd.f32 0.0, %v7924
      %7926 = vdwg.mxu0
      %v7928 = vsel %vm749, %v7925, 0
      %7930 = vmatpush.msra.mxu0 0.0
      %7931 = vmatpush.msra.mxu0 0.0
      %7932 = vmatpush.msra.mxu0 0.0
      %7933 = vmatpush.msra.mxu0 0.0
      %7934 = vmatpush.msra.mxu0 0.0
      %7935 = vmatpush.msra.mxu0 0.0
      %7936 = vmatpush.msra.mxu0 0.0
      %7937 = vmatpush.msra.mxu0 0.0
      %7938 = vmatpush.msra.mxu0 0.0
      %7939 = vmatpush.msra.mxu0 0.0
      %7940 = vmatpush.msra.mxu0 0.0
      %7941 = vmatpush.msra.mxu0 0.0
      %7942 = vmatpush.msra.mxu0 0.0
      %7943 = vmatpush.msra.mxu0 0.0
      %7944 = vmatpush.msra.mxu0 0.0
      %7945 = vmatpush.msra.mxu0 %v7659
      %7946 = vmatmul.f32.gmra.mxu0 %v7928
      %v7947 = vpop.f32.mrf.mxu0
      %v7948 = vadd.f32 0.0, %v7947
      %7949 = vdwg.mxu0
      %v7950 = vadd.f32 %v7860, %v7948
      %7951 = vrot.lane.b32.xlu0 %v7685, 104
      %v7952 = vpop.permute.xlu0 %7951
      %7953 = vrot.lane.b32.xlu0 %v7685, 72
      %v7954 = vpop.permute.xlu0 %7953
      %v7955 = vsel %vm749, %v7952, 0
      %v7957 = vsel %vm749, %v7954, 0
      %7959 = vmatpush.xpose.msra.mxu0 0.0
      %7960 = vmatpush.xpose.msra.mxu0 0.0
      %7961 = vmatpush.xpose.msra.mxu0 0.0
      %7962 = vmatpush.xpose.msra.mxu0 0.0
      %7963 = vmatpush.xpose.msra.mxu0 0.0
      %7964 = vmatpush.xpose.msra.mxu0 0.0
      %7965 = vmatpush.xpose.msra.mxu0 0.0
      %7966 = vmatpush.xpose.msra.mxu0 0.0
      %7967 = vmatpush.xpose.msra.mxu0 0.0
      %7968 = vmatpush.xpose.msra.mxu0 0.0
      %7969 = vmatpush.xpose.msra.mxu0 0.0
      %7970 = vmatpush.xpose.msra.mxu0 0.0
      %7971 = vmatpush.xpose.msra.mxu0 0.0
      %7972 = vmatpush.xpose.msra.mxu0 0.0
      %7973 = vmatpush.xpose.msra.mxu0 0.0
      %7974 = vmatpush.xpose.msra.mxu0 %v7957
      %7975 = vmatmul.f32.gmra.mxu0 %v7955
      %v7976 = vpop.f32.mrf.mxu0
      %v7977 = vadd.f32 %v708, %v7976
      %7978 = vdwg.mxu0
      %v7979 = vsel %vm749, %v7977, -inf
      %7980 = vmax.xlane.f32.xlu0 %v7979
      %v7981 = vpop.xlane.xlu0 %7980
      %v7982 = vsub.f32 %v7977, %v7981
      %v7983 = vmul.f32 %v7982, 1.442695
      %v7984 = vpow.pop %v7983
      %v7985 = vsel %vm749, %v7984, 0.0
      %7986 = vadd.xlane.f32.xlu0 %v7985
      %v7987 = vpop.xlane.xlu0 %7986
      %v7988 = vrcp.pop %v7987
      %v7989 = vmul.f32 %v7984, %v7988
      %7990 = vrot.lane.b32.xlu0 %v7685, 40
      %v7991 = vpop.permute.xlu0 %7990
      %v7994 = vsel %vm749, %v7989, 0
      %7996 = vmatpush.msra.mxu0 0.0
      %7997 = vmatpush.msra.mxu0 0.0
      %7998 = vmatpush.msra.mxu0 0.0
      %7999 = vmatpush.msra.mxu0 0.0
      %8000 = vmatpush.msra.mxu0 0.0
      %8001 = vmatpush.msra.mxu0 0.0
      %8002 = vmatpush.msra.mxu0 0.0
      %8003 = vmatpush.msra.mxu0 0.0
      %8004 = vmatpush.msra.mxu0 0.0
      %8005 = vmatpush.msra.mxu0 0.0
      %8006 = vmatpush.msra.mxu0 0.0
      %8007 = vmatpush.msra.mxu0 0.0
      %8008 = vmatpush.msra.mxu0 0.0
      %8009 = vmatpush.msra.mxu0 0.0
      %8010 = vmatpush.msra.mxu0 0.0
      %8011 = vmatpush.msra.mxu0 %v7991
      %8012 = vmatmul.f32.gmra.mxu0 %v7994
      %v8013 = vpop.f32.mrf.mxu0
      %v8014 = vadd.f32 0.0, %v8013
      %8015 = vdwg.mxu0
      %v8017 = vsel %vm749, %v8014, 0
      %8019 = vmatpush.msra.mxu0 0.0
      %8020 = vmatpush.msra.mxu0 0.0
      %8021 = vmatpush.msra.mxu0 0.0
      %8022 = vmatpush.msra.mxu0 0.0
      %8023 = vmatpush.msra.mxu0 0.0
      %8024 = vmatpush.msra.mxu0 0.0
      %8025 = vmatpush.msra.mxu0 0.0
      %8026 = vmatpush.msra.mxu0 0.0
      %8027 = vmatpush.msra.mxu0 0.0
      %8028 = vmatpush.msra.mxu0 0.0
      %8029 = vmatpush.msra.mxu0 0.0
      %8030 = vmatpush.msra.mxu0 0.0
      %8031 = vmatpush.msra.mxu0 0.0
      %8032 = vmatpush.msra.mxu0 0.0
      %8033 = vmatpush.msra.mxu0 0.0
      %8034 = vmatpush.msra.mxu0 %v7660
      %8035 = vmatmul.f32.gmra.mxu0 %v8017
      %v8036 = vpop.f32.mrf.mxu0
      %v8037 = vadd.f32 0.0, %v8036
      %8038 = vdwg.mxu0
      %v8039 = vadd.f32 %v7950, %v8037
      %v8040 = vperm.slane %v7647, 0
      %v8041 = vadd.f32 %v8039, %v8040
      %v8042 = vadd.f32 %v7645, %v8041
      %v8043 = vsel %vm722, %v8042, 0.0
      %8044 = vadd.xlane.f32.xlu0 %v8043
      %v8045 = vpop.xlane.xlu0 %8044
      %v8046 = vmul.f32 %v8045, %v1112
      %v8047 = vsub.f32 %v8042, %v8046
      %v8048 = vmul.f32 %v8047, %v8047
      %v8049 = vsel %vm722, %v8048, 0.0
      %8050 = vadd.xlane.f32.xlu0 %v8049
      %v8051 = vpop.xlane.xlu0 %8050
      %v8052 = vmul.f32 %v8051, %v1112
      %v8053 = vadd.f32 %v8052, 1e-05
      %v8054 = vrsqrt.pop %v8053
      %v8055 = vmul.f32 %v8054, %v8053
      %v8056 = vmul.f32 %v8055, %v8054
      %v8057 = vmul.f32 0.5, %v8056
      %v8058 = vsub.f32 1.5, %v8057
      %v8059 = vmul.f32 %v8054, %v8058
      %vm8060 = vweird.f32 %v8053
      %vm8061 = vweird.f32 %v8054
      %vm8062 = vmor %vm8060, %vm8061
      %v8063 = vsel %vm8062, %v8054, %v8059
      %v8064 = vmul.f32 %v8047, %v8063
      %v8065 = vperm.slane %v7647, 1
      %v8066 = vmul.f32 %v8064, %v8065
      %v8067 = vperm.slane %v7647, 2
      %v8068 = vadd.f32 %v8066, %v8067
      %s8069 = scalar_lea.vmem %s11, 32
      %v8070 = vld [vmem:[%s8069] sm:$0xff]
      %v8071 = vld [vmem:[%s8069 + $0x8] sm:$0xff]
      %v8072 = vld [vmem:[%s8069 + $0x10] sm:$0xff]
      %v8073 = vld [vmem:[%s8069 + $0x18] sm:$0xff]
      %s8074 = scalar_lea.vmem %s12, 32
      %v8075 = vld [vmem:[%s8074] sm:$0xff]
      %v8076 = vld [vmem:[%s8074 + $0x8] sm:$0xff]
      %v8077 = vld [vmem:[%s8074 + $0x10] sm:$0xff]
      %v8078 = vld [vmem:[%s8074 + $0x18] sm:$0xff]
      %s8079 = scalar_lea.vmem %s17, 1
      %v8080 = vld [vmem:[%s8079] sm:$0x1]
      %s8081 = scalar_lea.vmem %s13, 32
      %v8082 = vld [vmem:[%s8081] sm:$0xff]
      %v8083 = vld [vmem:[%s8081 + $0x8] sm:$0xff]
      %v8084 = vld [vmem:[%s8081 + $0x10] sm:$0xff]
      %v8085 = vld [vmem:[%s8081 + $0x18] sm:$0xff]
      %v8087 = vperm.slane %v8080, 0
      %v8090 = vsel %vm722, %v8068, 0
      %8092 = vmatpush.msra.mxu0 0.0
      %8093 = vmatpush.msra.mxu0 0.0
      %8094 = vmatpush.msra.mxu0 0.0
      %8095 = vmatpush.msra.mxu0 0.0
      %8096 = vmatpush.msra.mxu0 0.0
      %8097 = vmatpush.msra.mxu0 0.0
      %8098 = vmatpush.msra.mxu0 0.0
      %8099 = vmatpush.msra.mxu0 0.0
      %8100 = vmatpush.msra.mxu0 0.0
      %8101 = vmatpush.msra.mxu0 0.0
      %8102 = vmatpush.msra.mxu0 0.0
      %8103 = vmatpush.msra.mxu0 0.0
      %8104 = vmatpush.msra.mxu0 %v8073
      %8105 = vmatpush.msra.mxu0 %v8072
      %8106 = vmatpush.msra.mxu0 %v8071
      %8107 = vmatpush.msra.mxu0 %v8070
      %8108 = vmatmul.f32.gmra.mxu0 %v8090
      %v8109 = vpop.f32.mrf.mxu0
      %v8110 = vadd.f32 %v8087, %v8109
      %8111 = vdwg.mxu0
      %8112 = vrot.lane.b32.xlu0 %v8087, 96
      %v8113 = vpop.permute.xlu0 %8112
      %8115 = vmatpush.msra.mxu0 0.0
      %8116 = vmatpush.msra.mxu0 0.0
      %8117 = vmatpush.msra.mxu0 0.0
      %8118 = vmatpush.msra.mxu0 0.0
      %8119 = vmatpush.msra.mxu0 0.0
      %8120 = vmatpush.msra.mxu0 0.0
      %8121 = vmatpush.msra.mxu0 0.0
      %8122 = vmatpush.msra.mxu0 0.0
      %8123 = vmatpush.msra.mxu0 0.0
      %8124 = vmatpush.msra.mxu0 0.0
      %8125 = vmatpush.msra.mxu0 0.0
      %8126 = vmatpush.msra.mxu0 0.0
      %8127 = vmatpush.msra.mxu0 %v8078
      %8128 = vmatpush.msra.mxu0 %v8077
      %8129 = vmatpush.msra.mxu0 %v8076
      %8130 = vmatpush.msra.mxu0 %v8075
      %8131 = vmatmul.f32.gmra.mxu0 %v5511
      %v8132 = vpop.f32.mrf.mxu0
      %v8133 = vadd.f32 %v8113, %v8132
      %8134 = vdwg.mxu0
      %v8136 = vsel %vm749, %v8110, 0
      %v8139 = vsel %vm749, %v8133, 0
      %8141 = vmatpush.xpose.msra.mxu0 0.0
      %8142 = vmatpush.xpose.msra.mxu0 0.0
      %8143 = vmatpush.xpose.msra.mxu0 0.0
      %8144 = vmatpush.xpose.msra.mxu0 0.0
      %8145 = vmatpush.xpose.msra.mxu0 0.0
      %8146 = vmatpush.xpose.msra.mxu0 0.0
      %8147 = vmatpush.xpose.msra.mxu0 0.0
      %8148 = vmatpush.xpose.msra.mxu0 0.0
      %8149 = vmatpush.xpose.msra.mxu0 0.0
      %8150 = vmatpush.xpose.msra.mxu0 0.0
      %8151 = vmatpush.xpose.msra.mxu0 0.0
      %8152 = vmatpush.xpose.msra.mxu0 0.0
      %8153 = vmatpush.xpose.msra.mxu0 0.0
      %8154 = vmatpush.xpose.msra.mxu0 0.0
      %8155 = vmatpush.xpose.msra.mxu0 0.0
      %8156 = vmatpush.xpose.msra.mxu0 %v8139
      %8157 = vmatmul.f32.gmra.mxu0 %v8136
      %v8158 = vpop.f32.mrf.mxu0
      %v8159 = vadd.f32 0.0, %v8158
      %8160 = vdwg.mxu0
      %v8161 = vsel %vm749, %v8159, -inf
      %8162 = vmax.xlane.f32.xlu0 %v8161
      %v8163 = vpop.xlane.xlu0 %8162
      %v8164 = vsub.f32 %v8159, %v8163
      %v8165 = vmul.f32 %v8164, 1.442695
      %v8166 = vpow.pop %v8165
      %v8167 = vsel %vm749, %v8166, 0.0
      %8168 = vadd.xlane.f32.xlu0 %v8167
      %v8169 = vpop.xlane.xlu0 %8168
      %v8170 = vrcp.pop %v8169
      %v8171 = vmul.f32 %v8166, %v8170
      %8172 = vrot.lane.b32.xlu0 %v8133, 96
      %v8173 = vpop.permute.xlu0 %8172
      %v8176 = vsel %vm749, %v8171, 0
      %8178 = vmatpush.msra.mxu0 0.0
      %8179 = vmatpush.msra.mxu0 0.0
      %8180 = vmatpush.msra.mxu0 0.0
      %8181 = vmatpush.msra.mxu0 0.0
      %8182 = vmatpush.msra.mxu0 0.0
      %8183 = vmatpush.msra.mxu0 0.0
      %8184 = vmatpush.msra.mxu0 0.0
      %8185 = vmatpush.msra.mxu0 0.0
      %8186 = vmatpush.msra.mxu0 0.0
      %8187 = vmatpush.msra.mxu0 0.0
      %8188 = vmatpush.msra.mxu0 0.0
      %8189 = vmatpush.msra.mxu0 0.0
      %8190 = vmatpush.msra.mxu0 0.0
      %8191 = vmatpush.msra.mxu0 0.0
      %8192 = vmatpush.msra.mxu0 0.0
      %8193 = vmatpush.msra.mxu0 %v8173
      %8194 = vmatmul.f32.gmra.mxu0 %v8176
      %v8195 = vpop.f32.mrf.mxu0
      %v8196 = vadd.f32 0.0, %v8195
      %8197 = vdwg.mxu0
      %8198 = vrot.lane.b32.xlu0 %v8110, 120
      %v8199 = vpop.permute.xlu0 %8198
      %8200 = vrot.lane.b32.xlu0 %v8133, 120
      %v8201 = vpop.permute.xlu0 %8200
      %v8202 = vsel %vm749, %v8199, 0
      %v8204 = vsel %vm749, %v8201, 0
      %8206 = vmatpush.xpose.msra.mxu0 0.0
      %8207 = vmatpush.xpose.msra.mxu0 0.0
      %8208 = vmatpush.xpose.msra.mxu0 0.0
      %8209 = vmatpush.xpose.msra.mxu0 0.0
      %8210 = vmatpush.xpose.msra.mxu0 0.0
      %8211 = vmatpush.xpose.msra.mxu0 0.0
      %8212 = vmatpush.xpose.msra.mxu0 0.0
      %8213 = vmatpush.xpose.msra.mxu0 0.0
      %8214 = vmatpush.xpose.msra.mxu0 0.0
      %8215 = vmatpush.xpose.msra.mxu0 0.0
      %8216 = vmatpush.xpose.msra.mxu0 0.0
      %8217 = vmatpush.xpose.msra.mxu0 0.0
      %8218 = vmatpush.xpose.msra.mxu0 0.0
      %8219 = vmatpush.xpose.msra.mxu0 0.0
      %8220 = vmatpush.xpose.msra.mxu0 0.0
      %8221 = vmatpush.xpose.msra.mxu0 %v8204
      %8222 = vmatmul.f32.gmra.mxu0 %v8202
      %v8223 = vpop.f32.mrf.mxu0
      %v8224 = vadd.f32 0.0, %v8223
      %8225 = vdwg.mxu0
      %v8226 = vsel %vm749, %v8224, -inf
      %8227 = vmax.xlane.f32.xlu0 %v8226
      %v8228 = vpop.xlane.xlu0 %8227
      %v8229 = vsub.f32 %v8224, %v8228
      %v8230 = vmul.f32 %v8229, 1.442695
      %v8231 = vpow.pop %v8230
      %v8232 = vsel %vm749, %v8231, 0.0
      %8233 = vadd.xlane.f32.xlu0 %v8232
      %v8234 = vpop.xlane.xlu0 %8233
      %v8235 = vrcp.pop %v8234
      %v8236 = vmul.f32 %v8231, %v8235
      %8237 = vrot.lane.b32.xlu0 %v8133, 88
      %v8238 = vpop.permute.xlu0 %8237
      %v8241 = vsel %vm749, %v8236, 0
      %8243 = vmatpush.msra.mxu0 0.0
      %8244 = vmatpush.msra.mxu0 0.0
      %8245 = vmatpush.msra.mxu0 0.0
      %8246 = vmatpush.msra.mxu0 0.0
      %8247 = vmatpush.msra.mxu0 0.0
      %8248 = vmatpush.msra.mxu0 0.0
      %8249 = vmatpush.msra.mxu0 0.0
      %8250 = vmatpush.msra.mxu0 0.0
      %8251 = vmatpush.msra.mxu0 0.0
      %8252 = vmatpush.msra.mxu0 0.0
      %8253 = vmatpush.msra.mxu0 0.0
      %8254 = vmatpush.msra.mxu0 0.0
      %8255 = vmatpush.msra.mxu0 0.0
      %8256 = vmatpush.msra.mxu0 0.0
      %8257 = vmatpush.msra.mxu0 0.0
      %8258 = vmatpush.msra.mxu0 %v8238
      %8259 = vmatmul.f32.gmra.mxu0 %v8241
      %v8260 = vpop.f32.mrf.mxu0
      %v8261 = vadd.f32 0.0, %v8260
      %8262 = vdwg.mxu0
      %v8264 = vsel %vm749, %v8261, 0
      %8266 = vmatpush.msra.mxu0 0.0
      %8267 = vmatpush.msra.mxu0 0.0
      %8268 = vmatpush.msra.mxu0 0.0
      %8269 = vmatpush.msra.mxu0 0.0
      %8270 = vmatpush.msra.mxu0 0.0
      %8271 = vmatpush.msra.mxu0 0.0
      %8272 = vmatpush.msra.mxu0 0.0
      %8273 = vmatpush.msra.mxu0 0.0
      %8274 = vmatpush.msra.mxu0 0.0
      %8275 = vmatpush.msra.mxu0 0.0
      %8276 = vmatpush.msra.mxu0 0.0
      %8277 = vmatpush.msra.mxu0 0.0
      %8278 = vmatpush.msra.mxu0 0.0
      %8279 = vmatpush.msra.mxu0 0.0
      %8280 = vmatpush.msra.mxu0 0.0
      %8281 = vmatpush.msra.mxu0 %v8083
      %8282 = vmatmul.f32.gmra.mxu0 %v8264
      %v8283 = vpop.f32.mrf.mxu0
      %v8284 = vadd.f32 0.0, %v8283
      %8285 = vdwg.mxu0
      %v8287 = vsel %vm749, %v8196, 0
      %8289 = vmatpush.msra.mxu0 0.0
      %8290 = vmatpush.msra.mxu0 0.0
      %8291 = vmatpush.msra.mxu0 0.0
      %8292 = vmatpush.msra.mxu0 0.0
      %8293 = vmatpush.msra.mxu0 0.0
      %8294 = vmatpush.msra.mxu0 0.0
      %8295 = vmatpush.msra.mxu0 0.0
      %8296 = vmatpush.msra.mxu0 0.0
      %8297 = vmatpush.msra.mxu0 0.0
      %8298 = vmatpush.msra.mxu0 0.0
      %8299 = vmatpush.msra.mxu0 0.0
      %8300 = vmatpush.msra.mxu0 0.0
      %8301 = vmatpush.msra.mxu0 0.0
      %8302 = vmatpush.msra.mxu0 0.0
      %8303 = vmatpush.msra.mxu0 0.0
      %8304 = vmatpush.msra.mxu0 %v8082
      %8305 = vmatmul.f32.gmra.mxu0 %v8287
      %v8306 = vpop.f32.mrf.mxu0
      %v8307 = vadd.f32 %v8284, %v8306
      %8308 = vdwg.mxu0
      %8309 = vrot.lane.b32.xlu0 %v8110, 112
      %v8310 = vpop.permute.xlu0 %8309
      %8311 = vrot.lane.b32.xlu0 %v8133, 112
      %v8312 = vpop.permute.xlu0 %8311
      %v8313 = vsel %vm749, %v8310, 0
      %v8315 = vsel %vm749, %v8312, 0
      %8317 = vmatpush.xpose.msra.mxu0 0.0
      %8318 = vmatpush.xpose.msra.mxu0 0.0
      %8319 = vmatpush.xpose.msra.mxu0 0.0
      %8320 = vmatpush.xpose.msra.mxu0 0.0
      %8321 = vmatpush.xpose.msra.mxu0 0.0
      %8322 = vmatpush.xpose.msra.mxu0 0.0
      %8323 = vmatpush.xpose.msra.mxu0 0.0
      %8324 = vmatpush.xpose.msra.mxu0 0.0
      %8325 = vmatpush.xpose.msra.mxu0 0.0
      %8326 = vmatpush.xpose.msra.mxu0 0.0
      %8327 = vmatpush.xpose.msra.mxu0 0.0
      %8328 = vmatpush.xpose.msra.mxu0 0.0
      %8329 = vmatpush.xpose.msra.mxu0 0.0
      %8330 = vmatpush.xpose.msra.mxu0 0.0
      %8331 = vmatpush.xpose.msra.mxu0 0.0
      %8332 = vmatpush.xpose.msra.mxu0 %v8315
      %8333 = vmatmul.f32.gmra.mxu0 %v8313
      %v8334 = vpop.f32.mrf.mxu0
      %v8335 = vadd.f32 0.0, %v8334
      %8336 = vdwg.mxu0
      %v8337 = vsel %vm749, %v8335, -inf
      %8338 = vmax.xlane.f32.xlu0 %v8337
      %v8339 = vpop.xlane.xlu0 %8338
      %v8340 = vsub.f32 %v8335, %v8339
      %v8341 = vmul.f32 %v8340, 1.442695
      %v8342 = vpow.pop %v8341
      %v8343 = vsel %vm749, %v8342, 0.0
      %8344 = vadd.xlane.f32.xlu0 %v8343
      %v8345 = vpop.xlane.xlu0 %8344
      %v8346 = vrcp.pop %v8345
      %v8347 = vmul.f32 %v8342, %v8346
      %8348 = vrot.lane.b32.xlu0 %v8133, 80
      %v8349 = vpop.permute.xlu0 %8348
      %v8352 = vsel %vm749, %v8347, 0
      %8354 = vmatpush.msra.mxu0 0.0
      %8355 = vmatpush.msra.mxu0 0.0
      %8356 = vmatpush.msra.mxu0 0.0
      %8357 = vmatpush.msra.mxu0 0.0
      %8358 = vmatpush.msra.mxu0 0.0
      %8359 = vmatpush.msra.mxu0 0.0
      %8360 = vmatpush.msra.mxu0 0.0
      %8361 = vmatpush.msra.mxu0 0.0
      %8362 = vmatpush.msra.mxu0 0.0
      %8363 = vmatpush.msra.mxu0 0.0
      %8364 = vmatpush.msra.mxu0 0.0
      %8365 = vmatpush.msra.mxu0 0.0
      %8366 = vmatpush.msra.mxu0 0.0
      %8367 = vmatpush.msra.mxu0 0.0
      %8368 = vmatpush.msra.mxu0 0.0
      %8369 = vmatpush.msra.mxu0 %v8349
      %8370 = vmatmul.f32.gmra.mxu0 %v8352
      %v8371 = vpop.f32.mrf.mxu0
      %v8372 = vadd.f32 0.0, %v8371
      %8373 = vdwg.mxu0
      %v8375 = vsel %vm749, %v8372, 0
      %8377 = vmatpush.msra.mxu0 0.0
      %8378 = vmatpush.msra.mxu0 0.0
      %8379 = vmatpush.msra.mxu0 0.0
      %8380 = vmatpush.msra.mxu0 0.0
      %8381 = vmatpush.msra.mxu0 0.0
      %8382 = vmatpush.msra.mxu0 0.0
      %8383 = vmatpush.msra.mxu0 0.0
      %8384 = vmatpush.msra.mxu0 0.0
      %8385 = vmatpush.msra.mxu0 0.0
      %8386 = vmatpush.msra.mxu0 0.0
      %8387 = vmatpush.msra.mxu0 0.0
      %8388 = vmatpush.msra.mxu0 0.0
      %8389 = vmatpush.msra.mxu0 0.0
      %8390 = vmatpush.msra.mxu0 0.0
      %8391 = vmatpush.msra.mxu0 0.0
      %8392 = vmatpush.msra.mxu0 %v8084
      %8393 = vmatmul.f32.gmra.mxu0 %v8375
      %v8394 = vpop.f32.mrf.mxu0
      %v8395 = vadd.f32 0.0, %v8394
      %8396 = vdwg.mxu0
      %v8397 = vadd.f32 %v8307, %v8395
      %8398 = vrot.lane.b32.xlu0 %v8110, 104
      %v8399 = vpop.permute.xlu0 %8398
      %8400 = vrot.lane.b32.xlu0 %v8133, 104
      %v8401 = vpop.permute.xlu0 %8400
      %v8402 = vsel %vm749, %v8399, 0
      %v8404 = vsel %vm749, %v8401, 0
      %8406 = vmatpush.xpose.msra.mxu0 0.0
      %8407 = vmatpush.xpose.msra.mxu0 0.0
      %8408 = vmatpush.xpose.msra.mxu0 0.0
      %8409 = vmatpush.xpose.msra.mxu0 0.0
      %8410 = vmatpush.xpose.msra.mxu0 0.0
      %8411 = vmatpush.xpose.msra.mxu0 0.0
      %8412 = vmatpush.xpose.msra.mxu0 0.0
      %8413 = vmatpush.xpose.msra.mxu0 0.0
      %8414 = vmatpush.xpose.msra.mxu0 0.0
      %8415 = vmatpush.xpose.msra.mxu0 0.0
      %8416 = vmatpush.xpose.msra.mxu0 0.0
      %8417 = vmatpush.xpose.msra.mxu0 0.0
      %8418 = vmatpush.xpose.msra.mxu0 0.0
      %8419 = vmatpush.xpose.msra.mxu0 0.0
      %8420 = vmatpush.xpose.msra.mxu0 0.0
      %8421 = vmatpush.xpose.msra.mxu0 %v8404
      %8422 = vmatmul.f32.gmra.mxu0 %v8402
      %v8423 = vpop.f32.mrf.mxu0
      %v8424 = vadd.f32 0.0, %v8423
      %8425 = vdwg.mxu0
      %v8426 = vsel %vm749, %v8424, -inf
      %8427 = vmax.xlane.f32.xlu0 %v8426
      %v8428 = vpop.xlane.xlu0 %8427
      %v8429 = vsub.f32 %v8424, %v8428
      %v8430 = vmul.f32 %v8429, 1.442695
      %v8431 = vpow.pop %v8430
      %v8432 = vsel %vm749, %v8431, 0.0
      %8433 = vadd.xlane.f32.xlu0 %v8432
      %v8434 = vpop.xlane.xlu0 %8433
      %v8435 = vrcp.pop %v8434
      %v8436 = vmul.f32 %v8431, %v8435
      %8437 = vrot.lane.b32.xlu0 %v8133, 72
      %v8438 = vpop.permute.xlu0 %8437
      %v8441 = vsel %vm749, %v8436, 0
      %8443 = vmatpush.msra.mxu0 0.0
      %8444 = vmatpush.msra.mxu0 0.0
      %8445 = vmatpush.msra.mxu0 0.0
      %8446 = vmatpush.msra.mxu0 0.0
      %8447 = vmatpush.msra.mxu0 0.0
      %8448 = vmatpush.msra.mxu0 0.0
      %8449 = vmatpush.msra.mxu0 0.0
      %8450 = vmatpush.msra.mxu0 0.0
      %8451 = vmatpush.msra.mxu0 0.0
      %8452 = vmatpush.msra.mxu0 0.0
      %8453 = vmatpush.msra.mxu0 0.0
      %8454 = vmatpush.msra.mxu0 0.0
      %8455 = vmatpush.msra.mxu0 0.0
      %8456 = vmatpush.msra.mxu0 0.0
      %8457 = vmatpush.msra.mxu0 0.0
      %8458 = vmatpush.msra.mxu0 %v8438
      %8459 = vmatmul.f32.gmra.mxu0 %v8441
      %v8460 = vpop.f32.mrf.mxu0
      %v8461 = vadd.f32 0.0, %v8460
      %8462 = vdwg.mxu0
      %v8464 = vsel %vm749, %v8461, 0
      %8466 = vmatpush.msra.mxu0 0.0
      %8467 = vmatpush.msra.mxu0 0.0
      %8468 = vmatpush.msra.mxu0 0.0
      %8469 = vmatpush.msra.mxu0 0.0
      %8470 = vmatpush.msra.mxu0 0.0
      %8471 = vmatpush.msra.mxu0 0.0
      %8472 = vmatpush.msra.mxu0 0.0
      %8473 = vmatpush.msra.mxu0 0.0
      %8474 = vmatpush.msra.mxu0 0.0
      %8475 = vmatpush.msra.mxu0 0.0
      %8476 = vmatpush.msra.mxu0 0.0
      %8477 = vmatpush.msra.mxu0 0.0
      %8478 = vmatpush.msra.mxu0 0.0
      %8479 = vmatpush.msra.mxu0 0.0
      %8480 = vmatpush.msra.mxu0 0.0
      %8481 = vmatpush.msra.mxu0 %v8085
      %8482 = vmatmul.f32.gmra.mxu0 %v8464
      %v8483 = vpop.f32.mrf.mxu0
      %v8484 = vadd.f32 0.0, %v8483
      %8485 = vdwg.mxu0
      %v8486 = vadd.f32 %v8397, %v8484
      %v8487 = vperm.slane %v7647, 3
      %v8488 = vadd.f32 %v8486, %v8487
      %v8489 = vadd.f32 %v8068, %v8488
      %v8490 = vsel %vm722, %v8489, 0.0
      %8491 = vadd.xlane.f32.xlu0 %v8490
      %v8492 = vpop.xlane.xlu0 %8491
      %v8493 = vmul.f32 %v8492, %v1112
      %v8494 = vsub.f32 %v8489, %v8493
      %v8495 = vmul.f32 %v8494, %v8494
      %v8496 = vsel %vm722, %v8495, 0.0
      %8497 = vadd.xlane.f32.xlu0 %v8496
      %v8498 = vpop.xlane.xlu0 %8497
      %v8499 = vmul.f32 %v8498, %v1112
      %v8500 = vadd.f32 %v8499, 1e-05
      %v8501 = vrsqrt.pop %v8500
      %v8502 = vmul.f32 %v8501, %v8500
      %v8503 = vmul.f32 %v8502, %v8501
      %v8504 = vmul.f32 0.5, %v8503
      %v8505 = vsub.f32 1.5, %v8504
      %v8506 = vmul.f32 %v8501, %v8505
      %vm8507 = vweird.f32 %v8500
      %vm8508 = vweird.f32 %v8501
      %vm8509 = vmor %vm8507, %vm8508
      %v8510 = vsel %vm8509, %v8501, %v8506
      %v8511 = vmul.f32 %v8494, %v8510
      %v8512 = vperm.slane %v7647, 4
      %v8513 = vmul.f32 %v8511, %v8512
      %v8514 = vperm.slane %v7647, 5
      %v8515 = vadd.f32 %v8513, %v8514
      %s8516 = scalar_lea.vmem %s14, 256
      %v8517 = vld [vmem:[%s8516] sm:$0xff]
      %v8518 = vld [vmem:[%s8516 + $0x8] sm:$0xff]
      %v8519 = vld [vmem:[%s8516 + $0x10] sm:$0xff]
      %v8520 = vld [vmem:[%s8516 + $0x18] sm:$0xff]
      %v8521 = vld [vmem:[%s8516 + $0x20] sm:$0xff]
      %v8522 = vld [vmem:[%s8516 + $0x28] sm:$0xff]
      %v8523 = vld [vmem:[%s8516 + $0x30] sm:$0xff]
      %v8524 = vld [vmem:[%s8516 + $0x38] sm:$0xff]
      %v8525 = vld [vmem:[%s8516 + $0x40] sm:$0xff]
      %v8526 = vld [vmem:[%s8516 + $0x48] sm:$0xff]
      %v8527 = vld [vmem:[%s8516 + $0x50] sm:$0xff]
      %v8528 = vld [vmem:[%s8516 + $0x58] sm:$0xff]
      %v8529 = vld [vmem:[%s8516 + $0x60] sm:$0xff]
      %v8530 = vld [vmem:[%s8516 + $0x68] sm:$0xff]
      %v8531 = vld [vmem:[%s8516 + $0x70] sm:$0xff]
      %v8532 = vld [vmem:[%s8516 + $0x78] sm:$0xff]
      %v8533 = vld [vmem:[%s8516 + $0x80] sm:$0xff]
      %v8534 = vld [vmem:[%s8516 + $0x88] sm:$0xff]
      %v8535 = vld [vmem:[%s8516 + $0x90] sm:$0xff]
      %v8536 = vld [vmem:[%s8516 + $0x98] sm:$0xff]
      %v8537 = vld [vmem:[%s8516 + $0xa0] sm:$0xff]
      %v8538 = vld [vmem:[%s8516 + $0xa8] sm:$0xff]
      %v8539 = vld [vmem:[%s8516 + $0xb0] sm:$0xff]
      %v8540 = vld [vmem:[%s8516 + $0xb8] sm:$0xff]
      %v8541 = vld [vmem:[%s8516 + $0xc0] sm:$0xff]
      %v8542 = vld [vmem:[%s8516 + $0xc8] sm:$0xff]
      %v8543 = vld [vmem:[%s8516 + $0xd0] sm:$0xff]
      %v8544 = vld [vmem:[%s8516 + $0xd8] sm:$0xff]
      %v8545 = vld [vmem:[%s8516 + $0xe0] sm:$0xff]
      %v8546 = vld [vmem:[%s8516 + $0xe8] sm:$0xff]
      %v8547 = vld [vmem:[%s8516 + $0xf0] sm:$0xff]
      %v8548 = vld [vmem:[%s8516 + $0xf8] sm:$0xff]
      %s8549 = scalar_lea.vmem %s18, 16
      %v8550 = vld [vmem:[%s8549] sm:$0xff]
      %v8551 = vld [vmem:[%s8549 + $0x8] sm:$0xff]
      %s8552 = scalar_lea.vmem %s15, 1024
      %v8553 = vld [vmem:[%s8552] sm:$0xf]
      %v8554 = vld [vmem:[%s8552 + $0x4] sm:$0xf]
      %v8555 = vld [vmem:[%s8552 + $0x8] sm:$0xf]
      %v8556 = vld [vmem:[%s8552 + $0xc] sm:$0xf]
      %v8557 = vld [vmem:[%s8552 + $0x10] sm:$0xf]
      %v8558 = vld [vmem:[%s8552 + $0x14] sm:$0xf]
      %v8559 = vld [vmem:[%s8552 + $0x18] sm:$0xf]
      %v8560 = vld [vmem:[%s8552 + $0x1c] sm:$0xf]
      %v8561 = vld [vmem:[%s8552 + $0x20] sm:$0xf]
      %v8562 = vld [vmem:[%s8552 + $0x24] sm:$0xf]
      %v8563 = vld [vmem:[%s8552 + $0x28] sm:$0xf]
      %v8564 = vld [vmem:[%s8552 + $0x2c] sm:$0xf]
      %v8565 = vld [vmem:[%s8552 + $0x30] sm:$0xf]
      %v8566 = vld [vmem:[%s8552 + $0x34] sm:$0xf]
      %v8567 = vld [vmem:[%s8552 + $0x38] sm:$0xf]
      %v8568 = vld [vmem:[%s8552 + $0x3c] sm:$0xf]
      %v8569 = vld [vmem:[%s8552 + $0x40] sm:$0xf]
      %v8570 = vld [vmem:[%s8552 + $0x44] sm:$0xf]
      %v8571 = vld [vmem:[%s8552 + $0x48] sm:$0xf]
      %v8572 = vld [vmem:[%s8552 + $0x4c] sm:$0xf]
      %v8573 = vld [vmem:[%s8552 + $0x50] sm:$0xf]
      %v8574 = vld [vmem:[%s8552 + $0x54] sm:$0xf]
      %v8575 = vld [vmem:[%s8552 + $0x58] sm:$0xf]
      %v8576 = vld [vmem:[%s8552 + $0x5c] sm:$0xf]
      %v8577 = vld [vmem:[%s8552 + $0x60] sm:$0xf]
      %v8578 = vld [vmem:[%s8552 + $0x64] sm:$0xf]
      %v8579 = vld [vmem:[%s8552 + $0x68] sm:$0xf]
      %v8580 = vld [vmem:[%s8552 + $0x6c] sm:$0xf]
      %v8581 = vld [vmem:[%s8552 + $0x70] sm:$0xf]
      %v8582 = vld [vmem:[%s8552 + $0x74] sm:$0xf]
      %v8583 = vld [vmem:[%s8552 + $0x78] sm:$0xf]
      %v8584 = vld [vmem:[%s8552 + $0x7c] sm:$0xf]
      %v8585 = vld [vmem:[%s8552 + $0x80] sm:$0xf]
      %v8586 = vld [vmem:[%s8552 + $0x84] sm:$0xf]
      %v8587 = vld [vmem:[%s8552 + $0x88] sm:$0xf]
      %v8588 = vld [vmem:[%s8552 + $0x8c] sm:$0xf]
      %v8589 = vld [vmem:[%s8552 + $0x90] sm:$0xf]
      %v8590 = vld [vmem:[%s8552 + $0x94] sm:$0xf]
      %v8591 = vld [vmem:[%s8552 + $0x98] sm:$0xf]
      %v8592 = vld [vmem:[%s8552 + $0x9c] sm:$0xf]
      %v8593 = vld [vmem:[%s8552 + $0xa0] sm:$0xf]
      %v8594 = vld [vmem:[%s8552 + $0xa4] sm:$0xf]
      %v8595 = vld [vmem:[%s8552 + $0xa8] sm:$0xf]
      %v8596 = vld [vmem:[%s8552 + $0xac] sm:$0xf]
      %v8597 = vld [vmem:[%s8552 + $0xb0] sm:$0xf]
      %v8598 = vld [vmem:[%s8552 + $0xb4] sm:$0xf]
      %v8599 = vld [vmem:[%s8552 + $0xb8] sm:$0xf]
      %v8600 = vld [vmem:[%s8552 + $0xbc] sm:$0xf]
      %v8601 = vld [vmem:[%s8552 + $0xc0] sm:$0xf]
      %v8602 = vld [vmem:[%s8552 + $0xc4] sm:$0xf]
      %v8603 = vld [vmem:[%s8552 + $0xc8] sm:$0xf]
      %v8604 = vld [vmem:[%s8552 + $0xcc] sm:$0xf]
      %v8605 = vld [vmem:[%s8552 + $0xd0] sm:$0xf]
      %v8606 = vld [vmem:[%s8552 + $0xd4] sm:$0xf]
      %v8607 = vld [vmem:[%s8552 + $0xd8] sm:$0xf]
      %v8608 = vld [vmem:[%s8552 + $0xdc] sm:$0xf]
      %v8609 = vld [vmem:[%s8552 + $0xe0] sm:$0xf]
      %v8610 = vld [vmem:[%s8552 + $0xe4] sm:$0xf]
      %v8611 = vld [vmem:[%s8552 + $0xe8] sm:$0xf]
      %v8612 = vld [vmem:[%s8552 + $0xec] sm:$0xf]
      %v8613 = vld [vmem:[%s8552 + $0xf0] sm:$0xf]
      %v8614 = vld [vmem:[%s8552 + $0xf4] sm:$0xf]
      %v8615 = vld [vmem:[%s8552 + $0xf8] sm:$0xf]
      %v8616 = vld [vmem:[%s8552 + $0xfc] sm:$0xf]
      %v8617 = vld [vmem:[%s8552 + $0x100] sm:$0xf]
      %v8618 = vld [vmem:[%s8552 + $0x104] sm:$0xf]
      %v8619 = vld [vmem:[%s8552 + $0x108] sm:$0xf]
      %v8620 = vld [vmem:[%s8552 + $0x10c] sm:$0xf]
      %v8621 = vld [vmem:[%s8552 + $0x110] sm:$0xf]
      %v8622 = vld [vmem:[%s8552 + $0x114] sm:$0xf]
      %v8623 = vld [vmem:[%s8552 + $0x118] sm:$0xf]
      %v8624 = vld [vmem:[%s8552 + $0x11c] sm:$0xf]
      %v8625 = vld [vmem:[%s8552 + $0x120] sm:$0xf]
      %v8626 = vld [vmem:[%s8552 + $0x124] sm:$0xf]
      %v8627 = vld [vmem:[%s8552 + $0x128] sm:$0xf]
      %v8628 = vld [vmem:[%s8552 + $0x12c] sm:$0xf]
      %v8629 = vld [vmem:[%s8552 + $0x130] sm:$0xf]
      %v8630 = vld [vmem:[%s8552 + $0x134] sm:$0xf]
      %v8631 = vld [vmem:[%s8552 + $0x138] sm:$0xf]
      %v8632 = vld [vmem:[%s8552 + $0x13c] sm:$0xf]
      %v8633 = vld [vmem:[%s8552 + $0x140] sm:$0xf]
      %v8634 = vld [vmem:[%s8552 + $0x144] sm:$0xf]
      %v8635 = vld [vmem:[%s8552 + $0x148] sm:$0xf]
      %v8636 = vld [vmem:[%s8552 + $0x14c] sm:$0xf]
      %v8637 = vld [vmem:[%s8552 + $0x150] sm:$0xf]
      %v8638 = vld [vmem:[%s8552 + $0x154] sm:$0xf]
      %v8639 = vld [vmem:[%s8552 + $0x158] sm:$0xf]
      %v8640 = vld [vmem:[%s8552 + $0x15c] sm:$0xf]
      %v8641 = vld [vmem:[%s8552 + $0x160] sm:$0xf]
      %v8642 = vld [vmem:[%s8552 + $0x164] sm:$0xf]
      %v8643 = vld [vmem:[%s8552 + $0x168] sm:$0xf]
      %v8644 = vld [vmem:[%s8552 + $0x16c] sm:$0xf]
      %v8645 = vld [vmem:[%s8552 + $0x170] sm:$0xf]
      %v8646 = vld [vmem:[%s8552 + $0x174] sm:$0xf]
      %v8647 = vld [vmem:[%s8552 + $0x178] sm:$0xf]
      %v8648 = vld [vmem:[%s8552 + $0x17c] sm:$0xf]
      %v8649 = vld [vmem:[%s8552 + $0x180] sm:$0xf]
      %v8650 = vld [vmem:[%s8552 + $0x184] sm:$0xf]
      %v8651 = vld [vmem:[%s8552 + $0x188] sm:$0xf]
      %v8652 = vld [vmem:[%s8552 + $0x18c] sm:$0xf]
      %v8653 = vld [vmem:[%s8552 + $0x190] sm:$0xf]
      %v8654 = vld [vmem:[%s8552 + $0x194] sm:$0xf]
      %v8655 = vld [vmem:[%s8552 + $0x198] sm:$0xf]
      %v8656 = vld [vmem:[%s8552 + $0x19c] sm:$0xf]
      %v8657 = vld [vmem:[%s8552 + $0x1a0] sm:$0xf]
      %v8658 = vld [vmem:[%s8552 + $0x1a4] sm:$0xf]
      %v8659 = vld [vmem:[%s8552 + $0x1a8] sm:$0xf]
      %v8660 = vld [vmem:[%s8552 + $0x1ac] sm:$0xf]
      %v8661 = vld [vmem:[%s8552 + $0x1b0] sm:$0xf]
      %v8662 = vld [vmem:[%s8552 + $0x1b4] sm:$0xf]
      %v8663 = vld [vmem:[%s8552 + $0x1b8] sm:$0xf]
      %v8664 = vld [vmem:[%s8552 + $0x1bc] sm:$0xf]
      %v8665 = vld [vmem:[%s8552 + $0x1c0] sm:$0xf]
      %v8666 = vld [vmem:[%s8552 + $0x1c4] sm:$0xf]
      %v8667 = vld [vmem:[%s8552 + $0x1c8] sm:$0xf]
      %v8668 = vld [vmem:[%s8552 + $0x1cc] sm:$0xf]
      %v8669 = vld [vmem:[%s8552 + $0x1d0] sm:$0xf]
      %v8670 = vld [vmem:[%s8552 + $0x1d4] sm:$0xf]
      %v8671 = vld [vmem:[%s8552 + $0x1d8] sm:$0xf]
      %v8672 = vld [vmem:[%s8552 + $0x1dc] sm:$0xf]
      %v8673 = vld [vmem:[%s8552 + $0x1e0] sm:$0xf]
      %v8674 = vld [vmem:[%s8552 + $0x1e4] sm:$0xf]
      %v8675 = vld [vmem:[%s8552 + $0x1e8] sm:$0xf]
      %v8676 = vld [vmem:[%s8552 + $0x1ec] sm:$0xf]
      %v8677 = vld [vmem:[%s8552 + $0x1f0] sm:$0xf]
      %v8678 = vld [vmem:[%s8552 + $0x1f4] sm:$0xf]
      %v8679 = vld [vmem:[%s8552 + $0x1f8] sm:$0xf]
      %v8680 = vld [vmem:[%s8552 + $0x1fc] sm:$0xf]
      %v8681 = vld [vmem:[%s8552 + $0x200] sm:$0xf]
      %v8682 = vld [vmem:[%s8552 + $0x204] sm:$0xf]
      %v8683 = vld [vmem:[%s8552 + $0x208] sm:$0xf]
      %v8684 = vld [vmem:[%s8552 + $0x20c] sm:$0xf]
      %v8685 = vld [vmem:[%s8552 + $0x210] sm:$0xf]
      %v8686 = vld [vmem:[%s8552 + $0x214] sm:$0xf]
      %v8687 = vld [vmem:[%s8552 + $0x218] sm:$0xf]
      %v8688 = vld [vmem:[%s8552 + $0x21c] sm:$0xf]
      %v8689 = vld [vmem:[%s8552 + $0x220] sm:$0xf]
      %v8690 = vld [vmem:[%s8552 + $0x224] sm:$0xf]
      %v8691 = vld [vmem:[%s8552 + $0x228] sm:$0xf]
      %v8692 = vld [vmem:[%s8552 + $0x22c] sm:$0xf]
      %v8693 = vld [vmem:[%s8552 + $0x230] sm:$0xf]
      %v8694 = vld [vmem:[%s8552 + $0x234] sm:$0xf]
      %v8695 = vld [vmem:[%s8552 + $0x238] sm:$0xf]
      %v8696 = vld [vmem:[%s8552 + $0x23c] sm:$0xf]
      %v8697 = vld [vmem:[%s8552 + $0x240] sm:$0xf]
      %v8698 = vld [vmem:[%s8552 + $0x244] sm:$0xf]
      %v8699 = vld [vmem:[%s8552 + $0x248] sm:$0xf]
      %v8700 = vld [vmem:[%s8552 + $0x24c] sm:$0xf]
      %v8701 = vld [vmem:[%s8552 + $0x250] sm:$0xf]
      %v8702 = vld [vmem:[%s8552 + $0x254] sm:$0xf]
      %v8703 = vld [vmem:[%s8552 + $0x258] sm:$0xf]
      %v8704 = vld [vmem:[%s8552 + $0x25c] sm:$0xf]
      %v8705 = vld [vmem:[%s8552 + $0x260] sm:$0xf]
      %v8706 = vld [vmem:[%s8552 + $0x264] sm:$0xf]
      %v8707 = vld [vmem:[%s8552 + $0x268] sm:$0xf]
      %v8708 = vld [vmem:[%s8552 + $0x26c] sm:$0xf]
      %v8709 = vld [vmem:[%s8552 + $0x270] sm:$0xf]
      %v8710 = vld [vmem:[%s8552 + $0x274] sm:$0xf]
      %v8711 = vld [vmem:[%s8552 + $0x278] sm:$0xf]
      %v8712 = vld [vmem:[%s8552 + $0x27c] sm:$0xf]
      %v8713 = vld [vmem:[%s8552 + $0x280] sm:$0xf]
      %v8714 = vld [vmem:[%s8552 + $0x284] sm:$0xf]
      %v8715 = vld [vmem:[%s8552 + $0x288] sm:$0xf]
      %v8716 = vld [vmem:[%s8552 + $0x28c] sm:$0xf]
      %v8717 = vld [vmem:[%s8552 + $0x290] sm:$0xf]
      %v8718 = vld [vmem:[%s8552 + $0x294] sm:$0xf]
      %v8719 = vld [vmem:[%s8552 + $0x298] sm:$0xf]
      %v8720 = vld [vmem:[%s8552 + $0x29c] sm:$0xf]
      %v8721 = vld [vmem:[%s8552 + $0x2a0] sm:$0xf]
      %v8722 = vld [vmem:[%s8552 + $0x2a4] sm:$0xf]
      %v8723 = vld [vmem:[%s8552 + $0x2a8] sm:$0xf]
      %v8724 = vld [vmem:[%s8552 + $0x2ac] sm:$0xf]
      %v8725 = vld [vmem:[%s8552 + $0x2b0] sm:$0xf]
      %v8726 = vld [vmem:[%s8552 + $0x2b4] sm:$0xf]
      %v8727 = vld [vmem:[%s8552 + $0x2b8] sm:$0xf]
      %v8728 = vld [vmem:[%s8552 + $0x2bc] sm:$0xf]
      %v8729 = vld [vmem:[%s8552 + $0x2c0] sm:$0xf]
      %v8730 = vld [vmem:[%s8552 + $0x2c4] sm:$0xf]
      %v8731 = vld [vmem:[%s8552 + $0x2c8] sm:$0xf]
      %v8732 = vld [vmem:[%s8552 + $0x2cc] sm:$0xf]
      %v8733 = vld [vmem:[%s8552 + $0x2d0] sm:$0xf]
      %v8734 = vld [vmem:[%s8552 + $0x2d4] sm:$0xf]
      %v8735 = vld [vmem:[%s8552 + $0x2d8] sm:$0xf]
      %v8736 = vld [vmem:[%s8552 + $0x2dc] sm:$0xf]
      %v8737 = vld [vmem:[%s8552 + $0x2e0] sm:$0xf]
      %v8738 = vld [vmem:[%s8552 + $0x2e4] sm:$0xf]
      %v8739 = vld [vmem:[%s8552 + $0x2e8] sm:$0xf]
      %v8740 = vld [vmem:[%s8552 + $0x2ec] sm:$0xf]
      %v8741 = vld [vmem:[%s8552 + $0x2f0] sm:$0xf]
      %v8742 = vld [vmem:[%s8552 + $0x2f4] sm:$0xf]
      %v8743 = vld [vmem:[%s8552 + $0x2f8] sm:$0xf]
      %v8744 = vld [vmem:[%s8552 + $0x2fc] sm:$0xf]
      %v8745 = vld [vmem:[%s8552 + $0x300] sm:$0xf]
      %v8746 = vld [vmem:[%s8552 + $0x304] sm:$0xf]
      %v8747 = vld [vmem:[%s8552 + $0x308] sm:$0xf]
      %v8748 = vld [vmem:[%s8552 + $0x30c] sm:$0xf]
      %v8749 = vld [vmem:[%s8552 + $0x310] sm:$0xf]
      %v8750 = vld [vmem:[%s8552 + $0x314] sm:$0xf]
      %v8751 = vld [vmem:[%s8552 + $0x318] sm:$0xf]
      %v8752 = vld [vmem:[%s8552 + $0x31c] sm:$0xf]
      %v8753 = vld [vmem:[%s8552 + $0x320] sm:$0xf]
      %v8754 = vld [vmem:[%s8552 + $0x324] sm:$0xf]
      %v8755 = vld [vmem:[%s8552 + $0x328] sm:$0xf]
      %v8756 = vld [vmem:[%s8552 + $0x32c] sm:$0xf]
      %v8757 = vld [vmem:[%s8552 + $0x330] sm:$0xf]
      %v8758 = vld [vmem:[%s8552 + $0x334] sm:$0xf]
      %v8759 = vld [vmem:[%s8552 + $0x338] sm:$0xf]
      %v8760 = vld [vmem:[%s8552 + $0x33c] sm:$0xf]
      %v8761 = vld [vmem:[%s8552 + $0x340] sm:$0xf]
      %v8762 = vld [vmem:[%s8552 + $0x344] sm:$0xf]
      %v8763 = vld [vmem:[%s8552 + $0x348] sm:$0xf]
      %v8764 = vld [vmem:[%s8552 + $0x34c] sm:$0xf]
      %v8765 = vld [vmem:[%s8552 + $0x350] sm:$0xf]
      %v8766 = vld [vmem:[%s8552 + $0x354] sm:$0xf]
      %v8767 = vld [vmem:[%s8552 + $0x358] sm:$0xf]
      %v8768 = vld [vmem:[%s8552 + $0x35c] sm:$0xf]
      %v8769 = vld [vmem:[%s8552 + $0x360] sm:$0xf]
      %v8770 = vld [vmem:[%s8552 + $0x364] sm:$0xf]
      %v8771 = vld [vmem:[%s8552 + $0x368] sm:$0xf]
      %v8772 = vld [vmem:[%s8552 + $0x36c] sm:$0xf]
      %v8773 = vld [vmem:[%s8552 + $0x370] sm:$0xf]
      %v8774 = vld [vmem:[%s8552 + $0x374] sm:$0xf]
      %v8775 = vld [vmem:[%s8552 + $0x378] sm:$0xf]
      %v8776 = vld [vmem:[%s8552 + $0x37c] sm:$0xf]
      %v8777 = vld [vmem:[%s8552 + $0x380] sm:$0xf]
      %v8778 = vld [vmem:[%s8552 + $0x384] sm:$0xf]
      %v8779 = vld [vmem:[%s8552 + $0x388] sm:$0xf]
      %v8780 = vld [vmem:[%s8552 + $0x38c] sm:$0xf]
      %v8781 = vld [vmem:[%s8552 + $0x390] sm:$0xf]
      %v8782 = vld [vmem:[%s8552 + $0x394] sm:$0xf]
      %v8783 = vld [vmem:[%s8552 + $0x398] sm:$0xf]
      %v8784 = vld [vmem:[%s8552 + $0x39c] sm:$0xf]
      %v8785 = vld [vmem:[%s8552 + $0x3a0] sm:$0xf]
      %v8786 = vld [vmem:[%s8552 + $0x3a4] sm:$0xf]
      %v8787 = vld [vmem:[%s8552 + $0x3a8] sm:$0xf]
      %v8788 = vld [vmem:[%s8552 + $0x3ac] sm:$0xf]
      %v8789 = vld [vmem:[%s8552 + $0x3b0] sm:$0xf]
      %v8790 = vld [vmem:[%s8552 + $0x3b4] sm:$0xf]
      %v8791 = vld [vmem:[%s8552 + $0x3b8] sm:$0xf]
      %v8792 = vld [vmem:[%s8552 + $0x3bc] sm:$0xf]
      %v8793 = vld [vmem:[%s8552 + $0x3c0] sm:$0xf]
      %v8794 = vld [vmem:[%s8552 + $0x3c4] sm:$0xf]
      %v8795 = vld [vmem:[%s8552 + $0x3c8] sm:$0xf]
      %v8796 = vld [vmem:[%s8552 + $0x3cc] sm:$0xf]
      %v8797 = vld [vmem:[%s8552 + $0x3d0] sm:$0xf]
      %v8798 = vld [vmem:[%s8552 + $0x3d4] sm:$0xf]
      %v8799 = vld [vmem:[%s8552 + $0x3d8] sm:$0xf]
      %v8800 = vld [vmem:[%s8552 + $0x3dc] sm:$0xf]
      %v8801 = vld [vmem:[%s8552 + $0x3e0] sm:$0xf]
      %v8802 = vld [vmem:[%s8552 + $0x3e4] sm:$0xf]
      %v8803 = vld [vmem:[%s8552 + $0x3e8] sm:$0xf]
      %v8804 = vld [vmem:[%s8552 + $0x3ec] sm:$0xf]
      %v8805 = vld [vmem:[%s8552 + $0x3f0] sm:$0xf]
      %v8806 = vld [vmem:[%s8552 + $0x3f4] sm:$0xf]
      %v8807 = vld [vmem:[%s8552 + $0x3f8] sm:$0xf]
      %v8808 = vld [vmem:[%s8552 + $0x3fc] sm:$0xf]
      %v8809 = vpack.c.bf16 %v8515, %v8515
      %v8812 = vperm.slane %v8550, 0
      %v8813 = vperm.slane %v8550, 1
      %v8814 = vperm.slane %v8550, 2
      %v8815 = vperm.slane %v8550, 3
      %v8816 = vperm.slane %v8550, 4
      %v8817 = vperm.slane %v8550, 5
      %v8818 = vperm.slane %v8550, 6
      %v8819 = vperm.slane %v8550, 7
      %v8820 = vperm.slane %v8551, 0
      %v8821 = vperm.slane %v8551, 1
      %v8822 = vperm.slane %v8551, 2
      %v8823 = vperm.slane %v8551, 3
      %v8824 = vperm.slane %v8551, 4
      %v8825 = vperm.slane %v8551, 5
      %v8826 = vperm.slane %v8551, 6
      %v8827 = vperm.slane %v8551, 7
      %v8876 = vunpack.c.l.b16 %v8517
      %v8877 = vunpack.c.h.b16 %v8517
      %v8878 = vunpack.c.l.b16 %v8518
      %v8879 = vunpack.c.h.b16 %v8518
      %v8880 = vunpack.c.l.b16 %v8519
      %v8881 = vunpack.c.h.b16 %v8519
      %v8882 = vunpack.c.l.b16 %v8520
      %v8883 = vunpack.c.h.b16 %v8520
      %v8884 = vunpack.c.l.b16 %v8521
      %v8885 = vunpack.c.h.b16 %v8521
      %v8886 = vunpack.c.l.b16 %v8522
      %v8887 = vunpack.c.h.b16 %v8522
      %v8888 = vunpack.c.l.b16 %v8523
      %v8889 = vunpack.c.h.b16 %v8523
      %v8890 = vunpack.c.l.b16 %v8524
      %v8891 = vunpack.c.h.b16 %v8524
      %v8892 = vunpack.c.l.b16 %v8525
      %v8893 = vunpack.c.h.b16 %v8525
      %v8894 = vunpack.c.l.b16 %v8526
      %v8895 = vunpack.c.h.b16 %v8526
      %v8896 = vunpack.c.l.b16 %v8527
      %v8897 = vunpack.c.h.b16 %v8527
      %v8898 = vunpack.c.l.b16 %v8528
      %v8899 = vunpack.c.h.b16 %v8528
      %v8900 = vunpack.c.l.b16 %v8529
      %v8901 = vunpack.c.h.b16 %v8529
      %v8902 = vunpack.c.l.b16 %v8530
      %v8903 = vunpack.c.h.b16 %v8530
      %v8904 = vunpack.c.l.b16 %v8531
      %v8905 = vunpack.c.h.b16 %v8531
      %v8906 = vunpack.c.l.b16 %v8532
      %v8907 = vunpack.c.h.b16 %v8532
      %v8908 = vunpack.c.l.b16 %v8533
      %v8909 = vunpack.c.h.b16 %v8533
      %v8910 = vunpack.c.l.b16 %v8534
      %v8911 = vunpack.c.h.b16 %v8534
      %v8912 = vunpack.c.l.b16 %v8535
      %v8913 = vunpack.c.h.b16 %v8535
      %v8914 = vunpack.c.l.b16 %v8536
      %v8915 = vunpack.c.h.b16 %v8536
      %v8916 = vunpack.c.l.b16 %v8537
      %v8917 = vunpack.c.h.b16 %v8537
      %v8918 = vunpack.c.l.b16 %v8538
      %v8919 = vunpack.c.h.b16 %v8538
      %v8920 = vunpack.c.l.b16 %v8539
      %v8921 = vunpack.c.h.b16 %v8539
      %v8922 = vunpack.c.l.b16 %v8540
      %v8923 = vunpack.c.h.b16 %v8540
      %v8924 = vunpack.c.l.b16 %v8541
      %v8925 = vunpack.c.h.b16 %v8541
      %v8926 = vunpack.c.l.b16 %v8542
      %v8927 = vunpack.c.h.b16 %v8542
      %v8928 = vunpack.c.l.b16 %v8543
      %v8929 = vunpack.c.h.b16 %v8543
      %v8930 = vunpack.c.l.b16 %v8544
      %v8931 = vunpack.c.h.b16 %v8544
      %v8932 = vunpack.c.l.b16 %v8545
      %v8933 = vunpack.c.h.b16 %v8545
      %v8934 = vunpack.c.l.b16 %v8546
      %v8935 = vunpack.c.h.b16 %v8546
      %v8936 = vunpack.c.l.b16 %v8547
      %v8937 = vunpack.c.h.b16 %v8547
      %v8938 = vunpack.c.l.b16 %v8548
      %v8939 = vunpack.c.h.b16 %v8548
      %v8940 = vpack.c.b16 %v8892, %v8876
      %v8941 = vpack.c.b16 %v8893, %v8877
      %v8942 = vpack.c.b16 %v8894, %v8878
      %v8943 = vpack.c.b16 %v8895, %v8879
      %v8944 = vpack.c.b16 %v8896, %v8880
      %v8945 = vpack.c.b16 %v8897, %v8881
      %v8946 = vpack.c.b16 %v8898, %v8882
      %v8947 = vpack.c.b16 %v8899, %v8883
      %v8948 = vpack.c.b16 %v8900, %v8884
      %v8949 = vpack.c.b16 %v8901, %v8885
      %v8950 = vpack.c.b16 %v8902, %v8886
      %v8951 = vpack.c.b16 %v8903, %v8887
      %v8952 = vpack.c.b16 %v8904, %v8888
      %v8953 = vpack.c.b16 %v8905, %v8889
      %v8954 = vpack.c.b16 %v8906, %v8890
      %v8955 = vpack.c.b16 %v8907, %v8891
      %v8956 = vpack.c.b16 %v8924, %v8908
      %v8957 = vpack.c.b16 %v8925, %v8909
      %v8958 = vpack.c.b16 %v8926, %v8910
      %v8959 = vpack.c.b16 %v8927, %v8911
      %v8960 = vpack.c.b16 %v8928, %v8912
      %v8961 = vpack.c.b16 %v8929, %v8913
      %v8962 = vpack.c.b16 %v8930, %v8914
      %v8963 = vpack.c.b16 %v8931, %v8915
      %v8964 = vpack.c.b16 %v8932, %v8916
      %v8965 = vpack.c.b16 %v8933, %v8917
      %v8966 = vpack.c.b16 %v8934, %v8918
      %v8967 = vpack.c.b16 %v8935, %v8919
      %v8968 = vpack.c.b16 %v8936, %v8920
      %v8969 = vpack.c.b16 %v8937, %v8921
      %v8970 = vpack.c.b16 %v8938, %v8922
      %v8971 = vpack.c.b16 %v8939, %v8923
      %v9005 = vsel %vm722, %v8809, 0
      %9007 = vmatpush.bf16.msra.mxu0 0
      %9008 = vmatpush.bf16.msra.mxu0 0
      %9009 = vmatpush.bf16.msra.mxu0 0
      %9010 = vmatpush.bf16.msra.mxu0 0
      %9011 = vmatpush.bf16.msra.mxu0 0
      %9012 = vmatpush.bf16.msra.mxu0 0
      %9013 = vmatpush.bf16.msra.mxu0 %v8956
      %9014 = vmatpush.bf16.msra.mxu0 %v8940
      %9015 = vmatmul.bf16.gmra.mxu0 %v9005
      %v9016 = vpop.f32.mrf.mxu0
      %v9017 = vadd.f32 %v8812, %v9016
      %v9018 = vpop.f32.mrf.mxu0
      %9019 = vdwg.mxu0
      %9020 = vmatpush.bf16.msra.mxu0 0
      %9021 = vmatpush.bf16.msra.mxu0 0
      %9022 = vmatpush.bf16.msra.mxu0 0
      %9023 = vmatpush.bf16.msra.mxu0 0
      %9024 = vmatpush.bf16.msra.mxu0 0
      %9025 = vmatpush.bf16.msra.mxu0 0
      %9026 = vmatpush.bf16.msra.mxu0 %v8957
      %9027 = vmatpush.bf16.msra.mxu0 %v8941
      %9028 = vmatmul.bf16.gmra.mxu0 %v9005
      %v9029 = vpop.f32.mrf.mxu0
      %v9030 = vadd.f32 %v8813, %v9029
      %v9031 = vpop.f32.mrf.mxu0
      %9032 = vdwg.mxu0
      %9033 = vmatpush.bf16.msra.mxu0 0
      %9034 = vmatpush.bf16.msra.mxu0 0
      %9035 = vmatpush.bf16.msra.mxu0 0
      %9036 = vmatpush.bf16.msra.mxu0 0
      %9037 = vmatpush.bf16.msra.mxu0 0
      %9038 = vmatpush.bf16.msra.mxu0 0
      %9039 = vmatpush.bf16.msra.mxu0 %v8958
      %9040 = vmatpush.bf16.msra.mxu0 %v8942
      %9041 = vmatmul.bf16.gmra.mxu0 %v9005
      %v9042 = vpop.f32.mrf.mxu0
      %v9043 = vadd.f32 %v8814, %v9042
      %v9044 = vpop.f32.mrf.mxu0
      %9045 = vdwg.mxu0
      %9046 = vmatpush.bf16.msra.mxu0 0
      %9047 = vmatpush.bf16.msra.mxu0 0
      %9048 = vmatpush.bf16.msra.mxu0 0
      %9049 = vmatpush.bf16.msra.mxu0 0
      %9050 = vmatpush.bf16.msra.mxu0 0
      %9051 = vmatpush.bf16.msra.mxu0 0
      %9052 = vmatpush.bf16.msra.mxu0 %v8959
      %9053 = vmatpush.bf16.msra.mxu0 %v8943
      %9054 = vmatmul.bf16.gmra.mxu0 %v9005
      %v9055 = vpop.f32.mrf.mxu0
      %v9056 = vadd.f32 %v8815, %v9055
      %v9057 = vpop.f32.mrf.mxu0
      %9058 = vdwg.mxu0
      %9059 = vmatpush.bf16.msra.mxu0 0
      %9060 = vmatpush.bf16.msra.mxu0 0
      %9061 = vmatpush.bf16.msra.mxu0 0
      %9062 = vmatpush.bf16.msra.mxu0 0
      %9063 = vmatpush.bf16.msra.mxu0 0
      %9064 = vmatpush.bf16.msra.mxu0 0
      %9065 = vmatpush.bf16.msra.mxu0 %v8960
      %9066 = vmatpush.bf16.msra.mxu0 %v8944
      %9067 = vmatmul.bf16.gmra.mxu0 %v9005
      %v9068 = vpop.f32.mrf.mxu0
      %v9069 = vadd.f32 %v8816, %v9068
      %v9070 = vpop.f32.mrf.mxu0
      %9071 = vdwg.mxu0
      %9072 = vmatpush.bf16.msra.mxu0 0
      %9073 = vmatpush.bf16.msra.mxu0 0
      %9074 = vmatpush.bf16.msra.mxu0 0
      %9075 = vmatpush.bf16.msra.mxu0 0
      %9076 = vmatpush.bf16.msra.mxu0 0
      %9077 = vmatpush.bf16.msra.mxu0 0
      %9078 = vmatpush.bf16.msra.mxu0 %v8961
      %9079 = vmatpush.bf16.msra.mxu0 %v8945
      %9080 = vmatmul.bf16.gmra.mxu0 %v9005
      %v9081 = vpop.f32.mrf.mxu0
      %v9082 = vadd.f32 %v8817, %v9081
      %v9083 = vpop.f32.mrf.mxu0
      %9084 = vdwg.mxu0
      %9085 = vmatpush.bf16.msra.mxu0 0
      %9086 = vmatpush.bf16.msra.mxu0 0
      %9087 = vmatpush.bf16.msra.mxu0 0
      %9088 = vmatpush.bf16.msra.mxu0 0
      %9089 = vmatpush.bf16.msra.mxu0 0
      %9090 = vmatpush.bf16.msra.mxu0 0
      %9091 = vmatpush.bf16.msra.mxu0 %v8962
      %9092 = vmatpush.bf16.msra.mxu0 %v8946
      %9093 = vmatmul.bf16.gmra.mxu0 %v9005
      %v9094 = vpop.f32.mrf.mxu0
      %v9095 = vadd.f32 %v8818, %v9094
      %v9096 = vpop.f32.mrf.mxu0
      %9097 = vdwg.mxu0
      %9098 = vmatpush.bf16.msra.mxu0 0
      %9099 = vmatpush.bf16.msra.mxu0 0
      %9100 = vmatpush.bf16.msra.mxu0 0
      %9101 = vmatpush.bf16.msra.mxu0 0
      %9102 = vmatpush.bf16.msra.mxu0 0
      %9103 = vmatpush.bf16.msra.mxu0 0
      %9104 = vmatpush.bf16.msra.mxu0 %v8963
      %9105 = vmatpush.bf16.msra.mxu0 %v8947
      %9106 = vmatmul.bf16.gmra.mxu0 %v9005
      %v9107 = vpop.f32.mrf.mxu0
      %v9108 = vadd.f32 %v8819, %v9107
      %v9109 = vpop.f32.mrf.mxu0
      %9110 = vdwg.mxu0
      %9111 = vmatpush.bf16.msra.mxu0 0
      %9112 = vmatpush.bf16.msra.mxu0 0
      %9113 = vmatpush.bf16.msra.mxu0 0
      %9114 = vmatpush.bf16.msra.mxu0 0
      %9115 = vmatpush.bf16.msra.mxu0 0
      %9116 = vmatpush.bf16.msra.mxu0 0
      %9117 = vmatpush.bf16.msra.mxu0 %v8964
      %9118 = vmatpush.bf16.msra.mxu0 %v8948
      %9119 = vmatmul.bf16.gmra.mxu0 %v9005
      %v9120 = vpop.f32.mrf.mxu0
      %v9121 = vadd.f32 %v8820, %v9120
      %v9122 = vpop.f32.mrf.mxu0
      %9123 = vdwg.mxu0
      %9124 = vmatpush.bf16.msra.mxu0 0
      %9125 = vmatpush.bf16.msra.mxu0 0
      %9126 = vmatpush.bf16.msra.mxu0 0
      %9127 = vmatpush.bf16.msra.mxu0 0
      %9128 = vmatpush.bf16.msra.mxu0 0
      %9129 = vmatpush.bf16.msra.mxu0 0
      %9130 = vmatpush.bf16.msra.mxu0 %v8965
      %9131 = vmatpush.bf16.msra.mxu0 %v8949
      %9132 = vmatmul.bf16.gmra.mxu0 %v9005
      %v9133 = vpop.f32.mrf.mxu0
      %v9134 = vadd.f32 %v8821, %v9133
      %v9135 = vpop.f32.mrf.mxu0
      %9136 = vdwg.mxu0
      %9137 = vmatpush.bf16.msra.mxu0 0
      %9138 = vmatpush.bf16.msra.mxu0 0
      %9139 = vmatpush.bf16.msra.mxu0 0
      %9140 = vmatpush.bf16.msra.mxu0 0
      %9141 = vmatpush.bf16.msra.mxu0 0
      %9142 = vmatpush.bf16.msra.mxu0 0
      %9143 = vmatpush.bf16.msra.mxu0 %v8966
      %9144 = vmatpush.bf16.msra.mxu0 %v8950
      %9145 = vmatmul.bf16.gmra.mxu0 %v9005
      %v9146 = vpop.f32.mrf.mxu0
      %v9147 = vadd.f32 %v8822, %v9146
      %v9148 = vpop.f32.mrf.mxu0
      %9149 = vdwg.mxu0
      %9150 = vmatpush.bf16.msra.mxu0 0
      %9151 = vmatpush.bf16.msra.mxu0 0
      %9152 = vmatpush.bf16.msra.mxu0 0
      %9153 = vmatpush.bf16.msra.mxu0 0
      %9154 = vmatpush.bf16.msra.mxu0 0
      %9155 = vmatpush.bf16.msra.mxu0 0
      %9156 = vmatpush.bf16.msra.mxu0 %v8967
      %9157 = vmatpush.bf16.msra.mxu0 %v8951
      %9158 = vmatmul.bf16.gmra.mxu0 %v9005
      %v9159 = vpop.f32.mrf.mxu0
      %v9160 = vadd.f32 %v8823, %v9159
      %v9161 = vpop.f32.mrf.mxu0
      %9162 = vdwg.mxu0
      %9163 = vmatpush.bf16.msra.mxu0 0
      %9164 = vmatpush.bf16.msra.mxu0 0
      %9165 = vmatpush.bf16.msra.mxu0 0
      %9166 = vmatpush.bf16.msra.mxu0 0
      %9167 = vmatpush.bf16.msra.mxu0 0
      %9168 = vmatpush.bf16.msra.mxu0 0
      %9169 = vmatpush.bf16.msra.mxu0 %v8968
      %9170 = vmatpush.bf16.msra.mxu0 %v8952
      %9171 = vmatmul.bf16.gmra.mxu0 %v9005
      %v9172 = vpop.f32.mrf.mxu0
      %v9173 = vadd.f32 %v8824, %v9172
      %v9174 = vpop.f32.mrf.mxu0
      %9175 = vdwg.mxu0
      %9176 = vmatpush.bf16.msra.mxu0 0
      %9177 = vmatpush.bf16.msra.mxu0 0
      %9178 = vmatpush.bf16.msra.mxu0 0
      %9179 = vmatpush.bf16.msra.mxu0 0
      %9180 = vmatpush.bf16.msra.mxu0 0
      %9181 = vmatpush.bf16.msra.mxu0 0
      %9182 = vmatpush.bf16.msra.mxu0 %v8969
      %9183 = vmatpush.bf16.msra.mxu0 %v8953
      %9184 = vmatmul.bf16.gmra.mxu0 %v9005
      %v9185 = vpop.f32.mrf.mxu0
      %v9186 = vadd.f32 %v8825, %v9185
      %v9187 = vpop.f32.mrf.mxu0
      %9188 = vdwg.mxu0
      %9189 = vmatpush.bf16.msra.mxu0 0
      %9190 = vmatpush.bf16.msra.mxu0 0
      %9191 = vmatpush.bf16.msra.mxu0 0
      %9192 = vmatpush.bf16.msra.mxu0 0
      %9193 = vmatpush.bf16.msra.mxu0 0
      %9194 = vmatpush.bf16.msra.mxu0 0
      %9195 = vmatpush.bf16.msra.mxu0 %v8970
      %9196 = vmatpush.bf16.msra.mxu0 %v8954
      %9197 = vmatmul.bf16.gmra.mxu0 %v9005
      %v9198 = vpop.f32.mrf.mxu0
      %v9199 = vadd.f32 %v8826, %v9198
      %v9200 = vpop.f32.mrf.mxu0
      %9201 = vdwg.mxu0
      %9202 = vmatpush.bf16.msra.mxu0 0
      %9203 = vmatpush.bf16.msra.mxu0 0
      %9204 = vmatpush.bf16.msra.mxu0 0
      %9205 = vmatpush.bf16.msra.mxu0 0
      %9206 = vmatpush.bf16.msra.mxu0 0
      %9207 = vmatpush.bf16.msra.mxu0 0
      %9208 = vmatpush.bf16.msra.mxu0 %v8971
      %9209 = vmatpush.bf16.msra.mxu0 %v8955
      %9210 = vmatmul.bf16.gmra.mxu0 %v9005
      %v9211 = vpop.f32.mrf.mxu0
      %v9212 = vadd.f32 %v8827, %v9211
      %v9213 = vpop.f32.mrf.mxu0
      %9214 = vdwg.mxu0
      %v9215 = vmax.f32 %v9017, 0.0
      %v9216 = vmax.f32 %v9030, 0.0
      %v9217 = vmax.f32 %v9043, 0.0
      %v9218 = vmax.f32 %v9056, 0.0
      %v9219 = vmax.f32 %v9069, 0.0
      %v9220 = vmax.f32 %v9082, 0.0
      %v9221 = vmax.f32 %v9095, 0.0
      %v9222 = vmax.f32 %v9108, 0.0
      %v9223 = vmax.f32 %v9121, 0.0
      %v9224 = vmax.f32 %v9134, 0.0
      %v9225 = vmax.f32 %v9147, 0.0
      %v9226 = vmax.f32 %v9160, 0.0
      %v9227 = vmax.f32 %v9173, 0.0
      %v9228 = vmax.f32 %v9186, 0.0
      %v9229 = vmax.f32 %v9199, 0.0
      %v9230 = vmax.f32 %v9212, 0.0
      %v9231 = vpack.c.bf16 %v9215, %v9215
      %v9232 = vpack.c.bf16 %v9216, %v9216
      %v9233 = vpack.c.bf16 %v9217, %v9217
      %v9234 = vpack.c.bf16 %v9218, %v9218
      %v9235 = vpack.c.bf16 %v9219, %v9219
      %v9236 = vpack.c.bf16 %v9220, %v9220
      %v9237 = vpack.c.bf16 %v9221, %v9221
      %v9238 = vpack.c.bf16 %v9222, %v9222
      %v9239 = vpack.c.bf16 %v9223, %v9223
      %v9240 = vpack.c.bf16 %v9224, %v9224
      %v9241 = vpack.c.bf16 %v9225, %v9225
      %v9242 = vpack.c.bf16 %v9226, %v9226
      %v9243 = vpack.c.bf16 %v9227, %v9227
      %v9244 = vpack.c.bf16 %v9228, %v9228
      %v9245 = vpack.c.bf16 %v9229, %v9229
      %v9246 = vpack.c.bf16 %v9230, %v9230
      %v9247 = vperm.slane %v7647, 6
      %v9504 = vunpack.c.l.b16 %v8553
      %v9505 = vunpack.c.l.b16 %v8554
      %v9506 = vunpack.c.l.b16 %v8555
      %v9507 = vunpack.c.l.b16 %v8556
      %v9508 = vunpack.c.l.b16 %v8557
      %v9509 = vunpack.c.l.b16 %v8558
      %v9510 = vunpack.c.l.b16 %v8559
      %v9511 = vunpack.c.l.b16 %v8560
      %v9512 = vunpack.c.l.b16 %v8561
      %v9513 = vunpack.c.l.b16 %v8562
      %v9514 = vunpack.c.l.b16 %v8563
      %v9515 = vunpack.c.l.b16 %v8564
      %v9516 = vunpack.c.l.b16 %v8565
      %v9517 = vunpack.c.l.b16 %v8566
      %v9518 = vunpack.c.l.b16 %v8567
      %v9519 = vunpack.c.l.b16 %v8568
      %v9520 = vunpack.c.l.b16 %v8569
      %v9521 = vunpack.c.l.b16 %v8570
      %v9522 = vunpack.c.l.b16 %v8571
      %v9523 = vunpack.c.l.b16 %v8572
      %v9524 = vunpack.c.l.b16 %v8573
      %v9525 = vunpack.c.l.b16 %v8574
      %v9526 = vunpack.c.l.b16 %v8575
      %v9527 = vunpack.c.l.b16 %v8576
      %v9528 = vunpack.c.l.b16 %v8577
      %v9529 = vunpack.c.l.b16 %v8578
      %v9530 = vunpack.c.l.b16 %v8579
      %v9531 = vunpack.c.l.b16 %v8580
      %v9532 = vunpack.c.l.b16 %v8581
      %v9533 = vunpack.c.l.b16 %v8582
      %v9534 = vunpack.c.l.b16 %v8583
      %v9535 = vunpack.c.l.b16 %v8584
      %v9536 = vunpack.c.l.b16 %v8585
      %v9537 = vunpack.c.l.b16 %v8586
      %v9538 = vunpack.c.l.b16 %v8587
      %v9539 = vunpack.c.l.b16 %v8588
      %v9540 = vunpack.c.l.b16 %v8589
      %v9541 = vunpack.c.l.b16 %v8590
      %v9542 = vunpack.c.l.b16 %v8591
      %v9543 = vunpack.c.l.b16 %v8592
      %v9544 = vunpack.c.l.b16 %v8593
      %v9545 = vunpack.c.l.b16 %v8594
      %v9546 = vunpack.c.l.b16 %v8595
      %v9547 = vunpack.c.l.b16 %v8596
      %v9548 = vunpack.c.l.b16 %v8597
      %v9549 = vunpack.c.l.b16 %v8598
      %v9550 = vunpack.c.l.b16 %v8599
      %v9551 = vunpack.c.l.b16 %v8600
      %v9552 = vunpack.c.l.b16 %v8601
      %v9553 = vunpack.c.l.b16 %v8602
      %v9554 = vunpack.c.l.b16 %v8603
      %v9555 = vunpack.c.l.b16 %v8604
      %v9556 = vunpack.c.l.b16 %v8605
      %v9557 = vunpack.c.l.b16 %v8606
      %v9558 = vunpack.c.l.b16 %v8607
      %v9559 = vunpack.c.l.b16 %v8608
      %v9560 = vunpack.c.l.b16 %v8609
      %v9561 = vunpack.c.l.b16 %v8610
      %v9562 = vunpack.c.l.b16 %v8611
      %v9563 = vunpack.c.l.b16 %v8612
      %v9564 = vunpack.c.l.b16 %v8613
      %v9565 = vunpack.c.l.b16 %v8614
      %v9566 = vunpack.c.l.b16 %v8615
      %v9567 = vunpack.c.l.b16 %v8616
      %v9568 = vunpack.c.l.b16 %v8617
      %v9569 = vunpack.c.l.b16 %v8618
      %v9570 = vunpack.c.l.b16 %v8619
      %v9571 = vunpack.c.l.b16 %v8620
      %v9572 = vunpack.c.l.b16 %v8621
      %v9573 = vunpack.c.l.b16 %v8622
      %v9574 = vunpack.c.l.b16 %v8623
      %v9575 = vunpack.c.l.b16 %v8624
      %v9576 = vunpack.c.l.b16 %v8625
      %v9577 = vunpack.c.l.b16 %v8626
      %v9578 = vunpack.c.l.b16 %v8627
      %v9579 = vunpack.c.l.b16 %v8628
      %v9580 = vunpack.c.l.b16 %v8629
      %v9581 = vunpack.c.l.b16 %v8630
      %v9582 = vunpack.c.l.b16 %v8631
      %v9583 = vunpack.c.l.b16 %v8632
      %v9584 = vunpack.c.l.b16 %v8633
      %v9585 = vunpack.c.l.b16 %v8634
      %v9586 = vunpack.c.l.b16 %v8635
      %v9587 = vunpack.c.l.b16 %v8636
      %v9588 = vunpack.c.l.b16 %v8637
      %v9589 = vunpack.c.l.b16 %v8638
      %v9590 = vunpack.c.l.b16 %v8639
      %v9591 = vunpack.c.l.b16 %v8640
      %v9592 = vunpack.c.l.b16 %v8641
      %v9593 = vunpack.c.l.b16 %v8642
      %v9594 = vunpack.c.l.b16 %v8643
      %v9595 = vunpack.c.l.b16 %v8644
      %v9596 = vunpack.c.l.b16 %v8645
      %v9597 = vunpack.c.l.b16 %v8646
      %v9598 = vunpack.c.l.b16 %v8647
      %v9599 = vunpack.c.l.b16 %v8648
      %v9600 = vunpack.c.l.b16 %v8649
      %v9601 = vunpack.c.l.b16 %v8650
      %v9602 = vunpack.c.l.b16 %v8651
      %v9603 = vunpack.c.l.b16 %v8652
      %v9604 = vunpack.c.l.b16 %v8653
      %v9605 = vunpack.c.l.b16 %v8654
      %v9606 = vunpack.c.l.b16 %v8655
      %v9607 = vunpack.c.l.b16 %v8656
      %v9608 = vunpack.c.l.b16 %v8657
      %v9609 = vunpack.c.l.b16 %v8658
      %v9610 = vunpack.c.l.b16 %v8659
      %v9611 = vunpack.c.l.b16 %v8660
      %v9612 = vunpack.c.l.b16 %v8661
      %v9613 = vunpack.c.l.b16 %v8662
      %v9614 = vunpack.c.l.b16 %v8663
      %v9615 = vunpack.c.l.b16 %v8664
      %v9616 = vunpack.c.l.b16 %v8665
      %v9617 = vunpack.c.l.b16 %v8666
      %v9618 = vunpack.c.l.b16 %v8667
      %v9619 = vunpack.c.l.b16 %v8668
      %v9620 = vunpack.c.l.b16 %v8669
      %v9621 = vunpack.c.l.b16 %v8670
      %v9622 = vunpack.c.l.b16 %v8671
      %v9623 = vunpack.c.l.b16 %v8672
      %v9624 = vunpack.c.l.b16 %v8673
      %v9625 = vunpack.c.l.b16 %v8674
      %v9626 = vunpack.c.l.b16 %v8675
      %v9627 = vunpack.c.l.b16 %v8676
      %v9628 = vunpack.c.l.b16 %v8677
      %v9629 = vunpack.c.l.b16 %v8678
      %v9630 = vunpack.c.l.b16 %v8679
      %v9631 = vunpack.c.l.b16 %v8680
      %v9632 = vunpack.c.l.b16 %v8681
      %v9633 = vunpack.c.l.b16 %v8682
      %v9634 = vunpack.c.l.b16 %v8683
      %v9635 = vunpack.c.l.b16 %v8684
      %v9636 = vunpack.c.l.b16 %v8685
      %v9637 = vunpack.c.l.b16 %v8686
      %v9638 = vunpack.c.l.b16 %v8687
      %v9639 = vunpack.c.l.b16 %v8688
      %v9640 = vunpack.c.l.b16 %v8689
      %v9641 = vunpack.c.l.b16 %v8690
      %v9642 = vunpack.c.l.b16 %v8691
      %v9643 = vunpack.c.l.b16 %v8692
      %v9644 = vunpack.c.l.b16 %v8693
      %v9645 = vunpack.c.l.b16 %v8694
      %v9646 = vunpack.c.l.b16 %v8695
      %v9647 = vunpack.c.l.b16 %v8696
      %v9648 = vunpack.c.l.b16 %v8697
      %v9649 = vunpack.c.l.b16 %v8698
      %v9650 = vunpack.c.l.b16 %v8699
      %v9651 = vunpack.c.l.b16 %v8700
      %v9652 = vunpack.c.l.b16 %v8701
      %v9653 = vunpack.c.l.b16 %v8702
      %v9654 = vunpack.c.l.b16 %v8703
      %v9655 = vunpack.c.l.b16 %v8704
      %v9656 = vunpack.c.l.b16 %v8705
      %v9657 = vunpack.c.l.b16 %v8706
      %v9658 = vunpack.c.l.b16 %v8707
      %v9659 = vunpack.c.l.b16 %v8708
      %v9660 = vunpack.c.l.b16 %v8709
      %v9661 = vunpack.c.l.b16 %v8710
      %v9662 = vunpack.c.l.b16 %v8711
      %v9663 = vunpack.c.l.b16 %v8712
      %v9664 = vunpack.c.l.b16 %v8713
      %v9665 = vunpack.c.l.b16 %v8714
      %v9666 = vunpack.c.l.b16 %v8715
      %v9667 = vunpack.c.l.b16 %v8716
      %v9668 = vunpack.c.l.b16 %v8717
      %v9669 = vunpack.c.l.b16 %v8718
      %v9670 = vunpack.c.l.b16 %v8719
      %v9671 = vunpack.c.l.b16 %v8720
      %v9672 = vunpack.c.l.b16 %v8721
      %v9673 = vunpack.c.l.b16 %v8722
      %v9674 = vunpack.c.l.b16 %v8723
      %v9675 = vunpack.c.l.b16 %v8724
      %v9676 = vunpack.c.l.b16 %v8725
      %v9677 = vunpack.c.l.b16 %v8726
      %v9678 = vunpack.c.l.b16 %v8727
      %v9679 = vunpack.c.l.b16 %v8728
      %v9680 = vunpack.c.l.b16 %v8729
      %v9681 = vunpack.c.l.b16 %v8730
      %v9682 = vunpack.c.l.b16 %v8731
      %v9683 = vunpack.c.l.b16 %v8732
      %v9684 = vunpack.c.l.b16 %v8733
      %v9685 = vunpack.c.l.b16 %v8734
      %v9686 = vunpack.c.l.b16 %v8735
      %v9687 = vunpack.c.l.b16 %v8736
      %v9688 = vunpack.c.l.b16 %v8737
      %v9689 = vunpack.c.l.b16 %v8738
      %v9690 = vunpack.c.l.b16 %v8739
      %v9691 = vunpack.c.l.b16 %v8740
      %v9692 = vunpack.c.l.b16 %v8741
      %v9693 = vunpack.c.l.b16 %v8742
      %v9694 = vunpack.c.l.b16 %v8743
      %v9695 = vunpack.c.l.b16 %v8744
      %v9696 = vunpack.c.l.b16 %v8745
      %v9697 = vunpack.c.l.b16 %v8746
      %v9698 = vunpack.c.l.b16 %v8747
      %v9699 = vunpack.c.l.b16 %v8748
      %v9700 = vunpack.c.l.b16 %v8749
      %v9701 = vunpack.c.l.b16 %v8750
      %v9702 = vunpack.c.l.b16 %v8751
      %v9703 = vunpack.c.l.b16 %v8752
      %v9704 = vunpack.c.l.b16 %v8753
      %v9705 = vunpack.c.l.b16 %v8754
      %v9706 = vunpack.c.l.b16 %v8755
      %v9707 = vunpack.c.l.b16 %v8756
      %v9708 = vunpack.c.l.b16 %v8757
      %v9709 = vunpack.c.l.b16 %v8758
      %v9710 = vunpack.c.l.b16 %v8759
      %v9711 = vunpack.c.l.b16 %v8760
      %v9712 = vunpack.c.l.b16 %v8761
      %v9713 = vunpack.c.l.b16 %v8762
      %v9714 = vunpack.c.l.b16 %v8763
      %v9715 = vunpack.c.l.b16 %v8764
      %v9716 = vunpack.c.l.b16 %v8765
      %v9717 = vunpack.c.l.b16 %v8766
      %v9718 = vunpack.c.l.b16 %v8767
      %v9719 = vunpack.c.l.b16 %v8768
      %v9720 = vunpack.c.l.b16 %v8769
      %v9721 = vunpack.c.l.b16 %v8770
      %v9722 = vunpack.c.l.b16 %v8771
      %v9723 = vunpack.c.l.b16 %v8772
      %v9724 = vunpack.c.l.b16 %v8773
      %v9725 = vunpack.c.l.b16 %v8774
      %v9726 = vunpack.c.l.b16 %v8775
      %v9727 = vunpack.c.l.b16 %v8776
      %v9728 = vunpack.c.l.b16 %v8777
      %v9729 = vunpack.c.l.b16 %v8778
      %v9730 = vunpack.c.l.b16 %v8779
      %v9731 = vunpack.c.l.b16 %v8780
      %v9732 = vunpack.c.l.b16 %v8781
      %v9733 = vunpack.c.l.b16 %v8782
      %v9734 = vunpack.c.l.b16 %v8783
      %v9735 = vunpack.c.l.b16 %v8784
      %v9736 = vunpack.c.l.b16 %v8785
      %v9737 = vunpack.c.l.b16 %v8786
      %v9738 = vunpack.c.l.b16 %v8787
      %v9739 = vunpack.c.l.b16 %v8788
      %v9740 = vunpack.c.l.b16 %v8789
      %v9741 = vunpack.c.l.b16 %v8790
      %v9742 = vunpack.c.l.b16 %v8791
      %v9743 = vunpack.c.l.b16 %v8792
      %v9744 = vunpack.c.l.b16 %v8793
      %v9745 = vunpack.c.l.b16 %v8794
      %v9746 = vunpack.c.l.b16 %v8795
      %v9747 = vunpack.c.l.b16 %v8796
      %v9748 = vunpack.c.l.b16 %v8797
      %v9749 = vunpack.c.l.b16 %v8798
      %v9750 = vunpack.c.l.b16 %v8799
      %v9751 = vunpack.c.l.b16 %v8800
      %v9752 = vunpack.c.l.b16 %v8801
      %v9753 = vunpack.c.l.b16 %v8802
      %v9754 = vunpack.c.l.b16 %v8803
      %v9755 = vunpack.c.l.b16 %v8804
      %v9756 = vunpack.c.l.b16 %v8805
      %v9757 = vunpack.c.l.b16 %v8806
      %v9758 = vunpack.c.l.b16 %v8807
      %v9759 = vunpack.c.l.b16 %v8808
      %v9760 = vpack.c.b16 %v9505, %v9504
      %v9761 = vpack.c.b16 %v9507, %v9506
      %v9762 = vpack.c.b16 %v9509, %v9508
      %v9763 = vpack.c.b16 %v9511, %v9510
      %v9764 = vpack.c.b16 %v9513, %v9512
      %v9765 = vpack.c.b16 %v9515, %v9514
      %v9766 = vpack.c.b16 %v9517, %v9516
      %v9767 = vpack.c.b16 %v9519, %v9518
      %v9768 = vpack.c.b16 %v9521, %v9520
      %v9769 = vpack.c.b16 %v9523, %v9522
      %v9770 = vpack.c.b16 %v9525, %v9524
      %v9771 = vpack.c.b16 %v9527, %v9526
      %v9772 = vpack.c.b16 %v9529, %v9528
      %v9773 = vpack.c.b16 %v9531, %v9530
      %v9774 = vpack.c.b16 %v9533, %v9532
      %v9775 = vpack.c.b16 %v9535, %v9534
      %v9776 = vpack.c.b16 %v9537, %v9536
      %v9777 = vpack.c.b16 %v9539, %v9538
      %v9778 = vpack.c.b16 %v9541, %v9540
      %v9779 = vpack.c.b16 %v9543, %v9542
      %v9780 = vpack.c.b16 %v9545, %v9544
      %v9781 = vpack.c.b16 %v9547, %v9546
      %v9782 = vpack.c.b16 %v9549, %v9548
      %v9783 = vpack.c.b16 %v9551, %v9550
      %v9784 = vpack.c.b16 %v9553, %v9552
      %v9785 = vpack.c.b16 %v9555, %v9554
      %v9786 = vpack.c.b16 %v9557, %v9556
      %v9787 = vpack.c.b16 %v9559, %v9558
      %v9788 = vpack.c.b16 %v9561, %v9560
      %v9789 = vpack.c.b16 %v9563, %v9562
      %v9790 = vpack.c.b16 %v9565, %v9564
      %v9791 = vpack.c.b16 %v9567, %v9566
      %v9792 = vpack.c.b16 %v9569, %v9568
      %v9793 = vpack.c.b16 %v9571, %v9570
      %v9794 = vpack.c.b16 %v9573, %v9572
      %v9795 = vpack.c.b16 %v9575, %v9574
      %v9796 = vpack.c.b16 %v9577, %v9576
      %v9797 = vpack.c.b16 %v9579, %v9578
      %v9798 = vpack.c.b16 %v9581, %v9580
      %v9799 = vpack.c.b16 %v9583, %v9582
      %v9800 = vpack.c.b16 %v9585, %v9584
      %v9801 = vpack.c.b16 %v9587, %v9586
      %v9802 = vpack.c.b16 %v9589, %v9588
      %v9803 = vpack.c.b16 %v9591, %v9590
      %v9804 = vpack.c.b16 %v9593, %v9592
      %v9805 = vpack.c.b16 %v9595, %v9594
      %v9806 = vpack.c.b16 %v9597, %v9596
      %v9807 = vpack.c.b16 %v9599, %v9598
      %v9808 = vpack.c.b16 %v9601, %v9600
      %v9809 = vpack.c.b16 %v9603, %v9602
      %v9810 = vpack.c.b16 %v9605, %v9604
      %v9811 = vpack.c.b16 %v9607, %v9606
      %v9812 = vpack.c.b16 %v9609, %v9608
      %v9813 = vpack.c.b16 %v9611, %v9610
      %v9814 = vpack.c.b16 %v9613, %v9612
      %v9815 = vpack.c.b16 %v9615, %v9614
      %v9816 = vpack.c.b16 %v9617, %v9616
      %v9817 = vpack.c.b16 %v9619, %v9618
      %v9818 = vpack.c.b16 %v9621, %v9620
      %v9819 = vpack.c.b16 %v9623, %v9622
      %v9820 = vpack.c.b16 %v9625, %v9624
      %v9821 = vpack.c.b16 %v9627, %v9626
      %v9822 = vpack.c.b16 %v9629, %v9628
      %v9823 = vpack.c.b16 %v9631, %v9630
      %v9824 = vpack.c.b16 %v9633, %v9632
      %v9825 = vpack.c.b16 %v9635, %v9634
      %v9826 = vpack.c.b16 %v9637, %v9636
      %v9827 = vpack.c.b16 %v9639, %v9638
      %v9828 = vpack.c.b16 %v9641, %v9640
      %v9829 = vpack.c.b16 %v9643, %v9642
      %v9830 = vpack.c.b16 %v9645, %v9644
      %v9831 = vpack.c.b16 %v9647, %v9646
      %v9832 = vpack.c.b16 %v9649, %v9648
      %v9833 = vpack.c.b16 %v9651, %v9650
      %v9834 = vpack.c.b16 %v9653, %v9652
      %v9835 = vpack.c.b16 %v9655, %v9654
      %v9836 = vpack.c.b16 %v9657, %v9656
      %v9837 = vpack.c.b16 %v9659, %v9658
      %v9838 = vpack.c.b16 %v9661, %v9660
      %v9839 = vpack.c.b16 %v9663, %v9662
      %v9840 = vpack.c.b16 %v9665, %v9664
      %v9841 = vpack.c.b16 %v9667, %v9666
      %v9842 = vpack.c.b16 %v9669, %v9668
      %v9843 = vpack.c.b16 %v9671, %v9670
      %v9844 = vpack.c.b16 %v9673, %v9672
      %v9845 = vpack.c.b16 %v9675, %v9674
      %v9846 = vpack.c.b16 %v9677, %v9676
      %v9847 = vpack.c.b16 %v9679, %v9678
      %v9848 = vpack.c.b16 %v9681, %v9680
      %v9849 = vpack.c.b16 %v9683, %v9682
      %v9850 = vpack.c.b16 %v9685, %v9684
      %v9851 = vpack.c.b16 %v9687, %v9686
      %v9852 = vpack.c.b16 %v9689, %v9688
      %v9853 = vpack.c.b16 %v9691, %v9690
      %v9854 = vpack.c.b16 %v9693, %v9692
      %v9855 = vpack.c.b16 %v9695, %v9694
      %v9856 = vpack.c.b16 %v9697, %v9696
      %v9857 = vpack.c.b16 %v9699, %v9698
      %v9858 = vpack.c.b16 %v9701, %v9700
      %v9859 = vpack.c.b16 %v9703, %v9702
      %v9860 = vpack.c.b16 %v9705, %v9704
      %v9861 = vpack.c.b16 %v9707, %v9706
      %v9862 = vpack.c.b16 %v9709, %v9708
      %v9863 = vpack.c.b16 %v9711, %v9710
      %v9864 = vpack.c.b16 %v9713, %v9712
      %v9865 = vpack.c.b16 %v9715, %v9714
      %v9866 = vpack.c.b16 %v9717, %v9716
      %v9867 = vpack.c.b16 %v9719, %v9718
      %v9868 = vpack.c.b16 %v9721, %v9720
      %v9869 = vpack.c.b16 %v9723, %v9722
      %v9870 = vpack.c.b16 %v9725, %v9724
      %v9871 = vpack.c.b16 %v9727, %v9726
      %v9872 = vpack.c.b16 %v9729, %v9728
      %v9873 = vpack.c.b16 %v9731, %v9730
      %v9874 = vpack.c.b16 %v9733, %v9732
      %v9875 = vpack.c.b16 %v9735, %v9734
      %v9876 = vpack.c.b16 %v9737, %v9736
      %v9877 = vpack.c.b16 %v9739, %v9738
      %v9878 = vpack.c.b16 %v9741, %v9740
      %v9879 = vpack.c.b16 %v9743, %v9742
      %v9880 = vpack.c.b16 %v9745, %v9744
      %v9881 = vpack.c.b16 %v9747, %v9746
      %v9882 = vpack.c.b16 %v9749, %v9748
      %v9883 = vpack.c.b16 %v9751, %v9750
      %v9884 = vpack.c.b16 %v9753, %v9752
      %v9885 = vpack.c.b16 %v9755, %v9754
      %v9886 = vpack.c.b16 %v9757, %v9756
      %v9887 = vpack.c.b16 %v9759, %v9758
      %10016 = vmatpush.bf16.msra.mxu0 %v9767
      %10017 = vmatpush.bf16.msra.mxu0 %v9766
      %10018 = vmatpush.bf16.msra.mxu0 %v9765
      %10019 = vmatpush.bf16.msra.mxu0 %v9764
      %10020 = vmatpush.bf16.msra.mxu0 %v9763
      %10021 = vmatpush.bf16.msra.mxu0 %v9762
      %10022 = vmatpush.bf16.msra.mxu0 %v9761
      %10023 = vmatpush.bf16.msra.mxu0 %v9760
      %10024 = vmatmul.bf16.gmra.mxu0 %v9231
      %v10025 = vpop.f32.mrf.mxu0
      %v10026 = vadd.f32 %v9247, %v10025
      %v10027 = vpop.f32.mrf.mxu0
      %10028 = vdwg.mxu0
      %10029 = vmatpush.bf16.msra.mxu0 %v9775
      %10030 = vmatpush.bf16.msra.mxu0 %v9774
      %10031 = vmatpush.bf16.msra.mxu0 %v9773
      %10032 = vmatpush.bf16.msra.mxu0 %v9772
      %10033 = vmatpush.bf16.msra.mxu0 %v9771
      %10034 = vmatpush.bf16.msra.mxu0 %v9770
      %10035 = vmatpush.bf16.msra.mxu0 %v9769
      %10036 = vmatpush.bf16.msra.mxu0 %v9768
      %10037 = vmatmul.bf16.gmra.mxu0 %v9232
      %v10038 = vpop.f32.mrf.mxu0
      %v10039 = vadd.f32 %v10026, %v10038
      %v10040 = vpop.f32.mrf.mxu0
      %10041 = vdwg.mxu0
      %10042 = vmatpush.bf16.msra.mxu0 %v9783
      %10043 = vmatpush.bf16.msra.mxu0 %v9782
      %10044 = vmatpush.bf16.msra.mxu0 %v9781
      %10045 = vmatpush.bf16.msra.mxu0 %v9780
      %10046 = vmatpush.bf16.msra.mxu0 %v9779
      %10047 = vmatpush.bf16.msra.mxu0 %v9778
      %10048 = vmatpush.bf16.msra.mxu0 %v9777
      %10049 = vmatpush.bf16.msra.mxu0 %v9776
      %10050 = vmatmul.bf16.gmra.mxu0 %v9233
      %v10051 = vpop.f32.mrf.mxu0
      %v10052 = vadd.f32 %v10039, %v10051
      %v10053 = vpop.f32.mrf.mxu0
      %10054 = vdwg.mxu0
      %10055 = vmatpush.bf16.msra.mxu0 %v9791
      %10056 = vmatpush.bf16.msra.mxu0 %v9790
      %10057 = vmatpush.bf16.msra.mxu0 %v9789
      %10058 = vmatpush.bf16.msra.mxu0 %v9788
      %10059 = vmatpush.bf16.msra.mxu0 %v9787
      %10060 = vmatpush.bf16.msra.mxu0 %v9786
      %10061 = vmatpush.bf16.msra.mxu0 %v9785
      %10062 = vmatpush.bf16.msra.mxu0 %v9784
      %10063 = vmatmul.bf16.gmra.mxu0 %v9234
      %v10064 = vpop.f32.mrf.mxu0
      %v10065 = vadd.f32 %v10052, %v10064
      %v10066 = vpop.f32.mrf.mxu0
      %10067 = vdwg.mxu0
      %10068 = vmatpush.bf16.msra.mxu0 %v9799
      %10069 = vmatpush.bf16.msra.mxu0 %v9798
      %10070 = vmatpush.bf16.msra.mxu0 %v9797
      %10071 = vmatpush.bf16.msra.mxu0 %v9796
      %10072 = vmatpush.bf16.msra.mxu0 %v9795
      %10073 = vmatpush.bf16.msra.mxu0 %v9794
      %10074 = vmatpush.bf16.msra.mxu0 %v9793
      %10075 = vmatpush.bf16.msra.mxu0 %v9792
      %10076 = vmatmul.bf16.gmra.mxu0 %v9235
      %v10077 = vpop.f32.mrf.mxu0
      %v10078 = vadd.f32 %v10065, %v10077
      %v10079 = vpop.f32.mrf.mxu0
      %10080 = vdwg.mxu0
      %10081 = vmatpush.bf16.msra.mxu0 %v9807
      %10082 = vmatpush.bf16.msra.mxu0 %v9806
      %10083 = vmatpush.bf16.msra.mxu0 %v9805
      %10084 = vmatpush.bf16.msra.mxu0 %v9804
      %10085 = vmatpush.bf16.msra.mxu0 %v9803
      %10086 = vmatpush.bf16.msra.mxu0 %v9802
      %10087 = vmatpush.bf16.msra.mxu0 %v9801
      %10088 = vmatpush.bf16.msra.mxu0 %v9800
      %10089 = vmatmul.bf16.gmra.mxu0 %v9236
      %v10090 = vpop.f32.mrf.mxu0
      %v10091 = vadd.f32 %v10078, %v10090
      %v10092 = vpop.f32.mrf.mxu0
      %10093 = vdwg.mxu0
      %10094 = vmatpush.bf16.msra.mxu0 %v9815
      %10095 = vmatpush.bf16.msra.mxu0 %v9814
      %10096 = vmatpush.bf16.msra.mxu0 %v9813
      %10097 = vmatpush.bf16.msra.mxu0 %v9812
      %10098 = vmatpush.bf16.msra.mxu0 %v9811
      %10099 = vmatpush.bf16.msra.mxu0 %v9810
      %10100 = vmatpush.bf16.msra.mxu0 %v9809
      %10101 = vmatpush.bf16.msra.mxu0 %v9808
      %10102 = vmatmul.bf16.gmra.mxu0 %v9237
      %v10103 = vpop.f32.mrf.mxu0
      %v10104 = vadd.f32 %v10091, %v10103
      %v10105 = vpop.f32.mrf.mxu0
      %10106 = vdwg.mxu0
      %10107 = vmatpush.bf16.msra.mxu0 %v9823
      %10108 = vmatpush.bf16.msra.mxu0 %v9822
      %10109 = vmatpush.bf16.msra.mxu0 %v9821
      %10110 = vmatpush.bf16.msra.mxu0 %v9820
      %10111 = vmatpush.bf16.msra.mxu0 %v9819
      %10112 = vmatpush.bf16.msra.mxu0 %v9818
      %10113 = vmatpush.bf16.msra.mxu0 %v9817
      %10114 = vmatpush.bf16.msra.mxu0 %v9816
      %10115 = vmatmul.bf16.gmra.mxu0 %v9238
      %v10116 = vpop.f32.mrf.mxu0
      %v10117 = vadd.f32 %v10104, %v10116
      %v10118 = vpop.f32.mrf.mxu0
      %10119 = vdwg.mxu0
      %10120 = vmatpush.bf16.msra.mxu0 %v9831
      %10121 = vmatpush.bf16.msra.mxu0 %v9830
      %10122 = vmatpush.bf16.msra.mxu0 %v9829
      %10123 = vmatpush.bf16.msra.mxu0 %v9828
      %10124 = vmatpush.bf16.msra.mxu0 %v9827
      %10125 = vmatpush.bf16.msra.mxu0 %v9826
      %10126 = vmatpush.bf16.msra.mxu0 %v9825
      %10127 = vmatpush.bf16.msra.mxu0 %v9824
      %10128 = vmatmul.bf16.gmra.mxu0 %v9239
      %v10129 = vpop.f32.mrf.mxu0
      %v10130 = vadd.f32 %v10117, %v10129
      %v10131 = vpop.f32.mrf.mxu0
      %10132 = vdwg.mxu0
      %10133 = vmatpush.bf16.msra.mxu0 %v9839
      %10134 = vmatpush.bf16.msra.mxu0 %v9838
      %10135 = vmatpush.bf16.msra.mxu0 %v9837
      %10136 = vmatpush.bf16.msra.mxu0 %v9836
      %10137 = vmatpush.bf16.msra.mxu0 %v9835
      %10138 = vmatpush.bf16.msra.mxu0 %v9834
      %10139 = vmatpush.bf16.msra.mxu0 %v9833
      %10140 = vmatpush.bf16.msra.mxu0 %v9832
      %10141 = vmatmul.bf16.gmra.mxu0 %v9240
      %v10142 = vpop.f32.mrf.mxu0
      %v10143 = vadd.f32 %v10130, %v10142
      %v10144 = vpop.f32.mrf.mxu0
      %10145 = vdwg.mxu0
      %10146 = vmatpush.bf16.msra.mxu0 %v9847
      %10147 = vmatpush.bf16.msra.mxu0 %v9846
      %10148 = vmatpush.bf16.msra.mxu0 %v9845
      %10149 = vmatpush.bf16.msra.mxu0 %v9844
      %10150 = vmatpush.bf16.msra.mxu0 %v9843
      %10151 = vmatpush.bf16.msra.mxu0 %v9842
      %10152 = vmatpush.bf16.msra.mxu0 %v9841
      %10153 = vmatpush.bf16.msra.mxu0 %v9840
      %10154 = vmatmul.bf16.gmra.mxu0 %v9241
      %v10155 = vpop.f32.mrf.mxu0
      %v10156 = vadd.f32 %v10143, %v10155
      %v10157 = vpop.f32.mrf.mxu0
      %10158 = vdwg.mxu0
      %10159 = vmatpush.bf16.msra.mxu0 %v9855
      %10160 = vmatpush.bf16.msra.mxu0 %v9854
      %10161 = vmatpush.bf16.msra.mxu0 %v9853
      %10162 = vmatpush.bf16.msra.mxu0 %v9852
      %10163 = vmatpush.bf16.msra.mxu0 %v9851
      %10164 = vmatpush.bf16.msra.mxu0 %v9850
      %10165 = vmatpush.bf16.msra.mxu0 %v9849
      %10166 = vmatpush.bf16.msra.mxu0 %v9848
      %10167 = vmatmul.bf16.gmra.mxu0 %v9242
      %v10168 = vpop.f32.mrf.mxu0
      %v10169 = vadd.f32 %v10156, %v10168
      %v10170 = vpop.f32.mrf.mxu0
      %10171 = vdwg.mxu0
      %10172 = vmatpush.bf16.msra.mxu0 %v9863
      %10173 = vmatpush.bf16.msra.mxu0 %v9862
      %10174 = vmatpush.bf16.msra.mxu0 %v9861
      %10175 = vmatpush.bf16.msra.mxu0 %v9860
      %10176 = vmatpush.bf16.msra.mxu0 %v9859
      %10177 = vmatpush.bf16.msra.mxu0 %v9858
      %10178 = vmatpush.bf16.msra.mxu0 %v9857
      %10179 = vmatpush.bf16.msra.mxu0 %v9856
      %10180 = vmatmul.bf16.gmra.mxu0 %v9243
      %v10181 = vpop.f32.mrf.mxu0
      %v10182 = vadd.f32 %v10169, %v10181
      %v10183 = vpop.f32.mrf.mxu0
      %10184 = vdwg.mxu0
      %10185 = vmatpush.bf16.msra.mxu0 %v9871
      %10186 = vmatpush.bf16.msra.mxu0 %v9870
      %10187 = vmatpush.bf16.msra.mxu0 %v9869
      %10188 = vmatpush.bf16.msra.mxu0 %v9868
      %10189 = vmatpush.bf16.msra.mxu0 %v9867
      %10190 = vmatpush.bf16.msra.mxu0 %v9866
      %10191 = vmatpush.bf16.msra.mxu0 %v9865
      %10192 = vmatpush.bf16.msra.mxu0 %v9864
      %10193 = vmatmul.bf16.gmra.mxu0 %v9244
      %v10194 = vpop.f32.mrf.mxu0
      %v10195 = vadd.f32 %v10182, %v10194
      %v10196 = vpop.f32.mrf.mxu0
      %10197 = vdwg.mxu0
      %10198 = vmatpush.bf16.msra.mxu0 %v9879
      %10199 = vmatpush.bf16.msra.mxu0 %v9878
      %10200 = vmatpush.bf16.msra.mxu0 %v9877
      %10201 = vmatpush.bf16.msra.mxu0 %v9876
      %10202 = vmatpush.bf16.msra.mxu0 %v9875
      %10203 = vmatpush.bf16.msra.mxu0 %v9874
      %10204 = vmatpush.bf16.msra.mxu0 %v9873
      %10205 = vmatpush.bf16.msra.mxu0 %v9872
      %10206 = vmatmul.bf16.gmra.mxu0 %v9245
      %v10207 = vpop.f32.mrf.mxu0
      %v10208 = vadd.f32 %v10195, %v10207
      %v10209 = vpop.f32.mrf.mxu0
      %10210 = vdwg.mxu0
      %10211 = vmatpush.bf16.msra.mxu0 %v9887
      %10212 = vmatpush.bf16.msra.mxu0 %v9886
      %10213 = vmatpush.bf16.msra.mxu0 %v9885
      %10214 = vmatpush.bf16.msra.mxu0 %v9884
      %10215 = vmatpush.bf16.msra.mxu0 %v9883
      %10216 = vmatpush.bf16.msra.mxu0 %v9882
      %10217 = vmatpush.bf16.msra.mxu0 %v9881
      %10218 = vmatpush.bf16.msra.mxu0 %v9880
      %10219 = vmatmul.bf16.gmra.mxu0 %v9246
      %v10220 = vpop.f32.mrf.mxu0
      %v10221 = vadd.f32 %v10208, %v10220
      %v10222 = vpop.f32.mrf.mxu0
      %10223 = vdwg.mxu0
      %v10224 = vadd.f32 %v8515, %v10221
      %v10225 = vsel %vm722, %v10224, 0.0
      %10226 = vadd.xlane.f32.xlu0 %v10225
      %v10227 = vpop.xlane.xlu0 %10226
      %v10228 = vmul.f32 %v10227, %v1112
      %v10229 = vsub.f32 %v10224, %v10228
      %v10230 = vmul.f32 %v10229, %v10229
      %v10231 = vsel %vm722, %v10230, 0.0
      %10232 = vadd.xlane.f32.xlu0 %v10231
      %v10233 = vpop.xlane.xlu0 %10232
      %v10234 = vmul.f32 %v10233, %v1112
      %v10235 = vadd.f32 %v10234, 1e-05
      %v10236 = vrsqrt.pop %v10235
      %v10237 = vmul.f32 %v10236, %v10235
      %v10238 = vmul.f32 %v10237, %v10236
      %v10239 = vmul.f32 0.5, %v10238
      %v10240 = vsub.f32 1.5, %v10239
      %v10241 = vmul.f32 %v10236, %v10240
      %vm10242 = vweird.f32 %v10235
      %vm10243 = vweird.f32 %v10236
      %vm10244 = vmor %vm10242, %vm10243
      %v10245 = vsel %vm10244, %v10236, %v10241
      %v10246 = vmul.f32 %v10229, %v10245
      %v10247 = vperm.slane %v7647, 7
      %v10248 = vmul.f32 %v10246, %v10247
      %v10249 = vperm.slane %v7648, 0
      %v10250 = vadd.f32 %v10248, %v10249
      %v10251 = vsel %vm722, %v10250, 0.0
      %10252 = vadd.xlane.f32.xlu0 %v10251
      %v10253 = vpop.xlane.xlu0 %10252
      %v10254 = vmul.f32 %v10253, %v1112
      %v10255 = vsub.f32 %v10250, %v10254
      %v10256 = vmul.f32 %v10255, %v10255
      %v10257 = vsel %vm722, %v10256, 0.0
      %10258 = vadd.xlane.f32.xlu0 %v10257
      %v10259 = vpop.xlane.xlu0 %10258
      %v10260 = vmul.f32 %v10259, %v1112
      %v10261 = vadd.f32 %v10260, 1e-05
      %v10262 = vrsqrt.pop %v10261
      %v10263 = vmul.f32 %v10262, %v10261
      %v10264 = vmul.f32 %v10263, %v10262
      %v10265 = vmul.f32 0.5, %v10264
      %v10266 = vsub.f32 1.5, %v10265
      %v10267 = vmul.f32 %v10262, %v10266
      %vm10268 = vweird.f32 %v10261
      %vm10269 = vweird.f32 %v10262
      %vm10270 = vmor %vm10268, %vm10269
      %v10271 = vsel %vm10270, %v10262, %v10267
      %v10272 = vmul.f32 %v10255, %v10271
      %v10273 = vperm.slane %v5025, 2
      %v10274 = vmul.f32 %v10272, %v10273
      %v10275 = vperm.slane %v5025, 3
      %v10276 = vadd.f32 %v10274, %v10275
      %v10277 = vld [vmem:[%s21] sm:$0xff]
      %v10278 = vld [vmem:[%s21 + $0x8] sm:$0xff]
      %v10279 = vld [vmem:[%s21 + $0x10] sm:$0xff]
      %v10280 = vld [vmem:[%s21 + $0x18] sm:$0xff]
      %v10281 = vld [vmem:[%s22] sm:$0x1]
      %v10283 = vperm.slane %v10281, 0
      %v10286 = vsel %vm722, %v10276, 0
      %10288 = vmatpush.msra.mxu0 0.0
      %10289 = vmatpush.msra.mxu0 0.0
      %10290 = vmatpush.msra.mxu0 0.0
      %10291 = vmatpush.msra.mxu0 0.0
      %10292 = vmatpush.msra.mxu0 0.0
      %10293 = vmatpush.msra.mxu0 0.0
      %10294 = vmatpush.msra.mxu0 0.0
      %10295 = vmatpush.msra.mxu0 0.0
      %10296 = vmatpush.msra.mxu0 0.0
      %10297 = vmatpush.msra.mxu0 0.0
      %10298 = vmatpush.msra.mxu0 0.0
      %10299 = vmatpush.msra.mxu0 0.0
      %10300 = vmatpush.msra.mxu0 %v10280
      %10301 = vmatpush.msra.mxu0 %v10279
      %10302 = vmatpush.msra.mxu0 %v10278
      %10303 = vmatpush.msra.mxu0 %v10277
      %10304 = vmatmul.f32.gmra.mxu0 %v10286
      %v10305 = vpop.f32.mrf.mxu0
      %v10306 = vadd.f32 %v10283, %v10305
      %10307 = vdwg.mxu0
      %10308 = vst [vmem:[%s705] sm:$0xff] %v10306
      %p10309 = scmp.lt.s32.totalorder %s34, 1
      %s10310 = scalar_select %p10309, %s34, 1
      %s10311 = smul.addr %s10310, 8
      %s10312 = scalar_lea.vmem %s23, %s10311
      // Predicated region
      $region113: #{forward.1} parent=111 // pred_check
        %p10313 = pneg %p540
      $region114: #{forward.1} parent=111 // pred_check_branch
        %10315 = sbr.rel (%p10313) target = $region116
      $region115: #{forward.1} parent=111 // pred_region
        _
      $region116: #{forward.1} parent=111 // pred_fallthru
        _
    $region112: #{forward.1} parent=5 // pred_fallthru
      _
    %p10316 = scmp.le.s32.totalorder 2, %s29
    // Predicated region
    $region117: #{forward.1} parent=5 // pred_check
      %p10317 = pneg %p10316
    $region118: #{forward.1} parent=5 // pred_check_branch
      %10319 = sbr.rel (%p10317) target = $region120
    $region119: #{forward.1} parent=5 // pred_region
      %s10320 = ssub.s32 %s29, 2
      // Predicated region
      $region121: #{forward.1} parent=119 // pred_check
        %p10321 = pneg %p546
      $region122: #{forward.1} parent=119 // pred_check_branch
        %10323 = sbr.rel (%p10321) target = $region124
      $region123: #{forward.1} parent=119 // pred_region
        %p10324 = scmp.lt.s32.totalorder %s35, 1
        %s10325 = scalar_select %p10324, %s35, 1
        %s10326 = smul.addr %s10325, 8
        %s10327 = scalar_lea.vmem %s23, %s10326
      $region124: #{forward.1} parent=119 // pred_fallthru
        _
    $region120: #{forward.1} parent=5 // pred_fallthru
      _
  $region6: #{forward.1} parent=0 // loop_footer
    %s33 = sadd.s32 1, %s29
  $region7: #{forward.1} parent=0 // loop_footer_branch
    %28 = sbr.rel target = $region3
  $region8: #{forward.1} parent=0 // loop_exit
    _

</llo_original>
